<compile_context>
chip_gen: v7x
topology: tpu7x:2x2x1
jax: 0.10.0
libtpu: 0.0.40
codegen_flags: <defaults>
</compile_context>

<pallas_src>
import functools
import math

import jax
import jax.numpy as jnp
from jax.experimental import pallas as pl
from jax.experimental.pallas import tpu as pltpu  # noqa: F401  (TPU backend)


# ----------------------------------------------------------------------------
# Kernel 1: FlexibleInputLayer (2-D path) + positional encoding
# ----------------------------------------------------------------------------
def _input_proj_kernel(x_ref, w_ref, b_ref, pe_ref, o_ref, *, batch):
    y = jnp.dot(x_ref[...], w_ref[...], preferred_element_type=jnp.float32)
    y = jnp.maximum(y + b_ref[...], 0.0)                 # relu(Linear(...))
    pe = pe_ref[...]                                     # (S, D)
    pe_full = jnp.concatenate([pe] * batch, axis=0)      # (B*S, D), b-major rows
    o_ref[...] = (y + pe_full).astype(o_ref.dtype)


# ----------------------------------------------------------------------------
# Kernel 2: fully fused TransformerEncoderLayer (post-norm, relu, eval)
# ----------------------------------------------------------------------------
def _encoder_layer_kernel(x_ref, wqkv_ref, bqkv_ref, wo_ref, bo_ref,
                          ln1_g_ref, ln1_b_ref,
                          w1_ref, b1_ref, w2_ref, b2_ref,
                          ln2_g_ref, ln2_b_ref,
                          o_ref, *, batch, seq, nhead, eps):
    x = x_ref[...]                                       # (B*S, D)
    D = x.shape[1]
    DH = D // nhead
    scale = 1.0 / math.sqrt(DH)

    # --- fused QKV projection ------------------------------------------------
    qkv = jnp.dot(x, wqkv_ref[...], preferred_element_type=jnp.float32)
    qkv = qkv + bqkv_ref[...]                            # (B*S, 3D)
    q = qkv[:, 0 * D:1 * D]
    k = qkv[:, 1 * D:2 * D]
    v = qkv[:, 2 * D:3 * D]

    # --- per-batch / per-head attention (all in-VMEM, static slices) ---------
    batch_rows = []
    for b in range(batch):
        r0, r1 = b * seq, (b + 1) * seq
        head_outs = []
        for h in range(nhead):
            c0, c1 = h * DH, (h + 1) * DH
            qh = q[r0:r1, c0:c1]                         # (S, DH)
            kh = k[r0:r1, c0:c1]
            vh = v[r0:r1, c0:c1]
            s = jnp.dot(qh, kh.T, preferred_element_type=jnp.float32) * scale
            s = s - jnp.max(s, axis=-1, keepdims=True)
            p = jnp.exp(s)
            p = p / jnp.sum(p, axis=-1, keepdims=True)
            head_outs.append(
                jnp.dot(p, vh, preferred_element_type=jnp.float32))
        batch_rows.append(jnp.concatenate(head_outs, axis=1))   # (S, D)
    attn = jnp.concatenate(batch_rows, axis=0)                  # (B*S, D)

    # --- attention output projection + residual + LayerNorm1 -----------------
    attn = jnp.dot(attn, wo_ref[...], preferred_element_type=jnp.float32)
    attn = attn + bo_ref[...]
    x = x + attn
    mean = jnp.mean(x, axis=-1, keepdims=True)
    var = jnp.mean((x - mean) ** 2, axis=-1, keepdims=True)
    x = (x - mean) * jax.lax.rsqrt(var + eps) * ln1_g_ref[...] + ln1_b_ref[...]

    # --- FFN (hidden activation never leaves the kernel) + residual + LN2 ----
    hid = jnp.dot(x, w1_ref[...], preferred_element_type=jnp.float32)
    hid = jnp.maximum(hid + b1_ref[...], 0.0)                   # (B*S, dff)
    ffn = jnp.dot(hid, w2_ref[...], preferred_element_type=jnp.float32)
    ffn = ffn + b2_ref[...]
    x = x + ffn
    mean = jnp.mean(x, axis=-1, keepdims=True)
    var = jnp.mean((x - mean) ** 2, axis=-1, keepdims=True)
    x = (x - mean) * jax.lax.rsqrt(var + eps) * ln2_g_ref[...] + ln2_b_ref[...]

    o_ref[...] = x.astype(o_ref.dtype)


# ----------------------------------------------------------------------------
# Kernel 3: whole ExplorationEncoder
# ----------------------------------------------------------------------------
def _exploration_kernel(et_ref, w1_ref, b1_ref, w2_ref, b2_ref,
                        wqkv_ref, bqkv_ref, wao_ref, bao_ref,
                        wo_ref, bo_ref, o_ref, *, batch, length, nhead):
    et = et_ref[...]                                     # (B*L, 1+hist)
    h = jnp.dot(et, w1_ref[...], preferred_element_type=jnp.float32)
    h = jnp.maximum(h + b1_ref[...], 0.0)                # (B*L, 16)
    h = jnp.dot(h, w2_ref[...], preferred_element_type=jnp.float32)
    h = jnp.maximum(h + b2_ref[...], 0.0)                # (B*L, 32)

    E = h.shape[1]
    DH = E // nhead
    scale = 1.0 / math.sqrt(DH)

    qkv = jnp.dot(h, wqkv_ref[...], preferred_element_type=jnp.float32)
    qkv = qkv + bqkv_ref[...]                            # (B*L, 3E)
    q = qkv[:, 0 * E:1 * E]
    k = qkv[:, 1 * E:2 * E]
    v = qkv[:, 2 * E:3 * E]

    batch_rows = []
    for b in range(batch):
        r0, r1 = b * length, (b + 1) * length
        head_outs = []
        for hh in range(nhead):
            c0, c1 = hh * DH, (hh + 1) * DH
            qh = q[r0:r1, c0:c1]
            kh = k[r0:r1, c0:c1]
            vh = v[r0:r1, c0:c1]
            s = jnp.dot(qh, kh.T, preferred_element_type=jnp.float32) * scale
            s = s - jnp.max(s, axis=-1, keepdims=True)
            p = jnp.exp(s)
            p = p / jnp.sum(p, axis=-1, keepdims=True)
            head_outs.append(
                jnp.dot(p, vh, preferred_element_type=jnp.float32))
        batch_rows.append(jnp.concatenate(head_outs, axis=1))   # (L, E)
    attn = jnp.concatenate(batch_rows, axis=0)                  # (B*L, E)

    attn = jnp.dot(attn, wao_ref[...], preferred_element_type=jnp.float32)
    attn = attn + bao_ref[...]

    # mean over L per batch
    pooled = jnp.concatenate(
        [jnp.mean(attn[b * length:(b + 1) * length, :], axis=0, keepdims=True)
         for b in range(batch)], axis=0)                        # (B, E)

    out = jnp.dot(pooled, wo_ref[...], preferred_element_type=jnp.float32)
    o_ref[...] = (out + bo_ref[...]).astype(o_ref.dtype)


# ----------------------------------------------------------------------------
# Kernel 4: last-token select + feature concat + actor (softmax) + critic heads
# ----------------------------------------------------------------------------
def _heads_kernel(h_ref, ef_ref, wa_ref, ba_ref, wc_ref, bc_ref,
                  probs_ref, value_ref, *, batch, seq, use_explore):
    h = h_ref[...]                                       # (B*S, D)
    last = jnp.concatenate(
        [h[(b + 1) * seq - 1:(b + 1) * seq, :] for b in range(batch)], axis=0)
    ef = ef_ref[...] if use_explore else last            # torch.cat([x, x]) path
    combined = jnp.concatenate([last, ef], axis=1)       # (B, 2D)

    logits = jnp.dot(combined, wa_ref[...], preferred_element_type=jnp.float32)
    logits = logits + ba_ref[...]
    logits = logits - jnp.max(logits, axis=-1, keepdims=True)
    e = jnp.exp(logits)
    probs_ref[...] = (e / jnp.sum(e, axis=-1, keepdims=True)).astype(
        probs_ref.dtype)

    val = jnp.dot(combined, wc_ref[...], preferred_element_type=jnp.float32)
    value_ref[...] = (val + bc_ref[...]).astype(value_ref.dtype)


# ----------------------------------------------------------------------------
# Forward pass (glue only: reshapes / slicing of params; compute in kernels)
# ----------------------------------------------------------------------------
def ppo_transformer_forward(params, x, exploration_tensor=None, *, nhead=4):
    B, S = x.shape[0], x.shape[1]
    H, W = x.shape[2], x.shape[3]
    d_model = params["fc_in_w"].shape[1]
    action_size = params["actor_w"].shape[1]

    # FlexibleInputLayer (2-D path) + PositionalEncoding, fused
    h = pl.pallas_call(
        functools.partial(_input_proj_kernel, batch=B),
        out_shape=jax.ShapeDtypeStruct((B * S, d_model), jnp.float32),
    )(x.reshape(B * S, H * W), params["fc_in_w"], params["fc_in_b"],
      params["pe"][:S])

    # TransformerEncoder: one fused kernel per layer
    for lp in params["layers"]:
        h = pl.pallas_call(
            functools.partial(_encoder_layer_kernel,
                              batch=B, seq=S, nhead=nhead, eps=1e-5),
            out_shape=jax.ShapeDtypeStruct((B * S, d_model), jnp.float32),
        )(h, lp["wqkv"], lp["bqkv"], lp["wo"], lp["bo"],
          lp["ln1_g"], lp["ln1_b"],
          lp["w1"], lp["b1"], lp["w2"], lp["b2"],
          lp["ln2_g"], lp["ln2_b"])

    use_explore = (exploration_tensor is not None
                   and exploration_tensor.ndim == 3
                   and exploration_tensor.shape[0] == B)

    if use_explore:
        ep = params["explore"]
        L = exploration_tensor.shape[1]
        F = exploration_tensor.shape[2]
        ef = pl.pallas_call(
            functools.partial(_exploration_kernel, batch=B, length=L, nhead=4),
            out_shape=jax.ShapeDtypeStruct((B, d_model), jnp.float32),
        )(exploration_tensor.reshape(B * L, F),
          ep["w1"], ep["b1"], ep["w2"], ep["b2"],
          ep["wqkv"], ep["bqkv"], ep["wao"], ep["bao"],
          ep["wo"], ep["bo"])
    else:
        ef = jnp.zeros((B, d_model), jnp.float32)        # unused inside kernel

    probs, value = pl.pallas_call(
        functools.partial(_heads_kernel, batch=B, seq=S,
                          use_explore=use_explore),
        out_shape=(jax.ShapeDtypeStruct((B, action_size), jnp.float32),
                   jax.ShapeDtypeStruct((B, 1), jnp.float32)),
    )(h, ef, params["actor_w"], params["actor_b"],
      params["critic_w"], params["critic_b"])
    return probs, value


# ----------------------------------------------------------------------------
# Deterministic synthetic parameter init (weights stored as (K, N) for x @ W)
# ----------------------------------------------------------------------------
def sinusoidal_pe(max_len, d_model):
    pos = jnp.arange(max_len, dtype=jnp.float32)[:, None]
    div = jnp.exp(jnp.arange(0, d_model, 2, dtype=jnp.float32)
                  * (-math.log(10000.0) / d_model))
    pe = jnp.zeros((max_len, d_model), jnp.float32)
    pe = pe.at[:, 0::2].set(jnp.sin(pos * div))
    pe = pe.at[:, 1::2].set(jnp.cos(pos * div))
    return pe


def init_params(key, input_shape, action_size, d_model=32, nhead=4,
                num_layers=2, dim_feedforward=2048, history_length=5,
                max_len=64):
    keys = list(jax.random.split(key, 64))
    it = iter(keys)

    def dense(fan_in, fan_out):
        kw, kb = jax.random.split(next(it))
        lim = 1.0 / math.sqrt(fan_in)
        w = jax.random.uniform(kw, (fan_in, fan_out), jnp.float32, -lim, lim)
        b = jax.random.uniform(kb, (1, fan_out), jnp.float32, -lim, lim)
        return w, b

    def attn_params(D):
        wq, bq = dense(D, D)
        wk, bk = dense(D, D)
        wv, bv = dense(D, D)
        wo, bo = dense(D, D)
        return dict(wqkv=jnp.concatenate([wq, wk, wv], axis=1),
                    bqkv=jnp.concatenate([bq, bk, bv], axis=1),
                    wo=wo, bo=bo)

    H, W = input_shape
    fc_in_w, fc_in_b = dense(H * W, d_model)

    layers = []
    for _ in range(num_layers):
        ap = attn_params(d_model)
        w1, b1 = dense(d_model, dim_feedforward)
        w2, b2 = dense(dim_feedforward, d_model)
        layers.append(dict(
            wqkv=ap["wqkv"], bqkv=ap["bqkv"], wo=ap["wo"], bo=ap["bo"],
            ln1_g=jnp.ones((1, d_model), jnp.float32),
            ln1_b=jnp.zeros((1, d_model), jnp.float32),
            w1=w1, b1=b1, w2=w2, b2=b2,
            ln2_g=jnp.ones((1, d_model), jnp.float32),
            ln2_b=jnp.zeros((1, d_model), jnp.float32),
        ))

    ew1, eb1 = dense(1 + history_length, 16)
    ew2, eb2 = dense(16, 32)
    eap = attn_params(32)
    ewo, ebo = dense(32, d_model)
    explore = dict(w1=ew1, b1=eb1, w2=ew2, b2=eb2,
                   wqkv=eap["wqkv"], bqkv=eap["bqkv"],
                   wao=eap["wo"], bao=eap["bo"],
                   wo=ewo, bo=ebo)

    actor_w, actor_b = dense(2 * d_model, action_size)
    critic_w, critic_b = dense(2 * d_model, 1)

    return dict(
        fc_in_w=fc_in_w, fc_in_b=fc_in_b,
        pe=sinusoidal_pe(max_len, d_model),
        layers=layers,
        explore=explore,
        actor_w=actor_w, actor_b=actor_b,
        critic_w=critic_w, critic_b=critic_b,
    )


# ----------------------------------------------------------------------------
# Main
# ----------------------------------------------------------------------------
if __name__ == "__main__":
    B, S = 2, 8
    input_shape = (16, 16)          # 2-D FlexibleInputLayer path
    action_size = 6
    d_model, nhead, num_layers = 32, 4, 2
    history_length = 5
    L_explore = 4

    root = jax.random.PRNGKey(0)
    k_params, k_x, k_e = jax.random.split(root, 3)

    params = init_params(k_params, input_shape, action_size,
                         d_model=d_model, nhead=nhead, num_layers=num_layers,
                         history_length=history_length)

    x = jax.random.normal(k_x, (B, S, *input_shape), jnp.float32)
    exploration_tensor = jax.random.normal(
        k_e, (B, L_explore, 1 + history_length), jnp.float32)

    fwd = jax.jit(functools.partial(ppo_transformer_forward, nhead=nhead))
    action_probs, value = fwd(params, x, exploration_tensor)
    action_probs = jax.block_until_ready(action_probs)
    value = jax.block_until_ready(value)

    assert action_probs.shape == (B, action_size)
    assert value.shape == (B, 1)
    assert jnp.allclose(jnp.sum(action_probs, axis=-1), 1.0, atol=1e-5)
    assert bool(jnp.all(jnp.isfinite(action_probs)))
    assert bool(jnp.all(jnp.isfinite(value)))

    print("KERNEL_OK")
</pallas_src>

<mosaic_0001>
module attributes {stable_mosaic.version = 11 : i64} {
  func.func @_input_proj_kernel(%arg0: memref<16x256xf32, #tpu.memory_space<vmem>>, %arg1: memref<256x32xf32, #tpu.memory_space<vmem>>, %arg2: memref<1x32xf32, #tpu.memory_space<vmem>>, %arg3: memref<8x32xf32, #tpu.memory_space<vmem>>, %arg4: memref<16x32xf32, #tpu.memory_space<vmem>>) attributes {dimension_semantics = [], scalar_prefetch = 0 : i64, scratch_operands = 0 : i64, tpu.core_type = #tpu.core_type<tc>} {
    %c0 = arith.constant 0 : index
    %c0_0 = arith.constant 0 : index
    %0 = vector.load %arg0[%c0, %c0_0] : memref<16x256xf32, #tpu.memory_space<vmem>>, vector<16x256xf32>
    %c0_1 = arith.constant 0 : index
    %c0_2 = arith.constant 0 : index
    %1 = vector.load %arg1[%c0_1, %c0_2] : memref<256x32xf32, #tpu.memory_space<vmem>>, vector<256x32xf32>
    %cst = arith.constant dense<0.000000e+00> : vector<16x32xf32>
    %2 = tpu.matmul %0, %1, %cst {dimension_numbers = #tpu.dot_dimension_numbers<[1], [0], [0], [1], [0, 0, 1, 1], [], []>} : vector<16x256xf32>, vector<256x32xf32>, vector<16x32xf32> -> vector<16x32xf32>
    %c0_3 = arith.constant 0 : index
    %c0_4 = arith.constant 0 : index
    %3 = vector.load %arg2[%c0_3, %c0_4] : memref<1x32xf32, #tpu.memory_space<vmem>>, vector<1x32xf32>
    %4 = vector.broadcast %3 : vector<1x32xf32> to vector<16x32xf32>
    %5 = arith.addf %2, %4 : vector<16x32xf32>
    %cst_5 = arith.constant 0.000000e+00 : f32
    %6 = vector.broadcast %cst_5 : f32 to vector<16x32xf32>
    %7 = arith.maximumf %5, %6 : vector<16x32xf32>
    %c0_6 = arith.constant 0 : index
    %c0_7 = arith.constant 0 : index
    %8 = vector.load %arg3[%c0_6, %c0_7] : memref<8x32xf32, #tpu.memory_space<vmem>>, vector<8x32xf32>
    %9 = tpu.concatenate %8, %8 in 0 : vector<8x32xf32>, vector<8x32xf32> -> vector<16x32xf32>
    %10 = arith.addf %7, %9 : vector<16x32xf32>
    %c0_8 = arith.constant 0 : index
    %c0_9 = arith.constant 0 : index
    %11 = vector.load %arg4[%c0_8, %c0_9] : memref<16x32xf32, #tpu.memory_space<vmem>>, vector<16x32xf32>
    tpu.vector_store %arg4[%c0_8, %c0_9], %10 {strides = array<i32>} : memref<16x32xf32, #tpu.memory_space<vmem>>, vector<16x32xf32>,
    return
  }
}

module attributes {stable_mosaic.version = 11 : i64} {
  func.func @_exploration_kernel(%arg0: memref<8x6xf32, #tpu.memory_space<vmem>>, %arg1: memref<6x16xf32, #tpu.memory_space<vmem>>, %arg2: memref<1x16xf32, #tpu.memory_space<vmem>>, %arg3: memref<16x32xf32, #tpu.memory_space<vmem>>, %arg4: memref<1x32xf32, #tpu.memory_space<vmem>>, %arg5: memref<32x96xf32, #tpu.memory_space<vmem>>, %arg6: memref<1x96xf32, #tpu.memory_space<vmem>>, %arg7: memref<32x32xf32, #tpu.memory_space<vmem>>, %arg8: memref<1x32xf32, #tpu.memory_space<vmem>>, %arg9: memref<32x32xf32, #tpu.memory_space<vmem>>, %arg10: memref<1x32xf32, #tpu.memory_space<vmem>>, %arg11: memref<2x32xf32, #tpu.memory_space<vmem>>) attributes {dimension_semantics = [], scalar_prefetch = 0 : i64, scratch_operands = 0 : i64, tpu.core_type = #tpu.core_type<tc>} {
    %c0 = arith.constant 0 : index
    %c0_0 = arith.constant 0 : index
    %0 = vector.load %arg0[%c0, %c0_0] : memref<8x6xf32, #tpu.memory_space<vmem>>, vector<8x6xf32>
    %c0_1 = arith.constant 0 : index
    %c0_2 = arith.constant 0 : index
    %1 = vector.load %arg1[%c0_1, %c0_2] : memref<6x16xf32, #tpu.memory_space<vmem>>, vector<6x16xf32>
    %cst = arith.constant dense<0.000000e+00> : vector<8x16xf32>
    %2 = tpu.matmul %0, %1, %cst {dimension_numbers = #tpu.dot_dimension_numbers<[1], [0], [0], [1], [0, 0, 1, 1], [], []>} : vector<8x6xf32>, vector<6x16xf32>, vector<8x16xf32> -> vector<8x16xf32>
    %c0_3 = arith.constant 0 : index
    %c0_4 = arith.constant 0 : index
    %3 = vector.load %arg2[%c0_3, %c0_4] : memref<1x16xf32, #tpu.memory_space<vmem>>, vector<1x16xf32>
    %4 = vector.broadcast %3 : vector<1x16xf32> to vector<8x16xf32>
    %5 = arith.addf %2, %4 : vector<8x16xf32>
    %cst_5 = arith.constant 0.000000e+00 : f32
    %6 = vector.broadcast %cst_5 : f32 to vector<8x16xf32>
    %7 = arith.maximumf %5, %6 : vector<8x16xf32>
    %c0_6 = arith.constant 0 : index
    %c0_7 = arith.constant 0 : index
    %8 = vector.load %arg3[%c0_6, %c0_7] : memref<16x32xf32, #tpu.memory_space<vmem>>, vector<16x32xf32>
    %cst_8 = arith.constant dense<0.000000e+00> : vector<8x32xf32>
    %9 = tpu.matmul %7, %8, %cst_8 {dimension_numbers = #tpu.dot_dimension_numbers<[1], [0], [0], [1], [0, 0, 1, 1], [], []>} : vector<8x16xf32>, vector<16x32xf32>, vector<8x32xf32> -> vector<8x32xf32>
    %c0_9 = arith.constant 0 : index
    %c0_10 = arith.constant 0 : index
    %10 = vector.load %arg4[%c0_9, %c0_10] : memref<1x32xf32, #tpu.memory_space<vmem>>, vector<1x32xf32>
    %11 = vector.broadcast %10 : vector<1x32xf32> to vector<8x32xf32>
    %12 = arith.addf %9, %11 : vector<8x32xf32>
    %cst_11 = arith.constant 0.000000e+00 : f32
    %13 = vector.broadcast %cst_11 : f32 to vector<8x32xf32>
    %14 = arith.maximumf %12, %13 : vector<8x32xf32>
    %c0_12 = arith.constant 0 : index
    %c0_13 = arith.constant 0 : index
    %15 = vector.load %arg5[%c0_12, %c0_13] : memref<32x96xf32, #tpu.memory_space<vmem>>, vector<32x96xf32>
    %cst_14 = arith.constant dense<0.000000e+00> : vector<8x96xf32>
    %16 = tpu.matmul %14, %15, %cst_14 {dimension_numbers = #tpu.dot_dimension_numbers<[1], [0], [0], [1], [0, 0, 1, 1], [], []>} : vector<8x32xf32>, vector<32x96xf32>, vector<8x96xf32> -> vector<8x96xf32>
    %c0_15 = arith.constant 0 : index
    %c0_16 = arith.constant 0 : index
    %17 = vector.load %arg6[%c0_15, %c0_16] : memref<1x96xf32, #tpu.memory_space<vmem>>, vector<1x96xf32>
    %18 = vector.broadcast %17 : vector<1x96xf32> to vector<8x96xf32>
    %19 = arith.addf %16, %18 : vector<8x96xf32>
    %20 = vector.extract_strided_slice %19 {offsets = [0, 0], sizes = [8, 32], strides = [1, 1]} : vector<8x96xf32> to vector<8x32xf32>
    %21 = vector.extract_strided_slice %19 {offsets = [0, 32], sizes = [8, 32], strides = [1, 1]} : vector<8x96xf32> to vector<8x32xf32>
    %22 = vector.extract_strided_slice %19 {offsets = [0, 64], sizes = [8, 32], strides = [1, 1]} : vector<8x96xf32> to vector<8x32xf32>
    %23 = vector.extract_strided_slice %20 {offsets = [0, 0], sizes = [4, 8], strides = [1, 1]} : vector<8x32xf32> to vector<4x8xf32>
    %24 = vector.extract_strided_slice %21 {offsets = [0, 0], sizes = [4, 8], strides = [1, 1]} : vector<8x32xf32> to vector<4x8xf32>
    %25 = vector.extract_strided_slice %22 {offsets = [0, 0], sizes = [4, 8], strides = [1, 1]} : vector<8x32xf32> to vector<4x8xf32>
    %26 = tpu.transpose %24, [1, 0] : vector<4x8xf32> -> vector<8x4xf32>
    %cst_17 = arith.constant dense<0.000000e+00> : vector<4x4xf32>
    %27 = tpu.matmul %23, %26, %cst_17 {dimension_numbers = #tpu.dot_dimension_numbers<[1], [0], [0], [1], [0, 0, 1, 1], [], []>} : vector<4x8xf32>, vector<8x4xf32>, vector<4x4xf32> -> vector<4x4xf32>
    %cst_18 = arith.constant 0.353553385 : f32
    %28 = vector.broadcast %cst_18 : f32 to vector<4x4xf32>
    %29 = arith.mulf %27, %28 : vector<4x4xf32>
    %cst_19 = arith.constant dense<0xFF800000> : vector<4xf32>
    %30 = vector.multi_reduction <maximumf>, %29, %cst_19 [1] : vector<4x4xf32> to vector<4xf32>
    %31 = vector.shape_cast %30 : vector<4xf32> to vector<4x1xf32>
    %32 = vector.broadcast %31 : vector<4x1xf32> to vector<4x4xf32>
    %33 = arith.subf %29, %32 : vector<4x4xf32>
    %34 = math.exp %33 : vector<4x4xf32>
    %cst_20 = arith.constant dense<0.000000e+00> : vector<4xf32>
    %35 = vector.multi_reduction <add>, %34, %cst_20 [1] : vector<4x4xf32> to vector<4xf32>
    %36 = vector.shape_cast %35 : vector<4xf32> to vector<4x1xf32>
    %37 = vector.broadcast %36 : vector<4x1xf32> to vector<4x4xf32>
    %38 = arith.divf %34, %37 : vector<4x4xf32>
    %cst_21 = arith.constant dense<0.000000e+00> : vector<4x8xf32>
    %39 = tpu.matmul %38, %25, %cst_21 {dimension_numbers = #tpu.dot_dimension_numbers<[1], [0], [0], [1], [0, 0, 1, 1], [], []>} : vector<4x4xf32>, vector<4x8xf32>, vector<4x8xf32> -> vector<4x8xf32>
    %40 = vector.extract_strided_slice %20 {offsets = [0, 8], sizes = [4, 8], strides = [1, 1]} : vector<8x32xf32> to vector<4x8xf32>
    %41 = vector.extract_strided_slice %21 {offsets = [0, 8], sizes = [4, 8], strides = [1, 1]} : vector<8x32xf32> to vector<4x8xf32>
    %42 = vector.extract_strided_slice %22 {offsets = [0, 8], sizes = [4, 8], strides = [1, 1]} : vector<8x32xf32> to vector<4x8xf32>
    %43 = tpu.transpose %41, [1, 0] : vector<4x8xf32> -> vector<8x4xf32>
    %cst_22 = arith.constant dense<0.000000e+00> : vector<4x4xf32>
    %44 = tpu.matmul %40, %43, %cst_22 {dimension_numbers = #tpu.dot_dimension_numbers<[1], [0], [0], [1], [0, 0, 1, 1], [], []>} : vector<4x8xf32>, vector<8x4xf32>, vector<4x4xf32> -> vector<4x4xf32>
    %cst_23 = arith.constant 0.353553385 : f32
    %45 = vector.broadcast %cst_23 : f32 to vector<4x4xf32>
    %46 = arith.mulf %44, %45 : vector<4x4xf32>
    %cst_24 = arith.constant dense<0xFF800000> : vector<4xf32>
    %47 = vector.multi_reduction <maximumf>, %46, %cst_24 [1] : vector<4x4xf32> to vector<4xf32>
    %48 = vector.shape_cast %47 : vector<4xf32> to vector<4x1xf32>
    %49 = vector.broadcast %48 : vector<4x1xf32> to vector<4x4xf32>
    %50 = arith.subf %46, %49 : vector<4x4xf32>
    %51 = math.exp %50 : vector<4x4xf32>
    %cst_25 = arith.constant dense<0.000000e+00> : vector<4xf32>
    %52 = vector.multi_reduction <add>, %51, %cst_25 [1] : vector<4x4xf32> to vector<4xf32>
    %53 = vector.shape_cast %52 : vector<4xf32> to vector<4x1xf32>
    %54 = vector.broadcast %53 : vector<4x1xf32> to vector<4x4xf32>
    %55 = arith.divf %51, %54 : vector<4x4xf32>
    %cst_26 = arith.constant dense<0.000000e+00> : vector<4x8xf32>
    %56 = tpu.matmul %55, %42, %cst_26 {dimension_numbers = #tpu.dot_dimension_numbers<[1], [0], [0], [1], [0, 0, 1, 1], [], []>} : vector<4x4xf32>, vector<4x8xf32>, vector<4x8xf32> -> vector<4x8xf32>
    %57 = vector.extract_strided_slice %20 {offsets = [0, 16], sizes = [4, 8], strides = [1, 1]} : vector<8x32xf32> to vector<4x8xf32>
    %58 = vector.extract_strided_slice %21 {offsets = [0, 16], sizes = [4, 8], strides = [1, 1]} : vector<8x32xf32> to vector<4x8xf32>
    %59 = vector.extract_strided_slice %22 {offsets = [0, 16], sizes = [4, 8], strides = [1, 1]} : vector<8x32xf32> to vector<4x8xf32>
    %60 = tpu.transpose %58, [1, 0] : vector<4x8xf32> -> vector<8x4xf32>
    %cst_27 = arith.constant dense<0.000000e+00> : vector<4x4xf32>
    %61 = tpu.matmul %57, %60, %cst_27 {dimension_numbers = #tpu.dot_dimension_numbers<[1], [0], [0], [1], [0, 0, 1, 1], [], []>} : vector<4x8xf32>, vector<8x4xf32>, vector<4x4xf32> -> vector<4x4xf32>
    %cst_28 = arith.constant 0.353553385 : f32
    %62 = vector.broadcast %cst_28 : f32 to vector<4x4xf32>
    %63 = arith.mulf %61, %62 : vector<4x4xf32>
    %cst_29 = arith.constant dense<0xFF800000> : vector<4xf32>
    %64 = vector.multi_reduction <maximumf>, %63, %cst_29 [1] : vector<4x4xf32> to vector<4xf32>
    %65 = vector.shape_cast %64 : vector<4xf32> to vector<4x1xf32>
    %66 = vector.broadcast %65 : vector<4x1xf32> to vector<4x4xf32>
    %67 = arith.subf %63, %66 : vector<4x4xf32>
    %68 = math.exp %67 : vector<4x4xf32>
    %cst_30 = arith.constant dense<0.000000e+00> : vector<4xf32>
    %69 = vector.multi_reduction <add>, %68, %cst_30 [1] : vector<4x4xf32> to vector<4xf32>
    %70 = vector.shape_cast %69 : vector<4xf32> to vector<4x1xf32>
    %71 = vector.broadcast %70 : vector<4x1xf32> to vector<4x4xf32>
    %72 = arith.divf %68, %71 : vector<4x4xf32>
    %cst_31 = arith.constant dense<0.000000e+00> : vector<4x8xf32>
    %73 = tpu.matmul %72, %59, %cst_31 {dimension_numbers = #tpu.dot_dimension_numbers<[1], [0], [0], [1], [0, 0, 1, 1], [], []>} : vector<4x4xf32>, vector<4x8xf32>, vector<4x8xf32> -> vector<4x8xf32>
    %74 = vector.extract_strided_slice %20 {offsets = [0, 24], sizes = [4, 8], strides = [1, 1]} : vector<8x32xf32> to vector<4x8xf32>
    %75 = vector.extract_strided_slice %21 {offsets = [0, 24], sizes = [4, 8], strides = [1, 1]} : vector<8x32xf32> to vector<4x8xf32>
    %76 = vector.extract_strided_slice %22 {offsets = [0, 24], sizes = [4, 8], strides = [1, 1]} : vector<8x32xf32> to vector<4x8xf32>
    %77 = tpu.transpose %75, [1, 0] : vector<4x8xf32> -> vector<8x4xf32>
    %cst_32 = arith.constant dense<0.000000e+00> : vector<4x4xf32>
    %78 = tpu.matmul %74, %77, %cst_32 {dimension_numbers = #tpu.dot_dimension_numbers<[1], [0], [0], [1], [0, 0, 1, 1], [], []>} : vector<4x8xf32>, vector<8x4xf32>, vector<4x4xf32> -> vector<4x4xf32>
    %cst_33 = arith.constant 0.353553385 : f32
    %79 = vector.broadcast %cst_33 : f32 to vector<4x4xf32>
    %80 = arith.mulf %78, %79 : vector<4x4xf32>
    %cst_34 = arith.constant dense<0xFF800000> : vector<4xf32>
    %81 = vector.multi_reduction <maximumf>, %80, %cst_34 [1] : vector<4x4xf32> to vector<4xf32>
    %82 = vector.shape_cast %81 : vector<4xf32> to vector<4x1xf32>
    %83 = vector.broadcast %82 : vector<4x1xf32> to vector<4x4xf32>
    %84 = arith.subf %80, %83 : vector<4x4xf32>
    %85 = math.exp %84 : vector<4x4xf32>
    %cst_35 = arith.constant dense<0.000000e+00> : vector<4xf32>
    %86 = vector.multi_reduction <add>, %85, %cst_35 [1] : vector<4x4xf32> to vector<4xf32>
    %87 = vector.shape_cast %86 : vector<4xf32> to vector<4x1xf32>
    %88 = vector.broadcast %87 : vector<4x1xf32> to vector<4x4xf32>
    %89 = arith.divf %85, %88 : vector<4x4xf32>
    %cst_36 = arith.constant dense<0.000000e+00> : vector<4x8xf32>
    %90 = tpu.matmul %89, %76, %cst_36 {dimension_numbers = #tpu.dot_dimension_numbers<[1], [0], [0], [1], [0, 0, 1, 1], [], []>} : vector<4x4xf32>, vector<4x8xf32>, vector<4x8xf32> -> vector<4x8xf32>
    %91 = tpu.concatenate %39, %56, %73, %90 in 1 : vector<4x8xf32>, vector<4x8xf32>, vector<4x8xf32>, vector<4x8xf32> -> vector<4x32xf32>
    %92 = vector.extract_strided_slice %20 {offsets = [4, 0], sizes = [4, 8], strides = [1, 1]} : vector<8x32xf32> to vector<4x8xf32>
    %93 = vector.extract_strided_slice %21 {offsets = [4, 0], sizes = [4, 8], strides = [1, 1]} : vector<8x32xf32> to vector<4x8xf32>
    %94 = vector.extract_strided_slice %22 {offsets = [4, 0], sizes = [4, 8], strides = [1, 1]} : vector<8x32xf32> to vector<4x8xf32>
    %95 = tpu.transpose %93, [1, 0] : vector<4x8xf32> -> vector<8x4xf32>
    %cst_37 = arith.constant dense<0.000000e+00> : vector<4x4xf32>
    %96 = tpu.matmul %92, %95, %cst_37 {dimension_numbers = #tpu.dot_dimension_numbers<[1], [0], [0], [1], [0, 0, 1, 1], [], []>} : vector<4x8xf32>, vector<8x4xf32>, vector<4x4xf32> -> vector<4x4xf32>
    %cst_38 = arith.constant 0.353553385 : f32
    %97 = vector.broadcast %cst_38 : f32 to vector<4x4xf32>
    %98 = arith.mulf %96, %97 : vector<4x4xf32>
    %cst_39 = arith.constant dense<0xFF800000> : vector<4xf32>
    %99 = vector.multi_reduction <maximumf>, %98, %cst_39 [1] : vector<4x4xf32> to vector<4xf32>
    %100 = vector.shape_cast %99 : vector<4xf32> to vector<4x1xf32>
    %101 = vector.broadcast %100 : vector<4x1xf32> to vector<4x4xf32>
    %102 = arith.subf %98, %101 : vector<4x4xf32>
    %103 = math.exp %102 : vector<4x4xf32>
    %cst_40 = arith.constant dense<0.000000e+00> : vector<4xf32>
    %104 = vector.multi_reduction <add>, %103, %cst_40 [1] : vector<4x4xf32> to vector<4xf32>
    %105 = vector.shape_cast %104 : vector<4xf32> to vector<4x1xf32>
    %106 = vector.broadcast %105 : vector<4x1xf32> to vector<4x4xf32>
    %107 = arith.divf %103, %106 : vector<4x4xf32>
    %cst_41 = arith.constant dense<0.000000e+00> : vector<4x8xf32>
    %108 = tpu.matmul %107, %94, %cst_41 {dimension_numbers = #tpu.dot_dimension_numbers<[1], [0], [0], [1], [0, 0, 1, 1], [], []>} : vector<4x4xf32>, vector<4x8xf32>, vector<4x8xf32> -> vector<4x8xf32>
    %109 = vector.extract_strided_slice %20 {offsets = [4, 8], sizes = [4, 8], strides = [1, 1]} : vector<8x32xf32> to vector<4x8xf32>
    %110 = vector.extract_strided_slice %21 {offsets = [4, 8], sizes = [4, 8], strides = [1, 1]} : vector<8x32xf32> to vector<4x8xf32>
    %111 = vector.extract_strided_slice %22 {offsets = [4, 8], sizes = [4, 8], strides = [1, 1]} : vector<8x32xf32> to vector<4x8xf32>
    %112 = tpu.transpose %110, [1, 0] : vector<4x8xf32> -> vector<8x4xf32>
    %cst_42 = arith.constant dense<0.000000e+00> : vector<4x4xf32>
    %113 = tpu.matmul %109, %112, %cst_42 {dimension_numbers = #tpu.dot_dimension_numbers<[1], [0], [0], [1], [0, 0, 1, 1], [], []>} : vector<4x8xf32>, vector<8x4xf32>, vector<4x4xf32> -> vector<4x4xf32>
    %cst_43 = arith.constant 0.353553385 : f32
    %114 = vector.broadcast %cst_43 : f32 to vector<4x4xf32>
    %115 = arith.mulf %113, %114 : vector<4x4xf32>
    %cst_44 = arith.constant dense<0xFF800000> : vector<4xf32>
    %116 = vector.multi_reduction <maximumf>, %115, %cst_44 [1] : vector<4x4xf32> to vector<4xf32>
    %117 = vector.shape_cast %116 : vector<4xf32> to vector<4x1xf32>
    %118 = vector.broadcast %117 : vector<4x1xf32> to vector<4x4xf32>
    %119 = arith.subf %115, %118 : vector<4x4xf32>
    %120 = math.exp %119 : vector<4x4xf32>
    %cst_45 = arith.constant dense<0.000000e+00> : vector<4xf32>
    %121 = vector.multi_reduction <add>, %120, %cst_45 [1] : vector<4x4xf32> to vector<4xf32>
    %122 = vector.shape_cast %121 : vector<4xf32> to vector<4x1xf32>
    %123 = vector.broadcast %122 : vector<4x1xf32> to vector<4x4xf32>
    %124 = arith.divf %120, %123 : vector<4x4xf32>
    %cst_46 = arith.constant dense<0.000000e+00> : vector<4x8xf32>
    %125 = tpu.matmul %124, %111, %cst_46 {dimension_numbers = #tpu.dot_dimension_numbers<[1], [0], [0], [1], [0, 0, 1, 1], [], []>} : vector<4x4xf32>, vector<4x8xf32>, vector<4x8xf32> -> vector<4x8xf32>
    %126 = vector.extract_strided_slice %20 {offsets = [4, 16], sizes = [4, 8], strides = [1, 1]} : vector<8x32xf32> to vector<4x8xf32>
    %127 = vector.extract_strided_slice %21 {offsets = [4, 16], sizes = [4, 8], strides = [1, 1]} : vector<8x32xf32> to vector<4x8xf32>
    %128 = vector.extract_strided_slice %22 {offsets = [4, 16], sizes = [4, 8], strides = [1, 1]} : vector<8x32xf32> to vector<4x8xf32>
    %129 = tpu.transpose %127, [1, 0] : vector<4x8xf32> -> vector<8x4xf32>
    %cst_47 = arith.constant dense<0.000000e+00> : vector<4x4xf32>
    %130 = tpu.matmul %126, %129, %cst_47 {dimension_numbers = #tpu.dot_dimension_numbers<[1], [0], [0], [1], [0, 0, 1, 1], [], []>} : vector<4x8xf32>, vector<8x4xf32>, vector<4x4xf32> -> vector<4x4xf32>
    %cst_48 = arith.constant 0.353553385 : f32
    %131 = vector.broadcast %cst_48 : f32 to vector<4x4xf32>
    %132 = arith.mulf %130, %131 : vector<4x4xf32>
    %cst_49 = arith.constant dense<0xFF800000> : vector<4xf32>
    %133 = vector.multi_reduction <maximumf>, %132, %cst_49 [1] : vector<4x4xf32> to vector<4xf32>
    %134 = vector.shape_cast %133 : vector<4xf32> to vector<4x1xf32>
    %135 = vector.broadcast %134 : vector<4x1xf32> to vector<4x4xf32>
    %136 = arith.subf %132, %135 : vector<4x4xf32>
    %137 = math.exp %136 : vector<4x4xf32>
    %cst_50 = arith.constant dense<0.000000e+00> : vector<4xf32>
    %138 = vector.multi_reduction <add>, %137, %cst_50 [1] : vector<4x4xf32> to vector<4xf32>
    %139 = vector.shape_cast %138 : vector<4xf32> to vector<4x1xf32>
    %140 = vector.broadcast %139 : vector<4x1xf32> to vector<4x4xf32>
    %141 = arith.divf %137, %140 : vector<4x4xf32>
    %cst_51 = arith.constant dense<0.000000e+00> : vector<4x8xf32>
    %142 = tpu.matmul %141, %128, %cst_51 {dimension_numbers = #tpu.dot_dimension_numbers<[1], [0], [0], [1], [0, 0, 1, 1], [], []>} : vector<4x4xf32>, vector<4x8xf32>, vector<4x8xf32> -> vector<4x8xf32>
    %143 = vector.extract_strided_slice %20 {offsets = [4, 24], sizes = [4, 8], strides = [1, 1]} : vector<8x32xf32> to vector<4x8xf32>
    %144 = vector.extract_strided_slice %21 {offsets = [4, 24], sizes = [4, 8], strides = [1, 1]} : vector<8x32xf32> to vector<4x8xf32>
    %145 = vector.extract_strided_slice %22 {offsets = [4, 24], sizes = [4, 8], strides = [1, 1]} : vector<8x32xf32> to vector<4x8xf32>
    %146 = tpu.transpose %144, [1, 0] : vector<4x8xf32> -> vector<8x4xf32>
    %cst_52 = arith.constant dense<0.000000e+00> : vector<4x4xf32>
    %147 = tpu.matmul %143, %146, %cst_52 {dimension_numbers = #tpu.dot_dimension_numbers<[1], [0], [0], [1], [0, 0, 1, 1], [], []>} : vector<4x8xf32>, vector<8x4xf32>, vector<4x4xf32> -> vector<4x4xf32>
    %cst_53 = arith.constant 0.353553385 : f32
    %148 = vector.broadcast %cst_53 : f32 to vector<4x4xf32>
    %149 = arith.mulf %147, %148 : vector<4x4xf32>
    %cst_54 = arith.constant dense<0xFF800000> : vector<4xf32>
    %150 = vector.multi_reduction <maximumf>, %149, %cst_54 [1] : vector<4x4xf32> to vector<4xf32>
    %151 = vector.shape_cast %150 : vector<4xf32> to vector<4x1xf32>
    %152 = vector.broadcast %151 : vector<4x1xf32> to vector<4x4xf32>
    %153 = arith.subf %149, %152 : vector<4x4xf32>
    %154 = math.exp %153 : vector<4x4xf32>
    %cst_55 = arith.constant dense<0.000000e+00> : vector<4xf32>
    %155 = vector.multi_reduction <add>, %154, %cst_55 [1] : vector<4x4xf32> to vector<4xf32>
    %156 = vector.shape_cast %155 : vector<4xf32> to vector<4x1xf32>
    %157 = vector.broadcast %156 : vector<4x1xf32> to vector<4x4xf32>
    %158 = arith.divf %154, %157 : vector<4x4xf32>
    %cst_56 = arith.constant dense<0.000000e+00> : vector<4x8xf32>
    %159 = tpu.matmul %158, %145, %cst_56 {dimension_numbers = #tpu.dot_dimension_numbers<[1], [0], [0], [1], [0, 0, 1, 1], [], []>} : vector<4x4xf32>, vector<4x8xf32>, vector<4x8xf32> -> vector<4x8xf32>
    %160 = tpu.concatenate %108, %125, %142, %159 in 1 : vector<4x8xf32>, vector<4x8xf32>, vector<4x8xf32>, vector<4x8xf32> -> vector<4x32xf32>
    %161 = tpu.concatenate %91, %160 in 0 : vector<4x32xf32>, vector<4x32xf32> -> vector<8x32xf32>
    %c0_57 = arith.constant 0 : index
    %c0_58 = arith.constant 0 : index
    %162 = vector.load %arg7[%c0_57, %c0_58] : memref<32x32xf32, #tpu.memory_space<vmem>>, vector<32x32xf32>
    %cst_59 = arith.constant dense<0.000000e+00> : vector<8x32xf32>
    %163 = tpu.matmul %161, %162, %cst_59 {dimension_numbers = #tpu.dot_dimension_numbers<[1], [0], [0], [1], [0, 0, 1, 1], [], []>} : vector<8x32xf32>, vector<32x32xf32>, vector<8x32xf32> -> vector<8x32xf32>
    %c0_60 = arith.constant 0 : index
    %c0_61 = arith.constant 0 : index
    %164 = vector.load %arg8[%c0_60, %c0_61] : memref<1x32xf32, #tpu.memory_space<vmem>>, vector<1x32xf32>
    %165 = vector.broadcast %164 : vector<1x32xf32> to vector<8x32xf32>
    %166 = arith.addf %163, %165 : vector<8x32xf32>
    %167 = vector.extract_strided_slice %166 {offsets = [0, 0], sizes = [4, 32], strides = [1, 1]} : vector<8x32xf32> to vector<4x32xf32>
    %cst_62 = arith.constant dense<0.000000e+00> : vector<32xf32>
    %168 = vector.multi_reduction <add>, %167, %cst_62 [0] : vector<4x32xf32> to vector<32xf32>
    %169 = vector.shape_cast %168 : vector<32xf32> to vector<1x32xf32>
    %cst_63 = arith.constant 4.000000e+00 : f32
    %170 = vector.broadcast %cst_63 : f32 to vector<1x32xf32>
    %171 = arith.divf %169, %170 : vector<1x32xf32>
    %172 = vector.extract_strided_slice %166 {offsets = [4, 0], sizes = [4, 32], strides = [1, 1]} : vector<8x32xf32> to vector<4x32xf32>
    %cst_64 = arith.constant dense<0.000000e+00> : vector<32xf32>
    %173 = vector.multi_reduction <add>, %172, %cst_64 [0] : vector<4x32xf32> to vector<32xf32>
    %174 = vector.shape_cast %173 : vector<32xf32> to vector<1x32xf32>
    %cst_65 = arith.constant 4.000000e+00 : f32
    %175 = vector.broadcast %cst_65 : f32 to vector<1x32xf32>
    %176 = arith.divf %174, %175 : vector<1x32xf32>
    %177 = tpu.concatenate %171, %176 in 0 : vector<1x32xf32>, vector<1x32xf32> -> vector<2x32xf32>
    %c0_66 = arith.constant 0 : index
    %c0_67 = arith.constant 0 : index
    %178 = vector.load %arg9[%c0_66, %c0_67] : memref<32x32xf32, #tpu.memory_space<vmem>>, vector<32x32xf32>
    %cst_68 = arith.constant dense<0.000000e+00> : vector<2x32xf32>
    %179 = tpu.matmul %177, %178, %cst_68 {dimension_numbers = #tpu.dot_dimension_numbers<[1], [0], [0], [1], [0, 0, 1, 1], [], []>} : vector<2x32xf32>, vector<32x32xf32>, vector<2x32xf32> -> vector<2x32xf32>
    %c0_69 = arith.constant 0 : index
    %c0_70 = arith.constant 0 : index
    %180 = vector.load %arg10[%c0_69, %c0_70] : memref<1x32xf32, #tpu.memory_space<vmem>>, vector<1x32xf32>
    %181 = vector.broadcast %180 : vector<1x32xf32> to vector<2x32xf32>
    %182 = arith.addf %179, %181 : vector<2x32xf32>
    %c0_71 = arith.constant 0 : index
    %c0_72 = arith.constant 0 : index
    %183 = vector.load %arg11[%c0_71, %c0_72] : memref<2x32xf32, #tpu.memory_space<vmem>>, vector<2x32xf32>
    tpu.vector_store %arg11[%c0_71, %c0_72], %182 {strides = array<i32>} : memref<2x32xf32, #tpu.memory_space<vmem>>, vector<2x32xf32>,
    return
  }
}

module attributes {stable_mosaic.version = 11 : i64} {
  func.func @_encoder_layer_kernel(%arg0: memref<16x32xf32, #tpu.memory_space<vmem>>, %arg1: memref<32x96xf32, #tpu.memory_space<vmem>>, %arg2: memref<1x96xf32, #tpu.memory_space<vmem>>, %arg3: memref<32x32xf32, #tpu.memory_space<vmem>>, %arg4: memref<1x32xf32, #tpu.memory_space<vmem>>, %arg5: memref<1x32xf32, #tpu.memory_space<vmem>>, %arg6: memref<1x32xf32, #tpu.memory_space<vmem>>, %arg7: memref<32x2048xf32, #tpu.memory_space<vmem>>, %arg8: memref<1x2048xf32, #tpu.memory_space<vmem>>, %arg9: memref<2048x32xf32, #tpu.memory_space<vmem>>, %arg10: memref<1x32xf32, #tpu.memory_space<vmem>>, %arg11: memref<1x32xf32, #tpu.memory_space<vmem>>, %arg12: memref<1x32xf32, #tpu.memory_space<vmem>>, %arg13: memref<16x32xf32, #tpu.memory_space<vmem>>) attributes {dimension_semantics = [], scalar_prefetch = 0 : i64, scratch_operands = 0 : i64, tpu.core_type = #tpu.core_type<tc>} {
    %c0 = arith.constant 0 : index
    %c0_0 = arith.constant 0 : index
    %0 = vector.load %arg0[%c0, %c0_0] : memref<16x32xf32, #tpu.memory_space<vmem>>, vector<16x32xf32>
    %c0_1 = arith.constant 0 : index
    %c0_2 = arith.constant 0 : index
    %1 = vector.load %arg1[%c0_1, %c0_2] : memref<32x96xf32, #tpu.memory_space<vmem>>, vector<32x96xf32>
    %cst = arith.constant dense<0.000000e+00> : vector<16x96xf32>
    %2 = tpu.matmul %0, %1, %cst {dimension_numbers = #tpu.dot_dimension_numbers<[1], [0], [0], [1], [0, 0, 1, 1], [], []>} : vector<16x32xf32>, vector<32x96xf32>, vector<16x96xf32> -> vector<16x96xf32>
    %c0_3 = arith.constant 0 : index
    %c0_4 = arith.constant 0 : index
    %3 = vector.load %arg2[%c0_3, %c0_4] : memref<1x96xf32, #tpu.memory_space<vmem>>, vector<1x96xf32>
    %4 = vector.broadcast %3 : vector<1x96xf32> to vector<16x96xf32>
    %5 = arith.addf %2, %4 : vector<16x96xf32>
    %6 = vector.extract_strided_slice %5 {offsets = [0, 0], sizes = [16, 32], strides = [1, 1]} : vector<16x96xf32> to vector<16x32xf32>
    %7 = vector.extract_strided_slice %5 {offsets = [0, 32], sizes = [16, 32], strides = [1, 1]} : vector<16x96xf32> to vector<16x32xf32>
    %8 = vector.extract_strided_slice %5 {offsets = [0, 64], sizes = [16, 32], strides = [1, 1]} : vector<16x96xf32> to vector<16x32xf32>
    %9 = vector.extract_strided_slice %6 {offsets = [0, 0], sizes = [8, 8], strides = [1, 1]} : vector<16x32xf32> to vector<8x8xf32>
    %10 = vector.extract_strided_slice %7 {offsets = [0, 0], sizes = [8, 8], strides = [1, 1]} : vector<16x32xf32> to vector<8x8xf32>
    %11 = vector.extract_strided_slice %8 {offsets = [0, 0], sizes = [8, 8], strides = [1, 1]} : vector<16x32xf32> to vector<8x8xf32>
    %12 = tpu.transpose %10, [1, 0] : vector<8x8xf32> -> vector<8x8xf32>
    %cst_5 = arith.constant dense<0.000000e+00> : vector<8x8xf32>
    %13 = tpu.matmul %9, %12, %cst_5 {dimension_numbers = #tpu.dot_dimension_numbers<[1], [0], [0], [1], [0, 0, 1, 1], [], []>} : vector<8x8xf32>, vector<8x8xf32>, vector<8x8xf32> -> vector<8x8xf32>
    %cst_6 = arith.constant 0.353553385 : f32
    %14 = vector.broadcast %cst_6 : f32 to vector<8x8xf32>
    %15 = arith.mulf %13, %14 : vector<8x8xf32>
    %cst_7 = arith.constant dense<0xFF800000> : vector<8xf32>
    %16 = vector.multi_reduction <maximumf>, %15, %cst_7 [1] : vector<8x8xf32> to vector<8xf32>
    %17 = vector.shape_cast %16 : vector<8xf32> to vector<8x1xf32>
    %18 = vector.broadcast %17 : vector<8x1xf32> to vector<8x8xf32>
    %19 = arith.subf %15, %18 : vector<8x8xf32>
    %20 = math.exp %19 : vector<8x8xf32>
    %cst_8 = arith.constant dense<0.000000e+00> : vector<8xf32>
    %21 = vector.multi_reduction <add>, %20, %cst_8 [1] : vector<8x8xf32> to vector<8xf32>
    %22 = vector.shape_cast %21 : vector<8xf32> to vector<8x1xf32>
    %23 = vector.broadcast %22 : vector<8x1xf32> to vector<8x8xf32>
    %24 = arith.divf %20, %23 : vector<8x8xf32>
    %cst_9 = arith.constant dense<0.000000e+00> : vector<8x8xf32>
    %25 = tpu.matmul %24, %11, %cst_9 {dimension_numbers = #tpu.dot_dimension_numbers<[1], [0], [0], [1], [0, 0, 1, 1], [], []>} : vector<8x8xf32>, vector<8x8xf32>, vector<8x8xf32> -> vector<8x8xf32>
    %26 = vector.extract_strided_slice %6 {offsets = [0, 8], sizes = [8, 8], strides = [1, 1]} : vector<16x32xf32> to vector<8x8xf32>
    %27 = vector.extract_strided_slice %7 {offsets = [0, 8], sizes = [8, 8], strides = [1, 1]} : vector<16x32xf32> to vector<8x8xf32>
    %28 = vector.extract_strided_slice %8 {offsets = [0, 8], sizes = [8, 8], strides = [1, 1]} : vector<16x32xf32> to vector<8x8xf32>
    %29 = tpu.transpose %27, [1, 0] : vector<8x8xf32> -> vector<8x8xf32>
    %cst_10 = arith.constant dense<0.000000e+00> : vector<8x8xf32>
    %30 = tpu.matmul %26, %29, %cst_10 {dimension_numbers = #tpu.dot_dimension_numbers<[1], [0], [0], [1], [0, 0, 1, 1], [], []>} : vector<8x8xf32>, vector<8x8xf32>, vector<8x8xf32> -> vector<8x8xf32>
    %cst_11 = arith.constant 0.353553385 : f32
    %31 = vector.broadcast %cst_11 : f32 to vector<8x8xf32>
    %32 = arith.mulf %30, %31 : vector<8x8xf32>
    %cst_12 = arith.constant dense<0xFF800000> : vector<8xf32>
    %33 = vector.multi_reduction <maximumf>, %32, %cst_12 [1] : vector<8x8xf32> to vector<8xf32>
    %34 = vector.shape_cast %33 : vector<8xf32> to vector<8x1xf32>
    %35 = vector.broadcast %34 : vector<8x1xf32> to vector<8x8xf32>
    %36 = arith.subf %32, %35 : vector<8x8xf32>
    %37 = math.exp %36 : vector<8x8xf32>
    %cst_13 = arith.constant dense<0.000000e+00> : vector<8xf32>
    %38 = vector.multi_reduction <add>, %37, %cst_13 [1] : vector<8x8xf32> to vector<8xf32>
    %39 = vector.shape_cast %38 : vector<8xf32> to vector<8x1xf32>
    %40 = vector.broadcast %39 : vector<8x1xf32> to vector<8x8xf32>
    %41 = arith.divf %37, %40 : vector<8x8xf32>
    %cst_14 = arith.constant dense<0.000000e+00> : vector<8x8xf32>
    %42 = tpu.matmul %41, %28, %cst_14 {dimension_numbers = #tpu.dot_dimension_numbers<[1], [0], [0], [1], [0, 0, 1, 1], [], []>} : vector<8x8xf32>, vector<8x8xf32>, vector<8x8xf32> -> vector<8x8xf32>
    %43 = vector.extract_strided_slice %6 {offsets = [0, 16], sizes = [8, 8], strides = [1, 1]} : vector<16x32xf32> to vector<8x8xf32>
    %44 = vector.extract_strided_slice %7 {offsets = [0, 16], sizes = [8, 8], strides = [1, 1]} : vector<16x32xf32> to vector<8x8xf32>
    %45 = vector.extract_strided_slice %8 {offsets = [0, 16], sizes = [8, 8], strides = [1, 1]} : vector<16x32xf32> to vector<8x8xf32>
    %46 = tpu.transpose %44, [1, 0] : vector<8x8xf32> -> vector<8x8xf32>
    %cst_15 = arith.constant dense<0.000000e+00> : vector<8x8xf32>
    %47 = tpu.matmul %43, %46, %cst_15 {dimension_numbers = #tpu.dot_dimension_numbers<[1], [0], [0], [1], [0, 0, 1, 1], [], []>} : vector<8x8xf32>, vector<8x8xf32>, vector<8x8xf32> -> vector<8x8xf32>
    %cst_16 = arith.constant 0.353553385 : f32
    %48 = vector.broadcast %cst_16 : f32 to vector<8x8xf32>
    %49 = arith.mulf %47, %48 : vector<8x8xf32>
    %cst_17 = arith.constant dense<0xFF800000> : vector<8xf32>
    %50 = vector.multi_reduction <maximumf>, %49, %cst_17 [1] : vector<8x8xf32> to vector<8xf32>
    %51 = vector.shape_cast %50 : vector<8xf32> to vector<8x1xf32>
    %52 = vector.broadcast %51 : vector<8x1xf32> to vector<8x8xf32>
    %53 = arith.subf %49, %52 : vector<8x8xf32>
    %54 = math.exp %53 : vector<8x8xf32>
    %cst_18 = arith.constant dense<0.000000e+00> : vector<8xf32>
    %55 = vector.multi_reduction <add>, %54, %cst_18 [1] : vector<8x8xf32> to vector<8xf32>
    %56 = vector.shape_cast %55 : vector<8xf32> to vector<8x1xf32>
    %57 = vector.broadcast %56 : vector<8x1xf32> to vector<8x8xf32>
    %58 = arith.divf %54, %57 : vector<8x8xf32>
    %cst_19 = arith.constant dense<0.000000e+00> : vector<8x8xf32>
    %59 = tpu.matmul %58, %45, %cst_19 {dimension_numbers = #tpu.dot_dimension_numbers<[1], [0], [0], [1], [0, 0, 1, 1], [], []>} : vector<8x8xf32>, vector<8x8xf32>, vector<8x8xf32> -> vector<8x8xf32>
    %60 = vector.extract_strided_slice %6 {offsets = [0, 24], sizes = [8, 8], strides = [1, 1]} : vector<16x32xf32> to vector<8x8xf32>
    %61 = vector.extract_strided_slice %7 {offsets = [0, 24], sizes = [8, 8], strides = [1, 1]} : vector<16x32xf32> to vector<8x8xf32>
    %62 = vector.extract_strided_slice %8 {offsets = [0, 24], sizes = [8, 8], strides = [1, 1]} : vector<16x32xf32> to vector<8x8xf32>
    %63 = tpu.transpose %61, [1, 0] : vector<8x8xf32> -> vector<8x8xf32>
    %cst_20 = arith.constant dense<0.000000e+00> : vector<8x8xf32>
    %64 = tpu.matmul %60, %63, %cst_20 {dimension_numbers = #tpu.dot_dimension_numbers<[1], [0], [0], [1], [0, 0, 1, 1], [], []>} : vector<8x8xf32>, vector<8x8xf32>, vector<8x8xf32> -> vector<8x8xf32>
    %cst_21 = arith.constant 0.353553385 : f32
    %65 = vector.broadcast %cst_21 : f32 to vector<8x8xf32>
    %66 = arith.mulf %64, %65 : vector<8x8xf32>
    %cst_22 = arith.constant dense<0xFF800000> : vector<8xf32>
    %67 = vector.multi_reduction <maximumf>, %66, %cst_22 [1] : vector<8x8xf32> to vector<8xf32>
    %68 = vector.shape_cast %67 : vector<8xf32> to vector<8x1xf32>
    %69 = vector.broadcast %68 : vector<8x1xf32> to vector<8x8xf32>
    %70 = arith.subf %66, %69 : vector<8x8xf32>
    %71 = math.exp %70 : vector<8x8xf32>
    %cst_23 = arith.constant dense<0.000000e+00> : vector<8xf32>
    %72 = vector.multi_reduction <add>, %71, %cst_23 [1] : vector<8x8xf32> to vector<8xf32>
    %73 = vector.shape_cast %72 : vector<8xf32> to vector<8x1xf32>
    %74 = vector.broadcast %73 : vector<8x1xf32> to vector<8x8xf32>
    %75 = arith.divf %71, %74 : vector<8x8xf32>
    %cst_24 = arith.constant dense<0.000000e+00> : vector<8x8xf32>
    %76 = tpu.matmul %75, %62, %cst_24 {dimension_numbers = #tpu.dot_dimension_numbers<[1], [0], [0], [1], [0, 0, 1, 1], [], []>} : vector<8x8xf32>, vector<8x8xf32>, vector<8x8xf32> -> vector<8x8xf32>
    %77 = tpu.concatenate %25, %42, %59, %76 in 1 : vector<8x8xf32>, vector<8x8xf32>, vector<8x8xf32>, vector<8x8xf32> -> vector<8x32xf32>
    %78 = vector.extract_strided_slice %6 {offsets = [8, 0], sizes = [8, 8], strides = [1, 1]} : vector<16x32xf32> to vector<8x8xf32>
    %79 = vector.extract_strided_slice %7 {offsets = [8, 0], sizes = [8, 8], strides = [1, 1]} : vector<16x32xf32> to vector<8x8xf32>
    %80 = vector.extract_strided_slice %8 {offsets = [8, 0], sizes = [8, 8], strides = [1, 1]} : vector<16x32xf32> to vector<8x8xf32>
    %81 = tpu.transpose %79, [1, 0] : vector<8x8xf32> -> vector<8x8xf32>
    %cst_25 = arith.constant dense<0.000000e+00> : vector<8x8xf32>
    %82 = tpu.matmul %78, %81, %cst_25 {dimension_numbers = #tpu.dot_dimension_numbers<[1], [0], [0], [1], [0, 0, 1, 1], [], []>} : vector<8x8xf32>, vector<8x8xf32>, vector<8x8xf32> -> vector<8x8xf32>
    %cst_26 = arith.constant 0.353553385 : f32
    %83 = vector.broadcast %cst_26 : f32 to vector<8x8xf32>
    %84 = arith.mulf %82, %83 : vector<8x8xf32>
    %cst_27 = arith.constant dense<0xFF800000> : vector<8xf32>
    %85 = vector.multi_reduction <maximumf>, %84, %cst_27 [1] : vector<8x8xf32> to vector<8xf32>
    %86 = vector.shape_cast %85 : vector<8xf32> to vector<8x1xf32>
    %87 = vector.broadcast %86 : vector<8x1xf32> to vector<8x8xf32>
    %88 = arith.subf %84, %87 : vector<8x8xf32>
    %89 = math.exp %88 : vector<8x8xf32>
    %cst_28 = arith.constant dense<0.000000e+00> : vector<8xf32>
    %90 = vector.multi_reduction <add>, %89, %cst_28 [1] : vector<8x8xf32> to vector<8xf32>
    %91 = vector.shape_cast %90 : vector<8xf32> to vector<8x1xf32>
    %92 = vector.broadcast %91 : vector<8x1xf32> to vector<8x8xf32>
    %93 = arith.divf %89, %92 : vector<8x8xf32>
    %cst_29 = arith.constant dense<0.000000e+00> : vector<8x8xf32>
    %94 = tpu.matmul %93, %80, %cst_29 {dimension_numbers = #tpu.dot_dimension_numbers<[1], [0], [0], [1], [0, 0, 1, 1], [], []>} : vector<8x8xf32>, vector<8x8xf32>, vector<8x8xf32> -> vector<8x8xf32>
    %95 = vector.extract_strided_slice %6 {offsets = [8, 8], sizes = [8, 8], strides = [1, 1]} : vector<16x32xf32> to vector<8x8xf32>
    %96 = vector.extract_strided_slice %7 {offsets = [8, 8], sizes = [8, 8], strides = [1, 1]} : vector<16x32xf32> to vector<8x8xf32>
    %97 = vector.extract_strided_slice %8 {offsets = [8, 8], sizes = [8, 8], strides = [1, 1]} : vector<16x32xf32> to vector<8x8xf32>
    %98 = tpu.transpose %96, [1, 0] : vector<8x8xf32> -> vector<8x8xf32>
    %cst_30 = arith.constant dense<0.000000e+00> : vector<8x8xf32>
    %99 = tpu.matmul %95, %98, %cst_30 {dimension_numbers = #tpu.dot_dimension_numbers<[1], [0], [0], [1], [0, 0, 1, 1], [], []>} : vector<8x8xf32>, vector<8x8xf32>, vector<8x8xf32> -> vector<8x8xf32>
    %cst_31 = arith.constant 0.353553385 : f32
    %100 = vector.broadcast %cst_31 : f32 to vector<8x8xf32>
    %101 = arith.mulf %99, %100 : vector<8x8xf32>
    %cst_32 = arith.constant dense<0xFF800000> : vector<8xf32>
    %102 = vector.multi_reduction <maximumf>, %101, %cst_32 [1] : vector<8x8xf32> to vector<8xf32>
    %103 = vector.shape_cast %102 : vector<8xf32> to vector<8x1xf32>
    %104 = vector.broadcast %103 : vector<8x1xf32> to vector<8x8xf32>
    %105 = arith.subf %101, %104 : vector<8x8xf32>
    %106 = math.exp %105 : vector<8x8xf32>
    %cst_33 = arith.constant dense<0.000000e+00> : vector<8xf32>
    %107 = vector.multi_reduction <add>, %106, %cst_33 [1] : vector<8x8xf32> to vector<8xf32>
    %108 = vector.shape_cast %107 : vector<8xf32> to vector<8x1xf32>
    %109 = vector.broadcast %108 : vector<8x1xf32> to vector<8x8xf32>
    %110 = arith.divf %106, %109 : vector<8x8xf32>
    %cst_34 = arith.constant dense<0.000000e+00> : vector<8x8xf32>
    %111 = tpu.matmul %110, %97, %cst_34 {dimension_numbers = #tpu.dot_dimension_numbers<[1], [0], [0], [1], [0, 0, 1, 1], [], []>} : vector<8x8xf32>, vector<8x8xf32>, vector<8x8xf32> -> vector<8x8xf32>
    %112 = vector.extract_strided_slice %6 {offsets = [8, 16], sizes = [8, 8], strides = [1, 1]} : vector<16x32xf32> to vector<8x8xf32>
    %113 = vector.extract_strided_slice %7 {offsets = [8, 16], sizes = [8, 8], strides = [1, 1]} : vector<16x32xf32> to vector<8x8xf32>
    %114 = vector.extract_strided_slice %8 {offsets = [8, 16], sizes = [8, 8], strides = [1, 1]} : vector<16x32xf32> to vector<8x8xf32>
    %115 = tpu.transpose %113, [1, 0] : vector<8x8xf32> -> vector<8x8xf32>
    %cst_35 = arith.constant dense<0.000000e+00> : vector<8x8xf32>
    %116 = tpu.matmul %112, %115, %cst_35 {dimension_numbers = #tpu.dot_dimension_numbers<[1], [0], [0], [1], [0, 0, 1, 1], [], []>} : vector<8x8xf32>, vector<8x8xf32>, vector<8x8xf32> -> vector<8x8xf32>
    %cst_36 = arith.constant 0.353553385 : f32
    %117 = vector.broadcast %cst_36 : f32 to vector<8x8xf32>
    %118 = arith.mulf %116, %117 : vector<8x8xf32>
    %cst_37 = arith.constant dense<0xFF800000> : vector<8xf32>
    %119 = vector.multi_reduction <maximumf>, %118, %cst_37 [1] : vector<8x8xf32> to vector<8xf32>
    %120 = vector.shape_cast %119 : vector<8xf32> to vector<8x1xf32>
    %121 = vector.broadcast %120 : vector<8x1xf32> to vector<8x8xf32>
    %122 = arith.subf %118, %121 : vector<8x8xf32>
    %123 = math.exp %122 : vector<8x8xf32>
    %cst_38 = arith.constant dense<0.000000e+00> : vector<8xf32>
    %124 = vector.multi_reduction <add>, %123, %cst_38 [1] : vector<8x8xf32> to vector<8xf32>
    %125 = vector.shape_cast %124 : vector<8xf32> to vector<8x1xf32>
    %126 = vector.broadcast %125 : vector<8x1xf32> to vector<8x8xf32>
    %127 = arith.divf %123, %126 : vector<8x8xf32>
    %cst_39 = arith.constant dense<0.000000e+00> : vector<8x8xf32>
    %128 = tpu.matmul %127, %114, %cst_39 {dimension_numbers = #tpu.dot_dimension_numbers<[1], [0], [0], [1], [0, 0, 1, 1], [], []>} : vector<8x8xf32>, vector<8x8xf32>, vector<8x8xf32> -> vector<8x8xf32>
    %129 = vector.extract_strided_slice %6 {offsets = [8, 24], sizes = [8, 8], strides = [1, 1]} : vector<16x32xf32> to vector<8x8xf32>
    %130 = vector.extract_strided_slice %7 {offsets = [8, 24], sizes = [8, 8], strides = [1, 1]} : vector<16x32xf32> to vector<8x8xf32>
    %131 = vector.extract_strided_slice %8 {offsets = [8, 24], sizes = [8, 8], strides = [1, 1]} : vector<16x32xf32> to vector<8x8xf32>
    %132 = tpu.transpose %130, [1, 0] : vector<8x8xf32> -> vector<8x8xf32>
    %cst_40 = arith.constant dense<0.000000e+00> : vector<8x8xf32>
    %133 = tpu.matmul %129, %132, %cst_40 {dimension_numbers = #tpu.dot_dimension_numbers<[1], [0], [0], [1], [0, 0, 1, 1], [], []>} : vector<8x8xf32>, vector<8x8xf32>, vector<8x8xf32> -> vector<8x8xf32>
    %cst_41 = arith.constant 0.353553385 : f32
    %134 = vector.broadcast %cst_41 : f32 to vector<8x8xf32>
    %135 = arith.mulf %133, %134 : vector<8x8xf32>
    %cst_42 = arith.constant dense<0xFF800000> : vector<8xf32>
    %136 = vector.multi_reduction <maximumf>, %135, %cst_42 [1] : vector<8x8xf32> to vector<8xf32>
    %137 = vector.shape_cast %136 : vector<8xf32> to vector<8x1xf32>
    %138 = vector.broadcast %137 : vector<8x1xf32> to vector<8x8xf32>
    %139 = arith.subf %135, %138 : vector<8x8xf32>
    %140 = math.exp %139 : vector<8x8xf32>
    %cst_43 = arith.constant dense<0.000000e+00> : vector<8xf32>
    %141 = vector.multi_reduction <add>, %140, %cst_43 [1] : vector<8x8xf32> to vector<8xf32>
    %142 = vector.shape_cast %141 : vector<8xf32> to vector<8x1xf32>
    %143 = vector.broadcast %142 : vector<8x1xf32> to vector<8x8xf32>
    %144 = arith.divf %140, %143 : vector<8x8xf32>
    %cst_44 = arith.constant dense<0.000000e+00> : vector<8x8xf32>
    %145 = tpu.matmul %144, %131, %cst_44 {dimension_numbers = #tpu.dot_dimension_numbers<[1], [0], [0], [1], [0, 0, 1, 1], [], []>} : vector<8x8xf32>, vector<8x8xf32>, vector<8x8xf32> -> vector<8x8xf32>
    %146 = tpu.concatenate %94, %111, %128, %145 in 1 : vector<8x8xf32>, vector<8x8xf32>, vector<8x8xf32>, vector<8x8xf32> -> vector<8x32xf32>
    %147 = tpu.concatenate %77, %146 in 0 : vector<8x32xf32>, vector<8x32xf32> -> vector<16x32xf32>
    %c0_45 = arith.constant 0 : index
    %c0_46 = arith.constant 0 : index
    %148 = vector.load %arg3[%c0_45, %c0_46] : memref<32x32xf32, #tpu.memory_space<vmem>>, vector<32x32xf32>
    %cst_47 = arith.constant dense<0.000000e+00> : vector<16x32xf32>
    %149 = tpu.matmul %147, %148, %cst_47 {dimension_numbers = #tpu.dot_dimension_numbers<[1], [0], [0], [1], [0, 0, 1, 1], [], []>} : vector<16x32xf32>, vector<32x32xf32>, vector<16x32xf32> -> vector<16x32xf32>
    %c0_48 = arith.constant 0 : index
    %c0_49 = arith.constant 0 : index
    %150 = vector.load %arg4[%c0_48, %c0_49] : memref<1x32xf32, #tpu.memory_space<vmem>>, vector<1x32xf32>
    %151 = vector.broadcast %150 : vector<1x32xf32> to vector<16x32xf32>
    %152 = arith.addf %149, %151 : vector<16x32xf32>
    %153 = arith.addf %0, %152 : vector<16x32xf32>
    %cst_50 = arith.constant dense<0.000000e+00> : vector<16xf32>
    %154 = vector.multi_reduction <add>, %153, %cst_50 [1] : vector<16x32xf32> to vector<16xf32>
    %155 = vector.shape_cast %154 : vector<16xf32> to vector<16x1xf32>
    %cst_51 = arith.constant 3.200000e+01 : f32
    %156 = vector.broadcast %cst_51 : f32 to vector<16x1xf32>
    %157 = arith.divf %155, %156 : vector<16x1xf32>
    %158 = vector.broadcast %157 : vector<16x1xf32> to vector<16x32xf32>
    %159 = arith.subf %153, %158 : vector<16x32xf32>
    %160 = arith.mulf %159, %159 : vector<16x32xf32>
    %cst_52 = arith.constant dense<0.000000e+00> : vector<16xf32>
    %161 = vector.multi_reduction <add>, %160, %cst_52 [1] : vector<16x32xf32> to vector<16xf32>
    %162 = vector.shape_cast %161 : vector<16xf32> to vector<16x1xf32>
    %cst_53 = arith.constant 3.200000e+01 : f32
    %163 = vector.broadcast %cst_53 : f32 to vector<16x1xf32>
    %164 = arith.divf %162, %163 : vector<16x1xf32>
    %165 = vector.broadcast %157 : vector<16x1xf32> to vector<16x32xf32>
    %166 = arith.subf %153, %165 : vector<16x32xf32>
    %cst_54 = arith.constant 9.99999974E-6 : f32
    %167 = vector.broadcast %cst_54 : f32 to vector<16x1xf32>
    %168 = arith.addf %164, %167 : vector<16x1xf32>
    %169 = math.rsqrt %168 : vector<16x1xf32>
    %170 = vector.broadcast %169 : vector<16x1xf32> to vector<16x32xf32>
    %171 = arith.mulf %166, %170 : vector<16x32xf32>
    %c0_55 = arith.constant 0 : index
    %c0_56 = arith.constant 0 : index
    %172 = vector.load %arg5[%c0_55, %c0_56] : memref<1x32xf32, #tpu.memory_space<vmem>>, vector<1x32xf32>
    %173 = vector.broadcast %172 : vector<1x32xf32> to vector<16x32xf32>
    %174 = arith.mulf %171, %173 : vector<16x32xf32>
    %c0_57 = arith.constant 0 : index
    %c0_58 = arith.constant 0 : index
    %175 = vector.load %arg6[%c0_57, %c0_58] : memref<1x32xf32, #tpu.memory_space<vmem>>, vector<1x32xf32>
    %176 = vector.broadcast %175 : vector<1x32xf32> to vector<16x32xf32>
    %177 = arith.addf %174, %176 : vector<16x32xf32>
    %c0_59 = arith.constant 0 : index
    %c0_60 = arith.constant 0 : index
    %178 = vector.load %arg7[%c0_59, %c0_60] : memref<32x2048xf32, #tpu.memory_space<vmem>>, vector<32x2048xf32>
    %cst_61 = arith.constant dense<0.000000e+00> : vector<16x2048xf32>
    %179 = tpu.matmul %177, %178, %cst_61 {dimension_numbers = #tpu.dot_dimension_numbers<[1], [0], [0], [1], [0, 0, 1, 1], [], []>} : vector<16x32xf32>, vector<32x2048xf32>, vector<16x2048xf32> -> vector<16x2048xf32>
    %c0_62 = arith.constant 0 : index
    %c0_63 = arith.constant 0 : index
    %180 = vector.load %arg8[%c0_62, %c0_63] : memref<1x2048xf32, #tpu.memory_space<vmem>>, vector<1x2048xf32>
    %181 = vector.broadcast %180 : vector<1x2048xf32> to vector<16x2048xf32>
    %182 = arith.addf %179, %181 : vector<16x2048xf32>
    %cst_64 = arith.constant 0.000000e+00 : f32
    %183 = vector.broadcast %cst_64 : f32 to vector<16x2048xf32>
    %184 = arith.maximumf %182, %183 : vector<16x2048xf32>
    %c0_65 = arith.constant 0 : index
    %c0_66 = arith.constant 0 : index
    %185 = vector.load %arg9[%c0_65, %c0_66] : memref<2048x32xf32, #tpu.memory_space<vmem>>, vector<2048x32xf32>
    %cst_67 = arith.constant dense<0.000000e+00> : vector<16x32xf32>
    %186 = tpu.matmul %184, %185, %cst_67 {dimension_numbers = #tpu.dot_dimension_numbers<[1], [0], [0], [1], [0, 0, 1, 1], [], []>} : vector<16x2048xf32>, vector<2048x32xf32>, vector<16x32xf32> -> vector<16x32xf32>
    %c0_68 = arith.constant 0 : index
    %c0_69 = arith.constant 0 : index
    %187 = vector.load %arg10[%c0_68, %c0_69] : memref<1x32xf32, #tpu.memory_space<vmem>>, vector<1x32xf32>
    %188 = vector.broadcast %187 : vector<1x32xf32> to vector<16x32xf32>
    %189 = arith.addf %186, %188 : vector<16x32xf32>
    %190 = arith.addf %177, %189 : vector<16x32xf32>
    %cst_70 = arith.constant dense<0.000000e+00> : vector<16xf32>
    %191 = vector.multi_reduction <add>, %190, %cst_70 [1] : vector<16x32xf32> to vector<16xf32>
    %192 = vector.shape_cast %191 : vector<16xf32> to vector<16x1xf32>
    %cst_71 = arith.constant 3.200000e+01 : f32
    %193 = vector.broadcast %cst_71 : f32 to vector<16x1xf32>
    %194 = arith.divf %192, %193 : vector<16x1xf32>
    %195 = vector.broadcast %194 : vector<16x1xf32> to vector<16x32xf32>
    %196 = arith.subf %190, %195 : vector<16x32xf32>
    %197 = arith.mulf %196, %196 : vector<16x32xf32>
    %cst_72 = arith.constant dense<0.000000e+00> : vector<16xf32>
    %198 = vector.multi_reduction <add>, %197, %cst_72 [1] : vector<16x32xf32> to vector<16xf32>
    %199 = vector.shape_cast %198 : vector<16xf32> to vector<16x1xf32>
    %cst_73 = arith.constant 3.200000e+01 : f32
    %200 = vector.broadcast %cst_73 : f32 to vector<16x1xf32>
    %201 = arith.divf %199, %200 : vector<16x1xf32>
    %202 = vector.broadcast %194 : vector<16x1xf32> to vector<16x32xf32>
    %203 = arith.subf %190, %202 : vector<16x32xf32>
    %cst_74 = arith.constant 9.99999974E-6 : f32
    %204 = vector.broadcast %cst_74 : f32 to vector<16x1xf32>
    %205 = arith.addf %201, %204 : vector<16x1xf32>
    %206 = math.rsqrt %205 : vector<16x1xf32>
    %207 = vector.broadcast %206 : vector<16x1xf32> to vector<16x32xf32>
    %208 = arith.mulf %203, %207 : vector<16x32xf32>
    %c0_75 = arith.constant 0 : index
    %c0_76 = arith.constant 0 : index
    %209 = vector.load %arg11[%c0_75, %c0_76] : memref<1x32xf32, #tpu.memory_space<vmem>>, vector<1x32xf32>
    %210 = vector.broadcast %209 : vector<1x32xf32> to vector<16x32xf32>
    %211 = arith.mulf %208, %210 : vector<16x32xf32>
    %c0_77 = arith.constant 0 : index
    %c0_78 = arith.constant 0 : index
    %212 = vector.load %arg12[%c0_77, %c0_78] : memref<1x32xf32, #tpu.memory_space<vmem>>, vector<1x32xf32>
    %213 = vector.broadcast %212 : vector<1x32xf32> to vector<16x32xf32>
    %214 = arith.addf %211, %213 : vector<16x32xf32>
    %c0_79 = arith.constant 0 : index
    %c0_80 = arith.constant 0 : index
    %215 = vector.load %arg13[%c0_79, %c0_80] : memref<16x32xf32, #tpu.memory_space<vmem>>, vector<16x32xf32>
    tpu.vector_store %arg13[%c0_79, %c0_80], %214 {strides = array<i32>} : memref<16x32xf32, #tpu.memory_space<vmem>>, vector<16x32xf32>,
    return
  }
}

module attributes {stable_mosaic.version = 11 : i64} {
  func.func @_heads_kernel(%arg0: memref<16x32xf32, #tpu.memory_space<vmem>>, %arg1: memref<2x32xf32, #tpu.memory_space<vmem>>, %arg2: memref<64x6xf32, #tpu.memory_space<vmem>>, %arg3: memref<1x6xf32, #tpu.memory_space<vmem>>, %arg4: memref<64x1xf32, #tpu.memory_space<vmem>>, %arg5: memref<1x1xf32, #tpu.memory_space<vmem>>, %arg6: memref<2x6xf32, #tpu.memory_space<vmem>>, %arg7: memref<2x1xf32, #tpu.memory_space<vmem>>) attributes {dimension_semantics = [], scalar_prefetch = 0 : i64, scratch_operands = 0 : i64, tpu.core_type = #tpu.core_type<tc>} {
    %c0 = arith.constant 0 : index
    %c0_0 = arith.constant 0 : index
    %0 = vector.load %arg0[%c0, %c0_0] : memref<16x32xf32, #tpu.memory_space<vmem>>, vector<16x32xf32>
    %1 = vector.extract_strided_slice %0 {offsets = [7, 0], sizes = [1, 32], strides = [1, 1]} : vector<16x32xf32> to vector<1x32xf32>
    %2 = vector.extract_strided_slice %0 {offsets = [15, 0], sizes = [1, 32], strides = [1, 1]} : vector<16x32xf32> to vector<1x32xf32>
    %3 = tpu.concatenate %1, %2 in 0 : vector<1x32xf32>, vector<1x32xf32> -> vector<2x32xf32>
    %c0_1 = arith.constant 0 : index
    %c0_2 = arith.constant 0 : index
    %4 = vector.load %arg1[%c0_1, %c0_2] : memref<2x32xf32, #tpu.memory_space<vmem>>, vector<2x32xf32>
    %5 = tpu.concatenate %3, %4 in 1 : vector<2x32xf32>, vector<2x32xf32> -> vector<2x64xf32>
    %c0_3 = arith.constant 0 : index
    %c0_4 = arith.constant 0 : index
    %6 = vector.load %arg2[%c0_3, %c0_4] : memref<64x6xf32, #tpu.memory_space<vmem>>, vector<64x6xf32>
    %cst = arith.constant dense<0.000000e+00> : vector<2x6xf32>
    %7 = tpu.matmul %5, %6, %cst {dimension_numbers = #tpu.dot_dimension_numbers<[1], [0], [0], [1], [0, 0, 1, 1], [], []>} : vector<2x64xf32>, vector<64x6xf32>, vector<2x6xf32> -> vector<2x6xf32>
    %c0_5 = arith.constant 0 : index
    %c0_6 = arith.constant 0 : index
    %8 = vector.load %arg3[%c0_5, %c0_6] : memref<1x6xf32, #tpu.memory_space<vmem>>, vector<1x6xf32>
    %9 = vector.broadcast %8 : vector<1x6xf32> to vector<2x6xf32>
    %10 = arith.addf %7, %9 : vector<2x6xf32>
    %cst_7 = arith.constant dense<0xFF800000> : vector<2xf32>
    %11 = vector.multi_reduction <maximumf>, %10, %cst_7 [1] : vector<2x6xf32> to vector<2xf32>
    %12 = vector.shape_cast %11 : vector<2xf32> to vector<2x1xf32>
    %13 = vector.broadcast %12 : vector<2x1xf32> to vector<2x6xf32>
    %14 = arith.subf %10, %13 : vector<2x6xf32>
    %15 = math.exp %14 : vector<2x6xf32>
    %cst_8 = arith.constant dense<0.000000e+00> : vector<2xf32>
    %16 = vector.multi_reduction <add>, %15, %cst_8 [1] : vector<2x6xf32> to vector<2xf32>
    %17 = vector.shape_cast %16 : vector<2xf32> to vector<2x1xf32>
    %18 = vector.broadcast %17 : vector<2x1xf32> to vector<2x6xf32>
    %19 = arith.divf %15, %18 : vector<2x6xf32>
    %c0_9 = arith.constant 0 : index
    %c0_10 = arith.constant 0 : index
    %20 = vector.load %arg6[%c0_9, %c0_10] : memref<2x6xf32, #tpu.memory_space<vmem>>, vector<2x6xf32>
    tpu.vector_store %arg6[%c0_9, %c0_10], %19 {strides = array<i32>} : memref<2x6xf32, #tpu.memory_space<vmem>>, vector<2x6xf32>,
    %c0_11 = arith.constant 0 : index
    %c0_12 = arith.constant 0 : index
    %21 = vector.load %arg4[%c0_11, %c0_12] : memref<64x1xf32, #tpu.memory_space<vmem>>, vector<64x1xf32>
    %cst_13 = arith.constant dense<0.000000e+00> : vector<2x1xf32>
    %22 = tpu.matmul %5, %21, %cst_13 {dimension_numbers = #tpu.dot_dimension_numbers<[1], [0], [0], [1], [0, 0, 1, 1], [], []>} : vector<2x64xf32>, vector<64x1xf32>, vector<2x1xf32> -> vector<2x1xf32>
    %c0_14 = arith.constant 0 : index
    %c0_15 = arith.constant 0 : index
    %23 = vector.load %arg5[%c0_14, %c0_15] : memref<1x1xf32, #tpu.memory_space<vmem>>, vector<1x1xf32>
    %24 = vector.broadcast %23 : vector<1x1xf32> to vector<2x1xf32>
    %25 = arith.addf %22, %24 : vector<2x1xf32>
    %c0_16 = arith.constant 0 : index
    %c0_17 = arith.constant 0 : index
    %26 = vector.load %arg7[%c0_16, %c0_17] : memref<2x1xf32, #tpu.memory_space<vmem>>, vector<2x1xf32>
    tpu.vector_store %arg7[%c0_16, %c0_17], %25 {strides = array<i32>} : memref<2x1xf32, #tpu.memory_space<vmem>>, vector<2x1xf32>,
    return
  }
}

</mosaic_0001>

<llo_original>
// kernel: ppo_transformer_forward.5
$region0: #{ppo_transformer_forward.5}
  #allocation0 [shape = 'u32[]', space=smem, size = 0x4, offset = 0x4, fixed_abs, tag = 'smem constant byte address 0x4 - core index']
  #allocation1 [shape = 'u32[144,128]{1,0:T(1,128)}', space=vmem, size = 0x12000, scoped, tag = 'internal scratch']
  %s0 = inlined_call_operand.vmem [shape: f32[16,256], index: 0, kind: input, shape index: {}]
  %s1 = inlined_call_operand.vmem [shape: f32[256,32], index: 1, kind: input, shape index: {}]
  %s2 = inlined_call_operand.vmem [shape: f32[1,32], index: 2, kind: input, shape index: {}]
  %s3 = inlined_call_operand.vmem [shape: f32[8,32], index: 3, kind: input, shape index: {}]
  %s4 = inlined_call_operand.vmem [shape: f32[16,32], index: 4, kind: output, shape index: {}]
  %s5 = sld [smem:[#allocation0]]
  $region26: #{ppo_transformer_forward.5} parent=0
    _
  %s7 = ssub.s32 1, %s5
  %s8 = scalar_select 0, %s7, %s5
  // Predicated region
  $region2: #{ppo_transformer_forward.5} parent=0 // pred_check
    _
  $region3: #{ppo_transformer_forward.5} parent=0 // pred_check_branch
    %10 = sbr.rel (0) target = $region5
  $region4: #{ppo_transformer_forward.5} parent=0 // pred_region
    _
  $region5: #{ppo_transformer_forward.5} parent=0 // pred_fallthru
    _
  // Predicated region
  $region6: #{ppo_transformer_forward.5} parent=0 // pred_check
    _
  $region7: #{ppo_transformer_forward.5} parent=0 // pred_check_branch
    %12 = sbr.rel (0) target = $region9
  $region8: #{ppo_transformer_forward.5} parent=0 // pred_region
    _
  $region9: #{ppo_transformer_forward.5} parent=0 // pred_fallthru
    _
  // Predicated region
  $region10: #{ppo_transformer_forward.5} parent=0 // pred_check
    _
  $region11: #{ppo_transformer_forward.5} parent=0 // pred_check_branch
    %14 = sbr.rel (0) target = $region13
  $region12: #{ppo_transformer_forward.5} parent=0 // pred_region
    _
  $region13: #{ppo_transformer_forward.5} parent=0 // pred_fallthru
    _
  // Predicated region
  $region14: #{ppo_transformer_forward.5} parent=0 // pred_check
    _
  $region15: #{ppo_transformer_forward.5} parent=0 // pred_check_branch
    %16 = sbr.rel (0) target = $region17
  $region16: #{ppo_transformer_forward.5} parent=0 // pred_region
    _
  $region17: #{ppo_transformer_forward.5} parent=0 // pred_fallthru
    _
  %v17 = vld [vmem:[%s0] sm:$0xff]
  %v18 = vld [vmem:[%s0 + $0x8] sm:$0xff]
  %v19 = vld [vmem:[%s0 + $0x10] sm:$0xff]
  %v20 = vld [vmem:[%s0 + $0x18] sm:$0xff]
  %v21 = vld [vmem:[%s1] sm:$0xff]
  %v22 = vld [vmem:[%s1 + $0x8] sm:$0xff]
  %v23 = vld [vmem:[%s1 + $0x10] sm:$0xff]
  %v24 = vld [vmem:[%s1 + $0x18] sm:$0xff]
  %v25 = vld [vmem:[%s1 + $0x20] sm:$0xff]
  %v26 = vld [vmem:[%s1 + $0x28] sm:$0xff]
  %v27 = vld [vmem:[%s1 + $0x30] sm:$0xff]
  %v28 = vld [vmem:[%s1 + $0x38] sm:$0xff]
  %v29 = vld [vmem:[%s1 + $0x40] sm:$0xff]
  %v30 = vld [vmem:[%s1 + $0x48] sm:$0xff]
  %v31 = vld [vmem:[%s1 + $0x50] sm:$0xff]
  %v32 = vld [vmem:[%s1 + $0x58] sm:$0xff]
  %v33 = vld [vmem:[%s1 + $0x60] sm:$0xff]
  %v34 = vld [vmem:[%s1 + $0x68] sm:$0xff]
  %v35 = vld [vmem:[%s1 + $0x70] sm:$0xff]
  %v36 = vld [vmem:[%s1 + $0x78] sm:$0xff]
  %v37 = vld [vmem:[%s1 + $0x80] sm:$0xff]
  %v38 = vld [vmem:[%s1 + $0x88] sm:$0xff]
  %v39 = vld [vmem:[%s1 + $0x90] sm:$0xff]
  %v40 = vld [vmem:[%s1 + $0x98] sm:$0xff]
  %v41 = vld [vmem:[%s1 + $0xa0] sm:$0xff]
  %v42 = vld [vmem:[%s1 + $0xa8] sm:$0xff]
  %v43 = vld [vmem:[%s1 + $0xb0] sm:$0xff]
  %v44 = vld [vmem:[%s1 + $0xb8] sm:$0xff]
  %v45 = vld [vmem:[%s1 + $0xc0] sm:$0xff]
  %v46 = vld [vmem:[%s1 + $0xc8] sm:$0xff]
  %v47 = vld [vmem:[%s1 + $0xd0] sm:$0xff]
  %v48 = vld [vmem:[%s1 + $0xd8] sm:$0xff]
  %v49 = vld [vmem:[%s1 + $0xe0] sm:$0xff]
  %v50 = vld [vmem:[%s1 + $0xe8] sm:$0xff]
  %v51 = vld [vmem:[%s1 + $0xf0] sm:$0xff]
  %v52 = vld [vmem:[%s1 + $0xf8] sm:$0xff]
  %v53 = vld [vmem:[%s2] sm:$0x1]
  %v55 = vlaneseq
  %v56 = vshrl.u32 %v55, 7
  %v57 = vsub.s32 0, %v56
  %v58 = vrot.slane %v53, %v57
  %60 = vmatprep.subr.mxu0 0.0
  %61 = vmatpush1.msra.mxu0 %v21
  %62 = vmatprep.subr.mxu0 0.0
  %63 = vmatpush1.msra.mxu0 %v22
  %64 = vmatprep.subr.mxu0 0.0
  %65 = vmatpush1.msra.mxu0 %v23
  %66 = vmatprep.subr.mxu0 0.0
  %67 = vmatpush1.msra.mxu0 %v24
  %68 = vmatprep.subr.mxu0 0.0
  %69 = vmatpush1.msra.mxu0 %v25
  %70 = vmatprep.subr.mxu0 0.0
  %71 = vmatpush1.msra.mxu0 %v26
  %72 = vmatprep.subr.mxu0 0.0
  %73 = vmatpush1.msra.mxu0 %v27
  %74 = vmatprep.subr.mxu0 0.0
  %75 = vmatpush1.msra.mxu0 %v28
  %76 = vmatprep.subr.mxu0 0.0
  %77 = vmatpush1.msra.mxu0 %v29
  %78 = vmatprep.subr.mxu0 0.0
  %79 = vmatpush1.msra.mxu0 %v30
  %80 = vmatprep.subr.mxu0 0.0
  %81 = vmatpush1.msra.mxu0 %v31
  %82 = vmatprep.subr.mxu0 0.0
  %83 = vmatpush1.msra.mxu0 %v32
  %84 = vmatprep.subr.mxu0 0.0
  %85 = vmatpush1.msra.mxu0 %v33
  %86 = vmatprep.subr.mxu0 0.0
  %87 = vmatpush1.msra.mxu0 %v34
  %88 = vmatprep.subr.mxu0 0.0
  %89 = vmatpush1.msra.mxu0 %v35
  %90 = vmatprep.subr.mxu0 0.0
  %91 = vmatpush1.msra.mxu0 %v36
  %92 = vmatprep.subr.mxu0 0.0
  %93 = vmatpush1.msra.mxu0 %v37
  %94 = vmatprep.subr.mxu0 0.0
  %95 = vmatpush1.msra.mxu0 %v38
  %96 = vmatprep.subr.mxu0 0.0
  %97 = vmatpush1.msra.mxu0 %v39
  %98 = vmatprep.subr.mxu0 0.0
  %99 = vmatpush1.msra.mxu0 %v40
  %100 = vmatprep.subr.mxu0 0.0
  %101 = vmatpush1.msra.mxu0 %v41
  %102 = vmatprep.subr.mxu0 0.0
  %103 = vmatpush1.msra.mxu0 %v42
  %104 = vmatprep.subr.mxu0 0.0
  %105 = vmatpush1.msra.mxu0 %v43
  %106 = vmatprep.subr.mxu0 0.0
  %107 = vmatpush1.msra.mxu0 %v44
  %108 = vmatprep.subr.mxu0 0.0
  %109 = vmatpush1.msra.mxu0 %v45
  %110 = vmatprep.subr.mxu0 0.0
  %111 = vmatpush1.msra.mxu0 %v46
  %112 = vmatprep.subr.mxu0 0.0
  %113 = vmatpush1.msra.mxu0 %v47
  %114 = vmatprep.subr.mxu0 0.0
  %115 = vmatpush1.msra.mxu0 %v48
  %116 = vmatprep.subr.mxu0 0.0
  %117 = vmatpush1.msra.mxu0 %v49
  %118 = vmatprep.subr.mxu0 0.0
  %119 = vmatpush1.msra.mxu0 %v50
  %120 = vmatprep.subr.mxu0 0.0
  %121 = vmatpush1.msra.mxu0 %v51
  %122 = vmatprep.subr.mxu0 0.0
  %123 = vmatpush1.msra.mxu0 %v52
  %124 = vmatprep.mubr.f32.mxu0 %v18
  %125 = vmatmul.mubr.f32.gmra.mrb[0].mxu0 %v17
  %v126 = vpop.f32.mrb[0].mxu0
  %v127 = vadd.f32 %v58, %v126
  %v128 = vpop.f32.mrb[0].mxu0
  %129 = vmatprep.mubr.f32.mxu0 %v20
  %130 = vmatmul.mubr.f32.gmra.mrb[0].mxu0 %v19
  %v131 = vpop.f32.mrb[0].mxu0
  %v132 = vadd.f32 %v58, %v131
  %v133 = vpop.f32.mrb[0].mxu0
  %134 = vdwg.mxu0
  %v135 = vmax.f32 %v127, 0.0
  %v136 = vmax.f32 %v132, 0.0
  %v137 = vld [vmem:[%s3] sm:$0xff]
  %v138 = vadd.f32 %v135, %v137
  %v139 = vadd.f32 %v136, %v137
  %vm140 = vcmask 261120
  %141 = vst.msk [vmem:[%s4] sm:$0xff] %vm140, %v138
  %142 = vst.msk [vmem:[%s4 + $0x8] sm:$0xff] %vm140, %v139
  // Predicated region
  $region18: #{ppo_transformer_forward.5} parent=0 // pred_check
    _
  $region19: #{ppo_transformer_forward.5} parent=0 // pred_check_branch
    %144 = sbr.rel (0) target = $region21
  $region20: #{ppo_transformer_forward.5} parent=0 // pred_region
    _
  $region21: #{ppo_transformer_forward.5} parent=0 // pred_fallthru
    _
  // Predicated region
  $region22: #{ppo_transformer_forward.5} parent=0 // pred_check
    _
  $region23: #{ppo_transformer_forward.5} parent=0 // pred_check_branch
    %146 = sbr.rel (0) target = $region25
  $region24: #{ppo_transformer_forward.5} parent=0 // pred_region
    _
  $region25: #{ppo_transformer_forward.5} parent=0 // pred_fallthru
    _

// kernel: ppo_transformer_forward.9
$region0: #{ppo_transformer_forward.9}
  #allocation0 [shape = 'u32[]', space=smem, size = 0x4, offset = 0x4, fixed_abs, tag = 'smem constant byte address 0x4 - core index']
  #allocation1 [shape = 'u32[144,128]{1,0:T(1,128)}', space=vmem, size = 0x12000, scoped, tag = 'internal scratch']
  #allocation2 [shape = 'f32[1,1]{1,0:T(1,128)S(1)}', space=vmem, size = 0x200, scoped, tag = 'scoped memory for ppo_transformer_forward.9']
  %s0 = inlined_call_operand.vmem [shape: f32[16,32], index: 0, kind: input, shape index: {}]
  %s1 = inlined_call_operand.vmem [shape: f32[2,32], index: 1, kind: input, shape index: {}]
  %s2 = inlined_call_operand.vmem [shape: f32[64,6], index: 2, kind: input, shape index: {}]
  %s3 = inlined_call_operand.vmem [shape: f32[1,6], index: 3, kind: input, shape index: {}]
  %s4 = inlined_call_operand.vmem [shape: f32[64,1], index: 4, kind: input, shape index: {}]
  %s5 = inlined_call_operand.<no memory space> [shape: f32[1,1], index: 5, kind: input, shape index: {}]
  %s6 = inlined_call_operand.hbm [shape: f32[2,6], index: 6, kind: output, shape index: {0}]
  %s7 = inlined_call_operand.vmem [shape: f32[2,1], index: 7, kind: output, shape index: {1}]
  %8 = xla_tuple %s6, %s7
  %s9 = sld [smem:[#allocation0]]
  $region42: #{ppo_transformer_forward.9} parent=0
    _
  %s11 = ssub.s32 1, %s9
  %s12 = scalar_select 0, %s11, %s9
  %v13 = vstv %s5
  %14 = vst [vmem:[#allocation2] sm:$0x1] %v13
  $region1: #{ppo_transformer_forward.9} parent=0
    #allocation3 [shape = 'u8[1024]{0}', space=vmem, size = 0x400, scoped, tag = 'output window, operand 0, single buffered']
    #allocation4 [shape = 's32[1]{0}', space=sflag, size = 0x4, scoped, tag = 'scoped memory for ppo_transformer_forward.9']
    %15 = vsyncpa [#allocation4], 0
    // Predicated region
    $region2: #{ppo_transformer_forward.9} parent=1 // pred_check
      _
    $region3: #{ppo_transformer_forward.9} parent=1 // pred_check_branch
      %17 = sbr.rel (0) target = $region5
    $region4: #{ppo_transformer_forward.9} parent=1 // pred_region
      _
    $region5: #{ppo_transformer_forward.9} parent=1 // pred_fallthru
      _
    // Predicated region
    $region6: #{ppo_transformer_forward.9} parent=1 // pred_check
      _
    $region7: #{ppo_transformer_forward.9} parent=1 // pred_check_branch
      %19 = sbr.rel (0) target = $region9
    $region8: #{ppo_transformer_forward.9} parent=1 // pred_region
      _
    $region9: #{ppo_transformer_forward.9} parent=1 // pred_fallthru
      _
    // Predicated region
    $region10: #{ppo_transformer_forward.9} parent=1 // pred_check
      _
    $region11: #{ppo_transformer_forward.9} parent=1 // pred_check_branch
      %21 = sbr.rel (0) target = $region13
    $region12: #{ppo_transformer_forward.9} parent=1 // pred_region
      _
    $region13: #{ppo_transformer_forward.9} parent=1 // pred_fallthru
      _
    // Predicated region
    $region14: #{ppo_transformer_forward.9} parent=1 // pred_check
      _
    $region15: #{ppo_transformer_forward.9} parent=1 // pred_check_branch
      %23 = sbr.rel (0) target = $region17
    $region16: #{ppo_transformer_forward.9} parent=1 // pred_region
      _
    $region17: #{ppo_transformer_forward.9} parent=1 // pred_fallthru
      _
    // Predicated region
    $region18: #{ppo_transformer_forward.9} parent=1 // pred_check
      _
    $region19: #{ppo_transformer_forward.9} parent=1 // pred_check_branch
      %25 = sbr.rel (0) target = $region21
    $region20: #{ppo_transformer_forward.9} parent=1 // pred_region
      _
    $region21: #{ppo_transformer_forward.9} parent=1 // pred_fallthru
      _
    // Predicated region
    $region22: #{ppo_transformer_forward.9} parent=1 // pred_check
      _
    $region23: #{ppo_transformer_forward.9} parent=1 // pred_check_branch
      %27 = sbr.rel (0) target = $region25
    $region24: #{ppo_transformer_forward.9} parent=1 // pred_region
      _
    $region25: #{ppo_transformer_forward.9} parent=1 // pred_fallthru
      _
    %v28 = vld [vmem:[%s0] sm:$0xff]
    %v29 = vld [vmem:[%s0 + $0x8] sm:$0xff]
    %v31 = vrot.slane %v28, 7
    %v34 = vrot.slane %v29, 6
    %vm36 = vcmask 1040384
    %v37 = vsel %vm36, %v31, %v34
    %v38 = vld [vmem:[%s1] sm:$0x3]
    %40 = vrot.lane.b32.xlu0 %v38, 32
    %v41 = vpop.permute.xlu0 %40
    %vm43 = vcmask 261120
    %v44 = vsel %vm43, %v37, %v41
    %v45 = vld [vmem:[%s2] sm:$0xff]
    %v46 = vld [vmem:[%s2 + $0x8] sm:$0xff]
    %v47 = vld [vmem:[%s2 + $0x10] sm:$0xff]
    %v48 = vld [vmem:[%s2 + $0x18] sm:$0xff]
    %v49 = vld [vmem:[%s2 + $0x20] sm:$0xff]
    %v50 = vld [vmem:[%s2 + $0x28] sm:$0xff]
    %v51 = vld [vmem:[%s2 + $0x30] sm:$0xff]
    %v52 = vld [vmem:[%s2 + $0x38] sm:$0xff]
    %v53 = vld [vmem:[%s3] sm:$0x1]
    %v55 = vlaneseq
    %v56 = vshrl.u32 %v55, 7
    %v57 = vsub.s32 0, %v56
    %v58 = vrot.slane %v53, %v57
    %vm60 = vcmask 523264
    %v62 = vsel %vm60, %v44, 0
    %64 = vmatprep.subr.mxu0 0.0
    %65 = vmatpush1.msra.mxu0 %v45
    %66 = vmatprep.subr.mxu0 0.0
    %67 = vmatpush1.msra.mxu0 %v46
    %68 = vmatprep.subr.mxu0 0.0
    %69 = vmatpush1.msra.mxu0 %v47
    %70 = vmatprep.subr.mxu0 0.0
    %71 = vmatpush1.msra.mxu0 %v48
    %72 = vmatprep.subr.mxu0 0.0
    %73 = vmatpush1.msra.mxu0 %v49
    %74 = vmatprep.subr.mxu0 0.0
    %75 = vmatpush1.msra.mxu0 %v50
    %76 = vmatprep.subr.mxu0 0.0
    %77 = vmatpush1.msra.mxu0 %v51
    %78 = vmatprep.subr.mxu0 0.0
    %79 = vmatpush1.msra.mxu0 %v52
    %80 = vmatprep.subr.mxu0 0.0
    %81 = vmatpush1.msra.mxu0 0.0
    %82 = vmatprep.subr.mxu0 0.0
    %83 = vmatpush1.msra.mxu0 0.0
    %84 = vmatprep.subr.mxu0 0.0
    %85 = vmatpush1.msra.mxu0 0.0
    %86 = vmatprep.subr.mxu0 0.0
    %87 = vmatpush1.msra.mxu0 0.0
    %88 = vmatprep.subr.mxu0 0.0
    %89 = vmatpush1.msra.mxu0 0.0
    %90 = vmatprep.subr.mxu0 0.0
    %91 = vmatpush1.msra.mxu0 0.0
    %92 = vmatprep.subr.mxu0 0.0
    %93 = vmatpush1.msra.mxu0 0.0
    %94 = vmatprep.subr.mxu0 0.0
    %95 = vmatpush1.msra.mxu0 0.0
    %96 = vmatprep.subr.mxu0 0.0
    %97 = vmatpush1.msra.mxu0 0.0
    %98 = vmatprep.subr.mxu0 0.0
    %99 = vmatpush1.msra.mxu0 0.0
    %100 = vmatprep.subr.mxu0 0.0
    %101 = vmatpush1.msra.mxu0 0.0
    %102 = vmatprep.subr.mxu0 0.0
    %103 = vmatpush1.msra.mxu0 0.0
    %104 = vmatprep.subr.mxu0 0.0
    %105 = vmatpush1.msra.mxu0 0.0
    %106 = vmatprep.subr.mxu0 0.0
    %107 = vmatpush1.msra.mxu0 0.0
    %108 = vmatprep.subr.mxu0 0.0
    %109 = vmatpush1.msra.mxu0 0.0
    %110 = vmatprep.subr.mxu0 0.0
    %111 = vmatpush1.msra.mxu0 0.0
    %112 = vmatprep.subr.mxu0 0.0
    %113 = vmatpush1.msra.mxu0 0.0
    %114 = vmatprep.subr.mxu0 0.0
    %115 = vmatpush1.msra.mxu0 0.0
    %116 = vmatprep.subr.mxu0 0.0
    %117 = vmatpush1.msra.mxu0 0.0
    %118 = vmatprep.subr.mxu0 0.0
    %119 = vmatpush1.msra.mxu0 0.0
    %120 = vmatprep.subr.mxu0 0.0
    %121 = vmatpush1.msra.mxu0 0.0
    %122 = vmatprep.subr.mxu0 0.0
    %123 = vmatpush1.msra.mxu0 0.0
    %124 = vmatprep.subr.mxu0 0.0
    %125 = vmatpush1.msra.mxu0 0.0
    %126 = vmatprep.subr.mxu0 0.0
    %127 = vmatpush1.msra.mxu0 0.0
    %128 = vmatprep.mubr.f32.mxu0 0.0
    %129 = vmatmul.mubr.f32.gmra.mrb[0].mxu0 %v62
    %v130 = vpop.f32.mrb[0].mxu0
    %v131 = vadd.f32 %v58, %v130
    %v132 = vpop.f32.mrb[0].mxu0
    %133 = vdwg.mxu0
    %vm134 = vcmask 41984
    %v135 = vsel %vm134, %v131, -inf
    %136 = vmax.xlane.f32.xlu0 %v135
    %v137 = vpop.xlane.xlu0 %136
    %v138 = vsub.f32 %v131, %v137
    %v139 = vmul.f32 %v138, 1.442695
    %v140 = vpow.pop %v139
    %v141 = vsel %vm134, %v140, 0.0
    %142 = vadd.xlane.f32.xlu0 %v141
    %v143 = vpop.xlane.xlu0 %142
    %v144 = vrcp.pop %v143
    %v145 = vmul.f32 %v140, %v144
    %146 = vst.msk [vmem:[#allocation3] sm:$0x3] %vm134, %v145
    %v147 = vld [vmem:[%s4] sm:$0xff]
    %v148 = vld [vmem:[%s4 + $0x8] sm:$0xff]
    %v149 = vld [vmem:[%s4 + $0x10] sm:$0xff]
    %v150 = vld [vmem:[%s4 + $0x18] sm:$0xff]
    %v151 = vld [vmem:[%s4 + $0x20] sm:$0xff]
    %v152 = vld [vmem:[%s4 + $0x28] sm:$0xff]
    %v153 = vld [vmem:[%s4 + $0x30] sm:$0xff]
    %v154 = vld [vmem:[%s4 + $0x38] sm:$0xff]
    %v155 = vld [vmem:[#allocation2] sm:$0x1]
    %v157 = vlaneseq
    %v158 = vshrl.u32 %v157, 7
    %v159 = vsub.s32 0, %v158
    %v160 = vrot.slane %v155, %v159
    %162 = vmatprep.subr.mxu0 0.0
    %163 = vmatpush1.msra.mxu0 %v147
    %164 = vmatprep.subr.mxu0 0.0
    %165 = vmatpush1.msra.mxu0 %v148
    %166 = vmatprep.subr.mxu0 0.0
    %167 = vmatpush1.msra.mxu0 %v149
    %168 = vmatprep.subr.mxu0 0.0
    %169 = vmatpush1.msra.mxu0 %v150
    %170 = vmatprep.subr.mxu0 0.0
    %171 = vmatpush1.msra.mxu0 %v151
    %172 = vmatprep.subr.mxu0 0.0
    %173 = vmatpush1.msra.mxu0 %v152
    %174 = vmatprep.subr.mxu0 0.0
    %175 = vmatpush1.msra.mxu0 %v153
    %176 = vmatprep.subr.mxu0 0.0
    %177 = vmatpush1.msra.mxu0 %v154
    %178 = vmatprep.subr.mxu0 0.0
    %179 = vmatpush1.msra.mxu0 0.0
    %180 = vmatprep.subr.mxu0 0.0
    %181 = vmatpush1.msra.mxu0 0.0
    %182 = vmatprep.subr.mxu0 0.0
    %183 = vmatpush1.msra.mxu0 0.0
    %184 = vmatprep.subr.mxu0 0.0
    %185 = vmatpush1.msra.mxu0 0.0
    %186 = vmatprep.subr.mxu0 0.0
    %187 = vmatpush1.msra.mxu0 0.0
    %188 = vmatprep.subr.mxu0 0.0
    %189 = vmatpush1.msra.mxu0 0.0
    %190 = vmatprep.subr.mxu0 0.0
    %191 = vmatpush1.msra.mxu0 0.0
    %192 = vmatprep.subr.mxu0 0.0
    %193 = vmatpush1.msra.mxu0 0.0
    %194 = vmatprep.subr.mxu0 0.0
    %195 = vmatpush1.msra.mxu0 0.0
    %196 = vmatprep.subr.mxu0 0.0
    %197 = vmatpush1.msra.mxu0 0.0
    %198 = vmatprep.subr.mxu0 0.0
    %199 = vmatpush1.msra.mxu0 0.0
    %200 = vmatprep.subr.mxu0 0.0
    %201 = vmatpush1.msra.mxu0 0.0
    %202 = vmatprep.subr.mxu0 0.0
    %203 = vmatpush1.msra.mxu0 0.0
    %204 = vmatprep.subr.mxu0 0.0
    %205 = vmatpush1.msra.mxu0 0.0
    %206 = vmatprep.subr.mxu0 0.0
    %207 = vmatpush1.msra.mxu0 0.0
    %208 = vmatprep.subr.mxu0 0.0
    %209 = vmatpush1.msra.mxu0 0.0
    %210 = vmatprep.subr.mxu0 0.0
    %211 = vmatpush1.msra.mxu0 0.0
    %212 = vmatprep.subr.mxu0 0.0
    %213 = vmatpush1.msra.mxu0 0.0
    %214 = vmatprep.subr.mxu0 0.0
    %215 = vmatpush1.msra.mxu0 0.0
    %216 = vmatprep.subr.mxu0 0.0
    %217 = vmatpush1.msra.mxu0 0.0
    %218 = vmatprep.subr.mxu0 0.0
    %219 = vmatpush1.msra.mxu0 0.0
    %220 = vmatprep.subr.mxu0 0.0
    %221 = vmatpush1.msra.mxu0 0.0
    %222 = vmatprep.subr.mxu0 0.0
    %223 = vmatpush1.msra.mxu0 0.0
    %224 = vmatprep.subr.mxu0 0.0
    %225 = vmatpush1.msra.mxu0 0.0
    %226 = vmatprep.mubr.f32.mxu0 0.0
    %227 = vmatmul.mubr.f32.gmra.mrb[0].mxu0 %v62
    %v228 = vpop.f32.mrb[0].mxu0
    %v229 = vadd.f32 %v160, %v228
    %v230 = vpop.f32.mrb[0].mxu0
    %231 = vdwg.mxu0
    %vm232 = vcmask 1024
    %233 = vst.msk [vmem:[%s7] sm:$0x3] %vm232, %v229
    // Predicated region
    $region26: #{ppo_transformer_forward.9} parent=1 // pred_check
      _
    $region27: #{ppo_transformer_forward.9} parent=1 // pred_check_branch
      %235 = sbr.rel (0) target = $region29
    $region28: #{ppo_transformer_forward.9} parent=1 // pred_region
      %s237 = ssub.s32 32, 32
      %238 = vsyncadd [#allocation4], %s237
      %s240 = sshll.u32 [#allocation3], 4
      %s241 = int_to_ptr.vmem [resolvable:$true] %s240
      %243 = dma.vmem_to_hbm [thread:$0]  %s241, 32, %s6, [#allocation4]
    $region29: #{ppo_transformer_forward.9} parent=1 // pred_fallthru
      _
    // Predicated region
    $region30: #{ppo_transformer_forward.9} parent=1 // pred_check
      _
    $region31: #{ppo_transformer_forward.9} parent=1 // pred_check_branch
      %245 = sbr.rel (0) target = $region33
    $region32: #{ppo_transformer_forward.9} parent=1 // pred_region
      _
    $region33: #{ppo_transformer_forward.9} parent=1 // pred_fallthru
      _
    // Predicated region
    $region34: #{ppo_transformer_forward.9} parent=1 // pred_check
      _
    $region35: #{ppo_transformer_forward.9} parent=1 // pred_check_branch
      %247 = sbr.rel (0) target = $region37
    $region36: #{ppo_transformer_forward.9} parent=1 // pred_region
      %248 = dma.done [#allocation4], 32
    $region37: #{ppo_transformer_forward.9} parent=1 // pred_fallthru
      _
    // Predicated region
    $region38: #{ppo_transformer_forward.9} parent=1 // pred_check
      _
    $region39: #{ppo_transformer_forward.9} parent=1 // pred_check_branch
      %250 = sbr.rel (0) target = $region41
    $region40: #{ppo_transformer_forward.9} parent=1 // pred_region
      _
    $region41: #{ppo_transformer_forward.9} parent=1 // pred_fallthru
      _
    %251 = vsyncpa [#allocation4], 1

// kernel: ppo_transformer_forward.8
$region0: #{ppo_transformer_forward.8}
  #allocation0 [shape = 'u32[]', space=smem, size = 0x4, offset = 0x4, fixed_abs, tag = 'smem constant byte address 0x4 - core index']
  #allocation1 [shape = 'u32[144,128]{1,0:T(1,128)}', space=vmem, size = 0x12000, scoped, tag = 'internal scratch']
  %s0 = inlined_call_operand.vmem [shape: f32[8,6], index: 0, kind: input, shape index: {}]
  %s1 = inlined_call_operand.vmem [shape: f32[6,16], index: 1, kind: input, shape index: {}]
  %s2 = inlined_call_operand.vmem [shape: f32[1,16], index: 2, kind: input, shape index: {}]
  %s3 = inlined_call_operand.vmem [shape: f32[16,32], index: 3, kind: input, shape index: {}]
  %s4 = inlined_call_operand.vmem [shape: f32[1,32], index: 4, kind: input, shape index: {}]
  %s5 = inlined_call_operand.vmem [shape: f32[32,96], index: 5, kind: input, shape index: {}]
  %s6 = inlined_call_operand.vmem [shape: f32[1,96], index: 6, kind: input, shape index: {}]
  %s7 = inlined_call_operand.vmem [shape: f32[32,32], index: 7, kind: input, shape index: {}]
  %s8 = inlined_call_operand.vmem [shape: f32[1,32], index: 8, kind: input, shape index: {}]
  %s9 = inlined_call_operand.vmem [shape: f32[32,32], index: 9, kind: input, shape index: {}]
  %s10 = inlined_call_operand.vmem [shape: f32[1,32], index: 10, kind: input, shape index: {}]
  %s11 = inlined_call_operand.vmem [shape: f32[2,32], index: 11, kind: output, shape index: {}]
  %s12 = sld [smem:[#allocation0]]
  $region54: #{ppo_transformer_forward.8} parent=0
    _
  %s14 = ssub.s32 1, %s12
  %s15 = scalar_select 0, %s14, %s12
  // Predicated region
  $region2: #{ppo_transformer_forward.8} parent=0 // pred_check
    _
  $region3: #{ppo_transformer_forward.8} parent=0 // pred_check_branch
    %17 = sbr.rel (0) target = $region5
  $region4: #{ppo_transformer_forward.8} parent=0 // pred_region
    _
  $region5: #{ppo_transformer_forward.8} parent=0 // pred_fallthru
    _
  // Predicated region
  $region6: #{ppo_transformer_forward.8} parent=0 // pred_check
    _
  $region7: #{ppo_transformer_forward.8} parent=0 // pred_check_branch
    %19 = sbr.rel (0) target = $region9
  $region8: #{ppo_transformer_forward.8} parent=0 // pred_region
    _
  $region9: #{ppo_transformer_forward.8} parent=0 // pred_fallthru
    _
  // Predicated region
  $region10: #{ppo_transformer_forward.8} parent=0 // pred_check
    _
  $region11: #{ppo_transformer_forward.8} parent=0 // pred_check_branch
    %21 = sbr.rel (0) target = $region13
  $region12: #{ppo_transformer_forward.8} parent=0 // pred_region
    _
  $region13: #{ppo_transformer_forward.8} parent=0 // pred_fallthru
    _
  // Predicated region
  $region14: #{ppo_transformer_forward.8} parent=0 // pred_check
    _
  $region15: #{ppo_transformer_forward.8} parent=0 // pred_check_branch
    %23 = sbr.rel (0) target = $region17
  $region16: #{ppo_transformer_forward.8} parent=0 // pred_region
    _
  $region17: #{ppo_transformer_forward.8} parent=0 // pred_fallthru
    _
  // Predicated region
  $region18: #{ppo_transformer_forward.8} parent=0 // pred_check
    _
  $region19: #{ppo_transformer_forward.8} parent=0 // pred_check_branch
    %25 = sbr.rel (0) target = $region21
  $region20: #{ppo_transformer_forward.8} parent=0 // pred_region
    _
  $region21: #{ppo_transformer_forward.8} parent=0 // pred_fallthru
    _
  // Predicated region
  $region22: #{ppo_transformer_forward.8} parent=0 // pred_check
    _
  $region23: #{ppo_transformer_forward.8} parent=0 // pred_check_branch
    %27 = sbr.rel (0) target = $region25
  $region24: #{ppo_transformer_forward.8} parent=0 // pred_region
    _
  $region25: #{ppo_transformer_forward.8} parent=0 // pred_fallthru
    _
  // Predicated region
  $region26: #{ppo_transformer_forward.8} parent=0 // pred_check
    _
  $region27: #{ppo_transformer_forward.8} parent=0 // pred_check_branch
    %29 = sbr.rel (0) target = $region29
  $region28: #{ppo_transformer_forward.8} parent=0 // pred_region
    _
  $region29: #{ppo_transformer_forward.8} parent=0 // pred_fallthru
    _
  // Predicated region
  $region30: #{ppo_transformer_forward.8} parent=0 // pred_check
    _
  $region31: #{ppo_transformer_forward.8} parent=0 // pred_check_branch
    %31 = sbr.rel (0) target = $region33
  $region32: #{ppo_transformer_forward.8} parent=0 // pred_region
    _
  $region33: #{ppo_transformer_forward.8} parent=0 // pred_fallthru
    _
  // Predicated region
  $region34: #{ppo_transformer_forward.8} parent=0 // pred_check
    _
  $region35: #{ppo_transformer_forward.8} parent=0 // pred_check_branch
    %33 = sbr.rel (0) target = $region37
  $region36: #{ppo_transformer_forward.8} parent=0 // pred_region
    _
  $region37: #{ppo_transformer_forward.8} parent=0 // pred_fallthru
    _
  // Predicated region
  $region38: #{ppo_transformer_forward.8} parent=0 // pred_check
    _
  $region39: #{ppo_transformer_forward.8} parent=0 // pred_check_branch
    %35 = sbr.rel (0) target = $region41
  $region40: #{ppo_transformer_forward.8} parent=0 // pred_region
    _
  $region41: #{ppo_transformer_forward.8} parent=0 // pred_fallthru
    _
  // Predicated region
  $region42: #{ppo_transformer_forward.8} parent=0 // pred_check
    _
  $region43: #{ppo_transformer_forward.8} parent=0 // pred_check_branch
    %37 = sbr.rel (0) target = $region45
  $region44: #{ppo_transformer_forward.8} parent=0 // pred_region
    _
  $region45: #{ppo_transformer_forward.8} parent=0 // pred_fallthru
    _
  %v38 = vld [vmem:[%s0] sm:$0xff]
  %v39 = vld [vmem:[%s1] sm:$0x3f]
  %v40 = vld [vmem:[%s2] sm:$0x1]
  %v42 = vlaneseq
  %v43 = vshrl.u32 %v42, 7
  %v44 = vsub.s32 0, %v43
  %v45 = vrot.slane %v40, %v44
  %vm47 = vcmask 48128
  %v49 = vsel %vm47, %v38, 0
  %vm51 = vcmask 1045504
  %v53 = vsel %vm51, %v39, 0
  %55 = vmatprep.subr.mxu0 0.0
  %56 = vmatpush1.msra.mxu0 %v53
  %57 = vmatprep.subr.mxu0 0.0
  %58 = vmatpush1.msra.mxu0 0.0
  %59 = vmatprep.subr.mxu0 0.0
  %60 = vmatpush1.msra.mxu0 0.0
  %61 = vmatprep.subr.mxu0 0.0
  %62 = vmatpush1.msra.mxu0 0.0
  %63 = vmatprep.subr.mxu0 0.0
  %64 = vmatpush1.msra.mxu0 0.0
  %65 = vmatprep.subr.mxu0 0.0
  %66 = vmatpush1.msra.mxu0 0.0
  %67 = vmatprep.subr.mxu0 0.0
  %68 = vmatpush1.msra.mxu0 0.0
  %69 = vmatprep.subr.mxu0 0.0
  %70 = vmatpush1.msra.mxu0 0.0
  %71 = vmatprep.subr.mxu0 0.0
  %72 = vmatpush1.msra.mxu0 0.0
  %73 = vmatprep.subr.mxu0 0.0
  %74 = vmatpush1.msra.mxu0 0.0
  %75 = vmatprep.subr.mxu0 0.0
  %76 = vmatpush1.msra.mxu0 0.0
  %77 = vmatprep.subr.mxu0 0.0
  %78 = vmatpush1.msra.mxu0 0.0
  %79 = vmatprep.subr.mxu0 0.0
  %80 = vmatpush1.msra.mxu0 0.0
  %81 = vmatprep.subr.mxu0 0.0
  %82 = vmatpush1.msra.mxu0 0.0
  %83 = vmatprep.subr.mxu0 0.0
  %84 = vmatpush1.msra.mxu0 0.0
  %85 = vmatprep.subr.mxu0 0.0
  %86 = vmatpush1.msra.mxu0 0.0
  %87 = vmatprep.subr.mxu0 0.0
  %88 = vmatpush1.msra.mxu0 0.0
  %89 = vmatprep.subr.mxu0 0.0
  %90 = vmatpush1.msra.mxu0 0.0
  %91 = vmatprep.subr.mxu0 0.0
  %92 = vmatpush1.msra.mxu0 0.0
  %93 = vmatprep.subr.mxu0 0.0
  %94 = vmatpush1.msra.mxu0 0.0
  %95 = vmatprep.subr.mxu0 0.0
  %96 = vmatpush1.msra.mxu0 0.0
  %97 = vmatprep.subr.mxu0 0.0
  %98 = vmatpush1.msra.mxu0 0.0
  %99 = vmatprep.subr.mxu0 0.0
  %100 = vmatpush1.msra.mxu0 0.0
  %101 = vmatprep.subr.mxu0 0.0
  %102 = vmatpush1.msra.mxu0 0.0
  %103 = vmatprep.subr.mxu0 0.0
  %104 = vmatpush1.msra.mxu0 0.0
  %105 = vmatprep.subr.mxu0 0.0
  %106 = vmatpush1.msra.mxu0 0.0
  %107 = vmatprep.subr.mxu0 0.0
  %108 = vmatpush1.msra.mxu0 0.0
  %109 = vmatprep.subr.mxu0 0.0
  %110 = vmatpush1.msra.mxu0 0.0
  %111 = vmatprep.subr.mxu0 0.0
  %112 = vmatpush1.msra.mxu0 0.0
  %113 = vmatprep.subr.mxu0 0.0
  %114 = vmatpush1.msra.mxu0 0.0
  %115 = vmatprep.subr.mxu0 0.0
  %116 = vmatpush1.msra.mxu0 0.0
  %117 = vmatprep.subr.mxu0 0.0
  %118 = vmatpush1.msra.mxu0 0.0
  %119 = vmatprep.mubr.f32.mxu0 0.0
  %120 = vmatmul.mubr.f32.gmra.mrb[0].mxu0 %v49
  %v121 = vpop.f32.mrb[0].mxu0
  %v122 = vadd.f32 %v45, %v121
  %v123 = vpop.f32.mrb[0].mxu0
  %124 = vdwg.mxu0
  %v125 = vmax.f32 %v122, 0.0
  %v126 = vld [vmem:[%s3] sm:$0xff]
  %v127 = vld [vmem:[%s3 + $0x8] sm:$0xff]
  %v128 = vld [vmem:[%s4] sm:$0x1]
  %v130 = vlaneseq
  %v131 = vshrl.u32 %v130, 7
  %v132 = vsub.s32 0, %v131
  %v133 = vrot.slane %v128, %v132
  %vm135 = vcmask 130048
  %v137 = vsel %vm135, %v125, 0
  %139 = vmatprep.subr.mxu0 0.0
  %140 = vmatpush1.msra.mxu0 %v126
  %141 = vmatprep.subr.mxu0 0.0
  %142 = vmatpush1.msra.mxu0 %v127
  %143 = vmatprep.subr.mxu0 0.0
  %144 = vmatpush1.msra.mxu0 0.0
  %145 = vmatprep.subr.mxu0 0.0
  %146 = vmatpush1.msra.mxu0 0.0
  %147 = vmatprep.subr.mxu0 0.0
  %148 = vmatpush1.msra.mxu0 0.0
  %149 = vmatprep.subr.mxu0 0.0
  %150 = vmatpush1.msra.mxu0 0.0
  %151 = vmatprep.subr.mxu0 0.0
  %152 = vmatpush1.msra.mxu0 0.0
  %153 = vmatprep.subr.mxu0 0.0
  %154 = vmatpush1.msra.mxu0 0.0
  %155 = vmatprep.subr.mxu0 0.0
  %156 = vmatpush1.msra.mxu0 0.0
  %157 = vmatprep.subr.mxu0 0.0
  %158 = vmatpush1.msra.mxu0 0.0
  %159 = vmatprep.subr.mxu0 0.0
  %160 = vmatpush1.msra.mxu0 0.0
  %161 = vmatprep.subr.mxu0 0.0
  %162 = vmatpush1.msra.mxu0 0.0
  %163 = vmatprep.subr.mxu0 0.0
  %164 = vmatpush1.msra.mxu0 0.0
  %165 = vmatprep.subr.mxu0 0.0
  %166 = vmatpush1.msra.mxu0 0.0
  %167 = vmatprep.subr.mxu0 0.0
  %168 = vmatpush1.msra.mxu0 0.0
  %169 = vmatprep.subr.mxu0 0.0
  %170 = vmatpush1.msra.mxu0 0.0
  %171 = vmatprep.subr.mxu0 0.0
  %172 = vmatpush1.msra.mxu0 0.0
  %173 = vmatprep.subr.mxu0 0.0
  %174 = vmatpush1.msra.mxu0 0.0
  %175 = vmatprep.subr.mxu0 0.0
  %176 = vmatpush1.msra.mxu0 0.0
  %177 = vmatprep.subr.mxu0 0.0
  %178 = vmatpush1.msra.mxu0 0.0
  %179 = vmatprep.subr.mxu0 0.0
  %180 = vmatpush1.msra.mxu0 0.0
  %181 = vmatprep.subr.mxu0 0.0
  %182 = vmatpush1.msra.mxu0 0.0
  %183 = vmatprep.subr.mxu0 0.0
  %184 = vmatpush1.msra.mxu0 0.0
  %185 = vmatprep.subr.mxu0 0.0
  %186 = vmatpush1.msra.mxu0 0.0
  %187 = vmatprep.subr.mxu0 0.0
  %188 = vmatpush1.msra.mxu0 0.0
  %189 = vmatprep.subr.mxu0 0.0
  %190 = vmatpush1.msra.mxu0 0.0
  %191 = vmatprep.subr.mxu0 0.0
  %192 = vmatpush1.msra.mxu0 0.0
  %193 = vmatprep.subr.mxu0 0.0
  %194 = vmatpush1.msra.mxu0 0.0
  %195 = vmatprep.subr.mxu0 0.0
  %196 = vmatpush1.msra.mxu0 0.0
  %197 = vmatprep.subr.mxu0 0.0
  %198 = vmatpush1.msra.mxu0 0.0
  %199 = vmatprep.subr.mxu0 0.0
  %200 = vmatpush1.msra.mxu0 0.0
  %201 = vmatprep.subr.mxu0 0.0
  %202 = vmatpush1.msra.mxu0 0.0
  %203 = vmatprep.mubr.f32.mxu0 0.0
  %204 = vmatmul.mubr.f32.gmra.mrb[0].mxu0 %v137
  %v205 = vpop.f32.mrb[0].mxu0
  %v206 = vadd.f32 %v133, %v205
  %v207 = vpop.f32.mrb[0].mxu0
  %208 = vdwg.mxu0
  %v209 = vmax.f32 %v206, 0.0
  %v210 = vld [vmem:[%s5] sm:$0xff]
  %v211 = vld [vmem:[%s5 + $0x8] sm:$0xff]
  %v212 = vld [vmem:[%s5 + $0x10] sm:$0xff]
  %v213 = vld [vmem:[%s5 + $0x18] sm:$0xff]
  %v214 = vld [vmem:[%s6] sm:$0x1]
  %v216 = vlaneseq
  %v217 = vshrl.u32 %v216, 7
  %v218 = vsub.s32 0, %v217
  %v219 = vrot.slane %v214, %v218
  %vm221 = vcmask 261120
  %v223 = vsel %vm221, %v209, 0
  %225 = vmatprep.subr.mxu0 0.0
  %226 = vmatpush1.msra.mxu0 %v210
  %227 = vmatprep.subr.mxu0 0.0
  %228 = vmatpush1.msra.mxu0 %v211
  %229 = vmatprep.subr.mxu0 0.0
  %230 = vmatpush1.msra.mxu0 %v212
  %231 = vmatprep.subr.mxu0 0.0
  %232 = vmatpush1.msra.mxu0 %v213
  %233 = vmatprep.subr.mxu0 0.0
  %234 = vmatpush1.msra.mxu0 0.0
  %235 = vmatprep.subr.mxu0 0.0
  %236 = vmatpush1.msra.mxu0 0.0
  %237 = vmatprep.subr.mxu0 0.0
  %238 = vmatpush1.msra.mxu0 0.0
  %239 = vmatprep.subr.mxu0 0.0
  %240 = vmatpush1.msra.mxu0 0.0
  %241 = vmatprep.subr.mxu0 0.0
  %242 = vmatpush1.msra.mxu0 0.0
  %243 = vmatprep.subr.mxu0 0.0
  %244 = vmatpush1.msra.mxu0 0.0
  %245 = vmatprep.subr.mxu0 0.0
  %246 = vmatpush1.msra.mxu0 0.0
  %247 = vmatprep.subr.mxu0 0.0
  %248 = vmatpush1.msra.mxu0 0.0
  %249 = vmatprep.subr.mxu0 0.0
  %250 = vmatpush1.msra.mxu0 0.0
  %251 = vmatprep.subr.mxu0 0.0
  %252 = vmatpush1.msra.mxu0 0.0
  %253 = vmatprep.subr.mxu0 0.0
  %254 = vmatpush1.msra.mxu0 0.0
  %255 = vmatprep.subr.mxu0 0.0
  %256 = vmatpush1.msra.mxu0 0.0
  %257 = vmatprep.subr.mxu0 0.0
  %258 = vmatpush1.msra.mxu0 0.0
  %259 = vmatprep.subr.mxu0 0.0
  %260 = vmatpush1.msra.mxu0 0.0
  %261 = vmatprep.subr.mxu0 0.0
  %262 = vmatpush1.msra.mxu0 0.0
  %263 = vmatprep.subr.mxu0 0.0
  %264 = vmatpush1.msra.mxu0 0.0
  %265 = vmatprep.subr.mxu0 0.0
  %266 = vmatpush1.msra.mxu0 0.0
  %267 = vmatprep.subr.mxu0 0.0
  %268 = vmatpush1.msra.mxu0 0.0
  %269 = vmatprep.subr.mxu0 0.0
  %270 = vmatpush1.msra.mxu0 0.0
  %271 = vmatprep.subr.mxu0 0.0
  %272 = vmatpush1.msra.mxu0 0.0
  %273 = vmatprep.subr.mxu0 0.0
  %274 = vmatpush1.msra.mxu0 0.0
  %275 = vmatprep.subr.mxu0 0.0
  %276 = vmatpush1.msra.mxu0 0.0
  %277 = vmatprep.subr.mxu0 0.0
  %278 = vmatpush1.msra.mxu0 0.0
  %279 = vmatprep.subr.mxu0 0.0
  %280 = vmatpush1.msra.mxu0 0.0
  %281 = vmatprep.subr.mxu0 0.0
  %282 = vmatpush1.msra.mxu0 0.0
  %283 = vmatprep.subr.mxu0 0.0
  %284 = vmatpush1.msra.mxu0 0.0
  %285 = vmatprep.subr.mxu0 0.0
  %286 = vmatpush1.msra.mxu0 0.0
  %287 = vmatprep.subr.mxu0 0.0
  %288 = vmatpush1.msra.mxu0 0.0
  %289 = vmatprep.mubr.f32.mxu0 0.0
  %290 = vmatmul.mubr.f32.gmra.mrb[0].mxu0 %v223
  %v291 = vpop.f32.mrb[0].mxu0
  %v292 = vadd.f32 %v219, %v291
  %v293 = vpop.f32.mrb[0].mxu0
  %294 = vdwg.mxu0
  %296 = vrot.lane.b32.xlu0 %v292, 96
  %v297 = vpop.permute.xlu0 %296
  %vm298 = vcmask 64512
  %v299 = vsel %vm298, %v292, 0
  %v301 = vsel %vm298, %v297, 0
  %303 = vmatprep.subr.mxu0 0.0
  %304 = vmatpush1.xpose.msra.mxu0 %v301
  %305 = vmatprep.subr.mxu0 0.0
  %306 = vmatpush1.xpose.msra.mxu0 0.0
  %307 = vmatprep.subr.mxu0 0.0
  %308 = vmatpush1.xpose.msra.mxu0 0.0
  %309 = vmatprep.subr.mxu0 0.0
  %310 = vmatpush1.xpose.msra.mxu0 0.0
  %311 = vmatprep.subr.mxu0 0.0
  %312 = vmatpush1.xpose.msra.mxu0 0.0
  %313 = vmatprep.subr.mxu0 0.0
  %314 = vmatpush1.xpose.msra.mxu0 0.0
  %315 = vmatprep.subr.mxu0 0.0
  %316 = vmatpush1.xpose.msra.mxu0 0.0
  %317 = vmatprep.subr.mxu0 0.0
  %318 = vmatpush1.xpose.msra.mxu0 0.0
  %319 = vmatprep.subr.mxu0 0.0
  %320 = vmatpush1.xpose.msra.mxu0 0.0
  %321 = vmatprep.subr.mxu0 0.0
  %322 = vmatpush1.xpose.msra.mxu0 0.0
  %323 = vmatprep.subr.mxu0 0.0
  %324 = vmatpush1.xpose.msra.mxu0 0.0
  %325 = vmatprep.subr.mxu0 0.0
  %326 = vmatpush1.xpose.msra.mxu0 0.0
  %327 = vmatprep.subr.mxu0 0.0
  %328 = vmatpush1.xpose.msra.mxu0 0.0
  %329 = vmatprep.subr.mxu0 0.0
  %330 = vmatpush1.xpose.msra.mxu0 0.0
  %331 = vmatprep.subr.mxu0 0.0
  %332 = vmatpush1.xpose.msra.mxu0 0.0
  %333 = vmatprep.subr.mxu0 0.0
  %334 = vmatpush1.xpose.msra.mxu0 0.0
  %335 = vmatprep.subr.mxu0 0.0
  %336 = vmatpush1.xpose.msra.mxu0 0.0
  %337 = vmatprep.subr.mxu0 0.0
  %338 = vmatpush1.xpose.msra.mxu0 0.0
  %339 = vmatprep.subr.mxu0 0.0
  %340 = vmatpush1.xpose.msra.mxu0 0.0
  %341 = vmatprep.subr.mxu0 0.0
  %342 = vmatpush1.xpose.msra.mxu0 0.0
  %343 = vmatprep.subr.mxu0 0.0
  %344 = vmatpush1.xpose.msra.mxu0 0.0
  %345 = vmatprep.subr.mxu0 0.0
  %346 = vmatpush1.xpose.msra.mxu0 0.0
  %347 = vmatprep.subr.mxu0 0.0
  %348 = vmatpush1.xpose.msra.mxu0 0.0
  %349 = vmatprep.subr.mxu0 0.0
  %350 = vmatpush1.xpose.msra.mxu0 0.0
  %351 = vmatprep.subr.mxu0 0.0
  %352 = vmatpush1.xpose.msra.mxu0 0.0
  %353 = vmatprep.subr.mxu0 0.0
  %354 = vmatpush1.xpose.msra.mxu0 0.0
  %355 = vmatprep.subr.mxu0 0.0
  %356 = vmatpush1.xpose.msra.mxu0 0.0
  %357 = vmatprep.subr.mxu0 0.0
  %358 = vmatpush1.xpose.msra.mxu0 0.0
  %359 = vmatprep.subr.mxu0 0.0
  %360 = vmatpush1.xpose.msra.mxu0 0.0
  %361 = vmatprep.subr.mxu0 0.0
  %362 = vmatpush1.xpose.msra.mxu0 0.0
  %363 = vmatprep.subr.mxu0 0.0
  %364 = vmatpush1.xpose.msra.mxu0 0.0
  %365 = vmatprep.subr.mxu0 0.0
  %366 = vmatpush1.xpose.msra.mxu0 0.0
  %367 = vmatprep.mubr.f32.mxu0 0.0
  %368 = vmatmul.mubr.f32.gmra.mrb[0].mxu0 %v299
  %v369 = vpop.f32.mrb[0].mxu0
  %v370 = vadd.f32 0.0, %v369
  %v371 = vpop.f32.mrb[0].mxu0
  %372 = vdwg.mxu0
  %v373 = vmul.f32 %v370, 0.35355338
  %vm374 = vcmask 27648
  %v375 = vsel %vm374, %v373, -inf
  %376 = vmax.xlane.f32.xlu0 %v375
  %v377 = vpop.xlane.xlu0 %376
  %v378 = vsub.f32 %v373, %v377
  %v379 = vmul.f32 %v378, 1.442695
  %v380 = vpow.pop %v379
  %v381 = vsel %vm374, %v380, 0.0
  %382 = vadd.xlane.f32.xlu0 %v381
  %v383 = vpop.xlane.xlu0 %382
  %v384 = vrcp.pop %v383
  %v385 = vmul.f32 %v380, %v384
  %386 = vrot.lane.b32.xlu0 %v292, 64
  %v387 = vpop.permute.xlu0 %386
  %vm388 = vcmask 31744
  %v390 = vsel %vm388, %v385, 0
  %vm392 = vcmask 1043456
  %v393 = vsel %vm392, %v387, 0
  %395 = vmatprep.subr.mxu0 0.0
  %396 = vmatpush1.msra.mxu0 %v393
  %397 = vmatprep.subr.mxu0 0.0
  %398 = vmatpush1.msra.mxu0 0.0
  %399 = vmatprep.subr.mxu0 0.0
  %400 = vmatpush1.msra.mxu0 0.0
  %401 = vmatprep.subr.mxu0 0.0
  %402 = vmatpush1.msra.mxu0 0.0
  %403 = vmatprep.subr.mxu0 0.0
  %404 = vmatpush1.msra.mxu0 0.0
  %405 = vmatprep.subr.mxu0 0.0
  %406 = vmatpush1.msra.mxu0 0.0
  %407 = vmatprep.subr.mxu0 0.0
  %408 = vmatpush1.msra.mxu0 0.0
  %409 = vmatprep.subr.mxu0 0.0
  %410 = vmatpush1.msra.mxu0 0.0
  %411 = vmatprep.subr.mxu0 0.0
  %412 = vmatpush1.msra.mxu0 0.0
  %413 = vmatprep.subr.mxu0 0.0
  %414 = vmatpush1.msra.mxu0 0.0
  %415 = vmatprep.subr.mxu0 0.0
  %416 = vmatpush1.msra.mxu0 0.0
  %417 = vmatprep.subr.mxu0 0.0
  %418 = vmatpush1.msra.mxu0 0.0
  %419 = vmatprep.subr.mxu0 0.0
  %420 = vmatpush1.msra.mxu0 0.0
  %421 = vmatprep.subr.mxu0 0.0
  %422 = vmatpush1.msra.mxu0 0.0
  %423 = vmatprep.subr.mxu0 0.0
  %424 = vmatpush1.msra.mxu0 0.0
  %425 = vmatprep.subr.mxu0 0.0
  %426 = vmatpush1.msra.mxu0 0.0
  %427 = vmatprep.subr.mxu0 0.0
  %428 = vmatpush1.msra.mxu0 0.0
  %429 = vmatprep.subr.mxu0 0.0
  %430 = vmatpush1.msra.mxu0 0.0
  %431 = vmatprep.subr.mxu0 0.0
  %432 = vmatpush1.msra.mxu0 0.0
  %433 = vmatprep.subr.mxu0 0.0
  %434 = vmatpush1.msra.mxu0 0.0
  %435 = vmatprep.subr.mxu0 0.0
  %436 = vmatpush1.msra.mxu0 0.0
  %437 = vmatprep.subr.mxu0 0.0
  %438 = vmatpush1.msra.mxu0 0.0
  %439 = vmatprep.subr.mxu0 0.0
  %440 = vmatpush1.msra.mxu0 0.0
  %441 = vmatprep.subr.mxu0 0.0
  %442 = vmatpush1.msra.mxu0 0.0
  %443 = vmatprep.subr.mxu0 0.0
  %444 = vmatpush1.msra.mxu0 0.0
  %445 = vmatprep.subr.mxu0 0.0
  %446 = vmatpush1.msra.mxu0 0.0
  %447 = vmatprep.subr.mxu0 0.0
  %448 = vmatpush1.msra.mxu0 0.0
  %449 = vmatprep.subr.mxu0 0.0
  %450 = vmatpush1.msra.mxu0 0.0
  %451 = vmatprep.subr.mxu0 0.0
  %452 = vmatpush1.msra.mxu0 0.0
  %453 = vmatprep.subr.mxu0 0.0
  %454 = vmatpush1.msra.mxu0 0.0
  %455 = vmatprep.subr.mxu0 0.0
  %456 = vmatpush1.msra.mxu0 0.0
  %457 = vmatprep.subr.mxu0 0.0
  %458 = vmatpush1.msra.mxu0 0.0
  %459 = vmatprep.mubr.f32.mxu0 0.0
  %460 = vmatmul.mubr.f32.gmra.mrb[0].mxu0 %v390
  %v461 = vpop.f32.mrb[0].mxu0
  %v462 = vadd.f32 0.0, %v461
  %v463 = vpop.f32.mrb[0].mxu0
  %464 = vdwg.mxu0
  %465 = vrot.lane.b32.xlu0 %v292, 120
  %v466 = vpop.permute.xlu0 %465
  %467 = vrot.lane.b32.xlu0 %v292, 88
  %v468 = vpop.permute.xlu0 %467
  %v469 = vsel %vm298, %v466, 0
  %v471 = vsel %vm298, %v468, 0
  %473 = vmatprep.subr.mxu0 0.0
  %474 = vmatpush1.xpose.msra.mxu0 %v471
  %475 = vmatprep.subr.mxu0 0.0
  %476 = vmatpush1.xpose.msra.mxu0 0.0
  %477 = vmatprep.subr.mxu0 0.0
  %478 = vmatpush1.xpose.msra.mxu0 0.0
  %479 = vmatprep.subr.mxu0 0.0
  %480 = vmatpush1.xpose.msra.mxu0 0.0
  %481 = vmatprep.subr.mxu0 0.0
  %482 = vmatpush1.xpose.msra.mxu0 0.0
  %483 = vmatprep.subr.mxu0 0.0
  %484 = vmatpush1.xpose.msra.mxu0 0.0
  %485 = vmatprep.subr.mxu0 0.0
  %486 = vmatpush1.xpose.msra.mxu0 0.0
  %487 = vmatprep.subr.mxu0 0.0
  %488 = vmatpush1.xpose.msra.mxu0 0.0
  %489 = vmatprep.subr.mxu0 0.0
  %490 = vmatpush1.xpose.msra.mxu0 0.0
  %491 = vmatprep.subr.mxu0 0.0
  %492 = vmatpush1.xpose.msra.mxu0 0.0
  %493 = vmatprep.subr.mxu0 0.0
  %494 = vmatpush1.xpose.msra.mxu0 0.0
  %495 = vmatprep.subr.mxu0 0.0
  %496 = vmatpush1.xpose.msra.mxu0 0.0
  %497 = vmatprep.subr.mxu0 0.0
  %498 = vmatpush1.xpose.msra.mxu0 0.0
  %499 = vmatprep.subr.mxu0 0.0
  %500 = vmatpush1.xpose.msra.mxu0 0.0
  %501 = vmatprep.subr.mxu0 0.0
  %502 = vmatpush1.xpose.msra.mxu0 0.0
  %503 = vmatprep.subr.mxu0 0.0
  %504 = vmatpush1.xpose.msra.mxu0 0.0
  %505 = vmatprep.subr.mxu0 0.0
  %506 = vmatpush1.xpose.msra.mxu0 0.0
  %507 = vmatprep.subr.mxu0 0.0
  %508 = vmatpush1.xpose.msra.mxu0 0.0
  %509 = vmatprep.subr.mxu0 0.0
  %510 = vmatpush1.xpose.msra.mxu0 0.0
  %511 = vmatprep.subr.mxu0 0.0
  %512 = vmatpush1.xpose.msra.mxu0 0.0
  %513 = vmatprep.subr.mxu0 0.0
  %514 = vmatpush1.xpose.msra.mxu0 0.0
  %515 = vmatprep.subr.mxu0 0.0
  %516 = vmatpush1.xpose.msra.mxu0 0.0
  %517 = vmatprep.subr.mxu0 0.0
  %518 = vmatpush1.xpose.msra.mxu0 0.0
  %519 = vmatprep.subr.mxu0 0.0
  %520 = vmatpush1.xpose.msra.mxu0 0.0
  %521 = vmatprep.subr.mxu0 0.0
  %522 = vmatpush1.xpose.msra.mxu0 0.0
  %523 = vmatprep.subr.mxu0 0.0
  %524 = vmatpush1.xpose.msra.mxu0 0.0
  %525 = vmatprep.subr.mxu0 0.0
  %526 = vmatpush1.xpose.msra.mxu0 0.0
  %527 = vmatprep.subr.mxu0 0.0
  %528 = vmatpush1.xpose.msra.mxu0 0.0
  %529 = vmatprep.subr.mxu0 0.0
  %530 = vmatpush1.xpose.msra.mxu0 0.0
  %531 = vmatprep.subr.mxu0 0.0
  %532 = vmatpush1.xpose.msra.mxu0 0.0
  %533 = vmatprep.subr.mxu0 0.0
  %534 = vmatpush1.xpose.msra.mxu0 0.0
  %535 = vmatprep.subr.mxu0 0.0
  %536 = vmatpush1.xpose.msra.mxu0 0.0
  %537 = vmatprep.mubr.f32.mxu0 0.0
  %538 = vmatmul.mubr.f32.gmra.mrb[0].mxu0 %v469
  %v539 = vpop.f32.mrb[0].mxu0
  %v540 = vadd.f32 0.0, %v539
  %v541 = vpop.f32.mrb[0].mxu0
  %542 = vdwg.mxu0
  %v543 = vmul.f32 %v540, 0.35355338
  %v544 = vsel %vm374, %v543, -inf
  %545 = vmax.xlane.f32.xlu0 %v544
  %v546 = vpop.xlane.xlu0 %545
  %v547 = vsub.f32 %v543, %v546
  %v548 = vmul.f32 %v547, 1.442695
  %v549 = vpow.pop %v548
  %v550 = vsel %vm374, %v549, 0.0
  %551 = vadd.xlane.f32.xlu0 %v550
  %v552 = vpop.xlane.xlu0 %551
  %v553 = vrcp.pop %v552
  %v554 = vmul.f32 %v549, %v553
  %555 = vrot.lane.b32.xlu0 %v292, 56
  %v556 = vpop.permute.xlu0 %555
  %v558 = vsel %vm388, %v554, 0
  %v560 = vsel %vm392, %v556, 0
  %562 = vmatprep.subr.mxu0 0.0
  %563 = vmatpush1.msra.mxu0 %v560
  %564 = vmatprep.subr.mxu0 0.0
  %565 = vmatpush1.msra.mxu0 0.0
  %566 = vmatprep.subr.mxu0 0.0
  %567 = vmatpush1.msra.mxu0 0.0
  %568 = vmatprep.subr.mxu0 0.0
  %569 = vmatpush1.msra.mxu0 0.0
  %570 = vmatprep.subr.mxu0 0.0
  %571 = vmatpush1.msra.mxu0 0.0
  %572 = vmatprep.subr.mxu0 0.0
  %573 = vmatpush1.msra.mxu0 0.0
  %574 = vmatprep.subr.mxu0 0.0
  %575 = vmatpush1.msra.mxu0 0.0
  %576 = vmatprep.subr.mxu0 0.0
  %577 = vmatpush1.msra.mxu0 0.0
  %578 = vmatprep.subr.mxu0 0.0
  %579 = vmatpush1.msra.mxu0 0.0
  %580 = vmatprep.subr.mxu0 0.0
  %581 = vmatpush1.msra.mxu0 0.0
  %582 = vmatprep.subr.mxu0 0.0
  %583 = vmatpush1.msra.mxu0 0.0
  %584 = vmatprep.subr.mxu0 0.0
  %585 = vmatpush1.msra.mxu0 0.0
  %586 = vmatprep.subr.mxu0 0.0
  %587 = vmatpush1.msra.mxu0 0.0
  %588 = vmatprep.subr.mxu0 0.0
  %589 = vmatpush1.msra.mxu0 0.0
  %590 = vmatprep.subr.mxu0 0.0
  %591 = vmatpush1.msra.mxu0 0.0
  %592 = vmatprep.subr.mxu0 0.0
  %593 = vmatpush1.msra.mxu0 0.0
  %594 = vmatprep.subr.mxu0 0.0
  %595 = vmatpush1.msra.mxu0 0.0
  %596 = vmatprep.subr.mxu0 0.0
  %597 = vmatpush1.msra.mxu0 0.0
  %598 = vmatprep.subr.mxu0 0.0
  %599 = vmatpush1.msra.mxu0 0.0
  %600 = vmatprep.subr.mxu0 0.0
  %601 = vmatpush1.msra.mxu0 0.0
  %602 = vmatprep.subr.mxu0 0.0
  %603 = vmatpush1.msra.mxu0 0.0
  %604 = vmatprep.subr.mxu0 0.0
  %605 = vmatpush1.msra.mxu0 0.0
  %606 = vmatprep.subr.mxu0 0.0
  %607 = vmatpush1.msra.mxu0 0.0
  %608 = vmatprep.subr.mxu0 0.0
  %609 = vmatpush1.msra.mxu0 0.0
  %610 = vmatprep.subr.mxu0 0.0
  %611 = vmatpush1.msra.mxu0 0.0
  %612 = vmatprep.subr.mxu0 0.0
  %613 = vmatpush1.msra.mxu0 0.0
  %614 = vmatprep.subr.mxu0 0.0
  %615 = vmatpush1.msra.mxu0 0.0
  %616 = vmatprep.subr.mxu0 0.0
  %617 = vmatpush1.msra.mxu0 0.0
  %618 = vmatprep.subr.mxu0 0.0
  %619 = vmatpush1.msra.mxu0 0.0
  %620 = vmatprep.subr.mxu0 0.0
  %621 = vmatpush1.msra.mxu0 0.0
  %622 = vmatprep.subr.mxu0 0.0
  %623 = vmatpush1.msra.mxu0 0.0
  %624 = vmatprep.subr.mxu0 0.0
  %625 = vmatpush1.msra.mxu0 0.0
  %626 = vmatprep.mubr.f32.mxu0 0.0
  %627 = vmatmul.mubr.f32.gmra.mrb[0].mxu0 %v558
  %v628 = vpop.f32.mrb[0].mxu0
  %v629 = vadd.f32 0.0, %v628
  %v630 = vpop.f32.mrb[0].mxu0
  %631 = vdwg.mxu0
  %632 = vrot.lane.b32.xlu0 %v292, 112
  %v633 = vpop.permute.xlu0 %632
  %634 = vrot.lane.b32.xlu0 %v292, 80
  %v635 = vpop.permute.xlu0 %634
  %v636 = vsel %vm298, %v633, 0
  %v638 = vsel %vm298, %v635, 0
  %640 = vmatprep.subr.mxu0 0.0
  %641 = vmatpush1.xpose.msra.mxu0 %v638
  %642 = vmatprep.subr.mxu0 0.0
  %643 = vmatpush1.xpose.msra.mxu0 0.0
  %644 = vmatprep.subr.mxu0 0.0
  %645 = vmatpush1.xpose.msra.mxu0 0.0
  %646 = vmatprep.subr.mxu0 0.0
  %647 = vmatpush1.xpose.msra.mxu0 0.0
  %648 = vmatprep.subr.mxu0 0.0
  %649 = vmatpush1.xpose.msra.mxu0 0.0
  %650 = vmatprep.subr.mxu0 0.0
  %651 = vmatpush1.xpose.msra.mxu0 0.0
  %652 = vmatprep.subr.mxu0 0.0
  %653 = vmatpush1.xpose.msra.mxu0 0.0
  %654 = vmatprep.subr.mxu0 0.0
  %655 = vmatpush1.xpose.msra.mxu0 0.0
  %656 = vmatprep.subr.mxu0 0.0
  %657 = vmatpush1.xpose.msra.mxu0 0.0
  %658 = vmatprep.subr.mxu0 0.0
  %659 = vmatpush1.xpose.msra.mxu0 0.0
  %660 = vmatprep.subr.mxu0 0.0
  %661 = vmatpush1.xpose.msra.mxu0 0.0
  %662 = vmatprep.subr.mxu0 0.0
  %663 = vmatpush1.xpose.msra.mxu0 0.0
  %664 = vmatprep.subr.mxu0 0.0
  %665 = vmatpush1.xpose.msra.mxu0 0.0
  %666 = vmatprep.subr.mxu0 0.0
  %667 = vmatpush1.xpose.msra.mxu0 0.0
  %668 = vmatprep.subr.mxu0 0.0
  %669 = vmatpush1.xpose.msra.mxu0 0.0
  %670 = vmatprep.subr.mxu0 0.0
  %671 = vmatpush1.xpose.msra.mxu0 0.0
  %672 = vmatprep.subr.mxu0 0.0
  %673 = vmatpush1.xpose.msra.mxu0 0.0
  %674 = vmatprep.subr.mxu0 0.0
  %675 = vmatpush1.xpose.msra.mxu0 0.0
  %676 = vmatprep.subr.mxu0 0.0
  %677 = vmatpush1.xpose.msra.mxu0 0.0
  %678 = vmatprep.subr.mxu0 0.0
  %679 = vmatpush1.xpose.msra.mxu0 0.0
  %680 = vmatprep.subr.mxu0 0.0
  %681 = vmatpush1.xpose.msra.mxu0 0.0
  %682 = vmatprep.subr.mxu0 0.0
  %683 = vmatpush1.xpose.msra.mxu0 0.0
  %684 = vmatprep.subr.mxu0 0.0
  %685 = vmatpush1.xpose.msra.mxu0 0.0
  %686 = vmatprep.subr.mxu0 0.0
  %687 = vmatpush1.xpose.msra.mxu0 0.0
  %688 = vmatprep.subr.mxu0 0.0
  %689 = vmatpush1.xpose.msra.mxu0 0.0
  %690 = vmatprep.subr.mxu0 0.0
  %691 = vmatpush1.xpose.msra.mxu0 0.0
  %692 = vmatprep.subr.mxu0 0.0
  %693 = vmatpush1.xpose.msra.mxu0 0.0
  %694 = vmatprep.subr.mxu0 0.0
  %695 = vmatpush1.xpose.msra.mxu0 0.0
  %696 = vmatprep.subr.mxu0 0.0
  %697 = vmatpush1.xpose.msra.mxu0 0.0
  %698 = vmatprep.subr.mxu0 0.0
  %699 = vmatpush1.xpose.msra.mxu0 0.0
  %700 = vmatprep.subr.mxu0 0.0
  %701 = vmatpush1.xpose.msra.mxu0 0.0
  %702 = vmatprep.subr.mxu0 0.0
  %703 = vmatpush1.xpose.msra.mxu0 0.0
  %704 = vmatprep.mubr.f32.mxu0 0.0
  %705 = vmatmul.mubr.f32.gmra.mrb[0].mxu0 %v636
  %v706 = vpop.f32.mrb[0].mxu0
  %v707 = vadd.f32 0.0, %v706
  %v708 = vpop.f32.mrb[0].mxu0
  %709 = vdwg.mxu0
  %v710 = vmul.f32 %v707, 0.35355338
  %v711 = vsel %vm374, %v710, -inf
  %712 = vmax.xlane.f32.xlu0 %v711
  %v713 = vpop.xlane.xlu0 %712
  %v714 = vsub.f32 %v710, %v713
  %v715 = vmul.f32 %v714, 1.442695
  %v716 = vpow.pop %v715
  %v717 = vsel %vm374, %v716, 0.0
  %718 = vadd.xlane.f32.xlu0 %v717
  %v719 = vpop.xlane.xlu0 %718
  %v720 = vrcp.pop %v719
  %v721 = vmul.f32 %v716, %v720
  %722 = vrot.lane.b32.xlu0 %v292, 48
  %v723 = vpop.permute.xlu0 %722
  %v725 = vsel %vm388, %v721, 0
  %v727 = vsel %vm392, %v723, 0
  %729 = vmatprep.subr.mxu0 0.0
  %730 = vmatpush1.msra.mxu0 %v727
  %731 = vmatprep.subr.mxu0 0.0
  %732 = vmatpush1.msra.mxu0 0.0
  %733 = vmatprep.subr.mxu0 0.0
  %734 = vmatpush1.msra.mxu0 0.0
  %735 = vmatprep.subr.mxu0 0.0
  %736 = vmatpush1.msra.mxu0 0.0
  %737 = vmatprep.subr.mxu0 0.0
  %738 = vmatpush1.msra.mxu0 0.0
  %739 = vmatprep.subr.mxu0 0.0
  %740 = vmatpush1.msra.mxu0 0.0
  %741 = vmatprep.subr.mxu0 0.0
  %742 = vmatpush1.msra.mxu0 0.0
  %743 = vmatprep.subr.mxu0 0.0
  %744 = vmatpush1.msra.mxu0 0.0
  %745 = vmatprep.subr.mxu0 0.0
  %746 = vmatpush1.msra.mxu0 0.0
  %747 = vmatprep.subr.mxu0 0.0
  %748 = vmatpush1.msra.mxu0 0.0
  %749 = vmatprep.subr.mxu0 0.0
  %750 = vmatpush1.msra.mxu0 0.0
  %751 = vmatprep.subr.mxu0 0.0
  %752 = vmatpush1.msra.mxu0 0.0
  %753 = vmatprep.subr.mxu0 0.0
  %754 = vmatpush1.msra.mxu0 0.0
  %755 = vmatprep.subr.mxu0 0.0
  %756 = vmatpush1.msra.mxu0 0.0
  %757 = vmatprep.subr.mxu0 0.0
  %758 = vmatpush1.msra.mxu0 0.0
  %759 = vmatprep.subr.mxu0 0.0
  %760 = vmatpush1.msra.mxu0 0.0
  %761 = vmatprep.subr.mxu0 0.0
  %762 = vmatpush1.msra.mxu0 0.0
  %763 = vmatprep.subr.mxu0 0.0
  %764 = vmatpush1.msra.mxu0 0.0
  %765 = vmatprep.subr.mxu0 0.0
  %766 = vmatpush1.msra.mxu0 0.0
  %767 = vmatprep.subr.mxu0 0.0
  %768 = vmatpush1.msra.mxu0 0.0
  %769 = vmatprep.subr.mxu0 0.0
  %770 = vmatpush1.msra.mxu0 0.0
  %771 = vmatprep.subr.mxu0 0.0
  %772 = vmatpush1.msra.mxu0 0.0
  %773 = vmatprep.subr.mxu0 0.0
  %774 = vmatpush1.msra.mxu0 0.0
  %775 = vmatprep.subr.mxu0 0.0
  %776 = vmatpush1.msra.mxu0 0.0
  %777 = vmatprep.subr.mxu0 0.0
  %778 = vmatpush1.msra.mxu0 0.0
  %779 = vmatprep.subr.mxu0 0.0
  %780 = vmatpush1.msra.mxu0 0.0
  %781 = vmatprep.subr.mxu0 0.0
  %782 = vmatpush1.msra.mxu0 0.0
  %783 = vmatprep.subr.mxu0 0.0
  %784 = vmatpush1.msra.mxu0 0.0
  %785 = vmatprep.subr.mxu0 0.0
  %786 = vmatpush1.msra.mxu0 0.0
  %787 = vmatprep.subr.mxu0 0.0
  %788 = vmatpush1.msra.mxu0 0.0
  %789 = vmatprep.subr.mxu0 0.0
  %790 = vmatpush1.msra.mxu0 0.0
  %791 = vmatprep.subr.mxu0 0.0
  %792 = vmatpush1.msra.mxu0 0.0
  %793 = vmatprep.mubr.f32.mxu0 0.0
  %794 = vmatmul.mubr.f32.gmra.mrb[0].mxu0 %v725
  %v795 = vpop.f32.mrb[0].mxu0
  %v796 = vadd.f32 0.0, %v795
  %v797 = vpop.f32.mrb[0].mxu0
  %798 = vdwg.mxu0
  %799 = vrot.lane.b32.xlu0 %v292, 104
  %v800 = vpop.permute.xlu0 %799
  %801 = vrot.lane.b32.xlu0 %v292, 72
  %v802 = vpop.permute.xlu0 %801
  %v803 = vsel %vm298, %v800, 0
  %v805 = vsel %vm298, %v802, 0
  %807 = vmatprep.subr.mxu0 0.0
  %808 = vmatpush1.xpose.msra.mxu0 %v805
  %809 = vmatprep.subr.mxu0 0.0
  %810 = vmatpush1.xpose.msra.mxu0 0.0
  %811 = vmatprep.subr.mxu0 0.0
  %812 = vmatpush1.xpose.msra.mxu0 0.0
  %813 = vmatprep.subr.mxu0 0.0
  %814 = vmatpush1.xpose.msra.mxu0 0.0
  %815 = vmatprep.subr.mxu0 0.0
  %816 = vmatpush1.xpose.msra.mxu0 0.0
  %817 = vmatprep.subr.mxu0 0.0
  %818 = vmatpush1.xpose.msra.mxu0 0.0
  %819 = vmatprep.subr.mxu0 0.0
  %820 = vmatpush1.xpose.msra.mxu0 0.0
  %821 = vmatprep.subr.mxu0 0.0
  %822 = vmatpush1.xpose.msra.mxu0 0.0
  %823 = vmatprep.subr.mxu0 0.0
  %824 = vmatpush1.xpose.msra.mxu0 0.0
  %825 = vmatprep.subr.mxu0 0.0
  %826 = vmatpush1.xpose.msra.mxu0 0.0
  %827 = vmatprep.subr.mxu0 0.0
  %828 = vmatpush1.xpose.msra.mxu0 0.0
  %829 = vmatprep.subr.mxu0 0.0
  %830 = vmatpush1.xpose.msra.mxu0 0.0
  %831 = vmatprep.subr.mxu0 0.0
  %832 = vmatpush1.xpose.msra.mxu0 0.0
  %833 = vmatprep.subr.mxu0 0.0
  %834 = vmatpush1.xpose.msra.mxu0 0.0
  %835 = vmatprep.subr.mxu0 0.0
  %836 = vmatpush1.xpose.msra.mxu0 0.0
  %837 = vmatprep.subr.mxu0 0.0
  %838 = vmatpush1.xpose.msra.mxu0 0.0
  %839 = vmatprep.subr.mxu0 0.0
  %840 = vmatpush1.xpose.msra.mxu0 0.0
  %841 = vmatprep.subr.mxu0 0.0
  %842 = vmatpush1.xpose.msra.mxu0 0.0
  %843 = vmatprep.subr.mxu0 0.0
  %844 = vmatpush1.xpose.msra.mxu0 0.0
  %845 = vmatprep.subr.mxu0 0.0
  %846 = vmatpush1.xpose.msra.mxu0 0.0
  %847 = vmatprep.subr.mxu0 0.0
  %848 = vmatpush1.xpose.msra.mxu0 0.0
  %849 = vmatprep.subr.mxu0 0.0
  %850 = vmatpush1.xpose.msra.mxu0 0.0
  %851 = vmatprep.subr.mxu0 0.0
  %852 = vmatpush1.xpose.msra.mxu0 0.0
  %853 = vmatprep.subr.mxu0 0.0
  %854 = vmatpush1.xpose.msra.mxu0 0.0
  %855 = vmatprep.subr.mxu0 0.0
  %856 = vmatpush1.xpose.msra.mxu0 0.0
  %857 = vmatprep.subr.mxu0 0.0
  %858 = vmatpush1.xpose.msra.mxu0 0.0
  %859 = vmatprep.subr.mxu0 0.0
  %860 = vmatpush1.xpose.msra.mxu0 0.0
  %861 = vmatprep.subr.mxu0 0.0
  %862 = vmatpush1.xpose.msra.mxu0 0.0
  %863 = vmatprep.subr.mxu0 0.0
  %864 = vmatpush1.xpose.msra.mxu0 0.0
  %865 = vmatprep.subr.mxu0 0.0
  %866 = vmatpush1.xpose.msra.mxu0 0.0
  %867 = vmatprep.subr.mxu0 0.0
  %868 = vmatpush1.xpose.msra.mxu0 0.0
  %869 = vmatprep.subr.mxu0 0.0
  %870 = vmatpush1.xpose.msra.mxu0 0.0
  %871 = vmatprep.mubr.f32.mxu0 0.0
  %872 = vmatmul.mubr.f32.gmra.mrb[0].mxu0 %v803
  %v873 = vpop.f32.mrb[0].mxu0
  %v874 = vadd.f32 0.0, %v873
  %v875 = vpop.f32.mrb[0].mxu0
  %876 = vdwg.mxu0
  %v877 = vmul.f32 %v874, 0.35355338
  %v878 = vsel %vm374, %v877, -inf
  %879 = vmax.xlane.f32.xlu0 %v878
  %v880 = vpop.xlane.xlu0 %879
  %v881 = vsub.f32 %v877, %v880
  %v882 = vmul.f32 %v881, 1.442695
  %v883 = vpow.pop %v882
  %v884 = vsel %vm374, %v883, 0.0
  %885 = vadd.xlane.f32.xlu0 %v884
  %v886 = vpop.xlane.xlu0 %885
  %v887 = vrcp.pop %v886
  %v888 = vmul.f32 %v883, %v887
  %889 = vrot.lane.b32.xlu0 %v292, 40
  %v890 = vpop.permute.xlu0 %889
  %v892 = vsel %vm388, %v888, 0
  %v894 = vsel %vm392, %v890, 0
  %896 = vmatprep.subr.mxu0 0.0
  %897 = vmatpush1.msra.mxu0 %v894
  %898 = vmatprep.subr.mxu0 0.0
  %899 = vmatpush1.msra.mxu0 0.0
  %900 = vmatprep.subr.mxu0 0.0
  %901 = vmatpush1.msra.mxu0 0.0
  %902 = vmatprep.subr.mxu0 0.0
  %903 = vmatpush1.msra.mxu0 0.0
  %904 = vmatprep.subr.mxu0 0.0
  %905 = vmatpush1.msra.mxu0 0.0
  %906 = vmatprep.subr.mxu0 0.0
  %907 = vmatpush1.msra.mxu0 0.0
  %908 = vmatprep.subr.mxu0 0.0
  %909 = vmatpush1.msra.mxu0 0.0
  %910 = vmatprep.subr.mxu0 0.0
  %911 = vmatpush1.msra.mxu0 0.0
  %912 = vmatprep.subr.mxu0 0.0
  %913 = vmatpush1.msra.mxu0 0.0
  %914 = vmatprep.subr.mxu0 0.0
  %915 = vmatpush1.msra.mxu0 0.0
  %916 = vmatprep.subr.mxu0 0.0
  %917 = vmatpush1.msra.mxu0 0.0
  %918 = vmatprep.subr.mxu0 0.0
  %919 = vmatpush1.msra.mxu0 0.0
  %920 = vmatprep.subr.mxu0 0.0
  %921 = vmatpush1.msra.mxu0 0.0
  %922 = vmatprep.subr.mxu0 0.0
  %923 = vmatpush1.msra.mxu0 0.0
  %924 = vmatprep.subr.mxu0 0.0
  %925 = vmatpush1.msra.mxu0 0.0
  %926 = vmatprep.subr.mxu0 0.0
  %927 = vmatpush1.msra.mxu0 0.0
  %928 = vmatprep.subr.mxu0 0.0
  %929 = vmatpush1.msra.mxu0 0.0
  %930 = vmatprep.subr.mxu0 0.0
  %931 = vmatpush1.msra.mxu0 0.0
  %932 = vmatprep.subr.mxu0 0.0
  %933 = vmatpush1.msra.mxu0 0.0
  %934 = vmatprep.subr.mxu0 0.0
  %935 = vmatpush1.msra.mxu0 0.0
  %936 = vmatprep.subr.mxu0 0.0
  %937 = vmatpush1.msra.mxu0 0.0
  %938 = vmatprep.subr.mxu0 0.0
  %939 = vmatpush1.msra.mxu0 0.0
  %940 = vmatprep.subr.mxu0 0.0
  %941 = vmatpush1.msra.mxu0 0.0
  %942 = vmatprep.subr.mxu0 0.0
  %943 = vmatpush1.msra.mxu0 0.0
  %944 = vmatprep.subr.mxu0 0.0
  %945 = vmatpush1.msra.mxu0 0.0
  %946 = vmatprep.subr.mxu0 0.0
  %947 = vmatpush1.msra.mxu0 0.0
  %948 = vmatprep.subr.mxu0 0.0
  %949 = vmatpush1.msra.mxu0 0.0
  %950 = vmatprep.subr.mxu0 0.0
  %951 = vmatpush1.msra.mxu0 0.0
  %952 = vmatprep.subr.mxu0 0.0
  %953 = vmatpush1.msra.mxu0 0.0
  %954 = vmatprep.subr.mxu0 0.0
  %955 = vmatpush1.msra.mxu0 0.0
  %956 = vmatprep.subr.mxu0 0.0
  %957 = vmatpush1.msra.mxu0 0.0
  %958 = vmatprep.subr.mxu0 0.0
  %959 = vmatpush1.msra.mxu0 0.0
  %960 = vmatprep.mubr.f32.mxu0 0.0
  %961 = vmatmul.mubr.f32.gmra.mrb[0].mxu0 %v892
  %v962 = vpop.f32.mrb[0].mxu0
  %v963 = vadd.f32 0.0, %v962
  %v964 = vpop.f32.mrb[0].mxu0
  %965 = vdwg.mxu0
  %967 = vrot.lane.b32.xlu0 %v629, 8
  %v968 = vpop.permute.xlu0 %967
  %971 = vrot.lane.b32.xlu0 %v796, 16
  %v972 = vpop.permute.xlu0 %971
  %975 = vrot.lane.b32.xlu0 %v963, 24
  %v976 = vpop.permute.xlu0 %975
  %v978 = vsel %vm298, %v462, %v968
  %v979 = vsel %vm135, %v978, %v972
  %vm980 = vcmask 195584
  %v981 = vsel %vm980, %v979, %v976
  %v982 = vrot.slane %v292, 4
  %983 = vrot.lane.b32.xlu0 %v982, 96
  %v984 = vpop.permute.xlu0 %983
  %v985 = vsel %vm298, %v982, 0
  %v987 = vsel %vm298, %v984, 0
  %989 = vmatprep.subr.mxu0 0.0
  %990 = vmatpush1.xpose.msra.mxu0 %v987
  %991 = vmatprep.subr.mxu0 0.0
  %992 = vmatpush1.xpose.msra.mxu0 0.0
  %993 = vmatprep.subr.mxu0 0.0
  %994 = vmatpush1.xpose.msra.mxu0 0.0
  %995 = vmatprep.subr.mxu0 0.0
  %996 = vmatpush1.xpose.msra.mxu0 0.0
  %997 = vmatprep.subr.mxu0 0.0
  %998 = vmatpush1.xpose.msra.mxu0 0.0
  %999 = vmatprep.subr.mxu0 0.0
  %1000 = vmatpush1.xpose.msra.mxu0 0.0
  %1001 = vmatprep.subr.mxu0 0.0
  %1002 = vmatpush1.xpose.msra.mxu0 0.0
  %1003 = vmatprep.subr.mxu0 0.0
  %1004 = vmatpush1.xpose.msra.mxu0 0.0
  %1005 = vmatprep.subr.mxu0 0.0
  %1006 = vmatpush1.xpose.msra.mxu0 0.0
  %1007 = vmatprep.subr.mxu0 0.0
  %1008 = vmatpush1.xpose.msra.mxu0 0.0
  %1009 = vmatprep.subr.mxu0 0.0
  %1010 = vmatpush1.xpose.msra.mxu0 0.0
  %1011 = vmatprep.subr.mxu0 0.0
  %1012 = vmatpush1.xpose.msra.mxu0 0.0
  %1013 = vmatprep.subr.mxu0 0.0
  %1014 = vmatpush1.xpose.msra.mxu0 0.0
  %1015 = vmatprep.subr.mxu0 0.0
  %1016 = vmatpush1.xpose.msra.mxu0 0.0
  %1017 = vmatprep.subr.mxu0 0.0
  %1018 = vmatpush1.xpose.msra.mxu0 0.0
  %1019 = vmatprep.subr.mxu0 0.0
  %1020 = vmatpush1.xpose.msra.mxu0 0.0
  %1021 = vmatprep.subr.mxu0 0.0
  %1022 = vmatpush1.xpose.msra.mxu0 0.0
  %1023 = vmatprep.subr.mxu0 0.0
  %1024 = vmatpush1.xpose.msra.mxu0 0.0
  %1025 = vmatprep.subr.mxu0 0.0
  %1026 = vmatpush1.xpose.msra.mxu0 0.0
  %1027 = vmatprep.subr.mxu0 0.0
  %1028 = vmatpush1.xpose.msra.mxu0 0.0
  %1029 = vmatprep.subr.mxu0 0.0
  %1030 = vmatpush1.xpose.msra.mxu0 0.0
  %1031 = vmatprep.subr.mxu0 0.0
  %1032 = vmatpush1.xpose.msra.mxu0 0.0
  %1033 = vmatprep.subr.mxu0 0.0
  %1034 = vmatpush1.xpose.msra.mxu0 0.0
  %1035 = vmatprep.subr.mxu0 0.0
  %1036 = vmatpush1.xpose.msra.mxu0 0.0
  %1037 = vmatprep.subr.mxu0 0.0
  %1038 = vmatpush1.xpose.msra.mxu0 0.0
  %1039 = vmatprep.subr.mxu0 0.0
  %1040 = vmatpush1.xpose.msra.mxu0 0.0
  %1041 = vmatprep.subr.mxu0 0.0
  %1042 = vmatpush1.xpose.msra.mxu0 0.0
  %1043 = vmatprep.subr.mxu0 0.0
  %1044 = vmatpush1.xpose.msra.mxu0 0.0
  %1045 = vmatprep.subr.mxu0 0.0
  %1046 = vmatpush1.xpose.msra.mxu0 0.0
  %1047 = vmatprep.subr.mxu0 0.0
  %1048 = vmatpush1.xpose.msra.mxu0 0.0
  %1049 = vmatprep.subr.mxu0 0.0
  %1050 = vmatpush1.xpose.msra.mxu0 0.0
  %1051 = vmatprep.subr.mxu0 0.0
  %1052 = vmatpush1.xpose.msra.mxu0 0.0
  %1053 = vmatprep.mubr.f32.mxu0 0.0
  %1054 = vmatmul.mubr.f32.gmra.mrb[0].mxu0 %v985
  %v1055 = vpop.f32.mrb[0].mxu0
  %v1056 = vadd.f32 0.0, %v1055
  %v1057 = vpop.f32.mrb[0].mxu0
  %1058 = vdwg.mxu0
  %v1059 = vmul.f32 %v1056, 0.35355338
  %v1060 = vsel %vm374, %v1059, -inf
  %1061 = vmax.xlane.f32.xlu0 %v1060
  %v1062 = vpop.xlane.xlu0 %1061
  %v1063 = vsub.f32 %v1059, %v1062
  %v1064 = vmul.f32 %v1063, 1.442695
  %v1065 = vpow.pop %v1064
  %v1066 = vsel %vm374, %v1065, 0.0
  %1067 = vadd.xlane.f32.xlu0 %v1066
  %v1068 = vpop.xlane.xlu0 %1067
  %v1069 = vrcp.pop %v1068
  %v1070 = vmul.f32 %v1065, %v1069
  %1071 = vrot.lane.b32.xlu0 %v982, 64
  %v1072 = vpop.permute.xlu0 %1071
  %v1074 = vsel %vm388, %v1070, 0
  %v1076 = vsel %vm392, %v1072, 0
  %1078 = vmatprep.subr.mxu0 0.0
  %1079 = vmatpush1.msra.mxu0 %v1076
  %1080 = vmatprep.subr.mxu0 0.0
  %1081 = vmatpush1.msra.mxu0 0.0
  %1082 = vmatprep.subr.mxu0 0.0
  %1083 = vmatpush1.msra.mxu0 0.0
  %1084 = vmatprep.subr.mxu0 0.0
  %1085 = vmatpush1.msra.mxu0 0.0
  %1086 = vmatprep.subr.mxu0 0.0
  %1087 = vmatpush1.msra.mxu0 0.0
  %1088 = vmatprep.subr.mxu0 0.0
  %1089 = vmatpush1.msra.mxu0 0.0
  %1090 = vmatprep.subr.mxu0 0.0
  %1091 = vmatpush1.msra.mxu0 0.0
  %1092 = vmatprep.subr.mxu0 0.0
  %1093 = vmatpush1.msra.mxu0 0.0
  %1094 = vmatprep.subr.mxu0 0.0
  %1095 = vmatpush1.msra.mxu0 0.0
  %1096 = vmatprep.subr.mxu0 0.0
  %1097 = vmatpush1.msra.mxu0 0.0
  %1098 = vmatprep.subr.mxu0 0.0
  %1099 = vmatpush1.msra.mxu0 0.0
  %1100 = vmatprep.subr.mxu0 0.0
  %1101 = vmatpush1.msra.mxu0 0.0
  %1102 = vmatprep.subr.mxu0 0.0
  %1103 = vmatpush1.msra.mxu0 0.0
  %1104 = vmatprep.subr.mxu0 0.0
  %1105 = vmatpush1.msra.mxu0 0.0
  %1106 = vmatprep.subr.mxu0 0.0
  %1107 = vmatpush1.msra.mxu0 0.0
  %1108 = vmatprep.subr.mxu0 0.0
  %1109 = vmatpush1.msra.mxu0 0.0
  %1110 = vmatprep.subr.mxu0 0.0
  %1111 = vmatpush1.msra.mxu0 0.0
  %1112 = vmatprep.subr.mxu0 0.0
  %1113 = vmatpush1.msra.mxu0 0.0
  %1114 = vmatprep.subr.mxu0 0.0
  %1115 = vmatpush1.msra.mxu0 0.0
  %1116 = vmatprep.subr.mxu0 0.0
  %1117 = vmatpush1.msra.mxu0 0.0
  %1118 = vmatprep.subr.mxu0 0.0
  %1119 = vmatpush1.msra.mxu0 0.0
  %1120 = vmatprep.subr.mxu0 0.0
  %1121 = vmatpush1.msra.mxu0 0.0
  %1122 = vmatprep.subr.mxu0 0.0
  %1123 = vmatpush1.msra.mxu0 0.0
  %1124 = vmatprep.subr.mxu0 0.0
  %1125 = vmatpush1.msra.mxu0 0.0
  %1126 = vmatprep.subr.mxu0 0.0
  %1127 = vmatpush1.msra.mxu0 0.0
  %1128 = vmatprep.subr.mxu0 0.0
  %1129 = vmatpush1.msra.mxu0 0.0
  %1130 = vmatprep.subr.mxu0 0.0
  %1131 = vmatpush1.msra.mxu0 0.0
  %1132 = vmatprep.subr.mxu0 0.0
  %1133 = vmatpush1.msra.mxu0 0.0
  %1134 = vmatprep.subr.mxu0 0.0
  %1135 = vmatpush1.msra.mxu0 0.0
  %1136 = vmatprep.subr.mxu0 0.0
  %1137 = vmatpush1.msra.mxu0 0.0
  %1138 = vmatprep.subr.mxu0 0.0
  %1139 = vmatpush1.msra.mxu0 0.0
  %1140 = vmatprep.subr.mxu0 0.0
  %1141 = vmatpush1.msra.mxu0 0.0
  %1142 = vmatprep.mubr.f32.mxu0 0.0
  %1143 = vmatmul.mubr.f32.gmra.mrb[0].mxu0 %v1074
  %v1144 = vpop.f32.mrb[0].mxu0
  %v1145 = vadd.f32 0.0, %v1144
  %v1146 = vpop.f32.mrb[0].mxu0
  %1147 = vdwg.mxu0
  %1148 = vrot.lane.b32.xlu0 %v982, 120
  %v1149 = vpop.permute.xlu0 %1148
  %1150 = vrot.lane.b32.xlu0 %v982, 88
  %v1151 = vpop.permute.xlu0 %1150
  %v1152 = vsel %vm298, %v1149, 0
  %v1154 = vsel %vm298, %v1151, 0
  %1156 = vmatprep.subr.mxu0 0.0
  %1157 = vmatpush1.xpose.msra.mxu0 %v1154
  %1158 = vmatprep.subr.mxu0 0.0
  %1159 = vmatpush1.xpose.msra.mxu0 0.0
  %1160 = vmatprep.subr.mxu0 0.0
  %1161 = vmatpush1.xpose.msra.mxu0 0.0
  %1162 = vmatprep.subr.mxu0 0.0
  %1163 = vmatpush1.xpose.msra.mxu0 0.0
  %1164 = vmatprep.subr.mxu0 0.0
  %1165 = vmatpush1.xpose.msra.mxu0 0.0
  %1166 = vmatprep.subr.mxu0 0.0
  %1167 = vmatpush1.xpose.msra.mxu0 0.0
  %1168 = vmatprep.subr.mxu0 0.0
  %1169 = vmatpush1.xpose.msra.mxu0 0.0
  %1170 = vmatprep.subr.mxu0 0.0
  %1171 = vmatpush1.xpose.msra.mxu0 0.0
  %1172 = vmatprep.subr.mxu0 0.0
  %1173 = vmatpush1.xpose.msra.mxu0 0.0
  %1174 = vmatprep.subr.mxu0 0.0
  %1175 = vmatpush1.xpose.msra.mxu0 0.0
  %1176 = vmatprep.subr.mxu0 0.0
  %1177 = vmatpush1.xpose.msra.mxu0 0.0
  %1178 = vmatprep.subr.mxu0 0.0
  %1179 = vmatpush1.xpose.msra.mxu0 0.0
  %1180 = vmatprep.subr.mxu0 0.0
  %1181 = vmatpush1.xpose.msra.mxu0 0.0
  %1182 = vmatprep.subr.mxu0 0.0
  %1183 = vmatpush1.xpose.msra.mxu0 0.0
  %1184 = vmatprep.subr.mxu0 0.0
  %1185 = vmatpush1.xpose.msra.mxu0 0.0
  %1186 = vmatprep.subr.mxu0 0.0
  %1187 = vmatpush1.xpose.msra.mxu0 0.0
  %1188 = vmatprep.subr.mxu0 0.0
  %1189 = vmatpush1.xpose.msra.mxu0 0.0
  %1190 = vmatprep.subr.mxu0 0.0
  %1191 = vmatpush1.xpose.msra.mxu0 0.0
  %1192 = vmatprep.subr.mxu0 0.0
  %1193 = vmatpush1.xpose.msra.mxu0 0.0
  %1194 = vmatprep.subr.mxu0 0.0
  %1195 = vmatpush1.xpose.msra.mxu0 0.0
  %1196 = vmatprep.subr.mxu0 0.0
  %1197 = vmatpush1.xpose.msra.mxu0 0.0
  %1198 = vmatprep.subr.mxu0 0.0
  %1199 = vmatpush1.xpose.msra.mxu0 0.0
  %1200 = vmatprep.subr.mxu0 0.0
  %1201 = vmatpush1.xpose.msra.mxu0 0.0
  %1202 = vmatprep.subr.mxu0 0.0
  %1203 = vmatpush1.xpose.msra.mxu0 0.0
  %1204 = vmatprep.subr.mxu0 0.0
  %1205 = vmatpush1.xpose.msra.mxu0 0.0
  %1206 = vmatprep.subr.mxu0 0.0
  %1207 = vmatpush1.xpose.msra.mxu0 0.0
  %1208 = vmatprep.subr.mxu0 0.0
  %1209 = vmatpush1.xpose.msra.mxu0 0.0
  %1210 = vmatprep.subr.mxu0 0.0
  %1211 = vmatpush1.xpose.msra.mxu0 0.0
  %1212 = vmatprep.subr.mxu0 0.0
  %1213 = vmatpush1.xpose.msra.mxu0 0.0
  %1214 = vmatprep.subr.mxu0 0.0
  %1215 = vmatpush1.xpose.msra.mxu0 0.0
  %1216 = vmatprep.subr.mxu0 0.0
  %1217 = vmatpush1.xpose.msra.mxu0 0.0
  %1218 = vmatprep.subr.mxu0 0.0
  %1219 = vmatpush1.xpose.msra.mxu0 0.0
  %1220 = vmatprep.mubr.f32.mxu0 0.0
  %1221 = vmatmul.mubr.f32.gmra.mrb[0].mxu0 %v1152
  %v1222 = vpop.f32.mrb[0].mxu0
  %v1223 = vadd.f32 0.0, %v1222
  %v1224 = vpop.f32.mrb[0].mxu0
  %1225 = vdwg.mxu0
  %v1226 = vmul.f32 %v1223, 0.35355338
  %v1227 = vsel %vm374, %v1226, -inf
  %1228 = vmax.xlane.f32.xlu0 %v1227
  %v1229 = vpop.xlane.xlu0 %1228
  %v1230 = vsub.f32 %v1226, %v1229
  %v1231 = vmul.f32 %v1230, 1.442695
  %v1232 = vpow.pop %v1231
  %v1233 = vsel %vm374, %v1232, 0.0
  %1234 = vadd.xlane.f32.xlu0 %v1233
  %v1235 = vpop.xlane.xlu0 %1234
  %v1236 = vrcp.pop %v1235
  %v1237 = vmul.f32 %v1232, %v1236
  %1238 = vrot.lane.b32.xlu0 %v982, 56
  %v1239 = vpop.permute.xlu0 %1238
  %v1241 = vsel %vm388, %v1237, 0
  %v1243 = vsel %vm392, %v1239, 0
  %1245 = vmatprep.subr.mxu0 0.0
  %1246 = vmatpush1.msra.mxu0 %v1243
  %1247 = vmatprep.subr.mxu0 0.0
  %1248 = vmatpush1.msra.mxu0 0.0
  %1249 = vmatprep.subr.mxu0 0.0
  %1250 = vmatpush1.msra.mxu0 0.0
  %1251 = vmatprep.subr.mxu0 0.0
  %1252 = vmatpush1.msra.mxu0 0.0
  %1253 = vmatprep.subr.mxu0 0.0
  %1254 = vmatpush1.msra.mxu0 0.0
  %1255 = vmatprep.subr.mxu0 0.0
  %1256 = vmatpush1.msra.mxu0 0.0
  %1257 = vmatprep.subr.mxu0 0.0
  %1258 = vmatpush1.msra.mxu0 0.0
  %1259 = vmatprep.subr.mxu0 0.0
  %1260 = vmatpush1.msra.mxu0 0.0
  %1261 = vmatprep.subr.mxu0 0.0
  %1262 = vmatpush1.msra.mxu0 0.0
  %1263 = vmatprep.subr.mxu0 0.0
  %1264 = vmatpush1.msra.mxu0 0.0
  %1265 = vmatprep.subr.mxu0 0.0
  %1266 = vmatpush1.msra.mxu0 0.0
  %1267 = vmatprep.subr.mxu0 0.0
  %1268 = vmatpush1.msra.mxu0 0.0
  %1269 = vmatprep.subr.mxu0 0.0
  %1270 = vmatpush1.msra.mxu0 0.0
  %1271 = vmatprep.subr.mxu0 0.0
  %1272 = vmatpush1.msra.mxu0 0.0
  %1273 = vmatprep.subr.mxu0 0.0
  %1274 = vmatpush1.msra.mxu0 0.0
  %1275 = vmatprep.subr.mxu0 0.0
  %1276 = vmatpush1.msra.mxu0 0.0
  %1277 = vmatprep.subr.mxu0 0.0
  %1278 = vmatpush1.msra.mxu0 0.0
  %1279 = vmatprep.subr.mxu0 0.0
  %1280 = vmatpush1.msra.mxu0 0.0
  %1281 = vmatprep.subr.mxu0 0.0
  %1282 = vmatpush1.msra.mxu0 0.0
  %1283 = vmatprep.subr.mxu0 0.0
  %1284 = vmatpush1.msra.mxu0 0.0
  %1285 = vmatprep.subr.mxu0 0.0
  %1286 = vmatpush1.msra.mxu0 0.0
  %1287 = vmatprep.subr.mxu0 0.0
  %1288 = vmatpush1.msra.mxu0 0.0
  %1289 = vmatprep.subr.mxu0 0.0
  %1290 = vmatpush1.msra.mxu0 0.0
  %1291 = vmatprep.subr.mxu0 0.0
  %1292 = vmatpush1.msra.mxu0 0.0
  %1293 = vmatprep.subr.mxu0 0.0
  %1294 = vmatpush1.msra.mxu0 0.0
  %1295 = vmatprep.subr.mxu0 0.0
  %1296 = vmatpush1.msra.mxu0 0.0
  %1297 = vmatprep.subr.mxu0 0.0
  %1298 = vmatpush1.msra.mxu0 0.0
  %1299 = vmatprep.subr.mxu0 0.0
  %1300 = vmatpush1.msra.mxu0 0.0
  %1301 = vmatprep.subr.mxu0 0.0
  %1302 = vmatpush1.msra.mxu0 0.0
  %1303 = vmatprep.subr.mxu0 0.0
  %1304 = vmatpush1.msra.mxu0 0.0
  %1305 = vmatprep.subr.mxu0 0.0
  %1306 = vmatpush1.msra.mxu0 0.0
  %1307 = vmatprep.subr.mxu0 0.0
  %1308 = vmatpush1.msra.mxu0 0.0
  %1309 = vmatprep.mubr.f32.mxu0 0.0
  %1310 = vmatmul.mubr.f32.gmra.mrb[0].mxu0 %v1241
  %v1311 = vpop.f32.mrb[0].mxu0
  %v1312 = vadd.f32 0.0, %v1311
  %v1313 = vpop.f32.mrb[0].mxu0
  %1314 = vdwg.mxu0
  %1315 = vrot.lane.b32.xlu0 %v982, 112
  %v1316 = vpop.permute.xlu0 %1315
  %1317 = vrot.lane.b32.xlu0 %v982, 80
  %v1318 = vpop.permute.xlu0 %1317
  %v1319 = vsel %vm298, %v1316, 0
  %v1321 = vsel %vm298, %v1318, 0
  %1323 = vmatprep.subr.mxu0 0.0
  %1324 = vmatpush1.xpose.msra.mxu0 %v1321
  %1325 = vmatprep.subr.mxu0 0.0
  %1326 = vmatpush1.xpose.msra.mxu0 0.0
  %1327 = vmatprep.subr.mxu0 0.0
  %1328 = vmatpush1.xpose.msra.mxu0 0.0
  %1329 = vmatprep.subr.mxu0 0.0
  %1330 = vmatpush1.xpose.msra.mxu0 0.0
  %1331 = vmatprep.subr.mxu0 0.0
  %1332 = vmatpush1.xpose.msra.mxu0 0.0
  %1333 = vmatprep.subr.mxu0 0.0
  %1334 = vmatpush1.xpose.msra.mxu0 0.0
  %1335 = vmatprep.subr.mxu0 0.0
  %1336 = vmatpush1.xpose.msra.mxu0 0.0
  %1337 = vmatprep.subr.mxu0 0.0
  %1338 = vmatpush1.xpose.msra.mxu0 0.0
  %1339 = vmatprep.subr.mxu0 0.0
  %1340 = vmatpush1.xpose.msra.mxu0 0.0
  %1341 = vmatprep.subr.mxu0 0.0
  %1342 = vmatpush1.xpose.msra.mxu0 0.0
  %1343 = vmatprep.subr.mxu0 0.0
  %1344 = vmatpush1.xpose.msra.mxu0 0.0
  %1345 = vmatprep.subr.mxu0 0.0
  %1346 = vmatpush1.xpose.msra.mxu0 0.0
  %1347 = vmatprep.subr.mxu0 0.0
  %1348 = vmatpush1.xpose.msra.mxu0 0.0
  %1349 = vmatprep.subr.mxu0 0.0
  %1350 = vmatpush1.xpose.msra.mxu0 0.0
  %1351 = vmatprep.subr.mxu0 0.0
  %1352 = vmatpush1.xpose.msra.mxu0 0.0
  %1353 = vmatprep.subr.mxu0 0.0
  %1354 = vmatpush1.xpose.msra.mxu0 0.0
  %1355 = vmatprep.subr.mxu0 0.0
  %1356 = vmatpush1.xpose.msra.mxu0 0.0
  %1357 = vmatprep.subr.mxu0 0.0
  %1358 = vmatpush1.xpose.msra.mxu0 0.0
  %1359 = vmatprep.subr.mxu0 0.0
  %1360 = vmatpush1.xpose.msra.mxu0 0.0
  %1361 = vmatprep.subr.mxu0 0.0
  %1362 = vmatpush1.xpose.msra.mxu0 0.0
  %1363 = vmatprep.subr.mxu0 0.0
  %1364 = vmatpush1.xpose.msra.mxu0 0.0
  %1365 = vmatprep.subr.mxu0 0.0
  %1366 = vmatpush1.xpose.msra.mxu0 0.0
  %1367 = vmatprep.subr.mxu0 0.0
  %1368 = vmatpush1.xpose.msra.mxu0 0.0
  %1369 = vmatprep.subr.mxu0 0.0
  %1370 = vmatpush1.xpose.msra.mxu0 0.0
  %1371 = vmatprep.subr.mxu0 0.0
  %1372 = vmatpush1.xpose.msra.mxu0 0.0
  %1373 = vmatprep.subr.mxu0 0.0
  %1374 = vmatpush1.xpose.msra.mxu0 0.0
  %1375 = vmatprep.subr.mxu0 0.0
  %1376 = vmatpush1.xpose.msra.mxu0 0.0
  %1377 = vmatprep.subr.mxu0 0.0
  %1378 = vmatpush1.xpose.msra.mxu0 0.0
  %1379 = vmatprep.subr.mxu0 0.0
  %1380 = vmatpush1.xpose.msra.mxu0 0.0
  %1381 = vmatprep.subr.mxu0 0.0
  %1382 = vmatpush1.xpose.msra.mxu0 0.0
  %1383 = vmatprep.subr.mxu0 0.0
  %1384 = vmatpush1.xpose.msra.mxu0 0.0
  %1385 = vmatprep.subr.mxu0 0.0
  %1386 = vmatpush1.xpose.msra.mxu0 0.0
  %1387 = vmatprep.mubr.f32.mxu0 0.0
  %1388 = vmatmul.mubr.f32.gmra.mrb[0].mxu0 %v1319
  %v1389 = vpop.f32.mrb[0].mxu0
  %v1390 = vadd.f32 0.0, %v1389
  %v1391 = vpop.f32.mrb[0].mxu0
  %1392 = vdwg.mxu0
  %v1393 = vmul.f32 %v1390, 0.35355338
  %v1394 = vsel %vm374, %v1393, -inf
  %1395 = vmax.xlane.f32.xlu0 %v1394
  %v1396 = vpop.xlane.xlu0 %1395
  %v1397 = vsub.f32 %v1393, %v1396
  %v1398 = vmul.f32 %v1397, 1.442695
  %v1399 = vpow.pop %v1398
  %v1400 = vsel %vm374, %v1399, 0.0
  %1401 = vadd.xlane.f32.xlu0 %v1400
  %v1402 = vpop.xlane.xlu0 %1401
  %v1403 = vrcp.pop %v1402
  %v1404 = vmul.f32 %v1399, %v1403
  %1405 = vrot.lane.b32.xlu0 %v982, 48
  %v1406 = vpop.permute.xlu0 %1405
  %v1408 = vsel %vm388, %v1404, 0
  %v1410 = vsel %vm392, %v1406, 0
  %1412 = vmatprep.subr.mxu0 0.0
  %1413 = vmatpush1.msra.mxu0 %v1410
  %1414 = vmatprep.subr.mxu0 0.0
  %1415 = vmatpush1.msra.mxu0 0.0
  %1416 = vmatprep.subr.mxu0 0.0
  %1417 = vmatpush1.msra.mxu0 0.0
  %1418 = vmatprep.subr.mxu0 0.0
  %1419 = vmatpush1.msra.mxu0 0.0
  %1420 = vmatprep.subr.mxu0 0.0
  %1421 = vmatpush1.msra.mxu0 0.0
  %1422 = vmatprep.subr.mxu0 0.0
  %1423 = vmatpush1.msra.mxu0 0.0
  %1424 = vmatprep.subr.mxu0 0.0
  %1425 = vmatpush1.msra.mxu0 0.0
  %1426 = vmatprep.subr.mxu0 0.0
  %1427 = vmatpush1.msra.mxu0 0.0
  %1428 = vmatprep.subr.mxu0 0.0
  %1429 = vmatpush1.msra.mxu0 0.0
  %1430 = vmatprep.subr.mxu0 0.0
  %1431 = vmatpush1.msra.mxu0 0.0
  %1432 = vmatprep.subr.mxu0 0.0
  %1433 = vmatpush1.msra.mxu0 0.0
  %1434 = vmatprep.subr.mxu0 0.0
  %1435 = vmatpush1.msra.mxu0 0.0
  %1436 = vmatprep.subr.mxu0 0.0
  %1437 = vmatpush1.msra.mxu0 0.0
  %1438 = vmatprep.subr.mxu0 0.0
  %1439 = vmatpush1.msra.mxu0 0.0
  %1440 = vmatprep.subr.mxu0 0.0
  %1441 = vmatpush1.msra.mxu0 0.0
  %1442 = vmatprep.subr.mxu0 0.0
  %1443 = vmatpush1.msra.mxu0 0.0
  %1444 = vmatprep.subr.mxu0 0.0
  %1445 = vmatpush1.msra.mxu0 0.0
  %1446 = vmatprep.subr.mxu0 0.0
  %1447 = vmatpush1.msra.mxu0 0.0
  %1448 = vmatprep.subr.mxu0 0.0
  %1449 = vmatpush1.msra.mxu0 0.0
  %1450 = vmatprep.subr.mxu0 0.0
  %1451 = vmatpush1.msra.mxu0 0.0
  %1452 = vmatprep.subr.mxu0 0.0
  %1453 = vmatpush1.msra.mxu0 0.0
  %1454 = vmatprep.subr.mxu0 0.0
  %1455 = vmatpush1.msra.mxu0 0.0
  %1456 = vmatprep.subr.mxu0 0.0
  %1457 = vmatpush1.msra.mxu0 0.0
  %1458 = vmatprep.subr.mxu0 0.0
  %1459 = vmatpush1.msra.mxu0 0.0
  %1460 = vmatprep.subr.mxu0 0.0
  %1461 = vmatpush1.msra.mxu0 0.0
  %1462 = vmatprep.subr.mxu0 0.0
  %1463 = vmatpush1.msra.mxu0 0.0
  %1464 = vmatprep.subr.mxu0 0.0
  %1465 = vmatpush1.msra.mxu0 0.0
  %1466 = vmatprep.subr.mxu0 0.0
  %1467 = vmatpush1.msra.mxu0 0.0
  %1468 = vmatprep.subr.mxu0 0.0
  %1469 = vmatpush1.msra.mxu0 0.0
  %1470 = vmatprep.subr.mxu0 0.0
  %1471 = vmatpush1.msra.mxu0 0.0
  %1472 = vmatprep.subr.mxu0 0.0
  %1473 = vmatpush1.msra.mxu0 0.0
  %1474 = vmatprep.subr.mxu0 0.0
  %1475 = vmatpush1.msra.mxu0 0.0
  %1476 = vmatprep.mubr.f32.mxu0 0.0
  %1477 = vmatmul.mubr.f32.gmra.mrb[0].mxu0 %v1408
  %v1478 = vpop.f32.mrb[0].mxu0
  %v1479 = vadd.f32 0.0, %v1478
  %v1480 = vpop.f32.mrb[0].mxu0
  %1481 = vdwg.mxu0
  %1482 = vrot.lane.b32.xlu0 %v982, 104
  %v1483 = vpop.permute.xlu0 %1482
  %1484 = vrot.lane.b32.xlu0 %v982, 72
  %v1485 = vpop.permute.xlu0 %1484
  %v1486 = vsel %vm298, %v1483, 0
  %v1488 = vsel %vm298, %v1485, 0
  %1490 = vmatprep.subr.mxu0 0.0
  %1491 = vmatpush1.xpose.msra.mxu0 %v1488
  %1492 = vmatprep.subr.mxu0 0.0
  %1493 = vmatpush1.xpose.msra.mxu0 0.0
  %1494 = vmatprep.subr.mxu0 0.0
  %1495 = vmatpush1.xpose.msra.mxu0 0.0
  %1496 = vmatprep.subr.mxu0 0.0
  %1497 = vmatpush1.xpose.msra.mxu0 0.0
  %1498 = vmatprep.subr.mxu0 0.0
  %1499 = vmatpush1.xpose.msra.mxu0 0.0
  %1500 = vmatprep.subr.mxu0 0.0
  %1501 = vmatpush1.xpose.msra.mxu0 0.0
  %1502 = vmatprep.subr.mxu0 0.0
  %1503 = vmatpush1.xpose.msra.mxu0 0.0
  %1504 = vmatprep.subr.mxu0 0.0
  %1505 = vmatpush1.xpose.msra.mxu0 0.0
  %1506 = vmatprep.subr.mxu0 0.0
  %1507 = vmatpush1.xpose.msra.mxu0 0.0
  %1508 = vmatprep.subr.mxu0 0.0
  %1509 = vmatpush1.xpose.msra.mxu0 0.0
  %1510 = vmatprep.subr.mxu0 0.0
  %1511 = vmatpush1.xpose.msra.mxu0 0.0
  %1512 = vmatprep.subr.mxu0 0.0
  %1513 = vmatpush1.xpose.msra.mxu0 0.0
  %1514 = vmatprep.subr.mxu0 0.0
  %1515 = vmatpush1.xpose.msra.mxu0 0.0
  %1516 = vmatprep.subr.mxu0 0.0
  %1517 = vmatpush1.xpose.msra.mxu0 0.0
  %1518 = vmatprep.subr.mxu0 0.0
  %1519 = vmatpush1.xpose.msra.mxu0 0.0
  %1520 = vmatprep.subr.mxu0 0.0
  %1521 = vmatpush1.xpose.msra.mxu0 0.0
  %1522 = vmatprep.subr.mxu0 0.0
  %1523 = vmatpush1.xpose.msra.mxu0 0.0
  %1524 = vmatprep.subr.mxu0 0.0
  %1525 = vmatpush1.xpose.msra.mxu0 0.0
  %1526 = vmatprep.subr.mxu0 0.0
  %1527 = vmatpush1.xpose.msra.mxu0 0.0
  %1528 = vmatprep.subr.mxu0 0.0
  %1529 = vmatpush1.xpose.msra.mxu0 0.0
  %1530 = vmatprep.subr.mxu0 0.0
  %1531 = vmatpush1.xpose.msra.mxu0 0.0
  %1532 = vmatprep.subr.mxu0 0.0
  %1533 = vmatpush1.xpose.msra.mxu0 0.0
  %1534 = vmatprep.subr.mxu0 0.0
  %1535 = vmatpush1.xpose.msra.mxu0 0.0
  %1536 = vmatprep.subr.mxu0 0.0
  %1537 = vmatpush1.xpose.msra.mxu0 0.0
  %1538 = vmatprep.subr.mxu0 0.0
  %1539 = vmatpush1.xpose.msra.mxu0 0.0
  %1540 = vmatprep.subr.mxu0 0.0
  %1541 = vmatpush1.xpose.msra.mxu0 0.0
  %1542 = vmatprep.subr.mxu0 0.0
  %1543 = vmatpush1.xpose.msra.mxu0 0.0
  %1544 = vmatprep.subr.mxu0 0.0
  %1545 = vmatpush1.xpose.msra.mxu0 0.0
  %1546 = vmatprep.subr.mxu0 0.0
  %1547 = vmatpush1.xpose.msra.mxu0 0.0
  %1548 = vmatprep.subr.mxu0 0.0
  %1549 = vmatpush1.xpose.msra.mxu0 0.0
  %1550 = vmatprep.subr.mxu0 0.0
  %1551 = vmatpush1.xpose.msra.mxu0 0.0
  %1552 = vmatprep.subr.mxu0 0.0
  %1553 = vmatpush1.xpose.msra.mxu0 0.0
  %1554 = vmatprep.mubr.f32.mxu0 0.0
  %1555 = vmatmul.mubr.f32.gmra.mrb[0].mxu0 %v1486
  %v1556 = vpop.f32.mrb[0].mxu0
  %v1557 = vadd.f32 0.0, %v1556
  %v1558 = vpop.f32.mrb[0].mxu0
  %1559 = vdwg.mxu0
  %v1560 = vmul.f32 %v1557, 0.35355338
  %v1561 = vsel %vm374, %v1560, -inf
  %1562 = vmax.xlane.f32.xlu0 %v1561
  %v1563 = vpop.xlane.xlu0 %1562
  %v1564 = vsub.f32 %v1560, %v1563
  %v1565 = vmul.f32 %v1564, 1.442695
  %v1566 = vpow.pop %v1565
  %v1567 = vsel %vm374, %v1566, 0.0
  %1568 = vadd.xlane.f32.xlu0 %v1567
  %v1569 = vpop.xlane.xlu0 %1568
  %v1570 = vrcp.pop %v1569
  %v1571 = vmul.f32 %v1566, %v1570
  %1572 = vrot.lane.b32.xlu0 %v982, 40
  %v1573 = vpop.permute.xlu0 %1572
  %v1575 = vsel %vm388, %v1571, 0
  %v1577 = vsel %vm392, %v1573, 0
  %1579 = vmatprep.subr.mxu0 0.0
  %1580 = vmatpush1.msra.mxu0 %v1577
  %1581 = vmatprep.subr.mxu0 0.0
  %1582 = vmatpush1.msra.mxu0 0.0
  %1583 = vmatprep.subr.mxu0 0.0
  %1584 = vmatpush1.msra.mxu0 0.0
  %1585 = vmatprep.subr.mxu0 0.0
  %1586 = vmatpush1.msra.mxu0 0.0
  %1587 = vmatprep.subr.mxu0 0.0
  %1588 = vmatpush1.msra.mxu0 0.0
  %1589 = vmatprep.subr.mxu0 0.0
  %1590 = vmatpush1.msra.mxu0 0.0
  %1591 = vmatprep.subr.mxu0 0.0
  %1592 = vmatpush1.msra.mxu0 0.0
  %1593 = vmatprep.subr.mxu0 0.0
  %1594 = vmatpush1.msra.mxu0 0.0
  %1595 = vmatprep.subr.mxu0 0.0
  %1596 = vmatpush1.msra.mxu0 0.0
  %1597 = vmatprep.subr.mxu0 0.0
  %1598 = vmatpush1.msra.mxu0 0.0
  %1599 = vmatprep.subr.mxu0 0.0
  %1600 = vmatpush1.msra.mxu0 0.0
  %1601 = vmatprep.subr.mxu0 0.0
  %1602 = vmatpush1.msra.mxu0 0.0
  %1603 = vmatprep.subr.mxu0 0.0
  %1604 = vmatpush1.msra.mxu0 0.0
  %1605 = vmatprep.subr.mxu0 0.0
  %1606 = vmatpush1.msra.mxu0 0.0
  %1607 = vmatprep.subr.mxu0 0.0
  %1608 = vmatpush1.msra.mxu0 0.0
  %1609 = vmatprep.subr.mxu0 0.0
  %1610 = vmatpush1.msra.mxu0 0.0
  %1611 = vmatprep.subr.mxu0 0.0
  %1612 = vmatpush1.msra.mxu0 0.0
  %1613 = vmatprep.subr.mxu0 0.0
  %1614 = vmatpush1.msra.mxu0 0.0
  %1615 = vmatprep.subr.mxu0 0.0
  %1616 = vmatpush1.msra.mxu0 0.0
  %1617 = vmatprep.subr.mxu0 0.0
  %1618 = vmatpush1.msra.mxu0 0.0
  %1619 = vmatprep.subr.mxu0 0.0
  %1620 = vmatpush1.msra.mxu0 0.0
  %1621 = vmatprep.subr.mxu0 0.0
  %1622 = vmatpush1.msra.mxu0 0.0
  %1623 = vmatprep.subr.mxu0 0.0
  %1624 = vmatpush1.msra.mxu0 0.0
  %1625 = vmatprep.subr.mxu0 0.0
  %1626 = vmatpush1.msra.mxu0 0.0
  %1627 = vmatprep.subr.mxu0 0.0
  %1628 = vmatpush1.msra.mxu0 0.0
  %1629 = vmatprep.subr.mxu0 0.0
  %1630 = vmatpush1.msra.mxu0 0.0
  %1631 = vmatprep.subr.mxu0 0.0
  %1632 = vmatpush1.msra.mxu0 0.0
  %1633 = vmatprep.subr.mxu0 0.0
  %1634 = vmatpush1.msra.mxu0 0.0
  %1635 = vmatprep.subr.mxu0 0.0
  %1636 = vmatpush1.msra.mxu0 0.0
  %1637 = vmatprep.subr.mxu0 0.0
  %1638 = vmatpush1.msra.mxu0 0.0
  %1639 = vmatprep.subr.mxu0 0.0
  %1640 = vmatpush1.msra.mxu0 0.0
  %1641 = vmatprep.subr.mxu0 0.0
  %1642 = vmatpush1.msra.mxu0 0.0
  %1643 = vmatprep.mubr.f32.mxu0 0.0
  %1644 = vmatmul.mubr.f32.gmra.mrb[0].mxu0 %v1575
  %v1645 = vpop.f32.mrb[0].mxu0
  %v1646 = vadd.f32 0.0, %v1645
  %v1647 = vpop.f32.mrb[0].mxu0
  %1648 = vdwg.mxu0
  %1650 = vrot.lane.b32.xlu0 %v1312, 8
  %v1651 = vpop.permute.xlu0 %1650
  %1654 = vrot.lane.b32.xlu0 %v1479, 16
  %v1655 = vpop.permute.xlu0 %1654
  %1658 = vrot.lane.b32.xlu0 %v1646, 24
  %v1659 = vpop.permute.xlu0 %1658
  %v1661 = vsel %vm298, %v1145, %v1651
  %v1662 = vsel %vm135, %v1661, %v1655
  %v1663 = vsel %vm980, %v1662, %v1659
  %v1665 = vrot.slane %v1663, 4
  %v1667 = vsel %vm392, %v981, %v1665
  %v1668 = vld [vmem:[%s7] sm:$0xff]
  %v1669 = vld [vmem:[%s7 + $0x8] sm:$0xff]
  %v1670 = vld [vmem:[%s7 + $0x10] sm:$0xff]
  %v1671 = vld [vmem:[%s7 + $0x18] sm:$0xff]
  %v1672 = vld [vmem:[%s8] sm:$0x1]
  %v1674 = vlaneseq
  %v1675 = vshrl.u32 %v1674, 7
  %v1676 = vsub.s32 0, %v1675
  %v1677 = vrot.slane %v1672, %v1676
  %v1680 = vsel %vm221, %v1667, 0
  %1682 = vmatprep.subr.mxu0 0.0
  %1683 = vmatpush1.msra.mxu0 %v1668
  %1684 = vmatprep.subr.mxu0 0.0
  %1685 = vmatpush1.msra.mxu0 %v1669
  %1686 = vmatprep.subr.mxu0 0.0
  %1687 = vmatpush1.msra.mxu0 %v1670
  %1688 = vmatprep.subr.mxu0 0.0
  %1689 = vmatpush1.msra.mxu0 %v1671
  %1690 = vmatprep.subr.mxu0 0.0
  %1691 = vmatpush1.msra.mxu0 0.0
  %1692 = vmatprep.subr.mxu0 0.0
  %1693 = vmatpush1.msra.mxu0 0.0
  %1694 = vmatprep.subr.mxu0 0.0
  %1695 = vmatpush1.msra.mxu0 0.0
  %1696 = vmatprep.subr.mxu0 0.0
  %1697 = vmatpush1.msra.mxu0 0.0
  %1698 = vmatprep.subr.mxu0 0.0
  %1699 = vmatpush1.msra.mxu0 0.0
  %1700 = vmatprep.subr.mxu0 0.0
  %1701 = vmatpush1.msra.mxu0 0.0
  %1702 = vmatprep.subr.mxu0 0.0
  %1703 = vmatpush1.msra.mxu0 0.0
  %1704 = vmatprep.subr.mxu0 0.0
  %1705 = vmatpush1.msra.mxu0 0.0
  %1706 = vmatprep.subr.mxu0 0.0
  %1707 = vmatpush1.msra.mxu0 0.0
  %1708 = vmatprep.subr.mxu0 0.0
  %1709 = vmatpush1.msra.mxu0 0.0
  %1710 = vmatprep.subr.mxu0 0.0
  %1711 = vmatpush1.msra.mxu0 0.0
  %1712 = vmatprep.subr.mxu0 0.0
  %1713 = vmatpush1.msra.mxu0 0.0
  %1714 = vmatprep.subr.mxu0 0.0
  %1715 = vmatpush1.msra.mxu0 0.0
  %1716 = vmatprep.subr.mxu0 0.0
  %1717 = vmatpush1.msra.mxu0 0.0
  %1718 = vmatprep.subr.mxu0 0.0
  %1719 = vmatpush1.msra.mxu0 0.0
  %1720 = vmatprep.subr.mxu0 0.0
  %1721 = vmatpush1.msra.mxu0 0.0
  %1722 = vmatprep.subr.mxu0 0.0
  %1723 = vmatpush1.msra.mxu0 0.0
  %1724 = vmatprep.subr.mxu0 0.0
  %1725 = vmatpush1.msra.mxu0 0.0
  %1726 = vmatprep.subr.mxu0 0.0
  %1727 = vmatpush1.msra.mxu0 0.0
  %1728 = vmatprep.subr.mxu0 0.0
  %1729 = vmatpush1.msra.mxu0 0.0
  %1730 = vmatprep.subr.mxu0 0.0
  %1731 = vmatpush1.msra.mxu0 0.0
  %1732 = vmatprep.subr.mxu0 0.0
  %1733 = vmatpush1.msra.mxu0 0.0
  %1734 = vmatprep.subr.mxu0 0.0
  %1735 = vmatpush1.msra.mxu0 0.0
  %1736 = vmatprep.subr.mxu0 0.0
  %1737 = vmatpush1.msra.mxu0 0.0
  %1738 = vmatprep.subr.mxu0 0.0
  %1739 = vmatpush1.msra.mxu0 0.0
  %1740 = vmatprep.subr.mxu0 0.0
  %1741 = vmatpush1.msra.mxu0 0.0
  %1742 = vmatprep.subr.mxu0 0.0
  %1743 = vmatpush1.msra.mxu0 0.0
  %1744 = vmatprep.subr.mxu0 0.0
  %1745 = vmatpush1.msra.mxu0 0.0
  %1746 = vmatprep.mubr.f32.mxu0 0.0
  %1747 = vmatmul.mubr.f32.gmra.mrb[0].mxu0 %v1680
  %v1748 = vpop.f32.mrb[0].mxu0
  %v1749 = vadd.f32 %v1677, %v1748
  %v1750 = vpop.f32.mrb[0].mxu0
  %1751 = vdwg.mxu0
  %vm1752 = vcmask 257024
  %v1753 = vsel %vm1752, %v1749, 0.0
  %v1754 = vrot.slane %v1753, 4
  %v1755 = vadd.f32 %v1753, %v1754
  %v1756 = vrot.slane %v1755, 2
  %v1757 = vadd.f32 %v1755, %v1756
  %v1758 = vrot.slane %v1757, 1
  %v1759 = vadd.f32 %v1757, %v1758
  %v1760 = vrcp.pop 4.0
  %v1761 = vmul.f32 %v1759, %v1760
  %v1763 = vrot.slane %v1749, 4
  %v1765 = vsel %vm1752, %v1763, 0.0
  %v1766 = vrot.slane %v1765, 4
  %v1767 = vadd.f32 %v1765, %v1766
  %v1768 = vrot.slane %v1767, 2
  %v1769 = vadd.f32 %v1767, %v1768
  %v1770 = vrot.slane %v1769, 1
  %v1771 = vadd.f32 %v1769, %v1770
  %v1772 = vmul.f32 %v1771, %v1760
  %vm1773 = vcmask 1040384
  %v1774 = vsel %vm1773, %v1761, %v1772
  %v1775 = vld [vmem:[%s9] sm:$0xff]
  %v1776 = vld [vmem:[%s9 + $0x8] sm:$0xff]
  %v1777 = vld [vmem:[%s9 + $0x10] sm:$0xff]
  %v1778 = vld [vmem:[%s9 + $0x18] sm:$0xff]
  %v1779 = vld [vmem:[%s10] sm:$0x1]
  %v1781 = vlaneseq
  %v1782 = vshrl.u32 %v1781, 7
  %v1783 = vsub.s32 0, %v1782
  %v1784 = vrot.slane %v1779, %v1783
  %v1787 = vsel %vm221, %v1774, 0
  %1789 = vmatprep.subr.mxu0 0.0
  %1790 = vmatpush1.msra.mxu0 %v1775
  %1791 = vmatprep.subr.mxu0 0.0
  %1792 = vmatpush1.msra.mxu0 %v1776
  %1793 = vmatprep.subr.mxu0 0.0
  %1794 = vmatpush1.msra.mxu0 %v1777
  %1795 = vmatprep.subr.mxu0 0.0
  %1796 = vmatpush1.msra.mxu0 %v1778
  %1797 = vmatprep.subr.mxu0 0.0
  %1798 = vmatpush1.msra.mxu0 0.0
  %1799 = vmatprep.subr.mxu0 0.0
  %1800 = vmatpush1.msra.mxu0 0.0
  %1801 = vmatprep.subr.mxu0 0.0
  %1802 = vmatpush1.msra.mxu0 0.0
  %1803 = vmatprep.subr.mxu0 0.0
  %1804 = vmatpush1.msra.mxu0 0.0
  %1805 = vmatprep.subr.mxu0 0.0
  %1806 = vmatpush1.msra.mxu0 0.0
  %1807 = vmatprep.subr.mxu0 0.0
  %1808 = vmatpush1.msra.mxu0 0.0
  %1809 = vmatprep.subr.mxu0 0.0
  %1810 = vmatpush1.msra.mxu0 0.0
  %1811 = vmatprep.subr.mxu0 0.0
  %1812 = vmatpush1.msra.mxu0 0.0
  %1813 = vmatprep.subr.mxu0 0.0
  %1814 = vmatpush1.msra.mxu0 0.0
  %1815 = vmatprep.subr.mxu0 0.0
  %1816 = vmatpush1.msra.mxu0 0.0
  %1817 = vmatprep.subr.mxu0 0.0
  %1818 = vmatpush1.msra.mxu0 0.0
  %1819 = vmatprep.subr.mxu0 0.0
  %1820 = vmatpush1.msra.mxu0 0.0
  %1821 = vmatprep.subr.mxu0 0.0
  %1822 = vmatpush1.msra.mxu0 0.0
  %1823 = vmatprep.subr.mxu0 0.0
  %1824 = vmatpush1.msra.mxu0 0.0
  %1825 = vmatprep.subr.mxu0 0.0
  %1826 = vmatpush1.msra.mxu0 0.0
  %1827 = vmatprep.subr.mxu0 0.0
  %1828 = vmatpush1.msra.mxu0 0.0
  %1829 = vmatprep.subr.mxu0 0.0
  %1830 = vmatpush1.msra.mxu0 0.0
  %1831 = vmatprep.subr.mxu0 0.0
  %1832 = vmatpush1.msra.mxu0 0.0
  %1833 = vmatprep.subr.mxu0 0.0
  %1834 = vmatpush1.msra.mxu0 0.0
  %1835 = vmatprep.subr.mxu0 0.0
  %1836 = vmatpush1.msra.mxu0 0.0
  %1837 = vmatprep.subr.mxu0 0.0
  %1838 = vmatpush1.msra.mxu0 0.0
  %1839 = vmatprep.subr.mxu0 0.0
  %1840 = vmatpush1.msra.mxu0 0.0
  %1841 = vmatprep.subr.mxu0 0.0
  %1842 = vmatpush1.msra.mxu0 0.0
  %1843 = vmatprep.subr.mxu0 0.0
  %1844 = vmatpush1.msra.mxu0 0.0
  %1845 = vmatprep.subr.mxu0 0.0
  %1846 = vmatpush1.msra.mxu0 0.0
  %1847 = vmatprep.subr.mxu0 0.0
  %1848 = vmatpush1.msra.mxu0 0.0
  %1849 = vmatprep.subr.mxu0 0.0
  %1850 = vmatpush1.msra.mxu0 0.0
  %1851 = vmatprep.subr.mxu0 0.0
  %1852 = vmatpush1.msra.mxu0 0.0
  %1853 = vmatprep.mubr.f32.mxu0 0.0
  %1854 = vmatmul.mubr.f32.gmra.mrb[0].mxu0 %v1787
  %v1855 = vpop.f32.mrb[0].mxu0
  %v1856 = vadd.f32 %v1784, %v1855
  %v1857 = vpop.f32.mrb[0].mxu0
  %1858 = vdwg.mxu0
  %vm1859 = vcmask 254976
  %1860 = vst.msk [vmem:[%s11] sm:$0x3] %vm1859, %v1856
  // Predicated region
  $region46: #{ppo_transformer_forward.8} parent=0 // pred_check
    _
  $region47: #{ppo_transformer_forward.8} parent=0 // pred_check_branch
    %1862 = sbr.rel (0) target = $region49
  $region48: #{ppo_transformer_forward.8} parent=0 // pred_region
    _
  $region49: #{ppo_transformer_forward.8} parent=0 // pred_fallthru
    _
  // Predicated region
  $region50: #{ppo_transformer_forward.8} parent=0 // pred_check
    _
  $region51: #{ppo_transformer_forward.8} parent=0 // pred_check_branch
    %1864 = sbr.rel (0) target = $region53
  $region52: #{ppo_transformer_forward.8} parent=0 // pred_region
    _
  $region53: #{ppo_transformer_forward.8} parent=0 // pred_fallthru
    _

// kernel: ppo_transformer_forward.6
$region0: #{ppo_transformer_forward.6}
  #allocation0 [shape = 'u32[]', space=smem, size = 0x4, offset = 0x4, fixed_abs, tag = 'smem constant byte address 0x4 - core index']
  #allocation1 [shape = 'u32[144,128]{1,0:T(1,128)}', space=vmem, size = 0x12000, scoped, tag = 'internal scratch']
  %s0 = inlined_call_operand.vmem [shape: f32[16,32], index: 0, kind: input, shape index: {}]
  %s1 = inlined_call_operand.vmem [shape: f32[32,96], index: 1, kind: input, shape index: {}]
  %s2 = inlined_call_operand.vmem [shape: f32[1,96], index: 2, kind: input, shape index: {}]
  %s3 = inlined_call_operand.vmem [shape: f32[32,32], index: 3, kind: input, shape index: {}]
  %s4 = inlined_call_operand.vmem [shape: f32[1,32], index: 4, kind: input, shape index: {}]
  %s5 = inlined_call_operand.vmem [shape: f32[1,32], index: 5, kind: input, shape index: {}]
  %s6 = inlined_call_operand.vmem [shape: f32[1,32], index: 6, kind: input, shape index: {}]
  %s7 = inlined_call_operand.vmem [shape: f32[32,2048], index: 7, kind: input, shape index: {}]
  %s8 = inlined_call_operand.vmem [shape: f32[1,2048], index: 8, kind: input, shape index: {}]
  %s9 = inlined_call_operand.vmem [shape: f32[2048,32], index: 9, kind: input, shape index: {}]
  %s10 = inlined_call_operand.vmem [shape: f32[1,32], index: 10, kind: input, shape index: {}]
  %s11 = inlined_call_operand.vmem [shape: f32[1,32], index: 11, kind: input, shape index: {}]
  %s12 = inlined_call_operand.vmem [shape: f32[1,32], index: 12, kind: input, shape index: {}]
  %s13 = inlined_call_operand.vmem [shape: f32[16,32], index: 13, kind: output, shape index: {}]
  %s14 = sld [smem:[#allocation0]]
  $region62: #{ppo_transformer_forward.6} parent=0
    _
  %s16 = ssub.s32 1, %s14
  %s17 = scalar_select 0, %s16, %s14
  // Predicated region
  $region2: #{ppo_transformer_forward.6} parent=0 // pred_check
    _
  $region3: #{ppo_transformer_forward.6} parent=0 // pred_check_branch
    %19 = sbr.rel (0) target = $region5
  $region4: #{ppo_transformer_forward.6} parent=0 // pred_region
    _
  $region5: #{ppo_transformer_forward.6} parent=0 // pred_fallthru
    _
  // Predicated region
  $region6: #{ppo_transformer_forward.6} parent=0 // pred_check
    _
  $region7: #{ppo_transformer_forward.6} parent=0 // pred_check_branch
    %21 = sbr.rel (0) target = $region9
  $region8: #{ppo_transformer_forward.6} parent=0 // pred_region
    _
  $region9: #{ppo_transformer_forward.6} parent=0 // pred_fallthru
    _
  // Predicated region
  $region10: #{ppo_transformer_forward.6} parent=0 // pred_check
    _
  $region11: #{ppo_transformer_forward.6} parent=0 // pred_check_branch
    %23 = sbr.rel (0) target = $region13
  $region12: #{ppo_transformer_forward.6} parent=0 // pred_region
    _
  $region13: #{ppo_transformer_forward.6} parent=0 // pred_fallthru
    _
  // Predicated region
  $region14: #{ppo_transformer_forward.6} parent=0 // pred_check
    _
  $region15: #{ppo_transformer_forward.6} parent=0 // pred_check_branch
    %25 = sbr.rel (0) target = $region17
  $region16: #{ppo_transformer_forward.6} parent=0 // pred_region
    _
  $region17: #{ppo_transformer_forward.6} parent=0 // pred_fallthru
    _
  // Predicated region
  $region18: #{ppo_transformer_forward.6} parent=0 // pred_check
    _
  $region19: #{ppo_transformer_forward.6} parent=0 // pred_check_branch
    %27 = sbr.rel (0) target = $region21
  $region20: #{ppo_transformer_forward.6} parent=0 // pred_region
    _
  $region21: #{ppo_transformer_forward.6} parent=0 // pred_fallthru
    _
  // Predicated region
  $region22: #{ppo_transformer_forward.6} parent=0 // pred_check
    _
  $region23: #{ppo_transformer_forward.6} parent=0 // pred_check_branch
    %29 = sbr.rel (0) target = $region25
  $region24: #{ppo_transformer_forward.6} parent=0 // pred_region
    _
  $region25: #{ppo_transformer_forward.6} parent=0 // pred_fallthru
    _
  // Predicated region
  $region26: #{ppo_transformer_forward.6} parent=0 // pred_check
    _
  $region27: #{ppo_transformer_forward.6} parent=0 // pred_check_branch
    %31 = sbr.rel (0) target = $region29
  $region28: #{ppo_transformer_forward.6} parent=0 // pred_region
    _
  $region29: #{ppo_transformer_forward.6} parent=0 // pred_fallthru
    _
  // Predicated region
  $region30: #{ppo_transformer_forward.6} parent=0 // pred_check
    _
  $region31: #{ppo_transformer_forward.6} parent=0 // pred_check_branch
    %33 = sbr.rel (0) target = $region33
  $region32: #{ppo_transformer_forward.6} parent=0 // pred_region
    _
  $region33: #{ppo_transformer_forward.6} parent=0 // pred_fallthru
    _
  // Predicated region
  $region34: #{ppo_transformer_forward.6} parent=0 // pred_check
    _
  $region35: #{ppo_transformer_forward.6} parent=0 // pred_check_branch
    %35 = sbr.rel (0) target = $region37
  $region36: #{ppo_transformer_forward.6} parent=0 // pred_region
    _
  $region37: #{ppo_transformer_forward.6} parent=0 // pred_fallthru
    _
  // Predicated region
  $region38: #{ppo_transformer_forward.6} parent=0 // pred_check
    _
  $region39: #{ppo_transformer_forward.6} parent=0 // pred_check_branch
    %37 = sbr.rel (0) target = $region41
  $region40: #{ppo_transformer_forward.6} parent=0 // pred_region
    _
  $region41: #{ppo_transformer_forward.6} parent=0 // pred_fallthru
    _
  // Predicated region
  $region42: #{ppo_transformer_forward.6} parent=0 // pred_check
    _
  $region43: #{ppo_transformer_forward.6} parent=0 // pred_check_branch
    %39 = sbr.rel (0) target = $region45
  $region44: #{ppo_transformer_forward.6} parent=0 // pred_region
    _
  $region45: #{ppo_transformer_forward.6} parent=0 // pred_fallthru
    _
  // Predicated region
  $region46: #{ppo_transformer_forward.6} parent=0 // pred_check
    _
  $region47: #{ppo_transformer_forward.6} parent=0 // pred_check_branch
    %41 = sbr.rel (0) target = $region49
  $region48: #{ppo_transformer_forward.6} parent=0 // pred_region
    _
  $region49: #{ppo_transformer_forward.6} parent=0 // pred_fallthru
    _
  // Predicated region
  $region50: #{ppo_transformer_forward.6} parent=0 // pred_check
    _
  $region51: #{ppo_transformer_forward.6} parent=0 // pred_check_branch
    %43 = sbr.rel (0) target = $region53
  $region52: #{ppo_transformer_forward.6} parent=0 // pred_region
    _
  $region53: #{ppo_transformer_forward.6} parent=0 // pred_fallthru
    _
  %v44 = vld [vmem:[%s0] sm:$0xff]
  %v45 = vld [vmem:[%s0 + $0x8] sm:$0xff]
  %v46 = vld [vmem:[%s1] sm:$0xff]
  %v47 = vld [vmem:[%s1 + $0x8] sm:$0xff]
  %v48 = vld [vmem:[%s1 + $0x10] sm:$0xff]
  %v49 = vld [vmem:[%s1 + $0x18] sm:$0xff]
  %v50 = vld [vmem:[%s2] sm:$0x1]
  %v52 = vlaneseq
  %v53 = vshrl.u32 %v52, 7
  %v54 = vsub.s32 0, %v53
  %v55 = vrot.slane %v50, %v54
  %vm57 = vcmask 261120
  %v59 = vsel %vm57, %v44, 0
  %v62 = vsel %vm57, %v45, 0
  %64 = vmatprep.subr.mxu0 0.0
  %65 = vmatpush1.msra.mxu0 %v46
  %66 = vmatprep.subr.mxu0 0.0
  %67 = vmatpush1.msra.mxu0 %v47
  %68 = vmatprep.subr.mxu0 0.0
  %69 = vmatpush1.msra.mxu0 %v48
  %70 = vmatprep.subr.mxu0 0.0
  %71 = vmatpush1.msra.mxu0 %v49
  %72 = vmatprep.subr.mxu0 0.0
  %73 = vmatpush1.msra.mxu0 0.0
  %74 = vmatprep.subr.mxu0 0.0
  %75 = vmatpush1.msra.mxu0 0.0
  %76 = vmatprep.subr.mxu0 0.0
  %77 = vmatpush1.msra.mxu0 0.0
  %78 = vmatprep.subr.mxu0 0.0
  %79 = vmatpush1.msra.mxu0 0.0
  %80 = vmatprep.subr.mxu0 0.0
  %81 = vmatpush1.msra.mxu0 0.0
  %82 = vmatprep.subr.mxu0 0.0
  %83 = vmatpush1.msra.mxu0 0.0
  %84 = vmatprep.subr.mxu0 0.0
  %85 = vmatpush1.msra.mxu0 0.0
  %86 = vmatprep.subr.mxu0 0.0
  %87 = vmatpush1.msra.mxu0 0.0
  %88 = vmatprep.subr.mxu0 0.0
  %89 = vmatpush1.msra.mxu0 0.0
  %90 = vmatprep.subr.mxu0 0.0
  %91 = vmatpush1.msra.mxu0 0.0
  %92 = vmatprep.subr.mxu0 0.0
  %93 = vmatpush1.msra.mxu0 0.0
  %94 = vmatprep.subr.mxu0 0.0
  %95 = vmatpush1.msra.mxu0 0.0
  %96 = vmatprep.subr.mxu0 0.0
  %97 = vmatpush1.msra.mxu0 0.0
  %98 = vmatprep.subr.mxu0 0.0
  %99 = vmatpush1.msra.mxu0 0.0
  %100 = vmatprep.subr.mxu0 0.0
  %101 = vmatpush1.msra.mxu0 0.0
  %102 = vmatprep.subr.mxu0 0.0
  %103 = vmatpush1.msra.mxu0 0.0
  %104 = vmatprep.subr.mxu0 0.0
  %105 = vmatpush1.msra.mxu0 0.0
  %106 = vmatprep.subr.mxu0 0.0
  %107 = vmatpush1.msra.mxu0 0.0
  %108 = vmatprep.subr.mxu0 0.0
  %109 = vmatpush1.msra.mxu0 0.0
  %110 = vmatprep.subr.mxu0 0.0
  %111 = vmatpush1.msra.mxu0 0.0
  %112 = vmatprep.subr.mxu0 0.0
  %113 = vmatpush1.msra.mxu0 0.0
  %114 = vmatprep.subr.mxu0 0.0
  %115 = vmatpush1.msra.mxu0 0.0
  %116 = vmatprep.subr.mxu0 0.0
  %117 = vmatpush1.msra.mxu0 0.0
  %118 = vmatprep.subr.mxu0 0.0
  %119 = vmatpush1.msra.mxu0 0.0
  %120 = vmatprep.subr.mxu0 0.0
  %121 = vmatpush1.msra.mxu0 0.0
  %122 = vmatprep.subr.mxu0 0.0
  %123 = vmatpush1.msra.mxu0 0.0
  %124 = vmatprep.subr.mxu0 0.0
  %125 = vmatpush1.msra.mxu0 0.0
  %126 = vmatprep.subr.mxu0 0.0
  %127 = vmatpush1.msra.mxu0 0.0
  %128 = vmatprep.mubr.f32.mxu0 0.0
  %129 = vmatmul.mubr.f32.gmra.mrb[0].mxu0 %v59
  %v130 = vpop.f32.mrb[0].mxu0
  %v131 = vadd.f32 %v55, %v130
  %v132 = vpop.f32.mrb[0].mxu0
  %133 = vmatprep.mubr.f32.mxu0 0.0
  %134 = vmatmul.mubr.f32.gmra.mrb[0].mxu0 %v62
  %v135 = vpop.f32.mrb[0].mxu0
  %v136 = vadd.f32 %v55, %v135
  %v137 = vpop.f32.mrb[0].mxu0
  %138 = vdwg.mxu0
  %140 = vrot.lane.b32.xlu0 %v131, 96
  %v141 = vpop.permute.xlu0 %140
  %vm142 = vcmask 64512
  %v143 = vsel %vm142, %v131, 0
  %v145 = vsel %vm142, %v141, 0
  %147 = vmatprep.subr.mxu0 0.0
  %148 = vmatpush1.xpose.msra.mxu0 %v145
  %149 = vmatprep.subr.mxu0 0.0
  %150 = vmatpush1.xpose.msra.mxu0 0.0
  %151 = vmatprep.subr.mxu0 0.0
  %152 = vmatpush1.xpose.msra.mxu0 0.0
  %153 = vmatprep.subr.mxu0 0.0
  %154 = vmatpush1.xpose.msra.mxu0 0.0
  %155 = vmatprep.subr.mxu0 0.0
  %156 = vmatpush1.xpose.msra.mxu0 0.0
  %157 = vmatprep.subr.mxu0 0.0
  %158 = vmatpush1.xpose.msra.mxu0 0.0
  %159 = vmatprep.subr.mxu0 0.0
  %160 = vmatpush1.xpose.msra.mxu0 0.0
  %161 = vmatprep.subr.mxu0 0.0
  %162 = vmatpush1.xpose.msra.mxu0 0.0
  %163 = vmatprep.subr.mxu0 0.0
  %164 = vmatpush1.xpose.msra.mxu0 0.0
  %165 = vmatprep.subr.mxu0 0.0
  %166 = vmatpush1.xpose.msra.mxu0 0.0
  %167 = vmatprep.subr.mxu0 0.0
  %168 = vmatpush1.xpose.msra.mxu0 0.0
  %169 = vmatprep.subr.mxu0 0.0
  %170 = vmatpush1.xpose.msra.mxu0 0.0
  %171 = vmatprep.subr.mxu0 0.0
  %172 = vmatpush1.xpose.msra.mxu0 0.0
  %173 = vmatprep.subr.mxu0 0.0
  %174 = vmatpush1.xpose.msra.mxu0 0.0
  %175 = vmatprep.subr.mxu0 0.0
  %176 = vmatpush1.xpose.msra.mxu0 0.0
  %177 = vmatprep.subr.mxu0 0.0
  %178 = vmatpush1.xpose.msra.mxu0 0.0
  %179 = vmatprep.subr.mxu0 0.0
  %180 = vmatpush1.xpose.msra.mxu0 0.0
  %181 = vmatprep.subr.mxu0 0.0
  %182 = vmatpush1.xpose.msra.mxu0 0.0
  %183 = vmatprep.subr.mxu0 0.0
  %184 = vmatpush1.xpose.msra.mxu0 0.0
  %185 = vmatprep.subr.mxu0 0.0
  %186 = vmatpush1.xpose.msra.mxu0 0.0
  %187 = vmatprep.subr.mxu0 0.0
  %188 = vmatpush1.xpose.msra.mxu0 0.0
  %189 = vmatprep.subr.mxu0 0.0
  %190 = vmatpush1.xpose.msra.mxu0 0.0
  %191 = vmatprep.subr.mxu0 0.0
  %192 = vmatpush1.xpose.msra.mxu0 0.0
  %193 = vmatprep.subr.mxu0 0.0
  %194 = vmatpush1.xpose.msra.mxu0 0.0
  %195 = vmatprep.subr.mxu0 0.0
  %196 = vmatpush1.xpose.msra.mxu0 0.0
  %197 = vmatprep.subr.mxu0 0.0
  %198 = vmatpush1.xpose.msra.mxu0 0.0
  %199 = vmatprep.subr.mxu0 0.0
  %200 = vmatpush1.xpose.msra.mxu0 0.0
  %201 = vmatprep.subr.mxu0 0.0
  %202 = vmatpush1.xpose.msra.mxu0 0.0
  %203 = vmatprep.subr.mxu0 0.0
  %204 = vmatpush1.xpose.msra.mxu0 0.0
  %205 = vmatprep.subr.mxu0 0.0
  %206 = vmatpush1.xpose.msra.mxu0 0.0
  %207 = vmatprep.subr.mxu0 0.0
  %208 = vmatpush1.xpose.msra.mxu0 0.0
  %209 = vmatprep.subr.mxu0 0.0
  %210 = vmatpush1.xpose.msra.mxu0 0.0
  %211 = vmatprep.mubr.f32.mxu0 0.0
  %212 = vmatmul.mubr.f32.gmra.mrb[0].mxu0 %v143
  %v213 = vpop.f32.mrb[0].mxu0
  %v214 = vadd.f32 0.0, %v213
  %v215 = vpop.f32.mrb[0].mxu0
  %216 = vdwg.mxu0
  %v217 = vmul.f32 %v214, 0.35355338
  %v218 = vsel %vm142, %v217, -inf
  %219 = vmax.xlane.f32.xlu0 %v218
  %v220 = vpop.xlane.xlu0 %219
  %v221 = vsub.f32 %v217, %v220
  %v222 = vmul.f32 %v221, 1.442695
  %v223 = vpow.pop %v222
  %v224 = vsel %vm142, %v223, 0.0
  %225 = vadd.xlane.f32.xlu0 %v224
  %v226 = vpop.xlane.xlu0 %225
  %v227 = vrcp.pop %v226
  %v228 = vmul.f32 %v223, %v227
  %229 = vrot.lane.b32.xlu0 %v131, 64
  %v230 = vpop.permute.xlu0 %229
  %v233 = vsel %vm142, %v228, 0
  %235 = vmatprep.subr.mxu0 0.0
  %236 = vmatpush1.msra.mxu0 %v230
  %237 = vmatprep.subr.mxu0 0.0
  %238 = vmatpush1.msra.mxu0 0.0
  %239 = vmatprep.subr.mxu0 0.0
  %240 = vmatpush1.msra.mxu0 0.0
  %241 = vmatprep.subr.mxu0 0.0
  %242 = vmatpush1.msra.mxu0 0.0
  %243 = vmatprep.subr.mxu0 0.0
  %244 = vmatpush1.msra.mxu0 0.0
  %245 = vmatprep.subr.mxu0 0.0
  %246 = vmatpush1.msra.mxu0 0.0
  %247 = vmatprep.subr.mxu0 0.0
  %248 = vmatpush1.msra.mxu0 0.0
  %249 = vmatprep.subr.mxu0 0.0
  %250 = vmatpush1.msra.mxu0 0.0
  %251 = vmatprep.subr.mxu0 0.0
  %252 = vmatpush1.msra.mxu0 0.0
  %253 = vmatprep.subr.mxu0 0.0
  %254 = vmatpush1.msra.mxu0 0.0
  %255 = vmatprep.subr.mxu0 0.0
  %256 = vmatpush1.msra.mxu0 0.0
  %257 = vmatprep.subr.mxu0 0.0
  %258 = vmatpush1.msra.mxu0 0.0
  %259 = vmatprep.subr.mxu0 0.0
  %260 = vmatpush1.msra.mxu0 0.0
  %261 = vmatprep.subr.mxu0 0.0
  %262 = vmatpush1.msra.mxu0 0.0
  %263 = vmatprep.subr.mxu0 0.0
  %264 = vmatpush1.msra.mxu0 0.0
  %265 = vmatprep.subr.mxu0 0.0
  %266 = vmatpush1.msra.mxu0 0.0
  %267 = vmatprep.subr.mxu0 0.0
  %268 = vmatpush1.msra.mxu0 0.0
  %269 = vmatprep.subr.mxu0 0.0
  %270 = vmatpush1.msra.mxu0 0.0
  %271 = vmatprep.subr.mxu0 0.0
  %272 = vmatpush1.msra.mxu0 0.0
  %273 = vmatprep.subr.mxu0 0.0
  %274 = vmatpush1.msra.mxu0 0.0
  %275 = vmatprep.subr.mxu0 0.0
  %276 = vmatpush1.msra.mxu0 0.0
  %277 = vmatprep.subr.mxu0 0.0
  %278 = vmatpush1.msra.mxu0 0.0
  %279 = vmatprep.subr.mxu0 0.0
  %280 = vmatpush1.msra.mxu0 0.0
  %281 = vmatprep.subr.mxu0 0.0
  %282 = vmatpush1.msra.mxu0 0.0
  %283 = vmatprep.subr.mxu0 0.0
  %284 = vmatpush1.msra.mxu0 0.0
  %285 = vmatprep.subr.mxu0 0.0
  %286 = vmatpush1.msra.mxu0 0.0
  %287 = vmatprep.subr.mxu0 0.0
  %288 = vmatpush1.msra.mxu0 0.0
  %289 = vmatprep.subr.mxu0 0.0
  %290 = vmatpush1.msra.mxu0 0.0
  %291 = vmatprep.subr.mxu0 0.0
  %292 = vmatpush1.msra.mxu0 0.0
  %293 = vmatprep.subr.mxu0 0.0
  %294 = vmatpush1.msra.mxu0 0.0
  %295 = vmatprep.subr.mxu0 0.0
  %296 = vmatpush1.msra.mxu0 0.0
  %297 = vmatprep.subr.mxu0 0.0
  %298 = vmatpush1.msra.mxu0 0.0
  %299 = vmatprep.mubr.f32.mxu0 0.0
  %300 = vmatmul.mubr.f32.gmra.mrb[0].mxu0 %v233
  %v301 = vpop.f32.mrb[0].mxu0
  %v302 = vadd.f32 0.0, %v301
  %v303 = vpop.f32.mrb[0].mxu0
  %304 = vdwg.mxu0
  %305 = vrot.lane.b32.xlu0 %v131, 120
  %v306 = vpop.permute.xlu0 %305
  %307 = vrot.lane.b32.xlu0 %v131, 88
  %v308 = vpop.permute.xlu0 %307
  %v309 = vsel %vm142, %v306, 0
  %v311 = vsel %vm142, %v308, 0
  %313 = vmatprep.subr.mxu0 0.0
  %314 = vmatpush1.xpose.msra.mxu0 %v311
  %315 = vmatprep.subr.mxu0 0.0
  %316 = vmatpush1.xpose.msra.mxu0 0.0
  %317 = vmatprep.subr.mxu0 0.0
  %318 = vmatpush1.xpose.msra.mxu0 0.0
  %319 = vmatprep.subr.mxu0 0.0
  %320 = vmatpush1.xpose.msra.mxu0 0.0
  %321 = vmatprep.subr.mxu0 0.0
  %322 = vmatpush1.xpose.msra.mxu0 0.0
  %323 = vmatprep.subr.mxu0 0.0
  %324 = vmatpush1.xpose.msra.mxu0 0.0
  %325 = vmatprep.subr.mxu0 0.0
  %326 = vmatpush1.xpose.msra.mxu0 0.0
  %327 = vmatprep.subr.mxu0 0.0
  %328 = vmatpush1.xpose.msra.mxu0 0.0
  %329 = vmatprep.subr.mxu0 0.0
  %330 = vmatpush1.xpose.msra.mxu0 0.0
  %331 = vmatprep.subr.mxu0 0.0
  %332 = vmatpush1.xpose.msra.mxu0 0.0
  %333 = vmatprep.subr.mxu0 0.0
  %334 = vmatpush1.xpose.msra.mxu0 0.0
  %335 = vmatprep.subr.mxu0 0.0
  %336 = vmatpush1.xpose.msra.mxu0 0.0
  %337 = vmatprep.subr.mxu0 0.0
  %338 = vmatpush1.xpose.msra.mxu0 0.0
  %339 = vmatprep.subr.mxu0 0.0
  %340 = vmatpush1.xpose.msra.mxu0 0.0
  %341 = vmatprep.subr.mxu0 0.0
  %342 = vmatpush1.xpose.msra.mxu0 0.0
  %343 = vmatprep.subr.mxu0 0.0
  %344 = vmatpush1.xpose.msra.mxu0 0.0
  %345 = vmatprep.subr.mxu0 0.0
  %346 = vmatpush1.xpose.msra.mxu0 0.0
  %347 = vmatprep.subr.mxu0 0.0
  %348 = vmatpush1.xpose.msra.mxu0 0.0
  %349 = vmatprep.subr.mxu0 0.0
  %350 = vmatpush1.xpose.msra.mxu0 0.0
  %351 = vmatprep.subr.mxu0 0.0
  %352 = vmatpush1.xpose.msra.mxu0 0.0
  %353 = vmatprep.subr.mxu0 0.0
  %354 = vmatpush1.xpose.msra.mxu0 0.0
  %355 = vmatprep.subr.mxu0 0.0
  %356 = vmatpush1.xpose.msra.mxu0 0.0
  %357 = vmatprep.subr.mxu0 0.0
  %358 = vmatpush1.xpose.msra.mxu0 0.0
  %359 = vmatprep.subr.mxu0 0.0
  %360 = vmatpush1.xpose.msra.mxu0 0.0
  %361 = vmatprep.subr.mxu0 0.0
  %362 = vmatpush1.xpose.msra.mxu0 0.0
  %363 = vmatprep.subr.mxu0 0.0
  %364 = vmatpush1.xpose.msra.mxu0 0.0
  %365 = vmatprep.subr.mxu0 0.0
  %366 = vmatpush1.xpose.msra.mxu0 0.0
  %367 = vmatprep.subr.mxu0 0.0
  %368 = vmatpush1.xpose.msra.mxu0 0.0
  %369 = vmatprep.subr.mxu0 0.0
  %370 = vmatpush1.xpose.msra.mxu0 0.0
  %371 = vmatprep.subr.mxu0 0.0
  %372 = vmatpush1.xpose.msra.mxu0 0.0
  %373 = vmatprep.subr.mxu0 0.0
  %374 = vmatpush1.xpose.msra.mxu0 0.0
  %375 = vmatprep.subr.mxu0 0.0
  %376 = vmatpush1.xpose.msra.mxu0 0.0
  %377 = vmatprep.mubr.f32.mxu0 0.0
  %378 = vmatmul.mubr.f32.gmra.mrb[0].mxu0 %v309
  %v379 = vpop.f32.mrb[0].mxu0
  %v380 = vadd.f32 0.0, %v379
  %v381 = vpop.f32.mrb[0].mxu0
  %382 = vdwg.mxu0
  %v383 = vmul.f32 %v380, 0.35355338
  %v384 = vsel %vm142, %v383, -inf
  %385 = vmax.xlane.f32.xlu0 %v384
  %v386 = vpop.xlane.xlu0 %385
  %v387 = vsub.f32 %v383, %v386
  %v388 = vmul.f32 %v387, 1.442695
  %v389 = vpow.pop %v388
  %v390 = vsel %vm142, %v389, 0.0
  %391 = vadd.xlane.f32.xlu0 %v390
  %v392 = vpop.xlane.xlu0 %391
  %v393 = vrcp.pop %v392
  %v394 = vmul.f32 %v389, %v393
  %395 = vrot.lane.b32.xlu0 %v131, 56
  %v396 = vpop.permute.xlu0 %395
  %v399 = vsel %vm142, %v394, 0
  %401 = vmatprep.subr.mxu0 0.0
  %402 = vmatpush1.msra.mxu0 %v396
  %403 = vmatprep.subr.mxu0 0.0
  %404 = vmatpush1.msra.mxu0 0.0
  %405 = vmatprep.subr.mxu0 0.0
  %406 = vmatpush1.msra.mxu0 0.0
  %407 = vmatprep.subr.mxu0 0.0
  %408 = vmatpush1.msra.mxu0 0.0
  %409 = vmatprep.subr.mxu0 0.0
  %410 = vmatpush1.msra.mxu0 0.0
  %411 = vmatprep.subr.mxu0 0.0
  %412 = vmatpush1.msra.mxu0 0.0
  %413 = vmatprep.subr.mxu0 0.0
  %414 = vmatpush1.msra.mxu0 0.0
  %415 = vmatprep.subr.mxu0 0.0
  %416 = vmatpush1.msra.mxu0 0.0
  %417 = vmatprep.subr.mxu0 0.0
  %418 = vmatpush1.msra.mxu0 0.0
  %419 = vmatprep.subr.mxu0 0.0
  %420 = vmatpush1.msra.mxu0 0.0
  %421 = vmatprep.subr.mxu0 0.0
  %422 = vmatpush1.msra.mxu0 0.0
  %423 = vmatprep.subr.mxu0 0.0
  %424 = vmatpush1.msra.mxu0 0.0
  %425 = vmatprep.subr.mxu0 0.0
  %426 = vmatpush1.msra.mxu0 0.0
  %427 = vmatprep.subr.mxu0 0.0
  %428 = vmatpush1.msra.mxu0 0.0
  %429 = vmatprep.subr.mxu0 0.0
  %430 = vmatpush1.msra.mxu0 0.0
  %431 = vmatprep.subr.mxu0 0.0
  %432 = vmatpush1.msra.mxu0 0.0
  %433 = vmatprep.subr.mxu0 0.0
  %434 = vmatpush1.msra.mxu0 0.0
  %435 = vmatprep.subr.mxu0 0.0
  %436 = vmatpush1.msra.mxu0 0.0
  %437 = vmatprep.subr.mxu0 0.0
  %438 = vmatpush1.msra.mxu0 0.0
  %439 = vmatprep.subr.mxu0 0.0
  %440 = vmatpush1.msra.mxu0 0.0
  %441 = vmatprep.subr.mxu0 0.0
  %442 = vmatpush1.msra.mxu0 0.0
  %443 = vmatprep.subr.mxu0 0.0
  %444 = vmatpush1.msra.mxu0 0.0
  %445 = vmatprep.subr.mxu0 0.0
  %446 = vmatpush1.msra.mxu0 0.0
  %447 = vmatprep.subr.mxu0 0.0
  %448 = vmatpush1.msra.mxu0 0.0
  %449 = vmatprep.subr.mxu0 0.0
  %450 = vmatpush1.msra.mxu0 0.0
  %451 = vmatprep.subr.mxu0 0.0
  %452 = vmatpush1.msra.mxu0 0.0
  %453 = vmatprep.subr.mxu0 0.0
  %454 = vmatpush1.msra.mxu0 0.0
  %455 = vmatprep.subr.mxu0 0.0
  %456 = vmatpush1.msra.mxu0 0.0
  %457 = vmatprep.subr.mxu0 0.0
  %458 = vmatpush1.msra.mxu0 0.0
  %459 = vmatprep.subr.mxu0 0.0
  %460 = vmatpush1.msra.mxu0 0.0
  %461 = vmatprep.subr.mxu0 0.0
  %462 = vmatpush1.msra.mxu0 0.0
  %463 = vmatprep.subr.mxu0 0.0
  %464 = vmatpush1.msra.mxu0 0.0
  %465 = vmatprep.mubr.f32.mxu0 0.0
  %466 = vmatmul.mubr.f32.gmra.mrb[0].mxu0 %v399
  %v467 = vpop.f32.mrb[0].mxu0
  %v468 = vadd.f32 0.0, %v467
  %v469 = vpop.f32.mrb[0].mxu0
  %470 = vdwg.mxu0
  %471 = vrot.lane.b32.xlu0 %v131, 112
  %v472 = vpop.permute.xlu0 %471
  %473 = vrot.lane.b32.xlu0 %v131, 80
  %v474 = vpop.permute.xlu0 %473
  %v475 = vsel %vm142, %v472, 0
  %v477 = vsel %vm142, %v474, 0
  %479 = vmatprep.subr.mxu0 0.0
  %480 = vmatpush1.xpose.msra.mxu0 %v477
  %481 = vmatprep.subr.mxu0 0.0
  %482 = vmatpush1.xpose.msra.mxu0 0.0
  %483 = vmatprep.subr.mxu0 0.0
  %484 = vmatpush1.xpose.msra.mxu0 0.0
  %485 = vmatprep.subr.mxu0 0.0
  %486 = vmatpush1.xpose.msra.mxu0 0.0
  %487 = vmatprep.subr.mxu0 0.0
  %488 = vmatpush1.xpose.msra.mxu0 0.0
  %489 = vmatprep.subr.mxu0 0.0
  %490 = vmatpush1.xpose.msra.mxu0 0.0
  %491 = vmatprep.subr.mxu0 0.0
  %492 = vmatpush1.xpose.msra.mxu0 0.0
  %493 = vmatprep.subr.mxu0 0.0
  %494 = vmatpush1.xpose.msra.mxu0 0.0
  %495 = vmatprep.subr.mxu0 0.0
  %496 = vmatpush1.xpose.msra.mxu0 0.0
  %497 = vmatprep.subr.mxu0 0.0
  %498 = vmatpush1.xpose.msra.mxu0 0.0
  %499 = vmatprep.subr.mxu0 0.0
  %500 = vmatpush1.xpose.msra.mxu0 0.0
  %501 = vmatprep.subr.mxu0 0.0
  %502 = vmatpush1.xpose.msra.mxu0 0.0
  %503 = vmatprep.subr.mxu0 0.0
  %504 = vmatpush1.xpose.msra.mxu0 0.0
  %505 = vmatprep.subr.mxu0 0.0
  %506 = vmatpush1.xpose.msra.mxu0 0.0
  %507 = vmatprep.subr.mxu0 0.0
  %508 = vmatpush1.xpose.msra.mxu0 0.0
  %509 = vmatprep.subr.mxu0 0.0
  %510 = vmatpush1.xpose.msra.mxu0 0.0
  %511 = vmatprep.subr.mxu0 0.0
  %512 = vmatpush1.xpose.msra.mxu0 0.0
  %513 = vmatprep.subr.mxu0 0.0
  %514 = vmatpush1.xpose.msra.mxu0 0.0
  %515 = vmatprep.subr.mxu0 0.0
  %516 = vmatpush1.xpose.msra.mxu0 0.0
  %517 = vmatprep.subr.mxu0 0.0
  %518 = vmatpush1.xpose.msra.mxu0 0.0
  %519 = vmatprep.subr.mxu0 0.0
  %520 = vmatpush1.xpose.msra.mxu0 0.0
  %521 = vmatprep.subr.mxu0 0.0
  %522 = vmatpush1.xpose.msra.mxu0 0.0
  %523 = vmatprep.subr.mxu0 0.0
  %524 = vmatpush1.xpose.msra.mxu0 0.0
  %525 = vmatprep.subr.mxu0 0.0
  %526 = vmatpush1.xpose.msra.mxu0 0.0
  %527 = vmatprep.subr.mxu0 0.0
  %528 = vmatpush1.xpose.msra.mxu0 0.0
  %529 = vmatprep.subr.mxu0 0.0
  %530 = vmatpush1.xpose.msra.mxu0 0.0
  %531 = vmatprep.subr.mxu0 0.0
  %532 = vmatpush1.xpose.msra.mxu0 0.0
  %533 = vmatprep.subr.mxu0 0.0
  %534 = vmatpush1.xpose.msra.mxu0 0.0
  %535 = vmatprep.subr.mxu0 0.0
  %536 = vmatpush1.xpose.msra.mxu0 0.0
  %537 = vmatprep.subr.mxu0 0.0
  %538 = vmatpush1.xpose.msra.mxu0 0.0
  %539 = vmatprep.subr.mxu0 0.0
  %540 = vmatpush1.xpose.msra.mxu0 0.0
  %541 = vmatprep.subr.mxu0 0.0
  %542 = vmatpush1.xpose.msra.mxu0 0.0
  %543 = vmatprep.mubr.f32.mxu0 0.0
  %544 = vmatmul.mubr.f32.gmra.mrb[0].mxu0 %v475
  %v545 = vpop.f32.mrb[0].mxu0
  %v546 = vadd.f32 0.0, %v545
  %v547 = vpop.f32.mrb[0].mxu0
  %548 = vdwg.mxu0
  %v549 = vmul.f32 %v546, 0.35355338
  %v550 = vsel %vm142, %v549, -inf
  %551 = vmax.xlane.f32.xlu0 %v550
  %v552 = vpop.xlane.xlu0 %551
  %v553 = vsub.f32 %v549, %v552
  %v554 = vmul.f32 %v553, 1.442695
  %v555 = vpow.pop %v554
  %v556 = vsel %vm142, %v555, 0.0
  %557 = vadd.xlane.f32.xlu0 %v556
  %v558 = vpop.xlane.xlu0 %557
  %v559 = vrcp.pop %v558
  %v560 = vmul.f32 %v555, %v559
  %561 = vrot.lane.b32.xlu0 %v131, 48
  %v562 = vpop.permute.xlu0 %561
  %v565 = vsel %vm142, %v560, 0
  %567 = vmatprep.subr.mxu0 0.0
  %568 = vmatpush1.msra.mxu0 %v562
  %569 = vmatprep.subr.mxu0 0.0
  %570 = vmatpush1.msra.mxu0 0.0
  %571 = vmatprep.subr.mxu0 0.0
  %572 = vmatpush1.msra.mxu0 0.0
  %573 = vmatprep.subr.mxu0 0.0
  %574 = vmatpush1.msra.mxu0 0.0
  %575 = vmatprep.subr.mxu0 0.0
  %576 = vmatpush1.msra.mxu0 0.0
  %577 = vmatprep.subr.mxu0 0.0
  %578 = vmatpush1.msra.mxu0 0.0
  %579 = vmatprep.subr.mxu0 0.0
  %580 = vmatpush1.msra.mxu0 0.0
  %581 = vmatprep.subr.mxu0 0.0
  %582 = vmatpush1.msra.mxu0 0.0
  %583 = vmatprep.subr.mxu0 0.0
  %584 = vmatpush1.msra.mxu0 0.0
  %585 = vmatprep.subr.mxu0 0.0
  %586 = vmatpush1.msra.mxu0 0.0
  %587 = vmatprep.subr.mxu0 0.0
  %588 = vmatpush1.msra.mxu0 0.0
  %589 = vmatprep.subr.mxu0 0.0
  %590 = vmatpush1.msra.mxu0 0.0
  %591 = vmatprep.subr.mxu0 0.0
  %592 = vmatpush1.msra.mxu0 0.0
  %593 = vmatprep.subr.mxu0 0.0
  %594 = vmatpush1.msra.mxu0 0.0
  %595 = vmatprep.subr.mxu0 0.0
  %596 = vmatpush1.msra.mxu0 0.0
  %597 = vmatprep.subr.mxu0 0.0
  %598 = vmatpush1.msra.mxu0 0.0
  %599 = vmatprep.subr.mxu0 0.0
  %600 = vmatpush1.msra.mxu0 0.0
  %601 = vmatprep.subr.mxu0 0.0
  %602 = vmatpush1.msra.mxu0 0.0
  %603 = vmatprep.subr.mxu0 0.0
  %604 = vmatpush1.msra.mxu0 0.0
  %605 = vmatprep.subr.mxu0 0.0
  %606 = vmatpush1.msra.mxu0 0.0
  %607 = vmatprep.subr.mxu0 0.0
  %608 = vmatpush1.msra.mxu0 0.0
  %609 = vmatprep.subr.mxu0 0.0
  %610 = vmatpush1.msra.mxu0 0.0
  %611 = vmatprep.subr.mxu0 0.0
  %612 = vmatpush1.msra.mxu0 0.0
  %613 = vmatprep.subr.mxu0 0.0
  %614 = vmatpush1.msra.mxu0 0.0
  %615 = vmatprep.subr.mxu0 0.0
  %616 = vmatpush1.msra.mxu0 0.0
  %617 = vmatprep.subr.mxu0 0.0
  %618 = vmatpush1.msra.mxu0 0.0
  %619 = vmatprep.subr.mxu0 0.0
  %620 = vmatpush1.msra.mxu0 0.0
  %621 = vmatprep.subr.mxu0 0.0
  %622 = vmatpush1.msra.mxu0 0.0
  %623 = vmatprep.subr.mxu0 0.0
  %624 = vmatpush1.msra.mxu0 0.0
  %625 = vmatprep.subr.mxu0 0.0
  %626 = vmatpush1.msra.mxu0 0.0
  %627 = vmatprep.subr.mxu0 0.0
  %628 = vmatpush1.msra.mxu0 0.0
  %629 = vmatprep.subr.mxu0 0.0
  %630 = vmatpush1.msra.mxu0 0.0
  %631 = vmatprep.mubr.f32.mxu0 0.0
  %632 = vmatmul.mubr.f32.gmra.mrb[0].mxu0 %v565
  %v633 = vpop.f32.mrb[0].mxu0
  %v634 = vadd.f32 0.0, %v633
  %v635 = vpop.f32.mrb[0].mxu0
  %636 = vdwg.mxu0
  %637 = vrot.lane.b32.xlu0 %v131, 104
  %v638 = vpop.permute.xlu0 %637
  %639 = vrot.lane.b32.xlu0 %v131, 72
  %v640 = vpop.permute.xlu0 %639
  %v641 = vsel %vm142, %v638, 0
  %v643 = vsel %vm142, %v640, 0
  %645 = vmatprep.subr.mxu0 0.0
  %646 = vmatpush1.xpose.msra.mxu0 %v643
  %647 = vmatprep.subr.mxu0 0.0
  %648 = vmatpush1.xpose.msra.mxu0 0.0
  %649 = vmatprep.subr.mxu0 0.0
  %650 = vmatpush1.xpose.msra.mxu0 0.0
  %651 = vmatprep.subr.mxu0 0.0
  %652 = vmatpush1.xpose.msra.mxu0 0.0
  %653 = vmatprep.subr.mxu0 0.0
  %654 = vmatpush1.xpose.msra.mxu0 0.0
  %655 = vmatprep.subr.mxu0 0.0
  %656 = vmatpush1.xpose.msra.mxu0 0.0
  %657 = vmatprep.subr.mxu0 0.0
  %658 = vmatpush1.xpose.msra.mxu0 0.0
  %659 = vmatprep.subr.mxu0 0.0
  %660 = vmatpush1.xpose.msra.mxu0 0.0
  %661 = vmatprep.subr.mxu0 0.0
  %662 = vmatpush1.xpose.msra.mxu0 0.0
  %663 = vmatprep.subr.mxu0 0.0
  %664 = vmatpush1.xpose.msra.mxu0 0.0
  %665 = vmatprep.subr.mxu0 0.0
  %666 = vmatpush1.xpose.msra.mxu0 0.0
  %667 = vmatprep.subr.mxu0 0.0
  %668 = vmatpush1.xpose.msra.mxu0 0.0
  %669 = vmatprep.subr.mxu0 0.0
  %670 = vmatpush1.xpose.msra.mxu0 0.0
  %671 = vmatprep.subr.mxu0 0.0
  %672 = vmatpush1.xpose.msra.mxu0 0.0
  %673 = vmatprep.subr.mxu0 0.0
  %674 = vmatpush1.xpose.msra.mxu0 0.0
  %675 = vmatprep.subr.mxu0 0.0
  %676 = vmatpush1.xpose.msra.mxu0 0.0
  %677 = vmatprep.subr.mxu0 0.0
  %678 = vmatpush1.xpose.msra.mxu0 0.0
  %679 = vmatprep.subr.mxu0 0.0
  %680 = vmatpush1.xpose.msra.mxu0 0.0
  %681 = vmatprep.subr.mxu0 0.0
  %682 = vmatpush1.xpose.msra.mxu0 0.0
  %683 = vmatprep.subr.mxu0 0.0
  %684 = vmatpush1.xpose.msra.mxu0 0.0
  %685 = vmatprep.subr.mxu0 0.0
  %686 = vmatpush1.xpose.msra.mxu0 0.0
  %687 = vmatprep.subr.mxu0 0.0
  %688 = vmatpush1.xpose.msra.mxu0 0.0
  %689 = vmatprep.subr.mxu0 0.0
  %690 = vmatpush1.xpose.msra.mxu0 0.0
  %691 = vmatprep.subr.mxu0 0.0
  %692 = vmatpush1.xpose.msra.mxu0 0.0
  %693 = vmatprep.subr.mxu0 0.0
  %694 = vmatpush1.xpose.msra.mxu0 0.0
  %695 = vmatprep.subr.mxu0 0.0
  %696 = vmatpush1.xpose.msra.mxu0 0.0
  %697 = vmatprep.subr.mxu0 0.0
  %698 = vmatpush1.xpose.msra.mxu0 0.0
  %699 = vmatprep.subr.mxu0 0.0
  %700 = vmatpush1.xpose.msra.mxu0 0.0
  %701 = vmatprep.subr.mxu0 0.0
  %702 = vmatpush1.xpose.msra.mxu0 0.0
  %703 = vmatprep.subr.mxu0 0.0
  %704 = vmatpush1.xpose.msra.mxu0 0.0
  %705 = vmatprep.subr.mxu0 0.0
  %706 = vmatpush1.xpose.msra.mxu0 0.0
  %707 = vmatprep.subr.mxu0 0.0
  %708 = vmatpush1.xpose.msra.mxu0 0.0
  %709 = vmatprep.mubr.f32.mxu0 0.0
  %710 = vmatmul.mubr.f32.gmra.mrb[0].mxu0 %v641
  %v711 = vpop.f32.mrb[0].mxu0
  %v712 = vadd.f32 0.0, %v711
  %v713 = vpop.f32.mrb[0].mxu0
  %714 = vdwg.mxu0
  %v715 = vmul.f32 %v712, 0.35355338
  %v716 = vsel %vm142, %v715, -inf
  %717 = vmax.xlane.f32.xlu0 %v716
  %v718 = vpop.xlane.xlu0 %717
  %v719 = vsub.f32 %v715, %v718
  %v720 = vmul.f32 %v719, 1.442695
  %v721 = vpow.pop %v720
  %v722 = vsel %vm142, %v721, 0.0
  %723 = vadd.xlane.f32.xlu0 %v722
  %v724 = vpop.xlane.xlu0 %723
  %v725 = vrcp.pop %v724
  %v726 = vmul.f32 %v721, %v725
  %727 = vrot.lane.b32.xlu0 %v131, 40
  %v728 = vpop.permute.xlu0 %727
  %v731 = vsel %vm142, %v726, 0
  %733 = vmatprep.subr.mxu0 0.0
  %734 = vmatpush1.msra.mxu0 %v728
  %735 = vmatprep.subr.mxu0 0.0
  %736 = vmatpush1.msra.mxu0 0.0
  %737 = vmatprep.subr.mxu0 0.0
  %738 = vmatpush1.msra.mxu0 0.0
  %739 = vmatprep.subr.mxu0 0.0
  %740 = vmatpush1.msra.mxu0 0.0
  %741 = vmatprep.subr.mxu0 0.0
  %742 = vmatpush1.msra.mxu0 0.0
  %743 = vmatprep.subr.mxu0 0.0
  %744 = vmatpush1.msra.mxu0 0.0
  %745 = vmatprep.subr.mxu0 0.0
  %746 = vmatpush1.msra.mxu0 0.0
  %747 = vmatprep.subr.mxu0 0.0
  %748 = vmatpush1.msra.mxu0 0.0
  %749 = vmatprep.subr.mxu0 0.0
  %750 = vmatpush1.msra.mxu0 0.0
  %751 = vmatprep.subr.mxu0 0.0
  %752 = vmatpush1.msra.mxu0 0.0
  %753 = vmatprep.subr.mxu0 0.0
  %754 = vmatpush1.msra.mxu0 0.0
  %755 = vmatprep.subr.mxu0 0.0
  %756 = vmatpush1.msra.mxu0 0.0
  %757 = vmatprep.subr.mxu0 0.0
  %758 = vmatpush1.msra.mxu0 0.0
  %759 = vmatprep.subr.mxu0 0.0
  %760 = vmatpush1.msra.mxu0 0.0
  %761 = vmatprep.subr.mxu0 0.0
  %762 = vmatpush1.msra.mxu0 0.0
  %763 = vmatprep.subr.mxu0 0.0
  %764 = vmatpush1.msra.mxu0 0.0
  %765 = vmatprep.subr.mxu0 0.0
  %766 = vmatpush1.msra.mxu0 0.0
  %767 = vmatprep.subr.mxu0 0.0
  %768 = vmatpush1.msra.mxu0 0.0
  %769 = vmatprep.subr.mxu0 0.0
  %770 = vmatpush1.msra.mxu0 0.0
  %771 = vmatprep.subr.mxu0 0.0
  %772 = vmatpush1.msra.mxu0 0.0
  %773 = vmatprep.subr.mxu0 0.0
  %774 = vmatpush1.msra.mxu0 0.0
  %775 = vmatprep.subr.mxu0 0.0
  %776 = vmatpush1.msra.mxu0 0.0
  %777 = vmatprep.subr.mxu0 0.0
  %778 = vmatpush1.msra.mxu0 0.0
  %779 = vmatprep.subr.mxu0 0.0
  %780 = vmatpush1.msra.mxu0 0.0
  %781 = vmatprep.subr.mxu0 0.0
  %782 = vmatpush1.msra.mxu0 0.0
  %783 = vmatprep.subr.mxu0 0.0
  %784 = vmatpush1.msra.mxu0 0.0
  %785 = vmatprep.subr.mxu0 0.0
  %786 = vmatpush1.msra.mxu0 0.0
  %787 = vmatprep.subr.mxu0 0.0
  %788 = vmatpush1.msra.mxu0 0.0
  %789 = vmatprep.subr.mxu0 0.0
  %790 = vmatpush1.msra.mxu0 0.0
  %791 = vmatprep.subr.mxu0 0.0
  %792 = vmatpush1.msra.mxu0 0.0
  %793 = vmatprep.subr.mxu0 0.0
  %794 = vmatpush1.msra.mxu0 0.0
  %795 = vmatprep.subr.mxu0 0.0
  %796 = vmatpush1.msra.mxu0 0.0
  %797 = vmatprep.mubr.f32.mxu0 0.0
  %798 = vmatmul.mubr.f32.gmra.mrb[0].mxu0 %v731
  %v799 = vpop.f32.mrb[0].mxu0
  %v800 = vadd.f32 0.0, %v799
  %v801 = vpop.f32.mrb[0].mxu0
  %802 = vdwg.mxu0
  %804 = vrot.lane.b32.xlu0 %v468, 8
  %v805 = vpop.permute.xlu0 %804
  %808 = vrot.lane.b32.xlu0 %v634, 16
  %v809 = vpop.permute.xlu0 %808
  %812 = vrot.lane.b32.xlu0 %v800, 24
  %v813 = vpop.permute.xlu0 %812
  %v815 = vsel %vm142, %v302, %v805
  %vm816 = vcmask 130048
  %v817 = vsel %vm816, %v815, %v809
  %vm818 = vcmask 195584
  %v819 = vsel %vm818, %v817, %v813
  %821 = vrot.lane.b32.xlu0 %v136, 96
  %v822 = vpop.permute.xlu0 %821
  %v823 = vsel %vm142, %v136, 0
  %v825 = vsel %vm142, %v822, 0
  %827 = vmatprep.subr.mxu0 0.0
  %828 = vmatpush1.xpose.msra.mxu0 %v825
  %829 = vmatprep.subr.mxu0 0.0
  %830 = vmatpush1.xpose.msra.mxu0 0.0
  %831 = vmatprep.subr.mxu0 0.0
  %832 = vmatpush1.xpose.msra.mxu0 0.0
  %833 = vmatprep.subr.mxu0 0.0
  %834 = vmatpush1.xpose.msra.mxu0 0.0
  %835 = vmatprep.subr.mxu0 0.0
  %836 = vmatpush1.xpose.msra.mxu0 0.0
  %837 = vmatprep.subr.mxu0 0.0
  %838 = vmatpush1.xpose.msra.mxu0 0.0
  %839 = vmatprep.subr.mxu0 0.0
  %840 = vmatpush1.xpose.msra.mxu0 0.0
  %841 = vmatprep.subr.mxu0 0.0
  %842 = vmatpush1.xpose.msra.mxu0 0.0
  %843 = vmatprep.subr.mxu0 0.0
  %844 = vmatpush1.xpose.msra.mxu0 0.0
  %845 = vmatprep.subr.mxu0 0.0
  %846 = vmatpush1.xpose.msra.mxu0 0.0
  %847 = vmatprep.subr.mxu0 0.0
  %848 = vmatpush1.xpose.msra.mxu0 0.0
  %849 = vmatprep.subr.mxu0 0.0
  %850 = vmatpush1.xpose.msra.mxu0 0.0
  %851 = vmatprep.subr.mxu0 0.0
  %852 = vmatpush1.xpose.msra.mxu0 0.0
  %853 = vmatprep.subr.mxu0 0.0
  %854 = vmatpush1.xpose.msra.mxu0 0.0
  %855 = vmatprep.subr.mxu0 0.0
  %856 = vmatpush1.xpose.msra.mxu0 0.0
  %857 = vmatprep.subr.mxu0 0.0
  %858 = vmatpush1.xpose.msra.mxu0 0.0
  %859 = vmatprep.subr.mxu0 0.0
  %860 = vmatpush1.xpose.msra.mxu0 0.0
  %861 = vmatprep.subr.mxu0 0.0
  %862 = vmatpush1.xpose.msra.mxu0 0.0
  %863 = vmatprep.subr.mxu0 0.0
  %864 = vmatpush1.xpose.msra.mxu0 0.0
  %865 = vmatprep.subr.mxu0 0.0
  %866 = vmatpush1.xpose.msra.mxu0 0.0
  %867 = vmatprep.subr.mxu0 0.0
  %868 = vmatpush1.xpose.msra.mxu0 0.0
  %869 = vmatprep.subr.mxu0 0.0
  %870 = vmatpush1.xpose.msra.mxu0 0.0
  %871 = vmatprep.subr.mxu0 0.0
  %872 = vmatpush1.xpose.msra.mxu0 0.0
  %873 = vmatprep.subr.mxu0 0.0
  %874 = vmatpush1.xpose.msra.mxu0 0.0
  %875 = vmatprep.subr.mxu0 0.0
  %876 = vmatpush1.xpose.msra.mxu0 0.0
  %877 = vmatprep.subr.mxu0 0.0
  %878 = vmatpush1.xpose.msra.mxu0 0.0
  %879 = vmatprep.subr.mxu0 0.0
  %880 = vmatpush1.xpose.msra.mxu0 0.0
  %881 = vmatprep.subr.mxu0 0.0
  %882 = vmatpush1.xpose.msra.mxu0 0.0
  %883 = vmatprep.subr.mxu0 0.0
  %884 = vmatpush1.xpose.msra.mxu0 0.0
  %885 = vmatprep.subr.mxu0 0.0
  %886 = vmatpush1.xpose.msra.mxu0 0.0
  %887 = vmatprep.subr.mxu0 0.0
  %888 = vmatpush1.xpose.msra.mxu0 0.0
  %889 = vmatprep.subr.mxu0 0.0
  %890 = vmatpush1.xpose.msra.mxu0 0.0
  %891 = vmatprep.mubr.f32.mxu0 0.0
  %892 = vmatmul.mubr.f32.gmra.mrb[0].mxu0 %v823
  %v893 = vpop.f32.mrb[0].mxu0
  %v894 = vadd.f32 0.0, %v893
  %v895 = vpop.f32.mrb[0].mxu0
  %896 = vdwg.mxu0
  %v897 = vmul.f32 %v894, 0.35355338
  %v898 = vsel %vm142, %v897, -inf
  %899 = vmax.xlane.f32.xlu0 %v898
  %v900 = vpop.xlane.xlu0 %899
  %v901 = vsub.f32 %v897, %v900
  %v902 = vmul.f32 %v901, 1.442695
  %v903 = vpow.pop %v902
  %v904 = vsel %vm142, %v903, 0.0
  %905 = vadd.xlane.f32.xlu0 %v904
  %v906 = vpop.xlane.xlu0 %905
  %v907 = vrcp.pop %v906
  %v908 = vmul.f32 %v903, %v907
  %909 = vrot.lane.b32.xlu0 %v136, 64
  %v910 = vpop.permute.xlu0 %909
  %v913 = vsel %vm142, %v908, 0
  %915 = vmatprep.subr.mxu0 0.0
  %916 = vmatpush1.msra.mxu0 %v910
  %917 = vmatprep.subr.mxu0 0.0
  %918 = vmatpush1.msra.mxu0 0.0
  %919 = vmatprep.subr.mxu0 0.0
  %920 = vmatpush1.msra.mxu0 0.0
  %921 = vmatprep.subr.mxu0 0.0
  %922 = vmatpush1.msra.mxu0 0.0
  %923 = vmatprep.subr.mxu0 0.0
  %924 = vmatpush1.msra.mxu0 0.0
  %925 = vmatprep.subr.mxu0 0.0
  %926 = vmatpush1.msra.mxu0 0.0
  %927 = vmatprep.subr.mxu0 0.0
  %928 = vmatpush1.msra.mxu0 0.0
  %929 = vmatprep.subr.mxu0 0.0
  %930 = vmatpush1.msra.mxu0 0.0
  %931 = vmatprep.subr.mxu0 0.0
  %932 = vmatpush1.msra.mxu0 0.0
  %933 = vmatprep.subr.mxu0 0.0
  %934 = vmatpush1.msra.mxu0 0.0
  %935 = vmatprep.subr.mxu0 0.0
  %936 = vmatpush1.msra.mxu0 0.0
  %937 = vmatprep.subr.mxu0 0.0
  %938 = vmatpush1.msra.mxu0 0.0
  %939 = vmatprep.subr.mxu0 0.0
  %940 = vmatpush1.msra.mxu0 0.0
  %941 = vmatprep.subr.mxu0 0.0
  %942 = vmatpush1.msra.mxu0 0.0
  %943 = vmatprep.subr.mxu0 0.0
  %944 = vmatpush1.msra.mxu0 0.0
  %945 = vmatprep.subr.mxu0 0.0
  %946 = vmatpush1.msra.mxu0 0.0
  %947 = vmatprep.subr.mxu0 0.0
  %948 = vmatpush1.msra.mxu0 0.0
  %949 = vmatprep.subr.mxu0 0.0
  %950 = vmatpush1.msra.mxu0 0.0
  %951 = vmatprep.subr.mxu0 0.0
  %952 = vmatpush1.msra.mxu0 0.0
  %953 = vmatprep.subr.mxu0 0.0
  %954 = vmatpush1.msra.mxu0 0.0
  %955 = vmatprep.subr.mxu0 0.0
  %956 = vmatpush1.msra.mxu0 0.0
  %957 = vmatprep.subr.mxu0 0.0
  %958 = vmatpush1.msra.mxu0 0.0
  %959 = vmatprep.subr.mxu0 0.0
  %960 = vmatpush1.msra.mxu0 0.0
  %961 = vmatprep.subr.mxu0 0.0
  %962 = vmatpush1.msra.mxu0 0.0
  %963 = vmatprep.subr.mxu0 0.0
  %964 = vmatpush1.msra.mxu0 0.0
  %965 = vmatprep.subr.mxu0 0.0
  %966 = vmatpush1.msra.mxu0 0.0
  %967 = vmatprep.subr.mxu0 0.0
  %968 = vmatpush1.msra.mxu0 0.0
  %969 = vmatprep.subr.mxu0 0.0
  %970 = vmatpush1.msra.mxu0 0.0
  %971 = vmatprep.subr.mxu0 0.0
  %972 = vmatpush1.msra.mxu0 0.0
  %973 = vmatprep.subr.mxu0 0.0
  %974 = vmatpush1.msra.mxu0 0.0
  %975 = vmatprep.subr.mxu0 0.0
  %976 = vmatpush1.msra.mxu0 0.0
  %977 = vmatprep.subr.mxu0 0.0
  %978 = vmatpush1.msra.mxu0 0.0
  %979 = vmatprep.mubr.f32.mxu0 0.0
  %980 = vmatmul.mubr.f32.gmra.mrb[0].mxu0 %v913
  %v981 = vpop.f32.mrb[0].mxu0
  %v982 = vadd.f32 0.0, %v981
  %v983 = vpop.f32.mrb[0].mxu0
  %984 = vdwg.mxu0
  %985 = vrot.lane.b32.xlu0 %v136, 120
  %v986 = vpop.permute.xlu0 %985
  %987 = vrot.lane.b32.xlu0 %v136, 88
  %v988 = vpop.permute.xlu0 %987
  %v989 = vsel %vm142, %v986, 0
  %v991 = vsel %vm142, %v988, 0
  %993 = vmatprep.subr.mxu0 0.0
  %994 = vmatpush1.xpose.msra.mxu0 %v991
  %995 = vmatprep.subr.mxu0 0.0
  %996 = vmatpush1.xpose.msra.mxu0 0.0
  %997 = vmatprep.subr.mxu0 0.0
  %998 = vmatpush1.xpose.msra.mxu0 0.0
  %999 = vmatprep.subr.mxu0 0.0
  %1000 = vmatpush1.xpose.msra.mxu0 0.0
  %1001 = vmatprep.subr.mxu0 0.0
  %1002 = vmatpush1.xpose.msra.mxu0 0.0
  %1003 = vmatprep.subr.mxu0 0.0
  %1004 = vmatpush1.xpose.msra.mxu0 0.0
  %1005 = vmatprep.subr.mxu0 0.0
  %1006 = vmatpush1.xpose.msra.mxu0 0.0
  %1007 = vmatprep.subr.mxu0 0.0
  %1008 = vmatpush1.xpose.msra.mxu0 0.0
  %1009 = vmatprep.subr.mxu0 0.0
  %1010 = vmatpush1.xpose.msra.mxu0 0.0
  %1011 = vmatprep.subr.mxu0 0.0
  %1012 = vmatpush1.xpose.msra.mxu0 0.0
  %1013 = vmatprep.subr.mxu0 0.0
  %1014 = vmatpush1.xpose.msra.mxu0 0.0
  %1015 = vmatprep.subr.mxu0 0.0
  %1016 = vmatpush1.xpose.msra.mxu0 0.0
  %1017 = vmatprep.subr.mxu0 0.0
  %1018 = vmatpush1.xpose.msra.mxu0 0.0
  %1019 = vmatprep.subr.mxu0 0.0
  %1020 = vmatpush1.xpose.msra.mxu0 0.0
  %1021 = vmatprep.subr.mxu0 0.0
  %1022 = vmatpush1.xpose.msra.mxu0 0.0
  %1023 = vmatprep.subr.mxu0 0.0
  %1024 = vmatpush1.xpose.msra.mxu0 0.0
  %1025 = vmatprep.subr.mxu0 0.0
  %1026 = vmatpush1.xpose.msra.mxu0 0.0
  %1027 = vmatprep.subr.mxu0 0.0
  %1028 = vmatpush1.xpose.msra.mxu0 0.0
  %1029 = vmatprep.subr.mxu0 0.0
  %1030 = vmatpush1.xpose.msra.mxu0 0.0
  %1031 = vmatprep.subr.mxu0 0.0
  %1032 = vmatpush1.xpose.msra.mxu0 0.0
  %1033 = vmatprep.subr.mxu0 0.0
  %1034 = vmatpush1.xpose.msra.mxu0 0.0
  %1035 = vmatprep.subr.mxu0 0.0
  %1036 = vmatpush1.xpose.msra.mxu0 0.0
  %1037 = vmatprep.subr.mxu0 0.0
  %1038 = vmatpush1.xpose.msra.mxu0 0.0
  %1039 = vmatprep.subr.mxu0 0.0
  %1040 = vmatpush1.xpose.msra.mxu0 0.0
  %1041 = vmatprep.subr.mxu0 0.0
  %1042 = vmatpush1.xpose.msra.mxu0 0.0
  %1043 = vmatprep.subr.mxu0 0.0
  %1044 = vmatpush1.xpose.msra.mxu0 0.0
  %1045 = vmatprep.subr.mxu0 0.0
  %1046 = vmatpush1.xpose.msra.mxu0 0.0
  %1047 = vmatprep.subr.mxu0 0.0
  %1048 = vmatpush1.xpose.msra.mxu0 0.0
  %1049 = vmatprep.subr.mxu0 0.0
  %1050 = vmatpush1.xpose.msra.mxu0 0.0
  %1051 = vmatprep.subr.mxu0 0.0
  %1052 = vmatpush1.xpose.msra.mxu0 0.0
  %1053 = vmatprep.subr.mxu0 0.0
  %1054 = vmatpush1.xpose.msra.mxu0 0.0
  %1055 = vmatprep.subr.mxu0 0.0
  %1056 = vmatpush1.xpose.msra.mxu0 0.0
  %1057 = vmatprep.mubr.f32.mxu0 0.0
  %1058 = vmatmul.mubr.f32.gmra.mrb[0].mxu0 %v989
  %v1059 = vpop.f32.mrb[0].mxu0
  %v1060 = vadd.f32 0.0, %v1059
  %v1061 = vpop.f32.mrb[0].mxu0
  %1062 = vdwg.mxu0
  %v1063 = vmul.f32 %v1060, 0.35355338
  %v1064 = vsel %vm142, %v1063, -inf
  %1065 = vmax.xlane.f32.xlu0 %v1064
  %v1066 = vpop.xlane.xlu0 %1065
  %v1067 = vsub.f32 %v1063, %v1066
  %v1068 = vmul.f32 %v1067, 1.442695
  %v1069 = vpow.pop %v1068
  %v1070 = vsel %vm142, %v1069, 0.0
  %1071 = vadd.xlane.f32.xlu0 %v1070
  %v1072 = vpop.xlane.xlu0 %1071
  %v1073 = vrcp.pop %v1072
  %v1074 = vmul.f32 %v1069, %v1073
  %1075 = vrot.lane.b32.xlu0 %v136, 56
  %v1076 = vpop.permute.xlu0 %1075
  %v1079 = vsel %vm142, %v1074, 0
  %1081 = vmatprep.subr.mxu0 0.0
  %1082 = vmatpush1.msra.mxu0 %v1076
  %1083 = vmatprep.subr.mxu0 0.0
  %1084 = vmatpush1.msra.mxu0 0.0
  %1085 = vmatprep.subr.mxu0 0.0
  %1086 = vmatpush1.msra.mxu0 0.0
  %1087 = vmatprep.subr.mxu0 0.0
  %1088 = vmatpush1.msra.mxu0 0.0
  %1089 = vmatprep.subr.mxu0 0.0
  %1090 = vmatpush1.msra.mxu0 0.0
  %1091 = vmatprep.subr.mxu0 0.0
  %1092 = vmatpush1.msra.mxu0 0.0
  %1093 = vmatprep.subr.mxu0 0.0
  %1094 = vmatpush1.msra.mxu0 0.0
  %1095 = vmatprep.subr.mxu0 0.0
  %1096 = vmatpush1.msra.mxu0 0.0
  %1097 = vmatprep.subr.mxu0 0.0
  %1098 = vmatpush1.msra.mxu0 0.0
  %1099 = vmatprep.subr.mxu0 0.0
  %1100 = vmatpush1.msra.mxu0 0.0
  %1101 = vmatprep.subr.mxu0 0.0
  %1102 = vmatpush1.msra.mxu0 0.0
  %1103 = vmatprep.subr.mxu0 0.0
  %1104 = vmatpush1.msra.mxu0 0.0
  %1105 = vmatprep.subr.mxu0 0.0
  %1106 = vmatpush1.msra.mxu0 0.0
  %1107 = vmatprep.subr.mxu0 0.0
  %1108 = vmatpush1.msra.mxu0 0.0
  %1109 = vmatprep.subr.mxu0 0.0
  %1110 = vmatpush1.msra.mxu0 0.0
  %1111 = vmatprep.subr.mxu0 0.0
  %1112 = vmatpush1.msra.mxu0 0.0
  %1113 = vmatprep.subr.mxu0 0.0
  %1114 = vmatpush1.msra.mxu0 0.0
  %1115 = vmatprep.subr.mxu0 0.0
  %1116 = vmatpush1.msra.mxu0 0.0
  %1117 = vmatprep.subr.mxu0 0.0
  %1118 = vmatpush1.msra.mxu0 0.0
  %1119 = vmatprep.subr.mxu0 0.0
  %1120 = vmatpush1.msra.mxu0 0.0
  %1121 = vmatprep.subr.mxu0 0.0
  %1122 = vmatpush1.msra.mxu0 0.0
  %1123 = vmatprep.subr.mxu0 0.0
  %1124 = vmatpush1.msra.mxu0 0.0
  %1125 = vmatprep.subr.mxu0 0.0
  %1126 = vmatpush1.msra.mxu0 0.0
  %1127 = vmatprep.subr.mxu0 0.0
  %1128 = vmatpush1.msra.mxu0 0.0
  %1129 = vmatprep.subr.mxu0 0.0
  %1130 = vmatpush1.msra.mxu0 0.0
  %1131 = vmatprep.subr.mxu0 0.0
  %1132 = vmatpush1.msra.mxu0 0.0
  %1133 = vmatprep.subr.mxu0 0.0
  %1134 = vmatpush1.msra.mxu0 0.0
  %1135 = vmatprep.subr.mxu0 0.0
  %1136 = vmatpush1.msra.mxu0 0.0
  %1137 = vmatprep.subr.mxu0 0.0
  %1138 = vmatpush1.msra.mxu0 0.0
  %1139 = vmatprep.subr.mxu0 0.0
  %1140 = vmatpush1.msra.mxu0 0.0
  %1141 = vmatprep.subr.mxu0 0.0
  %1142 = vmatpush1.msra.mxu0 0.0
  %1143 = vmatprep.subr.mxu0 0.0
  %1144 = vmatpush1.msra.mxu0 0.0
  %1145 = vmatprep.mubr.f32.mxu0 0.0
  %1146 = vmatmul.mubr.f32.gmra.mrb[0].mxu0 %v1079
  %v1147 = vpop.f32.mrb[0].mxu0
  %v1148 = vadd.f32 0.0, %v1147
  %v1149 = vpop.f32.mrb[0].mxu0
  %1150 = vdwg.mxu0
  %1151 = vrot.lane.b32.xlu0 %v136, 112
  %v1152 = vpop.permute.xlu0 %1151
  %1153 = vrot.lane.b32.xlu0 %v136, 80
  %v1154 = vpop.permute.xlu0 %1153
  %v1155 = vsel %vm142, %v1152, 0
  %v1157 = vsel %vm142, %v1154, 0
  %1159 = vmatprep.subr.mxu0 0.0
  %1160 = vmatpush1.xpose.msra.mxu0 %v1157
  %1161 = vmatprep.subr.mxu0 0.0
  %1162 = vmatpush1.xpose.msra.mxu0 0.0
  %1163 = vmatprep.subr.mxu0 0.0
  %1164 = vmatpush1.xpose.msra.mxu0 0.0
  %1165 = vmatprep.subr.mxu0 0.0
  %1166 = vmatpush1.xpose.msra.mxu0 0.0
  %1167 = vmatprep.subr.mxu0 0.0
  %1168 = vmatpush1.xpose.msra.mxu0 0.0
  %1169 = vmatprep.subr.mxu0 0.0
  %1170 = vmatpush1.xpose.msra.mxu0 0.0
  %1171 = vmatprep.subr.mxu0 0.0
  %1172 = vmatpush1.xpose.msra.mxu0 0.0
  %1173 = vmatprep.subr.mxu0 0.0
  %1174 = vmatpush1.xpose.msra.mxu0 0.0
  %1175 = vmatprep.subr.mxu0 0.0
  %1176 = vmatpush1.xpose.msra.mxu0 0.0
  %1177 = vmatprep.subr.mxu0 0.0
  %1178 = vmatpush1.xpose.msra.mxu0 0.0
  %1179 = vmatprep.subr.mxu0 0.0
  %1180 = vmatpush1.xpose.msra.mxu0 0.0
  %1181 = vmatprep.subr.mxu0 0.0
  %1182 = vmatpush1.xpose.msra.mxu0 0.0
  %1183 = vmatprep.subr.mxu0 0.0
  %1184 = vmatpush1.xpose.msra.mxu0 0.0
  %1185 = vmatprep.subr.mxu0 0.0
  %1186 = vmatpush1.xpose.msra.mxu0 0.0
  %1187 = vmatprep.subr.mxu0 0.0
  %1188 = vmatpush1.xpose.msra.mxu0 0.0
  %1189 = vmatprep.subr.mxu0 0.0
  %1190 = vmatpush1.xpose.msra.mxu0 0.0
  %1191 = vmatprep.subr.mxu0 0.0
  %1192 = vmatpush1.xpose.msra.mxu0 0.0
  %1193 = vmatprep.subr.mxu0 0.0
  %1194 = vmatpush1.xpose.msra.mxu0 0.0
  %1195 = vmatprep.subr.mxu0 0.0
  %1196 = vmatpush1.xpose.msra.mxu0 0.0
  %1197 = vmatprep.subr.mxu0 0.0
  %1198 = vmatpush1.xpose.msra.mxu0 0.0
  %1199 = vmatprep.subr.mxu0 0.0
  %1200 = vmatpush1.xpose.msra.mxu0 0.0
  %1201 = vmatprep.subr.mxu0 0.0
  %1202 = vmatpush1.xpose.msra.mxu0 0.0
  %1203 = vmatprep.subr.mxu0 0.0
  %1204 = vmatpush1.xpose.msra.mxu0 0.0
  %1205 = vmatprep.subr.mxu0 0.0
  %1206 = vmatpush1.xpose.msra.mxu0 0.0
  %1207 = vmatprep.subr.mxu0 0.0
  %1208 = vmatpush1.xpose.msra.mxu0 0.0
  %1209 = vmatprep.subr.mxu0 0.0
  %1210 = vmatpush1.xpose.msra.mxu0 0.0
  %1211 = vmatprep.subr.mxu0 0.0
  %1212 = vmatpush1.xpose.msra.mxu0 0.0
  %1213 = vmatprep.subr.mxu0 0.0
  %1214 = vmatpush1.xpose.msra.mxu0 0.0
  %1215 = vmatprep.subr.mxu0 0.0
  %1216 = vmatpush1.xpose.msra.mxu0 0.0
  %1217 = vmatprep.subr.mxu0 0.0
  %1218 = vmatpush1.xpose.msra.mxu0 0.0
  %1219 = vmatprep.subr.mxu0 0.0
  %1220 = vmatpush1.xpose.msra.mxu0 0.0
  %1221 = vmatprep.subr.mxu0 0.0
  %1222 = vmatpush1.xpose.msra.mxu0 0.0
  %1223 = vmatprep.mubr.f32.mxu0 0.0
  %1224 = vmatmul.mubr.f32.gmra.mrb[0].mxu0 %v1155
  %v1225 = vpop.f32.mrb[0].mxu0
  %v1226 = vadd.f32 0.0, %v1225
  %v1227 = vpop.f32.mrb[0].mxu0
  %1228 = vdwg.mxu0
  %v1229 = vmul.f32 %v1226, 0.35355338
  %v1230 = vsel %vm142, %v1229, -inf
  %1231 = vmax.xlane.f32.xlu0 %v1230
  %v1232 = vpop.xlane.xlu0 %1231
  %v1233 = vsub.f32 %v1229, %v1232
  %v1234 = vmul.f32 %v1233, 1.442695
  %v1235 = vpow.pop %v1234
  %v1236 = vsel %vm142, %v1235, 0.0
  %1237 = vadd.xlane.f32.xlu0 %v1236
  %v1238 = vpop.xlane.xlu0 %1237
  %v1239 = vrcp.pop %v1238
  %v1240 = vmul.f32 %v1235, %v1239
  %1241 = vrot.lane.b32.xlu0 %v136, 48
  %v1242 = vpop.permute.xlu0 %1241
  %v1245 = vsel %vm142, %v1240, 0
  %1247 = vmatprep.subr.mxu0 0.0
  %1248 = vmatpush1.msra.mxu0 %v1242
  %1249 = vmatprep.subr.mxu0 0.0
  %1250 = vmatpush1.msra.mxu0 0.0
  %1251 = vmatprep.subr.mxu0 0.0
  %1252 = vmatpush1.msra.mxu0 0.0
  %1253 = vmatprep.subr.mxu0 0.0
  %1254 = vmatpush1.msra.mxu0 0.0
  %1255 = vmatprep.subr.mxu0 0.0
  %1256 = vmatpush1.msra.mxu0 0.0
  %1257 = vmatprep.subr.mxu0 0.0
  %1258 = vmatpush1.msra.mxu0 0.0
  %1259 = vmatprep.subr.mxu0 0.0
  %1260 = vmatpush1.msra.mxu0 0.0
  %1261 = vmatprep.subr.mxu0 0.0
  %1262 = vmatpush1.msra.mxu0 0.0
  %1263 = vmatprep.subr.mxu0 0.0
  %1264 = vmatpush1.msra.mxu0 0.0
  %1265 = vmatprep.subr.mxu0 0.0
  %1266 = vmatpush1.msra.mxu0 0.0
  %1267 = vmatprep.subr.mxu0 0.0
  %1268 = vmatpush1.msra.mxu0 0.0
  %1269 = vmatprep.subr.mxu0 0.0
  %1270 = vmatpush1.msra.mxu0 0.0
  %1271 = vmatprep.subr.mxu0 0.0
  %1272 = vmatpush1.msra.mxu0 0.0
  %1273 = vmatprep.subr.mxu0 0.0
  %1274 = vmatpush1.msra.mxu0 0.0
  %1275 = vmatprep.subr.mxu0 0.0
  %1276 = vmatpush1.msra.mxu0 0.0
  %1277 = vmatprep.subr.mxu0 0.0
  %1278 = vmatpush1.msra.mxu0 0.0
  %1279 = vmatprep.subr.mxu0 0.0
  %1280 = vmatpush1.msra.mxu0 0.0
  %1281 = vmatprep.subr.mxu0 0.0
  %1282 = vmatpush1.msra.mxu0 0.0
  %1283 = vmatprep.subr.mxu0 0.0
  %1284 = vmatpush1.msra.mxu0 0.0
  %1285 = vmatprep.subr.mxu0 0.0
  %1286 = vmatpush1.msra.mxu0 0.0
  %1287 = vmatprep.subr.mxu0 0.0
  %1288 = vmatpush1.msra.mxu0 0.0
  %1289 = vmatprep.subr.mxu0 0.0
  %1290 = vmatpush1.msra.mxu0 0.0
  %1291 = vmatprep.subr.mxu0 0.0
  %1292 = vmatpush1.msra.mxu0 0.0
  %1293 = vmatprep.subr.mxu0 0.0
  %1294 = vmatpush1.msra.mxu0 0.0
  %1295 = vmatprep.subr.mxu0 0.0
  %1296 = vmatpush1.msra.mxu0 0.0
  %1297 = vmatprep.subr.mxu0 0.0
  %1298 = vmatpush1.msra.mxu0 0.0
  %1299 = vmatprep.subr.mxu0 0.0
  %1300 = vmatpush1.msra.mxu0 0.0
  %1301 = vmatprep.subr.mxu0 0.0
  %1302 = vmatpush1.msra.mxu0 0.0
  %1303 = vmatprep.subr.mxu0 0.0
  %1304 = vmatpush1.msra.mxu0 0.0
  %1305 = vmatprep.subr.mxu0 0.0
  %1306 = vmatpush1.msra.mxu0 0.0
  %1307 = vmatprep.subr.mxu0 0.0
  %1308 = vmatpush1.msra.mxu0 0.0
  %1309 = vmatprep.subr.mxu0 0.0
  %1310 = vmatpush1.msra.mxu0 0.0
  %1311 = vmatprep.mubr.f32.mxu0 0.0
  %1312 = vmatmul.mubr.f32.gmra.mrb[0].mxu0 %v1245
  %v1313 = vpop.f32.mrb[0].mxu0
  %v1314 = vadd.f32 0.0, %v1313
  %v1315 = vpop.f32.mrb[0].mxu0
  %1316 = vdwg.mxu0
  %1317 = vrot.lane.b32.xlu0 %v136, 104
  %v1318 = vpop.permute.xlu0 %1317
  %1319 = vrot.lane.b32.xlu0 %v136, 72
  %v1320 = vpop.permute.xlu0 %1319
  %v1321 = vsel %vm142, %v1318, 0
  %v1323 = vsel %vm142, %v1320, 0
  %1325 = vmatprep.subr.mxu0 0.0
  %1326 = vmatpush1.xpose.msra.mxu0 %v1323
  %1327 = vmatprep.subr.mxu0 0.0
  %1328 = vmatpush1.xpose.msra.mxu0 0.0
  %1329 = vmatprep.subr.mxu0 0.0
  %1330 = vmatpush1.xpose.msra.mxu0 0.0
  %1331 = vmatprep.subr.mxu0 0.0
  %1332 = vmatpush1.xpose.msra.mxu0 0.0
  %1333 = vmatprep.subr.mxu0 0.0
  %1334 = vmatpush1.xpose.msra.mxu0 0.0
  %1335 = vmatprep.subr.mxu0 0.0
  %1336 = vmatpush1.xpose.msra.mxu0 0.0
  %1337 = vmatprep.subr.mxu0 0.0
  %1338 = vmatpush1.xpose.msra.mxu0 0.0
  %1339 = vmatprep.subr.mxu0 0.0
  %1340 = vmatpush1.xpose.msra.mxu0 0.0
  %1341 = vmatprep.subr.mxu0 0.0
  %1342 = vmatpush1.xpose.msra.mxu0 0.0
  %1343 = vmatprep.subr.mxu0 0.0
  %1344 = vmatpush1.xpose.msra.mxu0 0.0
  %1345 = vmatprep.subr.mxu0 0.0
  %1346 = vmatpush1.xpose.msra.mxu0 0.0
  %1347 = vmatprep.subr.mxu0 0.0
  %1348 = vmatpush1.xpose.msra.mxu0 0.0
  %1349 = vmatprep.subr.mxu0 0.0
  %1350 = vmatpush1.xpose.msra.mxu0 0.0
  %1351 = vmatprep.subr.mxu0 0.0
  %1352 = vmatpush1.xpose.msra.mxu0 0.0
  %1353 = vmatprep.subr.mxu0 0.0
  %1354 = vmatpush1.xpose.msra.mxu0 0.0
  %1355 = vmatprep.subr.mxu0 0.0
  %1356 = vmatpush1.xpose.msra.mxu0 0.0
  %1357 = vmatprep.subr.mxu0 0.0
  %1358 = vmatpush1.xpose.msra.mxu0 0.0
  %1359 = vmatprep.subr.mxu0 0.0
  %1360 = vmatpush1.xpose.msra.mxu0 0.0
  %1361 = vmatprep.subr.mxu0 0.0
  %1362 = vmatpush1.xpose.msra.mxu0 0.0
  %1363 = vmatprep.subr.mxu0 0.0
  %1364 = vmatpush1.xpose.msra.mxu0 0.0
  %1365 = vmatprep.subr.mxu0 0.0
  %1366 = vmatpush1.xpose.msra.mxu0 0.0
  %1367 = vmatprep.subr.mxu0 0.0
  %1368 = vmatpush1.xpose.msra.mxu0 0.0
  %1369 = vmatprep.subr.mxu0 0.0
  %1370 = vmatpush1.xpose.msra.mxu0 0.0
  %1371 = vmatprep.subr.mxu0 0.0
  %1372 = vmatpush1.xpose.msra.mxu0 0.0
  %1373 = vmatprep.subr.mxu0 0.0
  %1374 = vmatpush1.xpose.msra.mxu0 0.0
  %1375 = vmatprep.subr.mxu0 0.0
  %1376 = vmatpush1.xpose.msra.mxu0 0.0
  %1377 = vmatprep.subr.mxu0 0.0
  %1378 = vmatpush1.xpose.msra.mxu0 0.0
  %1379 = vmatprep.subr.mxu0 0.0
  %1380 = vmatpush1.xpose.msra.mxu0 0.0
  %1381 = vmatprep.subr.mxu0 0.0
  %1382 = vmatpush1.xpose.msra.mxu0 0.0
  %1383 = vmatprep.subr.mxu0 0.0
  %1384 = vmatpush1.xpose.msra.mxu0 0.0
  %1385 = vmatprep.subr.mxu0 0.0
  %1386 = vmatpush1.xpose.msra.mxu0 0.0
  %1387 = vmatprep.subr.mxu0 0.0
  %1388 = vmatpush1.xpose.msra.mxu0 0.0
  %1389 = vmatprep.mubr.f32.mxu0 0.0
  %1390 = vmatmul.mubr.f32.gmra.mrb[0].mxu0 %v1321
  %v1391 = vpop.f32.mrb[0].mxu0
  %v1392 = vadd.f32 0.0, %v1391
  %v1393 = vpop.f32.mrb[0].mxu0
  %1394 = vdwg.mxu0
  %v1395 = vmul.f32 %v1392, 0.35355338
  %v1396 = vsel %vm142, %v1395, -inf
  %1397 = vmax.xlane.f32.xlu0 %v1396
  %v1398 = vpop.xlane.xlu0 %1397
  %v1399 = vsub.f32 %v1395, %v1398
  %v1400 = vmul.f32 %v1399, 1.442695
  %v1401 = vpow.pop %v1400
  %v1402 = vsel %vm142, %v1401, 0.0
  %1403 = vadd.xlane.f32.xlu0 %v1402
  %v1404 = vpop.xlane.xlu0 %1403
  %v1405 = vrcp.pop %v1404
  %v1406 = vmul.f32 %v1401, %v1405
  %1407 = vrot.lane.b32.xlu0 %v136, 40
  %v1408 = vpop.permute.xlu0 %1407
  %v1411 = vsel %vm142, %v1406, 0
  %1413 = vmatprep.subr.mxu0 0.0
  %1414 = vmatpush1.msra.mxu0 %v1408
  %1415 = vmatprep.subr.mxu0 0.0
  %1416 = vmatpush1.msra.mxu0 0.0
  %1417 = vmatprep.subr.mxu0 0.0
  %1418 = vmatpush1.msra.mxu0 0.0
  %1419 = vmatprep.subr.mxu0 0.0
  %1420 = vmatpush1.msra.mxu0 0.0
  %1421 = vmatprep.subr.mxu0 0.0
  %1422 = vmatpush1.msra.mxu0 0.0
  %1423 = vmatprep.subr.mxu0 0.0
  %1424 = vmatpush1.msra.mxu0 0.0
  %1425 = vmatprep.subr.mxu0 0.0
  %1426 = vmatpush1.msra.mxu0 0.0
  %1427 = vmatprep.subr.mxu0 0.0
  %1428 = vmatpush1.msra.mxu0 0.0
  %1429 = vmatprep.subr.mxu0 0.0
  %1430 = vmatpush1.msra.mxu0 0.0
  %1431 = vmatprep.subr.mxu0 0.0
  %1432 = vmatpush1.msra.mxu0 0.0
  %1433 = vmatprep.subr.mxu0 0.0
  %1434 = vmatpush1.msra.mxu0 0.0
  %1435 = vmatprep.subr.mxu0 0.0
  %1436 = vmatpush1.msra.mxu0 0.0
  %1437 = vmatprep.subr.mxu0 0.0
  %1438 = vmatpush1.msra.mxu0 0.0
  %1439 = vmatprep.subr.mxu0 0.0
  %1440 = vmatpush1.msra.mxu0 0.0
  %1441 = vmatprep.subr.mxu0 0.0
  %1442 = vmatpush1.msra.mxu0 0.0
  %1443 = vmatprep.subr.mxu0 0.0
  %1444 = vmatpush1.msra.mxu0 0.0
  %1445 = vmatprep.subr.mxu0 0.0
  %1446 = vmatpush1.msra.mxu0 0.0
  %1447 = vmatprep.subr.mxu0 0.0
  %1448 = vmatpush1.msra.mxu0 0.0
  %1449 = vmatprep.subr.mxu0 0.0
  %1450 = vmatpush1.msra.mxu0 0.0
  %1451 = vmatprep.subr.mxu0 0.0
  %1452 = vmatpush1.msra.mxu0 0.0
  %1453 = vmatprep.subr.mxu0 0.0
  %1454 = vmatpush1.msra.mxu0 0.0
  %1455 = vmatprep.subr.mxu0 0.0
  %1456 = vmatpush1.msra.mxu0 0.0
  %1457 = vmatprep.subr.mxu0 0.0
  %1458 = vmatpush1.msra.mxu0 0.0
  %1459 = vmatprep.subr.mxu0 0.0
  %1460 = vmatpush1.msra.mxu0 0.0
  %1461 = vmatprep.subr.mxu0 0.0
  %1462 = vmatpush1.msra.mxu0 0.0
  %1463 = vmatprep.subr.mxu0 0.0
  %1464 = vmatpush1.msra.mxu0 0.0
  %1465 = vmatprep.subr.mxu0 0.0
  %1466 = vmatpush1.msra.mxu0 0.0
  %1467 = vmatprep.subr.mxu0 0.0
  %1468 = vmatpush1.msra.mxu0 0.0
  %1469 = vmatprep.subr.mxu0 0.0
  %1470 = vmatpush1.msra.mxu0 0.0
  %1471 = vmatprep.subr.mxu0 0.0
  %1472 = vmatpush1.msra.mxu0 0.0
  %1473 = vmatprep.subr.mxu0 0.0
  %1474 = vmatpush1.msra.mxu0 0.0
  %1475 = vmatprep.subr.mxu0 0.0
  %1476 = vmatpush1.msra.mxu0 0.0
  %1477 = vmatprep.mubr.f32.mxu0 0.0
  %1478 = vmatmul.mubr.f32.gmra.mrb[0].mxu0 %v1411
  %v1479 = vpop.f32.mrb[0].mxu0
  %v1480 = vadd.f32 0.0, %v1479
  %v1481 = vpop.f32.mrb[0].mxu0
  %1482 = vdwg.mxu0
  %1484 = vrot.lane.b32.xlu0 %v1148, 8
  %v1485 = vpop.permute.xlu0 %1484
  %1488 = vrot.lane.b32.xlu0 %v1314, 16
  %v1489 = vpop.permute.xlu0 %1488
  %1492 = vrot.lane.b32.xlu0 %v1480, 24
  %v1493 = vpop.permute.xlu0 %1492
  %v1495 = vsel %vm142, %v982, %v1485
  %v1496 = vsel %vm816, %v1495, %v1489
  %v1497 = vsel %vm818, %v1496, %v1493
  %v1498 = vld [vmem:[%s3] sm:$0xff]
  %v1499 = vld [vmem:[%s3 + $0x8] sm:$0xff]
  %v1500 = vld [vmem:[%s3 + $0x10] sm:$0xff]
  %v1501 = vld [vmem:[%s3 + $0x18] sm:$0xff]
  %v1502 = vld [vmem:[%s4] sm:$0x1]
  %v1504 = vlaneseq
  %v1505 = vshrl.u32 %v1504, 7
  %v1506 = vsub.s32 0, %v1505
  %v1507 = vrot.slane %v1502, %v1506
  %v1510 = vsel %vm57, %v819, 0
  %v1513 = vsel %vm57, %v1497, 0
  %1515 = vmatprep.subr.mxu0 0.0
  %1516 = vmatpush1.msra.mxu0 %v1498
  %1517 = vmatprep.subr.mxu0 0.0
  %1518 = vmatpush1.msra.mxu0 %v1499
  %1519 = vmatprep.subr.mxu0 0.0
  %1520 = vmatpush1.msra.mxu0 %v1500
  %1521 = vmatprep.subr.mxu0 0.0
  %1522 = vmatpush1.msra.mxu0 %v1501
  %1523 = vmatprep.subr.mxu0 0.0
  %1524 = vmatpush1.msra.mxu0 0.0
  %1525 = vmatprep.subr.mxu0 0.0
  %1526 = vmatpush1.msra.mxu0 0.0
  %1527 = vmatprep.subr.mxu0 0.0
  %1528 = vmatpush1.msra.mxu0 0.0
  %1529 = vmatprep.subr.mxu0 0.0
  %1530 = vmatpush1.msra.mxu0 0.0
  %1531 = vmatprep.subr.mxu0 0.0
  %1532 = vmatpush1.msra.mxu0 0.0
  %1533 = vmatprep.subr.mxu0 0.0
  %1534 = vmatpush1.msra.mxu0 0.0
  %1535 = vmatprep.subr.mxu0 0.0
  %1536 = vmatpush1.msra.mxu0 0.0
  %1537 = vmatprep.subr.mxu0 0.0
  %1538 = vmatpush1.msra.mxu0 0.0
  %1539 = vmatprep.subr.mxu0 0.0
  %1540 = vmatpush1.msra.mxu0 0.0
  %1541 = vmatprep.subr.mxu0 0.0
  %1542 = vmatpush1.msra.mxu0 0.0
  %1543 = vmatprep.subr.mxu0 0.0
  %1544 = vmatpush1.msra.mxu0 0.0
  %1545 = vmatprep.subr.mxu0 0.0
  %1546 = vmatpush1.msra.mxu0 0.0
  %1547 = vmatprep.subr.mxu0 0.0
  %1548 = vmatpush1.msra.mxu0 0.0
  %1549 = vmatprep.subr.mxu0 0.0
  %1550 = vmatpush1.msra.mxu0 0.0
  %1551 = vmatprep.subr.mxu0 0.0
  %1552 = vmatpush1.msra.mxu0 0.0
  %1553 = vmatprep.subr.mxu0 0.0
  %1554 = vmatpush1.msra.mxu0 0.0
  %1555 = vmatprep.subr.mxu0 0.0
  %1556 = vmatpush1.msra.mxu0 0.0
  %1557 = vmatprep.subr.mxu0 0.0
  %1558 = vmatpush1.msra.mxu0 0.0
  %1559 = vmatprep.subr.mxu0 0.0
  %1560 = vmatpush1.msra.mxu0 0.0
  %1561 = vmatprep.subr.mxu0 0.0
  %1562 = vmatpush1.msra.mxu0 0.0
  %1563 = vmatprep.subr.mxu0 0.0
  %1564 = vmatpush1.msra.mxu0 0.0
  %1565 = vmatprep.subr.mxu0 0.0
  %1566 = vmatpush1.msra.mxu0 0.0
  %1567 = vmatprep.subr.mxu0 0.0
  %1568 = vmatpush1.msra.mxu0 0.0
  %1569 = vmatprep.subr.mxu0 0.0
  %1570 = vmatpush1.msra.mxu0 0.0
  %1571 = vmatprep.subr.mxu0 0.0
  %1572 = vmatpush1.msra.mxu0 0.0
  %1573 = vmatprep.subr.mxu0 0.0
  %1574 = vmatpush1.msra.mxu0 0.0
  %1575 = vmatprep.subr.mxu0 0.0
  %1576 = vmatpush1.msra.mxu0 0.0
  %1577 = vmatprep.subr.mxu0 0.0
  %1578 = vmatpush1.msra.mxu0 0.0
  %1579 = vmatprep.mubr.f32.mxu0 0.0
  %1580 = vmatmul.mubr.f32.gmra.mrb[0].mxu0 %v1510
  %v1581 = vpop.f32.mrb[0].mxu0
  %v1582 = vadd.f32 %v1507, %v1581
  %v1583 = vpop.f32.mrb[0].mxu0
  %1584 = vmatprep.mubr.f32.mxu0 0.0
  %1585 = vmatmul.mubr.f32.gmra.mrb[0].mxu0 %v1513
  %v1586 = vpop.f32.mrb[0].mxu0
  %v1587 = vadd.f32 %v1507, %v1586
  %v1588 = vpop.f32.mrb[0].mxu0
  %1589 = vdwg.mxu0
  %v1590 = vadd.f32 %v44, %v1582
  %v1591 = vadd.f32 %v45, %v1587
  %v1592 = vsel %vm57, %v1590, 0.0
  %1593 = vadd.xlane.f32.xlu0 %v1592
  %v1594 = vpop.xlane.xlu0 %1593
  %v1595 = vsel %vm57, %v1591, 0.0
  %1596 = vadd.xlane.f32.xlu0 %v1595
  %v1597 = vpop.xlane.xlu0 %1596
  %v1598 = vrcp.pop 32.0
  %v1599 = vmul.f32 %v1594, %v1598
  %v1600 = vmul.f32 %v1597, %v1598
  %v1601 = vsub.f32 %v1590, %v1599
  %v1602 = vsub.f32 %v1591, %v1600
  %v1603 = vmul.f32 %v1601, %v1601
  %v1604 = vmul.f32 %v1602, %v1602
  %v1605 = vsel %vm57, %v1603, 0.0
  %1606 = vadd.xlane.f32.xlu0 %v1605
  %v1607 = vpop.xlane.xlu0 %1606
  %v1608 = vsel %vm57, %v1604, 0.0
  %1609 = vadd.xlane.f32.xlu0 %v1608
  %v1610 = vpop.xlane.xlu0 %1609
  %v1611 = vmul.f32 %v1607, %v1598
  %v1612 = vmul.f32 %v1610, %v1598
  %v1613 = vadd.f32 %v1611, 1e-05
  %v1614 = vadd.f32 %v1612, 1e-05
  %v1615 = vrsqrt.pop %v1613
  %v1616 = vrsqrt.pop %v1614
  %v1617 = vmul.f32 %v1601, %v1615
  %v1618 = vmul.f32 %v1602, %v1616
  %v1619 = vld [vmem:[%s5] sm:$0x1]
  %v1621 = vlaneseq
  %v1622 = vshrl.u32 %v1621, 7
  %v1623 = vsub.s32 0, %v1622
  %v1624 = vrot.slane %v1619, %v1623
  %v1626 = vmul.f32 %v1617, %v1624
  %v1627 = vmul.f32 %v1618, %v1624
  %v1628 = vld [vmem:[%s6] sm:$0x1]
  %v1630 = vlaneseq
  %v1631 = vshrl.u32 %v1630, 7
  %v1632 = vsub.s32 0, %v1631
  %v1633 = vrot.slane %v1628, %v1632
  %v1635 = vadd.f32 %v1626, %v1633
  %v1636 = vadd.f32 %v1627, %v1633
  %v1637 = vld [vmem:[%s7] sm:$0xff]
  %v1638 = vld [vmem:[%s7 + $0x8] sm:$0xff]
  %v1639 = vld [vmem:[%s7 + $0x10] sm:$0xff]
  %v1640 = vld [vmem:[%s7 + $0x18] sm:$0xff]
  %v1641 = vld [vmem:[%s7 + $0x20] sm:$0xff]
  %v1642 = vld [vmem:[%s7 + $0x28] sm:$0xff]
  %v1643 = vld [vmem:[%s7 + $0x30] sm:$0xff]
  %v1644 = vld [vmem:[%s7 + $0x38] sm:$0xff]
  %v1645 = vld [vmem:[%s7 + $0x40] sm:$0xff]
  %v1646 = vld [vmem:[%s7 + $0x48] sm:$0xff]
  %v1647 = vld [vmem:[%s7 + $0x50] sm:$0xff]
  %v1648 = vld [vmem:[%s7 + $0x58] sm:$0xff]
  %v1649 = vld [vmem:[%s7 + $0x60] sm:$0xff]
  %v1650 = vld [vmem:[%s7 + $0x68] sm:$0xff]
  %v1651 = vld [vmem:[%s7 + $0x70] sm:$0xff]
  %v1652 = vld [vmem:[%s7 + $0x78] sm:$0xff]
  %v1653 = vld [vmem:[%s7 + $0x80] sm:$0xff]
  %v1654 = vld [vmem:[%s7 + $0x88] sm:$0xff]
  %v1655 = vld [vmem:[%s7 + $0x90] sm:$0xff]
  %v1656 = vld [vmem:[%s7 + $0x98] sm:$0xff]
  %v1657 = vld [vmem:[%s7 + $0xa0] sm:$0xff]
  %v1658 = vld [vmem:[%s7 + $0xa8] sm:$0xff]
  %v1659 = vld [vmem:[%s7 + $0xb0] sm:$0xff]
  %v1660 = vld [vmem:[%s7 + $0xb8] sm:$0xff]
  %v1661 = vld [vmem:[%s7 + $0xc0] sm:$0xff]
  %v1662 = vld [vmem:[%s7 + $0xc8] sm:$0xff]
  %v1663 = vld [vmem:[%s7 + $0xd0] sm:$0xff]
  %v1664 = vld [vmem:[%s7 + $0xd8] sm:$0xff]
  %v1665 = vld [vmem:[%s7 + $0xe0] sm:$0xff]
  %v1666 = vld [vmem:[%s7 + $0xe8] sm:$0xff]
  %v1667 = vld [vmem:[%s7 + $0xf0] sm:$0xff]
  %v1668 = vld [vmem:[%s7 + $0xf8] sm:$0xff]
  %v1669 = vld [vmem:[%s7 + $0x100] sm:$0xff]
  %v1670 = vld [vmem:[%s7 + $0x108] sm:$0xff]
  %v1671 = vld [vmem:[%s7 + $0x110] sm:$0xff]
  %v1672 = vld [vmem:[%s7 + $0x118] sm:$0xff]
  %v1673 = vld [vmem:[%s7 + $0x120] sm:$0xff]
  %v1674 = vld [vmem:[%s7 + $0x128] sm:$0xff]
  %v1675 = vld [vmem:[%s7 + $0x130] sm:$0xff]
  %v1676 = vld [vmem:[%s7 + $0x138] sm:$0xff]
  %v1677 = vld [vmem:[%s7 + $0x140] sm:$0xff]
  %v1678 = vld [vmem:[%s7 + $0x148] sm:$0xff]
  %v1679 = vld [vmem:[%s7 + $0x150] sm:$0xff]
  %v1680 = vld [vmem:[%s7 + $0x158] sm:$0xff]
  %v1681 = vld [vmem:[%s7 + $0x160] sm:$0xff]
  %v1682 = vld [vmem:[%s7 + $0x168] sm:$0xff]
  %v1683 = vld [vmem:[%s7 + $0x170] sm:$0xff]
  %v1684 = vld [vmem:[%s7 + $0x178] sm:$0xff]
  %v1685 = vld [vmem:[%s7 + $0x180] sm:$0xff]
  %v1686 = vld [vmem:[%s7 + $0x188] sm:$0xff]
  %v1687 = vld [vmem:[%s7 + $0x190] sm:$0xff]
  %v1688 = vld [vmem:[%s7 + $0x198] sm:$0xff]
  %v1689 = vld [vmem:[%s7 + $0x1a0] sm:$0xff]
  %v1690 = vld [vmem:[%s7 + $0x1a8] sm:$0xff]
  %v1691 = vld [vmem:[%s7 + $0x1b0] sm:$0xff]
  %v1692 = vld [vmem:[%s7 + $0x1b8] sm:$0xff]
  %v1693 = vld [vmem:[%s7 + $0x1c0] sm:$0xff]
  %v1694 = vld [vmem:[%s7 + $0x1c8] sm:$0xff]
  %v1695 = vld [vmem:[%s7 + $0x1d0] sm:$0xff]
  %v1696 = vld [vmem:[%s7 + $0x1d8] sm:$0xff]
  %v1697 = vld [vmem:[%s7 + $0x1e0] sm:$0xff]
  %v1698 = vld [vmem:[%s7 + $0x1e8] sm:$0xff]
  %v1699 = vld [vmem:[%s7 + $0x1f0] sm:$0xff]
  %v1700 = vld [vmem:[%s7 + $0x1f8] sm:$0xff]
  %v1701 = vld [vmem:[%s8] sm:$0xff]
  %v1702 = vld [vmem:[%s8 + $0x8] sm:$0xff]
  %v1705 = vlaneseq
  %v1706 = vshrl.u32 %v1705, 7
  %v1707 = vsub.s32 0, %v1706
  %v1708 = vrot.slane %v1701, %v1707
  %v1709 = vlaneseq
  %v1710 = vshrl.u32 %v1709, 7
  %v1711 = vsub.s32 1, %v1710
  %v1712 = vrot.slane %v1701, %v1711
  %v1713 = vlaneseq
  %v1714 = vshrl.u32 %v1713, 7
  %v1715 = vsub.s32 2, %v1714
  %v1716 = vrot.slane %v1701, %v1715
  %v1717 = vlaneseq
  %v1718 = vshrl.u32 %v1717, 7
  %v1719 = vsub.s32 3, %v1718
  %v1720 = vrot.slane %v1701, %v1719
  %v1721 = vlaneseq
  %v1722 = vshrl.u32 %v1721, 7
  %v1723 = vsub.s32 4, %v1722
  %v1724 = vrot.slane %v1701, %v1723
  %v1725 = vlaneseq
  %v1726 = vshrl.u32 %v1725, 7
  %v1727 = vsub.s32 5, %v1726
  %v1728 = vrot.slane %v1701, %v1727
  %v1729 = vlaneseq
  %v1730 = vshrl.u32 %v1729, 7
  %v1731 = vsub.s32 6, %v1730
  %v1732 = vrot.slane %v1701, %v1731
  %v1733 = vlaneseq
  %v1734 = vshrl.u32 %v1733, 7
  %v1735 = vsub.s32 7, %v1734
  %v1736 = vrot.slane %v1701, %v1735
  %v1737 = vlaneseq
  %v1738 = vshrl.u32 %v1737, 7
  %v1739 = vsub.s32 0, %v1738
  %v1740 = vrot.slane %v1702, %v1739
  %v1741 = vlaneseq
  %v1742 = vshrl.u32 %v1741, 7
  %v1743 = vsub.s32 1, %v1742
  %v1744 = vrot.slane %v1702, %v1743
  %v1745 = vlaneseq
  %v1746 = vshrl.u32 %v1745, 7
  %v1747 = vsub.s32 2, %v1746
  %v1748 = vrot.slane %v1702, %v1747
  %v1749 = vlaneseq
  %v1750 = vshrl.u32 %v1749, 7
  %v1751 = vsub.s32 3, %v1750
  %v1752 = vrot.slane %v1702, %v1751
  %v1753 = vlaneseq
  %v1754 = vshrl.u32 %v1753, 7
  %v1755 = vsub.s32 4, %v1754
  %v1756 = vrot.slane %v1702, %v1755
  %v1757 = vlaneseq
  %v1758 = vshrl.u32 %v1757, 7
  %v1759 = vsub.s32 5, %v1758
  %v1760 = vrot.slane %v1702, %v1759
  %v1761 = vlaneseq
  %v1762 = vshrl.u32 %v1761, 7
  %v1763 = vsub.s32 6, %v1762
  %v1764 = vrot.slane %v1702, %v1763
  %v1765 = vlaneseq
  %v1766 = vshrl.u32 %v1765, 7
  %v1767 = vsub.s32 7, %v1766
  %v1768 = vrot.slane %v1702, %v1767
  %v1786 = vsel %vm57, %v1635, 0
  %v1789 = vsel %vm57, %v1636, 0
  %1791 = vmatprep.subr.mxu0 %v1638
  %1792 = vmatpush1.msra.mxu0 %v1637
  %1793 = vmatprep.subr.mxu0 %v1654
  %1794 = vmatpush1.msra.mxu0 %v1653
  %1795 = vmatprep.subr.mxu0 %v1670
  %1796 = vmatpush1.msra.mxu0 %v1669
  %1797 = vmatprep.subr.mxu0 %v1686
  %1798 = vmatpush1.msra.mxu0 %v1685
  %1799 = vmatprep.subr.mxu0 0.0
  %1800 = vmatpush1.msra.mxu0 0.0
  %1801 = vmatprep.subr.mxu0 0.0
  %1802 = vmatpush1.msra.mxu0 0.0
  %1803 = vmatprep.subr.mxu0 0.0
  %1804 = vmatpush1.msra.mxu0 0.0
  %1805 = vmatprep.subr.mxu0 0.0
  %1806 = vmatpush1.msra.mxu0 0.0
  %1807 = vmatprep.subr.mxu0 0.0
  %1808 = vmatpush1.msra.mxu0 0.0
  %1809 = vmatprep.subr.mxu0 0.0
  %1810 = vmatpush1.msra.mxu0 0.0
  %1811 = vmatprep.subr.mxu0 0.0
  %1812 = vmatpush1.msra.mxu0 0.0
  %1813 = vmatprep.subr.mxu0 0.0
  %1814 = vmatpush1.msra.mxu0 0.0
  %1815 = vmatprep.subr.mxu0 0.0
  %1816 = vmatpush1.msra.mxu0 0.0
  %1817 = vmatprep.subr.mxu0 0.0
  %1818 = vmatpush1.msra.mxu0 0.0
  %1819 = vmatprep.subr.mxu0 0.0
  %1820 = vmatpush1.msra.mxu0 0.0
  %1821 = vmatprep.subr.mxu0 0.0
  %1822 = vmatpush1.msra.mxu0 0.0
  %1823 = vmatprep.subr.mxu0 0.0
  %1824 = vmatpush1.msra.mxu0 0.0
  %1825 = vmatprep.subr.mxu0 0.0
  %1826 = vmatpush1.msra.mxu0 0.0
  %1827 = vmatprep.subr.mxu0 0.0
  %1828 = vmatpush1.msra.mxu0 0.0
  %1829 = vmatprep.subr.mxu0 0.0
  %1830 = vmatpush1.msra.mxu0 0.0
  %1831 = vmatprep.subr.mxu0 0.0
  %1832 = vmatpush1.msra.mxu0 0.0
  %1833 = vmatprep.subr.mxu0 0.0
  %1834 = vmatpush1.msra.mxu0 0.0
  %1835 = vmatprep.subr.mxu0 0.0
  %1836 = vmatpush1.msra.mxu0 0.0
  %1837 = vmatprep.subr.mxu0 0.0
  %1838 = vmatpush1.msra.mxu0 0.0
  %1839 = vmatprep.subr.mxu0 0.0
  %1840 = vmatpush1.msra.mxu0 0.0
  %1841 = vmatprep.subr.mxu0 0.0
  %1842 = vmatpush1.msra.mxu0 0.0
  %1843 = vmatprep.subr.mxu0 0.0
  %1844 = vmatpush1.msra.mxu0 0.0
  %1845 = vmatprep.subr.mxu0 0.0
  %1846 = vmatpush1.msra.mxu0 0.0
  %1847 = vmatprep.subr.mxu0 0.0
  %1848 = vmatpush1.msra.mxu0 0.0
  %1849 = vmatprep.subr.mxu0 0.0
  %1850 = vmatpush1.msra.mxu0 0.0
  %1851 = vmatprep.subr.mxu0 0.0
  %1852 = vmatpush1.msra.mxu0 0.0
  %1853 = vmatprep.subr.mxu0 0.0
  %1854 = vmatpush1.msra.mxu0 0.0
  %1855 = vmatprep.mubr.f32.mxu0 0.0
  %1856 = vmatmul.mubr.f32.gmra.mrb[0].mxu0 %v1786
  %v1857 = vpop.f32.mrb[0].mxu0
  %v1858 = vadd.f32 %v1708, %v1857
  %v1859 = vpop.f32.mrb[0].mxu0
  %v1860 = vadd.f32 %v1712, %v1859
  %1861 = vmatprep.mubr.f32.mxu0 0.0
  %1862 = vmatmul.mubr.f32.gmra.mrb[0].mxu0 %v1789
  %v1863 = vpop.f32.mrb[0].mxu0
  %v1864 = vadd.f32 %v1708, %v1863
  %v1865 = vpop.f32.mrb[0].mxu0
  %v1866 = vadd.f32 %v1712, %v1865
  %1867 = vdwg.mxu0
  %1868 = vmatprep.subr.mxu0 %v1640
  %1869 = vmatpush1.msra.mxu0 %v1639
  %1870 = vmatprep.subr.mxu0 %v1656
  %1871 = vmatpush1.msra.mxu0 %v1655
  %1872 = vmatprep.subr.mxu0 %v1672
  %1873 = vmatpush1.msra.mxu0 %v1671
  %1874 = vmatprep.subr.mxu0 %v1688
  %1875 = vmatpush1.msra.mxu0 %v1687
  %1876 = vmatprep.subr.mxu0 0.0
  %1877 = vmatpush1.msra.mxu0 0.0
  %1878 = vmatprep.subr.mxu0 0.0
  %1879 = vmatpush1.msra.mxu0 0.0
  %1880 = vmatprep.subr.mxu0 0.0
  %1881 = vmatpush1.msra.mxu0 0.0
  %1882 = vmatprep.subr.mxu0 0.0
  %1883 = vmatpush1.msra.mxu0 0.0
  %1884 = vmatprep.subr.mxu0 0.0
  %1885 = vmatpush1.msra.mxu0 0.0
  %1886 = vmatprep.subr.mxu0 0.0
  %1887 = vmatpush1.msra.mxu0 0.0
  %1888 = vmatprep.subr.mxu0 0.0
  %1889 = vmatpush1.msra.mxu0 0.0
  %1890 = vmatprep.subr.mxu0 0.0
  %1891 = vmatpush1.msra.mxu0 0.0
  %1892 = vmatprep.subr.mxu0 0.0
  %1893 = vmatpush1.msra.mxu0 0.0
  %1894 = vmatprep.subr.mxu0 0.0
  %1895 = vmatpush1.msra.mxu0 0.0
  %1896 = vmatprep.subr.mxu0 0.0
  %1897 = vmatpush1.msra.mxu0 0.0
  %1898 = vmatprep.subr.mxu0 0.0
  %1899 = vmatpush1.msra.mxu0 0.0
  %1900 = vmatprep.subr.mxu0 0.0
  %1901 = vmatpush1.msra.mxu0 0.0
  %1902 = vmatprep.subr.mxu0 0.0
  %1903 = vmatpush1.msra.mxu0 0.0
  %1904 = vmatprep.subr.mxu0 0.0
  %1905 = vmatpush1.msra.mxu0 0.0
  %1906 = vmatprep.subr.mxu0 0.0
  %1907 = vmatpush1.msra.mxu0 0.0
  %1908 = vmatprep.subr.mxu0 0.0
  %1909 = vmatpush1.msra.mxu0 0.0
  %1910 = vmatprep.subr.mxu0 0.0
  %1911 = vmatpush1.msra.mxu0 0.0
  %1912 = vmatprep.subr.mxu0 0.0
  %1913 = vmatpush1.msra.mxu0 0.0
  %1914 = vmatprep.subr.mxu0 0.0
  %1915 = vmatpush1.msra.mxu0 0.0
  %1916 = vmatprep.subr.mxu0 0.0
  %1917 = vmatpush1.msra.mxu0 0.0
  %1918 = vmatprep.subr.mxu0 0.0
  %1919 = vmatpush1.msra.mxu0 0.0
  %1920 = vmatprep.subr.mxu0 0.0
  %1921 = vmatpush1.msra.mxu0 0.0
  %1922 = vmatprep.subr.mxu0 0.0
  %1923 = vmatpush1.msra.mxu0 0.0
  %1924 = vmatprep.subr.mxu0 0.0
  %1925 = vmatpush1.msra.mxu0 0.0
  %1926 = vmatprep.subr.mxu0 0.0
  %1927 = vmatpush1.msra.mxu0 0.0
  %1928 = vmatprep.subr.mxu0 0.0
  %1929 = vmatpush1.msra.mxu0 0.0
  %1930 = vmatprep.subr.mxu0 0.0
  %1931 = vmatpush1.msra.mxu0 0.0
  %1932 = vmatprep.mubr.f32.mxu0 0.0
  %1933 = vmatmul.mubr.f32.gmra.mrb[0].mxu0 %v1786
  %v1934 = vpop.f32.mrb[0].mxu0
  %v1935 = vadd.f32 %v1716, %v1934
  %v1936 = vpop.f32.mrb[0].mxu0
  %v1937 = vadd.f32 %v1720, %v1936
  %1938 = vmatprep.mubr.f32.mxu0 0.0
  %1939 = vmatmul.mubr.f32.gmra.mrb[0].mxu0 %v1789
  %v1940 = vpop.f32.mrb[0].mxu0
  %v1941 = vadd.f32 %v1716, %v1940
  %v1942 = vpop.f32.mrb[0].mxu0
  %v1943 = vadd.f32 %v1720, %v1942
  %1944 = vdwg.mxu0
  %1945 = vmatprep.subr.mxu0 %v1642
  %1946 = vmatpush1.msra.mxu0 %v1641
  %1947 = vmatprep.subr.mxu0 %v1658
  %1948 = vmatpush1.msra.mxu0 %v1657
  %1949 = vmatprep.subr.mxu0 %v1674
  %1950 = vmatpush1.msra.mxu0 %v1673
  %1951 = vmatprep.subr.mxu0 %v1690
  %1952 = vmatpush1.msra.mxu0 %v1689
  %1953 = vmatprep.subr.mxu0 0.0
  %1954 = vmatpush1.msra.mxu0 0.0
  %1955 = vmatprep.subr.mxu0 0.0
  %1956 = vmatpush1.msra.mxu0 0.0
  %1957 = vmatprep.subr.mxu0 0.0
  %1958 = vmatpush1.msra.mxu0 0.0
  %1959 = vmatprep.subr.mxu0 0.0
  %1960 = vmatpush1.msra.mxu0 0.0
  %1961 = vmatprep.subr.mxu0 0.0
  %1962 = vmatpush1.msra.mxu0 0.0
  %1963 = vmatprep.subr.mxu0 0.0
  %1964 = vmatpush1.msra.mxu0 0.0
  %1965 = vmatprep.subr.mxu0 0.0
  %1966 = vmatpush1.msra.mxu0 0.0
  %1967 = vmatprep.subr.mxu0 0.0
  %1968 = vmatpush1.msra.mxu0 0.0
  %1969 = vmatprep.subr.mxu0 0.0
  %1970 = vmatpush1.msra.mxu0 0.0
  %1971 = vmatprep.subr.mxu0 0.0
  %1972 = vmatpush1.msra.mxu0 0.0
  %1973 = vmatprep.subr.mxu0 0.0
  %1974 = vmatpush1.msra.mxu0 0.0
  %1975 = vmatprep.subr.mxu0 0.0
  %1976 = vmatpush1.msra.mxu0 0.0
  %1977 = vmatprep.subr.mxu0 0.0
  %1978 = vmatpush1.msra.mxu0 0.0
  %1979 = vmatprep.subr.mxu0 0.0
  %1980 = vmatpush1.msra.mxu0 0.0
  %1981 = vmatprep.subr.mxu0 0.0
  %1982 = vmatpush1.msra.mxu0 0.0
  %1983 = vmatprep.subr.mxu0 0.0
  %1984 = vmatpush1.msra.mxu0 0.0
  %1985 = vmatprep.subr.mxu0 0.0
  %1986 = vmatpush1.msra.mxu0 0.0
  %1987 = vmatprep.subr.mxu0 0.0
  %1988 = vmatpush1.msra.mxu0 0.0
  %1989 = vmatprep.subr.mxu0 0.0
  %1990 = vmatpush1.msra.mxu0 0.0
  %1991 = vmatprep.subr.mxu0 0.0
  %1992 = vmatpush1.msra.mxu0 0.0
  %1993 = vmatprep.subr.mxu0 0.0
  %1994 = vmatpush1.msra.mxu0 0.0
  %1995 = vmatprep.subr.mxu0 0.0
  %1996 = vmatpush1.msra.mxu0 0.0
  %1997 = vmatprep.subr.mxu0 0.0
  %1998 = vmatpush1.msra.mxu0 0.0
  %1999 = vmatprep.subr.mxu0 0.0
  %2000 = vmatpush1.msra.mxu0 0.0
  %2001 = vmatprep.subr.mxu0 0.0
  %2002 = vmatpush1.msra.mxu0 0.0
  %2003 = vmatprep.subr.mxu0 0.0
  %2004 = vmatpush1.msra.mxu0 0.0
  %2005 = vmatprep.subr.mxu0 0.0
  %2006 = vmatpush1.msra.mxu0 0.0
  %2007 = vmatprep.subr.mxu0 0.0
  %2008 = vmatpush1.msra.mxu0 0.0
  %2009 = vmatprep.mubr.f32.mxu0 0.0
  %2010 = vmatmul.mubr.f32.gmra.mrb[0].mxu0 %v1786
  %v2011 = vpop.f32.mrb[0].mxu0
  %v2012 = vadd.f32 %v1724, %v2011
  %v2013 = vpop.f32.mrb[0].mxu0
  %v2014 = vadd.f32 %v1728, %v2013
  %2015 = vmatprep.mubr.f32.mxu0 0.0
  %2016 = vmatmul.mubr.f32.gmra.mrb[0].mxu0 %v1789
  %v2017 = vpop.f32.mrb[0].mxu0
  %v2018 = vadd.f32 %v1724, %v2017
  %v2019 = vpop.f32.mrb[0].mxu0
  %v2020 = vadd.f32 %v1728, %v2019
  %2021 = vdwg.mxu0
  %2022 = vmatprep.subr.mxu0 %v1644
  %2023 = vmatpush1.msra.mxu0 %v1643
  %2024 = vmatprep.subr.mxu0 %v1660
  %2025 = vmatpush1.msra.mxu0 %v1659
  %2026 = vmatprep.subr.mxu0 %v1676
  %2027 = vmatpush1.msra.mxu0 %v1675
  %2028 = vmatprep.subr.mxu0 %v1692
  %2029 = vmatpush1.msra.mxu0 %v1691
  %2030 = vmatprep.subr.mxu0 0.0
  %2031 = vmatpush1.msra.mxu0 0.0
  %2032 = vmatprep.subr.mxu0 0.0
  %2033 = vmatpush1.msra.mxu0 0.0
  %2034 = vmatprep.subr.mxu0 0.0
  %2035 = vmatpush1.msra.mxu0 0.0
  %2036 = vmatprep.subr.mxu0 0.0
  %2037 = vmatpush1.msra.mxu0 0.0
  %2038 = vmatprep.subr.mxu0 0.0
  %2039 = vmatpush1.msra.mxu0 0.0
  %2040 = vmatprep.subr.mxu0 0.0
  %2041 = vmatpush1.msra.mxu0 0.0
  %2042 = vmatprep.subr.mxu0 0.0
  %2043 = vmatpush1.msra.mxu0 0.0
  %2044 = vmatprep.subr.mxu0 0.0
  %2045 = vmatpush1.msra.mxu0 0.0
  %2046 = vmatprep.subr.mxu0 0.0
  %2047 = vmatpush1.msra.mxu0 0.0
  %2048 = vmatprep.subr.mxu0 0.0
  %2049 = vmatpush1.msra.mxu0 0.0
  %2050 = vmatprep.subr.mxu0 0.0
  %2051 = vmatpush1.msra.mxu0 0.0
  %2052 = vmatprep.subr.mxu0 0.0
  %2053 = vmatpush1.msra.mxu0 0.0
  %2054 = vmatprep.subr.mxu0 0.0
  %2055 = vmatpush1.msra.mxu0 0.0
  %2056 = vmatprep.subr.mxu0 0.0
  %2057 = vmatpush1.msra.mxu0 0.0
  %2058 = vmatprep.subr.mxu0 0.0
  %2059 = vmatpush1.msra.mxu0 0.0
  %2060 = vmatprep.subr.mxu0 0.0
  %2061 = vmatpush1.msra.mxu0 0.0
  %2062 = vmatprep.subr.mxu0 0.0
  %2063 = vmatpush1.msra.mxu0 0.0
  %2064 = vmatprep.subr.mxu0 0.0
  %2065 = vmatpush1.msra.mxu0 0.0
  %2066 = vmatprep.subr.mxu0 0.0
  %2067 = vmatpush1.msra.mxu0 0.0
  %2068 = vmatprep.subr.mxu0 0.0
  %2069 = vmatpush1.msra.mxu0 0.0
  %2070 = vmatprep.subr.mxu0 0.0
  %2071 = vmatpush1.msra.mxu0 0.0
  %2072 = vmatprep.subr.mxu0 0.0
  %2073 = vmatpush1.msra.mxu0 0.0
  %2074 = vmatprep.subr.mxu0 0.0
  %2075 = vmatpush1.msra.mxu0 0.0
  %2076 = vmatprep.subr.mxu0 0.0
  %2077 = vmatpush1.msra.mxu0 0.0
  %2078 = vmatprep.subr.mxu0 0.0
  %2079 = vmatpush1.msra.mxu0 0.0
  %2080 = vmatprep.subr.mxu0 0.0
  %2081 = vmatpush1.msra.mxu0 0.0
  %2082 = vmatprep.subr.mxu0 0.0
  %2083 = vmatpush1.msra.mxu0 0.0
  %2084 = vmatprep.subr.mxu0 0.0
  %2085 = vmatpush1.msra.mxu0 0.0
  %2086 = vmatprep.mubr.f32.mxu0 0.0
  %2087 = vmatmul.mubr.f32.gmra.mrb[0].mxu0 %v1786
  %v2088 = vpop.f32.mrb[0].mxu0
  %v2089 = vadd.f32 %v1732, %v2088
  %v2090 = vpop.f32.mrb[0].mxu0
  %v2091 = vadd.f32 %v1736, %v2090
  %2092 = vmatprep.mubr.f32.mxu0 0.0
  %2093 = vmatmul.mubr.f32.gmra.mrb[0].mxu0 %v1789
  %v2094 = vpop.f32.mrb[0].mxu0
  %v2095 = vadd.f32 %v1732, %v2094
  %v2096 = vpop.f32.mrb[0].mxu0
  %v2097 = vadd.f32 %v1736, %v2096
  %2098 = vdwg.mxu0
  %2099 = vmatprep.subr.mxu0 %v1646
  %2100 = vmatpush1.msra.mxu0 %v1645
  %2101 = vmatprep.subr.mxu0 %v1662
  %2102 = vmatpush1.msra.mxu0 %v1661
  %2103 = vmatprep.subr.mxu0 %v1678
  %2104 = vmatpush1.msra.mxu0 %v1677
  %2105 = vmatprep.subr.mxu0 %v1694
  %2106 = vmatpush1.msra.mxu0 %v1693
  %2107 = vmatprep.subr.mxu0 0.0
  %2108 = vmatpush1.msra.mxu0 0.0
  %2109 = vmatprep.subr.mxu0 0.0
  %2110 = vmatpush1.msra.mxu0 0.0
  %2111 = vmatprep.subr.mxu0 0.0
  %2112 = vmatpush1.msra.mxu0 0.0
  %2113 = vmatprep.subr.mxu0 0.0
  %2114 = vmatpush1.msra.mxu0 0.0
  %2115 = vmatprep.subr.mxu0 0.0
  %2116 = vmatpush1.msra.mxu0 0.0
  %2117 = vmatprep.subr.mxu0 0.0
  %2118 = vmatpush1.msra.mxu0 0.0
  %2119 = vmatprep.subr.mxu0 0.0
  %2120 = vmatpush1.msra.mxu0 0.0
  %2121 = vmatprep.subr.mxu0 0.0
  %2122 = vmatpush1.msra.mxu0 0.0
  %2123 = vmatprep.subr.mxu0 0.0
  %2124 = vmatpush1.msra.mxu0 0.0
  %2125 = vmatprep.subr.mxu0 0.0
  %2126 = vmatpush1.msra.mxu0 0.0
  %2127 = vmatprep.subr.mxu0 0.0
  %2128 = vmatpush1.msra.mxu0 0.0
  %2129 = vmatprep.subr.mxu0 0.0
  %2130 = vmatpush1.msra.mxu0 0.0
  %2131 = vmatprep.subr.mxu0 0.0
  %2132 = vmatpush1.msra.mxu0 0.0
  %2133 = vmatprep.subr.mxu0 0.0
  %2134 = vmatpush1.msra.mxu0 0.0
  %2135 = vmatprep.subr.mxu0 0.0
  %2136 = vmatpush1.msra.mxu0 0.0
  %2137 = vmatprep.subr.mxu0 0.0
  %2138 = vmatpush1.msra.mxu0 0.0
  %2139 = vmatprep.subr.mxu0 0.0
  %2140 = vmatpush1.msra.mxu0 0.0
  %2141 = vmatprep.subr.mxu0 0.0
  %2142 = vmatpush1.msra.mxu0 0.0
  %2143 = vmatprep.subr.mxu0 0.0
  %2144 = vmatpush1.msra.mxu0 0.0
  %2145 = vmatprep.subr.mxu0 0.0
  %2146 = vmatpush1.msra.mxu0 0.0
  %2147 = vmatprep.subr.mxu0 0.0
  %2148 = vmatpush1.msra.mxu0 0.0
  %2149 = vmatprep.subr.mxu0 0.0
  %2150 = vmatpush1.msra.mxu0 0.0
  %2151 = vmatprep.subr.mxu0 0.0
  %2152 = vmatpush1.msra.mxu0 0.0
  %2153 = vmatprep.subr.mxu0 0.0
  %2154 = vmatpush1.msra.mxu0 0.0
  %2155 = vmatprep.subr.mxu0 0.0
  %2156 = vmatpush1.msra.mxu0 0.0
  %2157 = vmatprep.subr.mxu0 0.0
  %2158 = vmatpush1.msra.mxu0 0.0
  %2159 = vmatprep.subr.mxu0 0.0
  %2160 = vmatpush1.msra.mxu0 0.0
  %2161 = vmatprep.subr.mxu0 0.0
  %2162 = vmatpush1.msra.mxu0 0.0
  %2163 = vmatprep.mubr.f32.mxu0 0.0
  %2164 = vmatmul.mubr.f32.gmra.mrb[0].mxu0 %v1786
  %v2165 = vpop.f32.mrb[0].mxu0
  %v2166 = vadd.f32 %v1740, %v2165
  %v2167 = vpop.f32.mrb[0].mxu0
  %v2168 = vadd.f32 %v1744, %v2167
  %2169 = vmatprep.mubr.f32.mxu0 0.0
  %2170 = vmatmul.mubr.f32.gmra.mrb[0].mxu0 %v1789
  %v2171 = vpop.f32.mrb[0].mxu0
  %v2172 = vadd.f32 %v1740, %v2171
  %v2173 = vpop.f32.mrb[0].mxu0
  %v2174 = vadd.f32 %v1744, %v2173
  %2175 = vdwg.mxu0
  %2176 = vmatprep.subr.mxu0 %v1648
  %2177 = vmatpush1.msra.mxu0 %v1647
  %2178 = vmatprep.subr.mxu0 %v1664
  %2179 = vmatpush1.msra.mxu0 %v1663
  %2180 = vmatprep.subr.mxu0 %v1680
  %2181 = vmatpush1.msra.mxu0 %v1679
  %2182 = vmatprep.subr.mxu0 %v1696
  %2183 = vmatpush1.msra.mxu0 %v1695
  %2184 = vmatprep.subr.mxu0 0.0
  %2185 = vmatpush1.msra.mxu0 0.0
  %2186 = vmatprep.subr.mxu0 0.0
  %2187 = vmatpush1.msra.mxu0 0.0
  %2188 = vmatprep.subr.mxu0 0.0
  %2189 = vmatpush1.msra.mxu0 0.0
  %2190 = vmatprep.subr.mxu0 0.0
  %2191 = vmatpush1.msra.mxu0 0.0
  %2192 = vmatprep.subr.mxu0 0.0
  %2193 = vmatpush1.msra.mxu0 0.0
  %2194 = vmatprep.subr.mxu0 0.0
  %2195 = vmatpush1.msra.mxu0 0.0
  %2196 = vmatprep.subr.mxu0 0.0
  %2197 = vmatpush1.msra.mxu0 0.0
  %2198 = vmatprep.subr.mxu0 0.0
  %2199 = vmatpush1.msra.mxu0 0.0
  %2200 = vmatprep.subr.mxu0 0.0
  %2201 = vmatpush1.msra.mxu0 0.0
  %2202 = vmatprep.subr.mxu0 0.0
  %2203 = vmatpush1.msra.mxu0 0.0
  %2204 = vmatprep.subr.mxu0 0.0
  %2205 = vmatpush1.msra.mxu0 0.0
  %2206 = vmatprep.subr.mxu0 0.0
  %2207 = vmatpush1.msra.mxu0 0.0
  %2208 = vmatprep.subr.mxu0 0.0
  %2209 = vmatpush1.msra.mxu0 0.0
  %2210 = vmatprep.subr.mxu0 0.0
  %2211 = vmatpush1.msra.mxu0 0.0
  %2212 = vmatprep.subr.mxu0 0.0
  %2213 = vmatpush1.msra.mxu0 0.0
  %2214 = vmatprep.subr.mxu0 0.0
  %2215 = vmatpush1.msra.mxu0 0.0
  %2216 = vmatprep.subr.mxu0 0.0
  %2217 = vmatpush1.msra.mxu0 0.0
  %2218 = vmatprep.subr.mxu0 0.0
  %2219 = vmatpush1.msra.mxu0 0.0
  %2220 = vmatprep.subr.mxu0 0.0
  %2221 = vmatpush1.msra.mxu0 0.0
  %2222 = vmatprep.subr.mxu0 0.0
  %2223 = vmatpush1.msra.mxu0 0.0
  %2224 = vmatprep.subr.mxu0 0.0
  %2225 = vmatpush1.msra.mxu0 0.0
  %2226 = vmatprep.subr.mxu0 0.0
  %2227 = vmatpush1.msra.mxu0 0.0
  %2228 = vmatprep.subr.mxu0 0.0
  %2229 = vmatpush1.msra.mxu0 0.0
  %2230 = vmatprep.subr.mxu0 0.0
  %2231 = vmatpush1.msra.mxu0 0.0
  %2232 = vmatprep.subr.mxu0 0.0
  %2233 = vmatpush1.msra.mxu0 0.0
  %2234 = vmatprep.subr.mxu0 0.0
  %2235 = vmatpush1.msra.mxu0 0.0
  %2236 = vmatprep.subr.mxu0 0.0
  %2237 = vmatpush1.msra.mxu0 0.0
  %2238 = vmatprep.subr.mxu0 0.0
  %2239 = vmatpush1.msra.mxu0 0.0
  %2240 = vmatprep.mubr.f32.mxu0 0.0
  %2241 = vmatmul.mubr.f32.gmra.mrb[0].mxu0 %v1786
  %v2242 = vpop.f32.mrb[0].mxu0
  %v2243 = vadd.f32 %v1748, %v2242
  %v2244 = vpop.f32.mrb[0].mxu0
  %v2245 = vadd.f32 %v1752, %v2244
  %2246 = vmatprep.mubr.f32.mxu0 0.0
  %2247 = vmatmul.mubr.f32.gmra.mrb[0].mxu0 %v1789
  %v2248 = vpop.f32.mrb[0].mxu0
  %v2249 = vadd.f32 %v1748, %v2248
  %v2250 = vpop.f32.mrb[0].mxu0
  %v2251 = vadd.f32 %v1752, %v2250
  %2252 = vdwg.mxu0
  %2253 = vmatprep.subr.mxu0 %v1650
  %2254 = vmatpush1.msra.mxu0 %v1649
  %2255 = vmatprep.subr.mxu0 %v1666
  %2256 = vmatpush1.msra.mxu0 %v1665
  %2257 = vmatprep.subr.mxu0 %v1682
  %2258 = vmatpush1.msra.mxu0 %v1681
  %2259 = vmatprep.subr.mxu0 %v1698
  %2260 = vmatpush1.msra.mxu0 %v1697
  %2261 = vmatprep.subr.mxu0 0.0
  %2262 = vmatpush1.msra.mxu0 0.0
  %2263 = vmatprep.subr.mxu0 0.0
  %2264 = vmatpush1.msra.mxu0 0.0
  %2265 = vmatprep.subr.mxu0 0.0
  %2266 = vmatpush1.msra.mxu0 0.0
  %2267 = vmatprep.subr.mxu0 0.0
  %2268 = vmatpush1.msra.mxu0 0.0
  %2269 = vmatprep.subr.mxu0 0.0
  %2270 = vmatpush1.msra.mxu0 0.0
  %2271 = vmatprep.subr.mxu0 0.0
  %2272 = vmatpush1.msra.mxu0 0.0
  %2273 = vmatprep.subr.mxu0 0.0
  %2274 = vmatpush1.msra.mxu0 0.0
  %2275 = vmatprep.subr.mxu0 0.0
  %2276 = vmatpush1.msra.mxu0 0.0
  %2277 = vmatprep.subr.mxu0 0.0
  %2278 = vmatpush1.msra.mxu0 0.0
  %2279 = vmatprep.subr.mxu0 0.0
  %2280 = vmatpush1.msra.mxu0 0.0
  %2281 = vmatprep.subr.mxu0 0.0
  %2282 = vmatpush1.msra.mxu0 0.0
  %2283 = vmatprep.subr.mxu0 0.0
  %2284 = vmatpush1.msra.mxu0 0.0
  %2285 = vmatprep.subr.mxu0 0.0
  %2286 = vmatpush1.msra.mxu0 0.0
  %2287 = vmatprep.subr.mxu0 0.0
  %2288 = vmatpush1.msra.mxu0 0.0
  %2289 = vmatprep.subr.mxu0 0.0
  %2290 = vmatpush1.msra.mxu0 0.0
  %2291 = vmatprep.subr.mxu0 0.0
  %2292 = vmatpush1.msra.mxu0 0.0
  %2293 = vmatprep.subr.mxu0 0.0
  %2294 = vmatpush1.msra.mxu0 0.0
  %2295 = vmatprep.subr.mxu0 0.0
  %2296 = vmatpush1.msra.mxu0 0.0
  %2297 = vmatprep.subr.mxu0 0.0
  %2298 = vmatpush1.msra.mxu0 0.0
  %2299 = vmatprep.subr.mxu0 0.0
  %2300 = vmatpush1.msra.mxu0 0.0
  %2301 = vmatprep.subr.mxu0 0.0
  %2302 = vmatpush1.msra.mxu0 0.0
  %2303 = vmatprep.subr.mxu0 0.0
  %2304 = vmatpush1.msra.mxu0 0.0
  %2305 = vmatprep.subr.mxu0 0.0
  %2306 = vmatpush1.msra.mxu0 0.0
  %2307 = vmatprep.subr.mxu0 0.0
  %2308 = vmatpush1.msra.mxu0 0.0
  %2309 = vmatprep.subr.mxu0 0.0
  %2310 = vmatpush1.msra.mxu0 0.0
  %2311 = vmatprep.subr.mxu0 0.0
  %2312 = vmatpush1.msra.mxu0 0.0
  %2313 = vmatprep.subr.mxu0 0.0
  %2314 = vmatpush1.msra.mxu0 0.0
  %2315 = vmatprep.subr.mxu0 0.0
  %2316 = vmatpush1.msra.mxu0 0.0
  %2317 = vmatprep.mubr.f32.mxu0 0.0
  %2318 = vmatmul.mubr.f32.gmra.mrb[0].mxu0 %v1786
  %v2319 = vpop.f32.mrb[0].mxu0
  %v2320 = vadd.f32 %v1756, %v2319
  %v2321 = vpop.f32.mrb[0].mxu0
  %v2322 = vadd.f32 %v1760, %v2321
  %2323 = vmatprep.mubr.f32.mxu0 0.0
  %2324 = vmatmul.mubr.f32.gmra.mrb[0].mxu0 %v1789
  %v2325 = vpop.f32.mrb[0].mxu0
  %v2326 = vadd.f32 %v1756, %v2325
  %v2327 = vpop.f32.mrb[0].mxu0
  %v2328 = vadd.f32 %v1760, %v2327
  %2329 = vdwg.mxu0
  %2330 = vmatprep.subr.mxu0 %v1652
  %2331 = vmatpush1.msra.mxu0 %v1651
  %2332 = vmatprep.subr.mxu0 %v1668
  %2333 = vmatpush1.msra.mxu0 %v1667
  %2334 = vmatprep.subr.mxu0 %v1684
  %2335 = vmatpush1.msra.mxu0 %v1683
  %2336 = vmatprep.subr.mxu0 %v1700
  %2337 = vmatpush1.msra.mxu0 %v1699
  %2338 = vmatprep.subr.mxu0 0.0
  %2339 = vmatpush1.msra.mxu0 0.0
  %2340 = vmatprep.subr.mxu0 0.0
  %2341 = vmatpush1.msra.mxu0 0.0
  %2342 = vmatprep.subr.mxu0 0.0
  %2343 = vmatpush1.msra.mxu0 0.0
  %2344 = vmatprep.subr.mxu0 0.0
  %2345 = vmatpush1.msra.mxu0 0.0
  %2346 = vmatprep.subr.mxu0 0.0
  %2347 = vmatpush1.msra.mxu0 0.0
  %2348 = vmatprep.subr.mxu0 0.0
  %2349 = vmatpush1.msra.mxu0 0.0
  %2350 = vmatprep.subr.mxu0 0.0
  %2351 = vmatpush1.msra.mxu0 0.0
  %2352 = vmatprep.subr.mxu0 0.0
  %2353 = vmatpush1.msra.mxu0 0.0
  %2354 = vmatprep.subr.mxu0 0.0
  %2355 = vmatpush1.msra.mxu0 0.0
  %2356 = vmatprep.subr.mxu0 0.0
  %2357 = vmatpush1.msra.mxu0 0.0
  %2358 = vmatprep.subr.mxu0 0.0
  %2359 = vmatpush1.msra.mxu0 0.0
  %2360 = vmatprep.subr.mxu0 0.0
  %2361 = vmatpush1.msra.mxu0 0.0
  %2362 = vmatprep.subr.mxu0 0.0
  %2363 = vmatpush1.msra.mxu0 0.0
  %2364 = vmatprep.subr.mxu0 0.0
  %2365 = vmatpush1.msra.mxu0 0.0
  %2366 = vmatprep.subr.mxu0 0.0
  %2367 = vmatpush1.msra.mxu0 0.0
  %2368 = vmatprep.subr.mxu0 0.0
  %2369 = vmatpush1.msra.mxu0 0.0
  %2370 = vmatprep.subr.mxu0 0.0
  %2371 = vmatpush1.msra.mxu0 0.0
  %2372 = vmatprep.subr.mxu0 0.0
  %2373 = vmatpush1.msra.mxu0 0.0
  %2374 = vmatprep.subr.mxu0 0.0
  %2375 = vmatpush1.msra.mxu0 0.0
  %2376 = vmatprep.subr.mxu0 0.0
  %2377 = vmatpush1.msra.mxu0 0.0
  %2378 = vmatprep.subr.mxu0 0.0
  %2379 = vmatpush1.msra.mxu0 0.0
  %2380 = vmatprep.subr.mxu0 0.0
  %2381 = vmatpush1.msra.mxu0 0.0
  %2382 = vmatprep.subr.mxu0 0.0
  %2383 = vmatpush1.msra.mxu0 0.0
  %2384 = vmatprep.subr.mxu0 0.0
  %2385 = vmatpush1.msra.mxu0 0.0
  %2386 = vmatprep.subr.mxu0 0.0
  %2387 = vmatpush1.msra.mxu0 0.0
  %2388 = vmatprep.subr.mxu0 0.0
  %2389 = vmatpush1.msra.mxu0 0.0
  %2390 = vmatprep.subr.mxu0 0.0
  %2391 = vmatpush1.msra.mxu0 0.0
  %2392 = vmatprep.subr.mxu0 0.0
  %2393 = vmatpush1.msra.mxu0 0.0
  %2394 = vmatprep.mubr.f32.mxu0 0.0
  %2395 = vmatmul.mubr.f32.gmra.mrb[0].mxu0 %v1786
  %v2396 = vpop.f32.mrb[0].mxu0
  %v2397 = vadd.f32 %v1764, %v2396
  %v2398 = vpop.f32.mrb[0].mxu0
  %v2399 = vadd.f32 %v1768, %v2398
  %2400 = vmatprep.mubr.f32.mxu0 0.0
  %2401 = vmatmul.mubr.f32.gmra.mrb[0].mxu0 %v1789
  %v2402 = vpop.f32.mrb[0].mxu0
  %v2403 = vadd.f32 %v1764, %v2402
  %v2404 = vpop.f32.mrb[0].mxu0
  %v2405 = vadd.f32 %v1768, %v2404
  %2406 = vdwg.mxu0
  %v2407 = vmax.f32 %v1858, 0.0
  %v2408 = vmax.f32 %v1860, 0.0
  %v2409 = vmax.f32 %v1935, 0.0
  %v2410 = vmax.f32 %v1937, 0.0
  %v2411 = vmax.f32 %v2012, 0.0
  %v2412 = vmax.f32 %v2014, 0.0
  %v2413 = vmax.f32 %v2089, 0.0
  %v2414 = vmax.f32 %v2091, 0.0
  %v2415 = vmax.f32 %v2166, 0.0
  %v2416 = vmax.f32 %v2168, 0.0
  %v2417 = vmax.f32 %v2243, 0.0
  %v2418 = vmax.f32 %v2245, 0.0
  %v2419 = vmax.f32 %v2320, 0.0
  %v2420 = vmax.f32 %v2322, 0.0
  %v2421 = vmax.f32 %v2397, 0.0
  %v2422 = vmax.f32 %v2399, 0.0
  %v2423 = vmax.f32 %v1864, 0.0
  %v2424 = vmax.f32 %v1866, 0.0
  %v2425 = vmax.f32 %v1941, 0.0
  %v2426 = vmax.f32 %v1943, 0.0
  %v2427 = vmax.f32 %v2018, 0.0
  %v2428 = vmax.f32 %v2020, 0.0
  %v2429 = vmax.f32 %v2095, 0.0
  %v2430 = vmax.f32 %v2097, 0.0
  %v2431 = vmax.f32 %v2172, 0.0
  %v2432 = vmax.f32 %v2174, 0.0
  %v2433 = vmax.f32 %v2249, 0.0
  %v2434 = vmax.f32 %v2251, 0.0
  %v2435 = vmax.f32 %v2326, 0.0
  %v2436 = vmax.f32 %v2328, 0.0
  %v2437 = vmax.f32 %v2403, 0.0
  %v2438 = vmax.f32 %v2405, 0.0
  %v2439 = vld [vmem:[%s9] sm:$0xff]
  %v2440 = vld [vmem:[%s9 + $0x8] sm:$0xff]
  %v2441 = vld [vmem:[%s9 + $0x10] sm:$0xff]
  %v2442 = vld [vmem:[%s9 + $0x18] sm:$0xff]
  %v2443 = vld [vmem:[%s9 + $0x20] sm:$0xff]
  %v2444 = vld [vmem:[%s9 + $0x28] sm:$0xff]
  %v2445 = vld [vmem:[%s9 + $0x30] sm:$0xff]
  %v2446 = vld [vmem:[%s9 + $0x38] sm:$0xff]
  %v2447 = vld [vmem:[%s9 + $0x40] sm:$0xff]
  %v2448 = vld [vmem:[%s9 + $0x48] sm:$0xff]
  %v2449 = vld [vmem:[%s9 + $0x50] sm:$0xff]
  %v2450 = vld [vmem:[%s9 + $0x58] sm:$0xff]
  %v2451 = vld [vmem:[%s9 + $0x60] sm:$0xff]
  %v2452 = vld [vmem:[%s9 + $0x68] sm:$0xff]
  %v2453 = vld [vmem:[%s9 + $0x70] sm:$0xff]
  %v2454 = vld [vmem:[%s9 + $0x78] sm:$0xff]
  %v2455 = vld [vmem:[%s9 + $0x80] sm:$0xff]
  %v2456 = vld [vmem:[%s9 + $0x88] sm:$0xff]
  %v2457 = vld [vmem:[%s9 + $0x90] sm:$0xff]
  %v2458 = vld [vmem:[%s9 + $0x98] sm:$0xff]
  %v2459 = vld [vmem:[%s9 + $0xa0] sm:$0xff]
  %v2460 = vld [vmem:[%s9 + $0xa8] sm:$0xff]
  %v2461 = vld [vmem:[%s9 + $0xb0] sm:$0xff]
  %v2462 = vld [vmem:[%s9 + $0xb8] sm:$0xff]
  %v2463 = vld [vmem:[%s9 + $0xc0] sm:$0xff]
  %v2464 = vld [vmem:[%s9 + $0xc8] sm:$0xff]
  %v2465 = vld [vmem:[%s9 + $0xd0] sm:$0xff]
  %v2466 = vld [vmem:[%s9 + $0xd8] sm:$0xff]
  %v2467 = vld [vmem:[%s9 + $0xe0] sm:$0xff]
  %v2468 = vld [vmem:[%s9 + $0xe8] sm:$0xff]
  %v2469 = vld [vmem:[%s9 + $0xf0] sm:$0xff]
  %v2470 = vld [vmem:[%s9 + $0xf8] sm:$0xff]
  %v2471 = vld [vmem:[%s9 + $0x100] sm:$0xff]
  %v2472 = vld [vmem:[%s9 + $0x108] sm:$0xff]
  %v2473 = vld [vmem:[%s9 + $0x110] sm:$0xff]
  %v2474 = vld [vmem:[%s9 + $0x118] sm:$0xff]
  %v2475 = vld [vmem:[%s9 + $0x120] sm:$0xff]
  %v2476 = vld [vmem:[%s9 + $0x128] sm:$0xff]
  %v2477 = vld [vmem:[%s9 + $0x130] sm:$0xff]
  %v2478 = vld [vmem:[%s9 + $0x138] sm:$0xff]
  %v2479 = vld [vmem:[%s9 + $0x140] sm:$0xff]
  %v2480 = vld [vmem:[%s9 + $0x148] sm:$0xff]
  %v2481 = vld [vmem:[%s9 + $0x150] sm:$0xff]
  %v2482 = vld [vmem:[%s9 + $0x158] sm:$0xff]
  %v2483 = vld [vmem:[%s9 + $0x160] sm:$0xff]
  %v2484 = vld [vmem:[%s9 + $0x168] sm:$0xff]
  %v2485 = vld [vmem:[%s9 + $0x170] sm:$0xff]
  %v2486 = vld [vmem:[%s9 + $0x178] sm:$0xff]
  %v2487 = vld [vmem:[%s9 + $0x180] sm:$0xff]
  %v2488 = vld [vmem:[%s9 + $0x188] sm:$0xff]
  %v2489 = vld [vmem:[%s9 + $0x190] sm:$0xff]
  %v2490 = vld [vmem:[%s9 + $0x198] sm:$0xff]
  %v2491 = vld [vmem:[%s9 + $0x1a0] sm:$0xff]
  %v2492 = vld [vmem:[%s9 + $0x1a8] sm:$0xff]
  %v2493 = vld [vmem:[%s9 + $0x1b0] sm:$0xff]
  %v2494 = vld [vmem:[%s9 + $0x1b8] sm:$0xff]
  %v2495 = vld [vmem:[%s9 + $0x1c0] sm:$0xff]
  %v2496 = vld [vmem:[%s9 + $0x1c8] sm:$0xff]
  %v2497 = vld [vmem:[%s9 + $0x1d0] sm:$0xff]
  %v2498 = vld [vmem:[%s9 + $0x1d8] sm:$0xff]
  %v2499 = vld [vmem:[%s9 + $0x1e0] sm:$0xff]
  %v2500 = vld [vmem:[%s9 + $0x1e8] sm:$0xff]
  %v2501 = vld [vmem:[%s9 + $0x1f0] sm:$0xff]
  %v2502 = vld [vmem:[%s9 + $0x1f8] sm:$0xff]
  %v2503 = vld [vmem:[%s9 + $0x200] sm:$0xff]
  %v2504 = vld [vmem:[%s9 + $0x208] sm:$0xff]
  %v2505 = vld [vmem:[%s9 + $0x210] sm:$0xff]
  %v2506 = vld [vmem:[%s9 + $0x218] sm:$0xff]
  %v2507 = vld [vmem:[%s9 + $0x220] sm:$0xff]
  %v2508 = vld [vmem:[%s9 + $0x228] sm:$0xff]
  %v2509 = vld [vmem:[%s9 + $0x230] sm:$0xff]
  %v2510 = vld [vmem:[%s9 + $0x238] sm:$0xff]
  %v2511 = vld [vmem:[%s9 + $0x240] sm:$0xff]
  %v2512 = vld [vmem:[%s9 + $0x248] sm:$0xff]
  %v2513 = vld [vmem:[%s9 + $0x250] sm:$0xff]
  %v2514 = vld [vmem:[%s9 + $0x258] sm:$0xff]
  %v2515 = vld [vmem:[%s9 + $0x260] sm:$0xff]
  %v2516 = vld [vmem:[%s9 + $0x268] sm:$0xff]
  %v2517 = vld [vmem:[%s9 + $0x270] sm:$0xff]
  %v2518 = vld [vmem:[%s9 + $0x278] sm:$0xff]
  %v2519 = vld [vmem:[%s9 + $0x280] sm:$0xff]
  %v2520 = vld [vmem:[%s9 + $0x288] sm:$0xff]
  %v2521 = vld [vmem:[%s9 + $0x290] sm:$0xff]
  %v2522 = vld [vmem:[%s9 + $0x298] sm:$0xff]
  %v2523 = vld [vmem:[%s9 + $0x2a0] sm:$0xff]
  %v2524 = vld [vmem:[%s9 + $0x2a8] sm:$0xff]
  %v2525 = vld [vmem:[%s9 + $0x2b0] sm:$0xff]
  %v2526 = vld [vmem:[%s9 + $0x2b8] sm:$0xff]
  %v2527 = vld [vmem:[%s9 + $0x2c0] sm:$0xff]
  %v2528 = vld [vmem:[%s9 + $0x2c8] sm:$0xff]
  %v2529 = vld [vmem:[%s9 + $0x2d0] sm:$0xff]
  %v2530 = vld [vmem:[%s9 + $0x2d8] sm:$0xff]
  %v2531 = vld [vmem:[%s9 + $0x2e0] sm:$0xff]
  %v2532 = vld [vmem:[%s9 + $0x2e8] sm:$0xff]
  %v2533 = vld [vmem:[%s9 + $0x2f0] sm:$0xff]
  %v2534 = vld [vmem:[%s9 + $0x2f8] sm:$0xff]
  %v2535 = vld [vmem:[%s9 + $0x300] sm:$0xff]
  %v2536 = vld [vmem:[%s9 + $0x308] sm:$0xff]
  %v2537 = vld [vmem:[%s9 + $0x310] sm:$0xff]
  %v2538 = vld [vmem:[%s9 + $0x318] sm:$0xff]
  %v2539 = vld [vmem:[%s9 + $0x320] sm:$0xff]
  %v2540 = vld [vmem:[%s9 + $0x328] sm:$0xff]
  %v2541 = vld [vmem:[%s9 + $0x330] sm:$0xff]
  %v2542 = vld [vmem:[%s9 + $0x338] sm:$0xff]
  %v2543 = vld [vmem:[%s9 + $0x340] sm:$0xff]
  %v2544 = vld [vmem:[%s9 + $0x348] sm:$0xff]
  %v2545 = vld [vmem:[%s9 + $0x350] sm:$0xff]
  %v2546 = vld [vmem:[%s9 + $0x358] sm:$0xff]
  %v2547 = vld [vmem:[%s9 + $0x360] sm:$0xff]
  %v2548 = vld [vmem:[%s9 + $0x368] sm:$0xff]
  %v2549 = vld [vmem:[%s9 + $0x370] sm:$0xff]
  %v2550 = vld [vmem:[%s9 + $0x378] sm:$0xff]
  %v2551 = vld [vmem:[%s9 + $0x380] sm:$0xff]
  %v2552 = vld [vmem:[%s9 + $0x388] sm:$0xff]
  %v2553 = vld [vmem:[%s9 + $0x390] sm:$0xff]
  %v2554 = vld [vmem:[%s9 + $0x398] sm:$0xff]
  %v2555 = vld [vmem:[%s9 + $0x3a0] sm:$0xff]
  %v2556 = vld [vmem:[%s9 + $0x3a8] sm:$0xff]
  %v2557 = vld [vmem:[%s9 + $0x3b0] sm:$0xff]
  %v2558 = vld [vmem:[%s9 + $0x3b8] sm:$0xff]
  %v2559 = vld [vmem:[%s9 + $0x3c0] sm:$0xff]
  %v2560 = vld [vmem:[%s9 + $0x3c8] sm:$0xff]
  %v2561 = vld [vmem:[%s9 + $0x3d0] sm:$0xff]
  %v2562 = vld [vmem:[%s9 + $0x3d8] sm:$0xff]
  %v2563 = vld [vmem:[%s9 + $0x3e0] sm:$0xff]
  %v2564 = vld [vmem:[%s9 + $0x3e8] sm:$0xff]
  %v2565 = vld [vmem:[%s9 + $0x3f0] sm:$0xff]
  %v2566 = vld [vmem:[%s9 + $0x3f8] sm:$0xff]
  %v2567 = vld [vmem:[%s9 + $0x400] sm:$0xff]
  %v2568 = vld [vmem:[%s9 + $0x408] sm:$0xff]
  %v2569 = vld [vmem:[%s9 + $0x410] sm:$0xff]
  %v2570 = vld [vmem:[%s9 + $0x418] sm:$0xff]
  %v2571 = vld [vmem:[%s9 + $0x420] sm:$0xff]
  %v2572 = vld [vmem:[%s9 + $0x428] sm:$0xff]
  %v2573 = vld [vmem:[%s9 + $0x430] sm:$0xff]
  %v2574 = vld [vmem:[%s9 + $0x438] sm:$0xff]
  %v2575 = vld [vmem:[%s9 + $0x440] sm:$0xff]
  %v2576 = vld [vmem:[%s9 + $0x448] sm:$0xff]
  %v2577 = vld [vmem:[%s9 + $0x450] sm:$0xff]
  %v2578 = vld [vmem:[%s9 + $0x458] sm:$0xff]
  %v2579 = vld [vmem:[%s9 + $0x460] sm:$0xff]
  %v2580 = vld [vmem:[%s9 + $0x468] sm:$0xff]
  %v2581 = vld [vmem:[%s9 + $0x470] sm:$0xff]
  %v2582 = vld [vmem:[%s9 + $0x478] sm:$0xff]
  %v2583 = vld [vmem:[%s9 + $0x480] sm:$0xff]
  %v2584 = vld [vmem:[%s9 + $0x488] sm:$0xff]
  %v2585 = vld [vmem:[%s9 + $0x490] sm:$0xff]
  %v2586 = vld [vmem:[%s9 + $0x498] sm:$0xff]
  %v2587 = vld [vmem:[%s9 + $0x4a0] sm:$0xff]
  %v2588 = vld [vmem:[%s9 + $0x4a8] sm:$0xff]
  %v2589 = vld [vmem:[%s9 + $0x4b0] sm:$0xff]
  %v2590 = vld [vmem:[%s9 + $0x4b8] sm:$0xff]
  %v2591 = vld [vmem:[%s9 + $0x4c0] sm:$0xff]
  %v2592 = vld [vmem:[%s9 + $0x4c8] sm:$0xff]
  %v2593 = vld [vmem:[%s9 + $0x4d0] sm:$0xff]
  %v2594 = vld [vmem:[%s9 + $0x4d8] sm:$0xff]
  %v2595 = vld [vmem:[%s9 + $0x4e0] sm:$0xff]
  %v2596 = vld [vmem:[%s9 + $0x4e8] sm:$0xff]
  %v2597 = vld [vmem:[%s9 + $0x4f0] sm:$0xff]
  %v2598 = vld [vmem:[%s9 + $0x4f8] sm:$0xff]
  %v2599 = vld [vmem:[%s9 + $0x500] sm:$0xff]
  %v2600 = vld [vmem:[%s9 + $0x508] sm:$0xff]
  %v2601 = vld [vmem:[%s9 + $0x510] sm:$0xff]
  %v2602 = vld [vmem:[%s9 + $0x518] sm:$0xff]
  %v2603 = vld [vmem:[%s9 + $0x520] sm:$0xff]
  %v2604 = vld [vmem:[%s9 + $0x528] sm:$0xff]
  %v2605 = vld [vmem:[%s9 + $0x530] sm:$0xff]
  %v2606 = vld [vmem:[%s9 + $0x538] sm:$0xff]
  %v2607 = vld [vmem:[%s9 + $0x540] sm:$0xff]
  %v2608 = vld [vmem:[%s9 + $0x548] sm:$0xff]
  %v2609 = vld [vmem:[%s9 + $0x550] sm:$0xff]
  %v2610 = vld [vmem:[%s9 + $0x558] sm:$0xff]
  %v2611 = vld [vmem:[%s9 + $0x560] sm:$0xff]
  %v2612 = vld [vmem:[%s9 + $0x568] sm:$0xff]
  %v2613 = vld [vmem:[%s9 + $0x570] sm:$0xff]
  %v2614 = vld [vmem:[%s9 + $0x578] sm:$0xff]
  %v2615 = vld [vmem:[%s9 + $0x580] sm:$0xff]
  %v2616 = vld [vmem:[%s9 + $0x588] sm:$0xff]
  %v2617 = vld [vmem:[%s9 + $0x590] sm:$0xff]
  %v2618 = vld [vmem:[%s9 + $0x598] sm:$0xff]
  %v2619 = vld [vmem:[%s9 + $0x5a0] sm:$0xff]
  %v2620 = vld [vmem:[%s9 + $0x5a8] sm:$0xff]
  %v2621 = vld [vmem:[%s9 + $0x5b0] sm:$0xff]
  %v2622 = vld [vmem:[%s9 + $0x5b8] sm:$0xff]
  %v2623 = vld [vmem:[%s9 + $0x5c0] sm:$0xff]
  %v2624 = vld [vmem:[%s9 + $0x5c8] sm:$0xff]
  %v2625 = vld [vmem:[%s9 + $0x5d0] sm:$0xff]
  %v2626 = vld [vmem:[%s9 + $0x5d8] sm:$0xff]
  %v2627 = vld [vmem:[%s9 + $0x5e0] sm:$0xff]
  %v2628 = vld [vmem:[%s9 + $0x5e8] sm:$0xff]
  %v2629 = vld [vmem:[%s9 + $0x5f0] sm:$0xff]
  %v2630 = vld [vmem:[%s9 + $0x5f8] sm:$0xff]
  %v2631 = vld [vmem:[%s9 + $0x600] sm:$0xff]
  %v2632 = vld [vmem:[%s9 + $0x608] sm:$0xff]
  %v2633 = vld [vmem:[%s9 + $0x610] sm:$0xff]
  %v2634 = vld [vmem:[%s9 + $0x618] sm:$0xff]
  %v2635 = vld [vmem:[%s9 + $0x620] sm:$0xff]
  %v2636 = vld [vmem:[%s9 + $0x628] sm:$0xff]
  %v2637 = vld [vmem:[%s9 + $0x630] sm:$0xff]
  %v2638 = vld [vmem:[%s9 + $0x638] sm:$0xff]
  %v2639 = vld [vmem:[%s9 + $0x640] sm:$0xff]
  %v2640 = vld [vmem:[%s9 + $0x648] sm:$0xff]
  %v2641 = vld [vmem:[%s9 + $0x650] sm:$0xff]
  %v2642 = vld [vmem:[%s9 + $0x658] sm:$0xff]
  %v2643 = vld [vmem:[%s9 + $0x660] sm:$0xff]
  %v2644 = vld [vmem:[%s9 + $0x668] sm:$0xff]
  %v2645 = vld [vmem:[%s9 + $0x670] sm:$0xff]
  %v2646 = vld [vmem:[%s9 + $0x678] sm:$0xff]
  %v2647 = vld [vmem:[%s9 + $0x680] sm:$0xff]
  %v2648 = vld [vmem:[%s9 + $0x688] sm:$0xff]
  %v2649 = vld [vmem:[%s9 + $0x690] sm:$0xff]
  %v2650 = vld [vmem:[%s9 + $0x698] sm:$0xff]
  %v2651 = vld [vmem:[%s9 + $0x6a0] sm:$0xff]
  %v2652 = vld [vmem:[%s9 + $0x6a8] sm:$0xff]
  %v2653 = vld [vmem:[%s9 + $0x6b0] sm:$0xff]
  %v2654 = vld [vmem:[%s9 + $0x6b8] sm:$0xff]
  %v2655 = vld [vmem:[%s9 + $0x6c0] sm:$0xff]
  %v2656 = vld [vmem:[%s9 + $0x6c8] sm:$0xff]
  %v2657 = vld [vmem:[%s9 + $0x6d0] sm:$0xff]
  %v2658 = vld [vmem:[%s9 + $0x6d8] sm:$0xff]
  %v2659 = vld [vmem:[%s9 + $0x6e0] sm:$0xff]
  %v2660 = vld [vmem:[%s9 + $0x6e8] sm:$0xff]
  %v2661 = vld [vmem:[%s9 + $0x6f0] sm:$0xff]
  %v2662 = vld [vmem:[%s9 + $0x6f8] sm:$0xff]
  %v2663 = vld [vmem:[%s9 + $0x700] sm:$0xff]
  %v2664 = vld [vmem:[%s9 + $0x708] sm:$0xff]
  %v2665 = vld [vmem:[%s9 + $0x710] sm:$0xff]
  %v2666 = vld [vmem:[%s9 + $0x718] sm:$0xff]
  %v2667 = vld [vmem:[%s9 + $0x720] sm:$0xff]
  %v2668 = vld [vmem:[%s9 + $0x728] sm:$0xff]
  %v2669 = vld [vmem:[%s9 + $0x730] sm:$0xff]
  %v2670 = vld [vmem:[%s9 + $0x738] sm:$0xff]
  %v2671 = vld [vmem:[%s9 + $0x740] sm:$0xff]
  %v2672 = vld [vmem:[%s9 + $0x748] sm:$0xff]
  %v2673 = vld [vmem:[%s9 + $0x750] sm:$0xff]
  %v2674 = vld [vmem:[%s9 + $0x758] sm:$0xff]
  %v2675 = vld [vmem:[%s9 + $0x760] sm:$0xff]
  %v2676 = vld [vmem:[%s9 + $0x768] sm:$0xff]
  %v2677 = vld [vmem:[%s9 + $0x770] sm:$0xff]
  %v2678 = vld [vmem:[%s9 + $0x778] sm:$0xff]
  %v2679 = vld [vmem:[%s9 + $0x780] sm:$0xff]
  %v2680 = vld [vmem:[%s9 + $0x788] sm:$0xff]
  %v2681 = vld [vmem:[%s9 + $0x790] sm:$0xff]
  %v2682 = vld [vmem:[%s9 + $0x798] sm:$0xff]
  %v2683 = vld [vmem:[%s9 + $0x7a0] sm:$0xff]
  %v2684 = vld [vmem:[%s9 + $0x7a8] sm:$0xff]
  %v2685 = vld [vmem:[%s9 + $0x7b0] sm:$0xff]
  %v2686 = vld [vmem:[%s9 + $0x7b8] sm:$0xff]
  %v2687 = vld [vmem:[%s9 + $0x7c0] sm:$0xff]
  %v2688 = vld [vmem:[%s9 + $0x7c8] sm:$0xff]
  %v2689 = vld [vmem:[%s9 + $0x7d0] sm:$0xff]
  %v2690 = vld [vmem:[%s9 + $0x7d8] sm:$0xff]
  %v2691 = vld [vmem:[%s9 + $0x7e0] sm:$0xff]
  %v2692 = vld [vmem:[%s9 + $0x7e8] sm:$0xff]
  %v2693 = vld [vmem:[%s9 + $0x7f0] sm:$0xff]
  %v2694 = vld [vmem:[%s9 + $0x7f8] sm:$0xff]
  %v2695 = vld [vmem:[%s10] sm:$0x1]
  %v2697 = vlaneseq
  %v2698 = vshrl.u32 %v2697, 7
  %v2699 = vsub.s32 0, %v2698
  %v2700 = vrot.slane %v2695, %v2699
  %2702 = vmatprep.subr.mxu0 0.0
  %2703 = vmatpush1.msra.mxu0 %v2439
  %2704 = vmatprep.subr.mxu0 0.0
  %2705 = vmatpush1.msra.mxu0 %v2440
  %2706 = vmatprep.subr.mxu0 0.0
  %2707 = vmatpush1.msra.mxu0 %v2441
  %2708 = vmatprep.subr.mxu0 0.0
  %2709 = vmatpush1.msra.mxu0 %v2442
  %2710 = vmatprep.subr.mxu0 0.0
  %2711 = vmatpush1.msra.mxu0 %v2443
  %2712 = vmatprep.subr.mxu0 0.0
  %2713 = vmatpush1.msra.mxu0 %v2444
  %2714 = vmatprep.subr.mxu0 0.0
  %2715 = vmatpush1.msra.mxu0 %v2445
  %2716 = vmatprep.subr.mxu0 0.0
  %2717 = vmatpush1.msra.mxu0 %v2446
  %2718 = vmatprep.subr.mxu0 0.0
  %2719 = vmatpush1.msra.mxu0 %v2447
  %2720 = vmatprep.subr.mxu0 0.0
  %2721 = vmatpush1.msra.mxu0 %v2448
  %2722 = vmatprep.subr.mxu0 0.0
  %2723 = vmatpush1.msra.mxu0 %v2449
  %2724 = vmatprep.subr.mxu0 0.0
  %2725 = vmatpush1.msra.mxu0 %v2450
  %2726 = vmatprep.subr.mxu0 0.0
  %2727 = vmatpush1.msra.mxu0 %v2451
  %2728 = vmatprep.subr.mxu0 0.0
  %2729 = vmatpush1.msra.mxu0 %v2452
  %2730 = vmatprep.subr.mxu0 0.0
  %2731 = vmatpush1.msra.mxu0 %v2453
  %2732 = vmatprep.subr.mxu0 0.0
  %2733 = vmatpush1.msra.mxu0 %v2454
  %2734 = vmatprep.subr.mxu0 0.0
  %2735 = vmatpush1.msra.mxu0 %v2455
  %2736 = vmatprep.subr.mxu0 0.0
  %2737 = vmatpush1.msra.mxu0 %v2456
  %2738 = vmatprep.subr.mxu0 0.0
  %2739 = vmatpush1.msra.mxu0 %v2457
  %2740 = vmatprep.subr.mxu0 0.0
  %2741 = vmatpush1.msra.mxu0 %v2458
  %2742 = vmatprep.subr.mxu0 0.0
  %2743 = vmatpush1.msra.mxu0 %v2459
  %2744 = vmatprep.subr.mxu0 0.0
  %2745 = vmatpush1.msra.mxu0 %v2460
  %2746 = vmatprep.subr.mxu0 0.0
  %2747 = vmatpush1.msra.mxu0 %v2461
  %2748 = vmatprep.subr.mxu0 0.0
  %2749 = vmatpush1.msra.mxu0 %v2462
  %2750 = vmatprep.subr.mxu0 0.0
  %2751 = vmatpush1.msra.mxu0 %v2463
  %2752 = vmatprep.subr.mxu0 0.0
  %2753 = vmatpush1.msra.mxu0 %v2464
  %2754 = vmatprep.subr.mxu0 0.0
  %2755 = vmatpush1.msra.mxu0 %v2465
  %2756 = vmatprep.subr.mxu0 0.0
  %2757 = vmatpush1.msra.mxu0 %v2466
  %2758 = vmatprep.subr.mxu0 0.0
  %2759 = vmatpush1.msra.mxu0 %v2467
  %2760 = vmatprep.subr.mxu0 0.0
  %2761 = vmatpush1.msra.mxu0 %v2468
  %2762 = vmatprep.subr.mxu0 0.0
  %2763 = vmatpush1.msra.mxu0 %v2469
  %2764 = vmatprep.subr.mxu0 0.0
  %2765 = vmatpush1.msra.mxu0 %v2470
  %2766 = vmatprep.mubr.f32.mxu0 %v2408
  %2767 = vmatmul.mubr.f32.gmra.mrb[0].mxu0 %v2407
  %v2768 = vpop.f32.mrb[0].mxu0
  %v2769 = vadd.f32 %v2700, %v2768
  %v2770 = vpop.f32.mrb[0].mxu0
  %2771 = vmatprep.mubr.f32.mxu0 %v2424
  %2772 = vmatmul.mubr.f32.gmra.mrb[0].mxu0 %v2423
  %v2773 = vpop.f32.mrb[0].mxu0
  %v2774 = vadd.f32 %v2700, %v2773
  %v2775 = vpop.f32.mrb[0].mxu0
  %2776 = vdwg.mxu0
  %2777 = vmatprep.subr.mxu0 0.0
  %2778 = vmatpush1.msra.mxu0 %v2471
  %2779 = vmatprep.subr.mxu0 0.0
  %2780 = vmatpush1.msra.mxu0 %v2472
  %2781 = vmatprep.subr.mxu0 0.0
  %2782 = vmatpush1.msra.mxu0 %v2473
  %2783 = vmatprep.subr.mxu0 0.0
  %2784 = vmatpush1.msra.mxu0 %v2474
  %2785 = vmatprep.subr.mxu0 0.0
  %2786 = vmatpush1.msra.mxu0 %v2475
  %2787 = vmatprep.subr.mxu0 0.0
  %2788 = vmatpush1.msra.mxu0 %v2476
  %2789 = vmatprep.subr.mxu0 0.0
  %2790 = vmatpush1.msra.mxu0 %v2477
  %2791 = vmatprep.subr.mxu0 0.0
  %2792 = vmatpush1.msra.mxu0 %v2478
  %2793 = vmatprep.subr.mxu0 0.0
  %2794 = vmatpush1.msra.mxu0 %v2479
  %2795 = vmatprep.subr.mxu0 0.0
  %2796 = vmatpush1.msra.mxu0 %v2480
  %2797 = vmatprep.subr.mxu0 0.0
  %2798 = vmatpush1.msra.mxu0 %v2481
  %2799 = vmatprep.subr.mxu0 0.0
  %2800 = vmatpush1.msra.mxu0 %v2482
  %2801 = vmatprep.subr.mxu0 0.0
  %2802 = vmatpush1.msra.mxu0 %v2483
  %2803 = vmatprep.subr.mxu0 0.0
  %2804 = vmatpush1.msra.mxu0 %v2484
  %2805 = vmatprep.subr.mxu0 0.0
  %2806 = vmatpush1.msra.mxu0 %v2485
  %2807 = vmatprep.subr.mxu0 0.0
  %2808 = vmatpush1.msra.mxu0 %v2486
  %2809 = vmatprep.subr.mxu0 0.0
  %2810 = vmatpush1.msra.mxu0 %v2487
  %2811 = vmatprep.subr.mxu0 0.0
  %2812 = vmatpush1.msra.mxu0 %v2488
  %2813 = vmatprep.subr.mxu0 0.0
  %2814 = vmatpush1.msra.mxu0 %v2489
  %2815 = vmatprep.subr.mxu0 0.0
  %2816 = vmatpush1.msra.mxu0 %v2490
  %2817 = vmatprep.subr.mxu0 0.0
  %2818 = vmatpush1.msra.mxu0 %v2491
  %2819 = vmatprep.subr.mxu0 0.0
  %2820 = vmatpush1.msra.mxu0 %v2492
  %2821 = vmatprep.subr.mxu0 0.0
  %2822 = vmatpush1.msra.mxu0 %v2493
  %2823 = vmatprep.subr.mxu0 0.0
  %2824 = vmatpush1.msra.mxu0 %v2494
  %2825 = vmatprep.subr.mxu0 0.0
  %2826 = vmatpush1.msra.mxu0 %v2495
  %2827 = vmatprep.subr.mxu0 0.0
  %2828 = vmatpush1.msra.mxu0 %v2496
  %2829 = vmatprep.subr.mxu0 0.0
  %2830 = vmatpush1.msra.mxu0 %v2497
  %2831 = vmatprep.subr.mxu0 0.0
  %2832 = vmatpush1.msra.mxu0 %v2498
  %2833 = vmatprep.subr.mxu0 0.0
  %2834 = vmatpush1.msra.mxu0 %v2499
  %2835 = vmatprep.subr.mxu0 0.0
  %2836 = vmatpush1.msra.mxu0 %v2500
  %2837 = vmatprep.subr.mxu0 0.0
  %2838 = vmatpush1.msra.mxu0 %v2501
  %2839 = vmatprep.subr.mxu0 0.0
  %2840 = vmatpush1.msra.mxu0 %v2502
  %2841 = vmatprep.mubr.f32.mxu0 %v2410
  %2842 = vmatmul.mubr.f32.gmra.mrb[0].mxu0 %v2409
  %v2843 = vpop.f32.mrb[0].mxu0
  %v2844 = vadd.f32 %v2769, %v2843
  %v2845 = vpop.f32.mrb[0].mxu0
  %2846 = vmatprep.mubr.f32.mxu0 %v2426
  %2847 = vmatmul.mubr.f32.gmra.mrb[0].mxu0 %v2425
  %v2848 = vpop.f32.mrb[0].mxu0
  %v2849 = vadd.f32 %v2774, %v2848
  %v2850 = vpop.f32.mrb[0].mxu0
  %2851 = vdwg.mxu0
  %2852 = vmatprep.subr.mxu0 0.0
  %2853 = vmatpush1.msra.mxu0 %v2503
  %2854 = vmatprep.subr.mxu0 0.0
  %2855 = vmatpush1.msra.mxu0 %v2504
  %2856 = vmatprep.subr.mxu0 0.0
  %2857 = vmatpush1.msra.mxu0 %v2505
  %2858 = vmatprep.subr.mxu0 0.0
  %2859 = vmatpush1.msra.mxu0 %v2506
  %2860 = vmatprep.subr.mxu0 0.0
  %2861 = vmatpush1.msra.mxu0 %v2507
  %2862 = vmatprep.subr.mxu0 0.0
  %2863 = vmatpush1.msra.mxu0 %v2508
  %2864 = vmatprep.subr.mxu0 0.0
  %2865 = vmatpush1.msra.mxu0 %v2509
  %2866 = vmatprep.subr.mxu0 0.0
  %2867 = vmatpush1.msra.mxu0 %v2510
  %2868 = vmatprep.subr.mxu0 0.0
  %2869 = vmatpush1.msra.mxu0 %v2511
  %2870 = vmatprep.subr.mxu0 0.0
  %2871 = vmatpush1.msra.mxu0 %v2512
  %2872 = vmatprep.subr.mxu0 0.0
  %2873 = vmatpush1.msra.mxu0 %v2513
  %2874 = vmatprep.subr.mxu0 0.0
  %2875 = vmatpush1.msra.mxu0 %v2514
  %2876 = vmatprep.subr.mxu0 0.0
  %2877 = vmatpush1.msra.mxu0 %v2515
  %2878 = vmatprep.subr.mxu0 0.0
  %2879 = vmatpush1.msra.mxu0 %v2516
  %2880 = vmatprep.subr.mxu0 0.0
  %2881 = vmatpush1.msra.mxu0 %v2517
  %2882 = vmatprep.subr.mxu0 0.0
  %2883 = vmatpush1.msra.mxu0 %v2518
  %2884 = vmatprep.subr.mxu0 0.0
  %2885 = vmatpush1.msra.mxu0 %v2519
  %2886 = vmatprep.subr.mxu0 0.0
  %2887 = vmatpush1.msra.mxu0 %v2520
  %2888 = vmatprep.subr.mxu0 0.0
  %2889 = vmatpush1.msra.mxu0 %v2521
  %2890 = vmatprep.subr.mxu0 0.0
  %2891 = vmatpush1.msra.mxu0 %v2522
  %2892 = vmatprep.subr.mxu0 0.0
  %2893 = vmatpush1.msra.mxu0 %v2523
  %2894 = vmatprep.subr.mxu0 0.0
  %2895 = vmatpush1.msra.mxu0 %v2524
  %2896 = vmatprep.subr.mxu0 0.0
  %2897 = vmatpush1.msra.mxu0 %v2525
  %2898 = vmatprep.subr.mxu0 0.0
  %2899 = vmatpush1.msra.mxu0 %v2526
  %2900 = vmatprep.subr.mxu0 0.0
  %2901 = vmatpush1.msra.mxu0 %v2527
  %2902 = vmatprep.subr.mxu0 0.0
  %2903 = vmatpush1.msra.mxu0 %v2528
  %2904 = vmatprep.subr.mxu0 0.0
  %2905 = vmatpush1.msra.mxu0 %v2529
  %2906 = vmatprep.subr.mxu0 0.0
  %2907 = vmatpush1.msra.mxu0 %v2530
  %2908 = vmatprep.subr.mxu0 0.0
  %2909 = vmatpush1.msra.mxu0 %v2531
  %2910 = vmatprep.subr.mxu0 0.0
  %2911 = vmatpush1.msra.mxu0 %v2532
  %2912 = vmatprep.subr.mxu0 0.0
  %2913 = vmatpush1.msra.mxu0 %v2533
  %2914 = vmatprep.subr.mxu0 0.0
  %2915 = vmatpush1.msra.mxu0 %v2534
  %2916 = vmatprep.mubr.f32.mxu0 %v2412
  %2917 = vmatmul.mubr.f32.gmra.mrb[0].mxu0 %v2411
  %v2918 = vpop.f32.mrb[0].mxu0
  %v2919 = vadd.f32 %v2844, %v2918
  %v2920 = vpop.f32.mrb[0].mxu0
  %2921 = vmatprep.mubr.f32.mxu0 %v2428
  %2922 = vmatmul.mubr.f32.gmra.mrb[0].mxu0 %v2427
  %v2923 = vpop.f32.mrb[0].mxu0
  %v2924 = vadd.f32 %v2849, %v2923
  %v2925 = vpop.f32.mrb[0].mxu0
  %2926 = vdwg.mxu0
  %2927 = vmatprep.subr.mxu0 0.0
  %2928 = vmatpush1.msra.mxu0 %v2535
  %2929 = vmatprep.subr.mxu0 0.0
  %2930 = vmatpush1.msra.mxu0 %v2536
  %2931 = vmatprep.subr.mxu0 0.0
  %2932 = vmatpush1.msra.mxu0 %v2537
  %2933 = vmatprep.subr.mxu0 0.0
  %2934 = vmatpush1.msra.mxu0 %v2538
  %2935 = vmatprep.subr.mxu0 0.0
  %2936 = vmatpush1.msra.mxu0 %v2539
  %2937 = vmatprep.subr.mxu0 0.0
  %2938 = vmatpush1.msra.mxu0 %v2540
  %2939 = vmatprep.subr.mxu0 0.0
  %2940 = vmatpush1.msra.mxu0 %v2541
  %2941 = vmatprep.subr.mxu0 0.0
  %2942 = vmatpush1.msra.mxu0 %v2542
  %2943 = vmatprep.subr.mxu0 0.0
  %2944 = vmatpush1.msra.mxu0 %v2543
  %2945 = vmatprep.subr.mxu0 0.0
  %2946 = vmatpush1.msra.mxu0 %v2544
  %2947 = vmatprep.subr.mxu0 0.0
  %2948 = vmatpush1.msra.mxu0 %v2545
  %2949 = vmatprep.subr.mxu0 0.0
  %2950 = vmatpush1.msra.mxu0 %v2546
  %2951 = vmatprep.subr.mxu0 0.0
  %2952 = vmatpush1.msra.mxu0 %v2547
  %2953 = vmatprep.subr.mxu0 0.0
  %2954 = vmatpush1.msra.mxu0 %v2548
  %2955 = vmatprep.subr.mxu0 0.0
  %2956 = vmatpush1.msra.mxu0 %v2549
  %2957 = vmatprep.subr.mxu0 0.0
  %2958 = vmatpush1.msra.mxu0 %v2550
  %2959 = vmatprep.subr.mxu0 0.0
  %2960 = vmatpush1.msra.mxu0 %v2551
  %2961 = vmatprep.subr.mxu0 0.0
  %2962 = vmatpush1.msra.mxu0 %v2552
  %2963 = vmatprep.subr.mxu0 0.0
  %2964 = vmatpush1.msra.mxu0 %v2553
  %2965 = vmatprep.subr.mxu0 0.0
  %2966 = vmatpush1.msra.mxu0 %v2554
  %2967 = vmatprep.subr.mxu0 0.0
  %2968 = vmatpush1.msra.mxu0 %v2555
  %2969 = vmatprep.subr.mxu0 0.0
  %2970 = vmatpush1.msra.mxu0 %v2556
  %2971 = vmatprep.subr.mxu0 0.0
  %2972 = vmatpush1.msra.mxu0 %v2557
  %2973 = vmatprep.subr.mxu0 0.0
  %2974 = vmatpush1.msra.mxu0 %v2558
  %2975 = vmatprep.subr.mxu0 0.0
  %2976 = vmatpush1.msra.mxu0 %v2559
  %2977 = vmatprep.subr.mxu0 0.0
  %2978 = vmatpush1.msra.mxu0 %v2560
  %2979 = vmatprep.subr.mxu0 0.0
  %2980 = vmatpush1.msra.mxu0 %v2561
  %2981 = vmatprep.subr.mxu0 0.0
  %2982 = vmatpush1.msra.mxu0 %v2562
  %2983 = vmatprep.subr.mxu0 0.0
  %2984 = vmatpush1.msra.mxu0 %v2563
  %2985 = vmatprep.subr.mxu0 0.0
  %2986 = vmatpush1.msra.mxu0 %v2564
  %2987 = vmatprep.subr.mxu0 0.0
  %2988 = vmatpush1.msra.mxu0 %v2565
  %2989 = vmatprep.subr.mxu0 0.0
  %2990 = vmatpush1.msra.mxu0 %v2566
  %2991 = vmatprep.mubr.f32.mxu0 %v2414
  %2992 = vmatmul.mubr.f32.gmra.mrb[0].mxu0 %v2413
  %v2993 = vpop.f32.mrb[0].mxu0
  %v2994 = vadd.f32 %v2919, %v2993
  %v2995 = vpop.f32.mrb[0].mxu0
  %2996 = vmatprep.mubr.f32.mxu0 %v2430
  %2997 = vmatmul.mubr.f32.gmra.mrb[0].mxu0 %v2429
  %v2998 = vpop.f32.mrb[0].mxu0
  %v2999 = vadd.f32 %v2924, %v2998
  %v3000 = vpop.f32.mrb[0].mxu0
  %3001 = vdwg.mxu0
  %3002 = vmatprep.subr.mxu0 0.0
  %3003 = vmatpush1.msra.mxu0 %v2567
  %3004 = vmatprep.subr.mxu0 0.0
  %3005 = vmatpush1.msra.mxu0 %v2568
  %3006 = vmatprep.subr.mxu0 0.0
  %3007 = vmatpush1.msra.mxu0 %v2569
  %3008 = vmatprep.subr.mxu0 0.0
  %3009 = vmatpush1.msra.mxu0 %v2570
  %3010 = vmatprep.subr.mxu0 0.0
  %3011 = vmatpush1.msra.mxu0 %v2571
  %3012 = vmatprep.subr.mxu0 0.0
  %3013 = vmatpush1.msra.mxu0 %v2572
  %3014 = vmatprep.subr.mxu0 0.0
  %3015 = vmatpush1.msra.mxu0 %v2573
  %3016 = vmatprep.subr.mxu0 0.0
  %3017 = vmatpush1.msra.mxu0 %v2574
  %3018 = vmatprep.subr.mxu0 0.0
  %3019 = vmatpush1.msra.mxu0 %v2575
  %3020 = vmatprep.subr.mxu0 0.0
  %3021 = vmatpush1.msra.mxu0 %v2576
  %3022 = vmatprep.subr.mxu0 0.0
  %3023 = vmatpush1.msra.mxu0 %v2577
  %3024 = vmatprep.subr.mxu0 0.0
  %3025 = vmatpush1.msra.mxu0 %v2578
  %3026 = vmatprep.subr.mxu0 0.0
  %3027 = vmatpush1.msra.mxu0 %v2579
  %3028 = vmatprep.subr.mxu0 0.0
  %3029 = vmatpush1.msra.mxu0 %v2580
  %3030 = vmatprep.subr.mxu0 0.0
  %3031 = vmatpush1.msra.mxu0 %v2581
  %3032 = vmatprep.subr.mxu0 0.0
  %3033 = vmatpush1.msra.mxu0 %v2582
  %3034 = vmatprep.subr.mxu0 0.0
  %3035 = vmatpush1.msra.mxu0 %v2583
  %3036 = vmatprep.subr.mxu0 0.0
  %3037 = vmatpush1.msra.mxu0 %v2584
  %3038 = vmatprep.subr.mxu0 0.0
  %3039 = vmatpush1.msra.mxu0 %v2585
  %3040 = vmatprep.subr.mxu0 0.0
  %3041 = vmatpush1.msra.mxu0 %v2586
  %3042 = vmatprep.subr.mxu0 0.0
  %3043 = vmatpush1.msra.mxu0 %v2587
  %3044 = vmatprep.subr.mxu0 0.0
  %3045 = vmatpush1.msra.mxu0 %v2588
  %3046 = vmatprep.subr.mxu0 0.0
  %3047 = vmatpush1.msra.mxu0 %v2589
  %3048 = vmatprep.subr.mxu0 0.0
  %3049 = vmatpush1.msra.mxu0 %v2590
  %3050 = vmatprep.subr.mxu0 0.0
  %3051 = vmatpush1.msra.mxu0 %v2591
  %3052 = vmatprep.subr.mxu0 0.0
  %3053 = vmatpush1.msra.mxu0 %v2592
  %3054 = vmatprep.subr.mxu0 0.0
  %3055 = vmatpush1.msra.mxu0 %v2593
  %3056 = vmatprep.subr.mxu0 0.0
  %3057 = vmatpush1.msra.mxu0 %v2594
  %3058 = vmatprep.subr.mxu0 0.0
  %3059 = vmatpush1.msra.mxu0 %v2595
  %3060 = vmatprep.subr.mxu0 0.0
  %3061 = vmatpush1.msra.mxu0 %v2596
  %3062 = vmatprep.subr.mxu0 0.0
  %3063 = vmatpush1.msra.mxu0 %v2597
  %3064 = vmatprep.subr.mxu0 0.0
  %3065 = vmatpush1.msra.mxu0 %v2598
  %3066 = vmatprep.mubr.f32.mxu0 %v2416
  %3067 = vmatmul.mubr.f32.gmra.mrb[0].mxu0 %v2415
  %v3068 = vpop.f32.mrb[0].mxu0
  %v3069 = vadd.f32 %v2994, %v3068
  %v3070 = vpop.f32.mrb[0].mxu0
  %3071 = vmatprep.mubr.f32.mxu0 %v2432
  %3072 = vmatmul.mubr.f32.gmra.mrb[0].mxu0 %v2431
  %v3073 = vpop.f32.mrb[0].mxu0
  %v3074 = vadd.f32 %v2999, %v3073
  %v3075 = vpop.f32.mrb[0].mxu0
  %3076 = vdwg.mxu0
  %3077 = vmatprep.subr.mxu0 0.0
  %3078 = vmatpush1.msra.mxu0 %v2599
  %3079 = vmatprep.subr.mxu0 0.0
  %3080 = vmatpush1.msra.mxu0 %v2600
  %3081 = vmatprep.subr.mxu0 0.0
  %3082 = vmatpush1.msra.mxu0 %v2601
  %3083 = vmatprep.subr.mxu0 0.0
  %3084 = vmatpush1.msra.mxu0 %v2602
  %3085 = vmatprep.subr.mxu0 0.0
  %3086 = vmatpush1.msra.mxu0 %v2603
  %3087 = vmatprep.subr.mxu0 0.0
  %3088 = vmatpush1.msra.mxu0 %v2604
  %3089 = vmatprep.subr.mxu0 0.0
  %3090 = vmatpush1.msra.mxu0 %v2605
  %3091 = vmatprep.subr.mxu0 0.0
  %3092 = vmatpush1.msra.mxu0 %v2606
  %3093 = vmatprep.subr.mxu0 0.0
  %3094 = vmatpush1.msra.mxu0 %v2607
  %3095 = vmatprep.subr.mxu0 0.0
  %3096 = vmatpush1.msra.mxu0 %v2608
  %3097 = vmatprep.subr.mxu0 0.0
  %3098 = vmatpush1.msra.mxu0 %v2609
  %3099 = vmatprep.subr.mxu0 0.0
  %3100 = vmatpush1.msra.mxu0 %v2610
  %3101 = vmatprep.subr.mxu0 0.0
  %3102 = vmatpush1.msra.mxu0 %v2611
  %3103 = vmatprep.subr.mxu0 0.0
  %3104 = vmatpush1.msra.mxu0 %v2612
  %3105 = vmatprep.subr.mxu0 0.0
  %3106 = vmatpush1.msra.mxu0 %v2613
  %3107 = vmatprep.subr.mxu0 0.0
  %3108 = vmatpush1.msra.mxu0 %v2614
  %3109 = vmatprep.subr.mxu0 0.0
  %3110 = vmatpush1.msra.mxu0 %v2615
  %3111 = vmatprep.subr.mxu0 0.0
  %3112 = vmatpush1.msra.mxu0 %v2616
  %3113 = vmatprep.subr.mxu0 0.0
  %3114 = vmatpush1.msra.mxu0 %v2617
  %3115 = vmatprep.subr.mxu0 0.0
  %3116 = vmatpush1.msra.mxu0 %v2618
  %3117 = vmatprep.subr.mxu0 0.0
  %3118 = vmatpush1.msra.mxu0 %v2619
  %3119 = vmatprep.subr.mxu0 0.0
  %3120 = vmatpush1.msra.mxu0 %v2620
  %3121 = vmatprep.subr.mxu0 0.0
  %3122 = vmatpush1.msra.mxu0 %v2621
  %3123 = vmatprep.subr.mxu0 0.0
  %3124 = vmatpush1.msra.mxu0 %v2622
  %3125 = vmatprep.subr.mxu0 0.0
  %3126 = vmatpush1.msra.mxu0 %v2623
  %3127 = vmatprep.subr.mxu0 0.0
  %3128 = vmatpush1.msra.mxu0 %v2624
  %3129 = vmatprep.subr.mxu0 0.0
  %3130 = vmatpush1.msra.mxu0 %v2625
  %3131 = vmatprep.subr.mxu0 0.0
  %3132 = vmatpush1.msra.mxu0 %v2626
  %3133 = vmatprep.subr.mxu0 0.0
  %3134 = vmatpush1.msra.mxu0 %v2627
  %3135 = vmatprep.subr.mxu0 0.0
  %3136 = vmatpush1.msra.mxu0 %v2628
  %3137 = vmatprep.subr.mxu0 0.0
  %3138 = vmatpush1.msra.mxu0 %v2629
  %3139 = vmatprep.subr.mxu0 0.0
  %3140 = vmatpush1.msra.mxu0 %v2630
  %3141 = vmatprep.mubr.f32.mxu0 %v2418
  %3142 = vmatmul.mubr.f32.gmra.mrb[0].mxu0 %v2417
  %v3143 = vpop.f32.mrb[0].mxu0
  %v3144 = vadd.f32 %v3069, %v3143
  %v3145 = vpop.f32.mrb[0].mxu0
  %3146 = vmatprep.mubr.f32.mxu0 %v2434
  %3147 = vmatmul.mubr.f32.gmra.mrb[0].mxu0 %v2433
  %v3148 = vpop.f32.mrb[0].mxu0
  %v3149 = vadd.f32 %v3074, %v3148
  %v3150 = vpop.f32.mrb[0].mxu0
  %3151 = vdwg.mxu0
  %3152 = vmatprep.subr.mxu0 0.0
  %3153 = vmatpush1.msra.mxu0 %v2631
  %3154 = vmatprep.subr.mxu0 0.0
  %3155 = vmatpush1.msra.mxu0 %v2632
  %3156 = vmatprep.subr.mxu0 0.0
  %3157 = vmatpush1.msra.mxu0 %v2633
  %3158 = vmatprep.subr.mxu0 0.0
  %3159 = vmatpush1.msra.mxu0 %v2634
  %3160 = vmatprep.subr.mxu0 0.0
  %3161 = vmatpush1.msra.mxu0 %v2635
  %3162 = vmatprep.subr.mxu0 0.0
  %3163 = vmatpush1.msra.mxu0 %v2636
  %3164 = vmatprep.subr.mxu0 0.0
  %3165 = vmatpush1.msra.mxu0 %v2637
  %3166 = vmatprep.subr.mxu0 0.0
  %3167 = vmatpush1.msra.mxu0 %v2638
  %3168 = vmatprep.subr.mxu0 0.0
  %3169 = vmatpush1.msra.mxu0 %v2639
  %3170 = vmatprep.subr.mxu0 0.0
  %3171 = vmatpush1.msra.mxu0 %v2640
  %3172 = vmatprep.subr.mxu0 0.0
  %3173 = vmatpush1.msra.mxu0 %v2641
  %3174 = vmatprep.subr.mxu0 0.0
  %3175 = vmatpush1.msra.mxu0 %v2642
  %3176 = vmatprep.subr.mxu0 0.0
  %3177 = vmatpush1.msra.mxu0 %v2643
  %3178 = vmatprep.subr.mxu0 0.0
  %3179 = vmatpush1.msra.mxu0 %v2644
  %3180 = vmatprep.subr.mxu0 0.0
  %3181 = vmatpush1.msra.mxu0 %v2645
  %3182 = vmatprep.subr.mxu0 0.0
  %3183 = vmatpush1.msra.mxu0 %v2646
  %3184 = vmatprep.subr.mxu0 0.0
  %3185 = vmatpush1.msra.mxu0 %v2647
  %3186 = vmatprep.subr.mxu0 0.0
  %3187 = vmatpush1.msra.mxu0 %v2648
  %3188 = vmatprep.subr.mxu0 0.0
  %3189 = vmatpush1.msra.mxu0 %v2649
  %3190 = vmatprep.subr.mxu0 0.0
  %3191 = vmatpush1.msra.mxu0 %v2650
  %3192 = vmatprep.subr.mxu0 0.0
  %3193 = vmatpush1.msra.mxu0 %v2651
  %3194 = vmatprep.subr.mxu0 0.0
  %3195 = vmatpush1.msra.mxu0 %v2652
  %3196 = vmatprep.subr.mxu0 0.0
  %3197 = vmatpush1.msra.mxu0 %v2653
  %3198 = vmatprep.subr.mxu0 0.0
  %3199 = vmatpush1.msra.mxu0 %v2654
  %3200 = vmatprep.subr.mxu0 0.0
  %3201 = vmatpush1.msra.mxu0 %v2655
  %3202 = vmatprep.subr.mxu0 0.0
  %3203 = vmatpush1.msra.mxu0 %v2656
  %3204 = vmatprep.subr.mxu0 0.0
  %3205 = vmatpush1.msra.mxu0 %v2657
  %3206 = vmatprep.subr.mxu0 0.0
  %3207 = vmatpush1.msra.mxu0 %v2658
  %3208 = vmatprep.subr.mxu0 0.0
  %3209 = vmatpush1.msra.mxu0 %v2659
  %3210 = vmatprep.subr.mxu0 0.0
  %3211 = vmatpush1.msra.mxu0 %v2660
  %3212 = vmatprep.subr.mxu0 0.0
  %3213 = vmatpush1.msra.mxu0 %v2661
  %3214 = vmatprep.subr.mxu0 0.0
  %3215 = vmatpush1.msra.mxu0 %v2662
  %3216 = vmatprep.mubr.f32.mxu0 %v2420
  %3217 = vmatmul.mubr.f32.gmra.mrb[0].mxu0 %v2419
  %v3218 = vpop.f32.mrb[0].mxu0
  %v3219 = vadd.f32 %v3144, %v3218
  %v3220 = vpop.f32.mrb[0].mxu0
  %3221 = vmatprep.mubr.f32.mxu0 %v2436
  %3222 = vmatmul.mubr.f32.gmra.mrb[0].mxu0 %v2435
  %v3223 = vpop.f32.mrb[0].mxu0
  %v3224 = vadd.f32 %v3149, %v3223
  %v3225 = vpop.f32.mrb[0].mxu0
  %3226 = vdwg.mxu0
  %3227 = vmatprep.subr.mxu0 0.0
  %3228 = vmatpush1.msra.mxu0 %v2663
  %3229 = vmatprep.subr.mxu0 0.0
  %3230 = vmatpush1.msra.mxu0 %v2664
  %3231 = vmatprep.subr.mxu0 0.0
  %3232 = vmatpush1.msra.mxu0 %v2665
  %3233 = vmatprep.subr.mxu0 0.0
  %3234 = vmatpush1.msra.mxu0 %v2666
  %3235 = vmatprep.subr.mxu0 0.0
  %3236 = vmatpush1.msra.mxu0 %v2667
  %3237 = vmatprep.subr.mxu0 0.0
  %3238 = vmatpush1.msra.mxu0 %v2668
  %3239 = vmatprep.subr.mxu0 0.0
  %3240 = vmatpush1.msra.mxu0 %v2669
  %3241 = vmatprep.subr.mxu0 0.0
  %3242 = vmatpush1.msra.mxu0 %v2670
  %3243 = vmatprep.subr.mxu0 0.0
  %3244 = vmatpush1.msra.mxu0 %v2671
  %3245 = vmatprep.subr.mxu0 0.0
  %3246 = vmatpush1.msra.mxu0 %v2672
  %3247 = vmatprep.subr.mxu0 0.0
  %3248 = vmatpush1.msra.mxu0 %v2673
  %3249 = vmatprep.subr.mxu0 0.0
  %3250 = vmatpush1.msra.mxu0 %v2674
  %3251 = vmatprep.subr.mxu0 0.0
  %3252 = vmatpush1.msra.mxu0 %v2675
  %3253 = vmatprep.subr.mxu0 0.0
  %3254 = vmatpush1.msra.mxu0 %v2676
  %3255 = vmatprep.subr.mxu0 0.0
  %3256 = vmatpush1.msra.mxu0 %v2677
  %3257 = vmatprep.subr.mxu0 0.0
  %3258 = vmatpush1.msra.mxu0 %v2678
  %3259 = vmatprep.subr.mxu0 0.0
  %3260 = vmatpush1.msra.mxu0 %v2679
  %3261 = vmatprep.subr.mxu0 0.0
  %3262 = vmatpush1.msra.mxu0 %v2680
  %3263 = vmatprep.subr.mxu0 0.0
  %3264 = vmatpush1.msra.mxu0 %v2681
  %3265 = vmatprep.subr.mxu0 0.0
  %3266 = vmatpush1.msra.mxu0 %v2682
  %3267 = vmatprep.subr.mxu0 0.0
  %3268 = vmatpush1.msra.mxu0 %v2683
  %3269 = vmatprep.subr.mxu0 0.0
  %3270 = vmatpush1.msra.mxu0 %v2684
  %3271 = vmatprep.subr.mxu0 0.0
  %3272 = vmatpush1.msra.mxu0 %v2685
  %3273 = vmatprep.subr.mxu0 0.0
  %3274 = vmatpush1.msra.mxu0 %v2686
  %3275 = vmatprep.subr.mxu0 0.0
  %3276 = vmatpush1.msra.mxu0 %v2687
  %3277 = vmatprep.subr.mxu0 0.0
  %3278 = vmatpush1.msra.mxu0 %v2688
  %3279 = vmatprep.subr.mxu0 0.0
  %3280 = vmatpush1.msra.mxu0 %v2689
  %3281 = vmatprep.subr.mxu0 0.0
  %3282 = vmatpush1.msra.mxu0 %v2690
  %3283 = vmatprep.subr.mxu0 0.0
  %3284 = vmatpush1.msra.mxu0 %v2691
  %3285 = vmatprep.subr.mxu0 0.0
  %3286 = vmatpush1.msra.mxu0 %v2692
  %3287 = vmatprep.subr.mxu0 0.0
  %3288 = vmatpush1.msra.mxu0 %v2693
  %3289 = vmatprep.subr.mxu0 0.0
  %3290 = vmatpush1.msra.mxu0 %v2694
  %3291 = vmatprep.mubr.f32.mxu0 %v2422
  %3292 = vmatmul.mubr.f32.gmra.mrb[0].mxu0 %v2421
  %v3293 = vpop.f32.mrb[0].mxu0
  %v3294 = vadd.f32 %v3219, %v3293
  %v3295 = vpop.f32.mrb[0].mxu0
  %3296 = vmatprep.mubr.f32.mxu0 %v2438
  %3297 = vmatmul.mubr.f32.gmra.mrb[0].mxu0 %v2437
  %v3298 = vpop.f32.mrb[0].mxu0
  %v3299 = vadd.f32 %v3224, %v3298
  %v3300 = vpop.f32.mrb[0].mxu0
  %3301 = vdwg.mxu0
  %v3302 = vadd.f32 %v1635, %v3294
  %v3303 = vadd.f32 %v1636, %v3299
  %v3304 = vsel %vm57, %v3302, 0.0
  %3305 = vadd.xlane.f32.xlu0 %v3304
  %v3306 = vpop.xlane.xlu0 %3305
  %v3307 = vsel %vm57, %v3303, 0.0
  %3308 = vadd.xlane.f32.xlu0 %v3307
  %v3309 = vpop.xlane.xlu0 %3308
  %v3310 = vmul.f32 %v3306, %v1598
  %v3311 = vmul.f32 %v3309, %v1598
  %v3312 = vsub.f32 %v3302, %v3310
  %v3313 = vsub.f32 %v3303, %v3311
  %v3314 = vmul.f32 %v3312, %v3312
  %v3315 = vmul.f32 %v3313, %v3313
  %v3316 = vsel %vm57, %v3314, 0.0
  %3317 = vadd.xlane.f32.xlu0 %v3316
  %v3318 = vpop.xlane.xlu0 %3317
  %v3319 = vsel %vm57, %v3315, 0.0
  %3320 = vadd.xlane.f32.xlu0 %v3319
  %v3321 = vpop.xlane.xlu0 %3320
  %v3322 = vmul.f32 %v3318, %v1598
  %v3323 = vmul.f32 %v3321, %v1598
  %v3324 = vadd.f32 %v3322, 1e-05
  %v3325 = vadd.f32 %v3323, 1e-05
  %v3326 = vrsqrt.pop %v3324
  %v3327 = vrsqrt.pop %v3325
  %v3328 = vmul.f32 %v3312, %v3326
  %v3329 = vmul.f32 %v3313, %v3327
  %v3330 = vld [vmem:[%s11] sm:$0x1]
  %v3332 = vlaneseq
  %v3333 = vshrl.u32 %v3332, 7
  %v3334 = vsub.s32 0, %v3333
  %v3335 = vrot.slane %v3330, %v3334
  %v3337 = vmul.f32 %v3328, %v3335
  %v3338 = vmul.f32 %v3329, %v3335
  %v3339 = vld [vmem:[%s12] sm:$0x1]
  %v3341 = vlaneseq
  %v3342 = vshrl.u32 %v3341, 7
  %v3343 = vsub.s32 0, %v3342
  %v3344 = vrot.slane %v3339, %v3343
  %v3346 = vadd.f32 %v3337, %v3344
  %v3347 = vadd.f32 %v3338, %v3344
  %3348 = vst.msk [vmem:[%s13] sm:$0xff] %vm57, %v3346
  %3349 = vst.msk [vmem:[%s13 + $0x8] sm:$0xff] %vm57, %v3347
  // Predicated region
  $region54: #{ppo_transformer_forward.6} parent=0 // pred_check
    _
  $region55: #{ppo_transformer_forward.6} parent=0 // pred_check_branch
    %3351 = sbr.rel (0) target = $region57
  $region56: #{ppo_transformer_forward.6} parent=0 // pred_region
    _
  $region57: #{ppo_transformer_forward.6} parent=0 // pred_fallthru
    _
  // Predicated region
  $region58: #{ppo_transformer_forward.6} parent=0 // pred_check
    _
  $region59: #{ppo_transformer_forward.6} parent=0 // pred_check_branch
    %3353 = sbr.rel (0) target = $region61
  $region60: #{ppo_transformer_forward.6} parent=0 // pred_region
    _
  $region61: #{ppo_transformer_forward.6} parent=0 // pred_fallthru
    _

</llo_original>
